<compile_context>
chip_gen: v6e
topology: v6e:2x2x1
jax: 0.10.0
libtpu: 0.0.40
codegen_flags: <defaults>
</compile_context>

<pallas_src>
import functools

import numpy as np
import jax
import jax.numpy as jnp
from jax.experimental import pallas as pl
from jax.experimental.pallas import tpu as pltpu

K = 4  # ConvTranspose2d kernel size for every layer


def _round_up(v, m):
    return (v + m - 1) // m * m


# ----------------------------------------------------------------------------
# Pallas kernel: the entire generator forward, BB samples per grid step.
# ----------------------------------------------------------------------------
def _fused_kernel(x_ref, w0_ref, sc0_ref, b0_ref,
                  mt1_ref, sc1_ref, b1_ref,
                  mt2_ref, sc2_ref, b2_ref,
                  mt3_ref, sc3_ref, b3_ref,
                  mt4_ref, out_ref,
                  st0, st1, st2, st3, *, bb, k, sizes):
    f32 = jnp.float32
    cdt = st0.dtype                      # compute dtype of stored activations (bf16)
    w1, w2, w3, w4, w5 = sizes[1], sizes[2], sizes[3], sizes[4], sizes[5]

    # ---- layer 0: ConvT on a 1x1 input == dense latent expansion (one MXU dot)
    z0 = jnp.dot(x_ref[...], w0_ref[...], preferred_element_type=f32)  # (bb, k*ch0)
    a0 = jnp.maximum(z0 * sc0_ref[...] + b0_ref[...], 0.0)
    ch0 = st0.shape[1]                   # C1 * H1_in
    # width-dilate for the stride-2 layer 1 (+ K-1 pad): zero scratch + offset stores
    st0[...] = jnp.zeros_like(st0)
    for xi in range(w1):
        r = (2 * xi + k - 1) * bb
        st0[r:r + bb, :] = a0[:, xi * ch0:(xi + 1) * ch0].astype(cdt)

    def deconv(src, mt_ref, w_out):
        # out[x*bb + b, (c',y)] = sum_kx src[(x+kx)*bb + b, (c,iy)] @ MT[kx]
        acc = jnp.dot(src[0:w_out * bb, :], mt_ref[0], preferred_element_type=f32)
        for kx in range(1, k):
            acc = acc + jnp.dot(src[kx * bb:(kx + w_out) * bb, :], mt_ref[kx],
                                preferred_element_type=f32)
        return acc

    # ---- layer 1: ConvT s2 + BN + ReLU (next layer stride 2) ----------------
    a1 = jnp.maximum(deconv(st0, mt1_ref, w2) * sc1_ref[...] + b1_ref[...], 0.0)
    st1[...] = jnp.zeros_like(st1)
    for xi in range(w2):
        r = (2 * xi + k - 1) * bb
        st1[r:r + bb, :] = a1[xi * bb:(xi + 1) * bb, :].astype(cdt)

    # ---- layer 2: ConvT s2 + BN + ReLU (next layer stride 1: offset copy) ---
    a2 = jnp.maximum(deconv(st1, mt2_ref, w3) * sc2_ref[...] + b2_ref[...], 0.0)
    pad = (k - 1) * bb
    st2[0:pad, :] = jnp.zeros((pad, st2.shape[1]), cdt)
    st2[pad + w3 * bb:pad + w3 * bb + pad, :] = jnp.zeros((pad, st2.shape[1]), cdt)
    st2[pad:pad + w3 * bb, :] = a2.astype(cdt)

    # ---- layer 3: ConvT s1 + BN + ReLU ---------------------------------------
    a3 = jnp.maximum(deconv(st2, mt3_ref, w4) * sc3_ref[...] + b3_ref[...], 0.0)
    st3[0:pad, :] = jnp.zeros((pad, st3.shape[1]), cdt)
    st3[pad + w4 * bb:pad + w4 * bb + pad, :] = jnp.zeros((pad, st3.shape[1]), cdt)
    st3[pad:pad + w4 * bb, :] = a3.astype(cdt)

    # ---- layer 4: final ConvT, no BN / activation; lane-dense (128-padded) ---
    a4 = deconv(st3, mt4_ref, w5)                     # (w5*bb, out_cols_pad)
    out_ref[0] = a4.astype(out_ref.dtype)


# ----------------------------------------------------------------------------
# One-time parameter preparation (numpy, outside the forward path).
# ----------------------------------------------------------------------------
def _build_mt(w, stride, h_in, h_out):
    """Fold channel mixing + kernel-row conv + height dilation/pad of one ConvT layer.

    w: (Cin, Cout, K, K) PyTorch ConvTranspose2d weight.
    Returns MT of shape (K, Cin*h_in, Cout*h_out) with
      MT[kx, c*h_in + iy, c'*h_out + y] = w[c, c', y - stride*iy, K-1-kx]
    whenever 0 <= y - stride*iy < K, else 0.
    """
    cin_l, cout_l, k, _ = w.shape
    mt = np.zeros((k, cin_l * h_in, cout_l * h_out), np.float32)
    rows = np.arange(cin_l) * h_in
    cols = np.arange(cout_l) * h_out
    for kx in range(k):
        for iy in range(h_in):
            for y in range(h_out):
                d = y - stride * iy
                if 0 <= d < k:
                    mt[kx][np.ix_(rows + iy, cols + y)] = w[:, :, d, k - 1 - kx]
    return mt


def _fold_bn(gamma, beta, mean, var, eps=1e-5):
    scale = gamma / jnp.sqrt(var + eps)
    return scale, beta - mean * scale


def init_params(key, in_channels, mid_channels, out_channels):
    chans = [in_channels, mid_channels * 8, mid_channels * 4,
             mid_channels * 2, mid_channels, out_channels]
    strides = [1, 2, 2, 1, 1]
    params = []
    for i in range(5):
        key, k_w, k_g, k_b, k_m, k_v = jax.random.split(key, 6)
        w = 0.05 * jax.random.normal(k_w, (chans[i], chans[i + 1], 4, 4), jnp.float32)
        if i < 4:  # layers followed by BatchNorm
            gamma = 1.0 + 0.1 * jax.random.normal(k_g, (chans[i + 1],), jnp.float32)
            beta = 0.1 * jax.random.normal(k_b, (chans[i + 1],), jnp.float32)
            mean = 0.1 * jax.random.normal(k_m, (chans[i + 1],), jnp.float32)
            var = jnp.abs(jax.random.normal(k_v, (chans[i + 1],), jnp.float32)) + 0.5
            scale, bias = _fold_bn(gamma, beta, mean, var)
        else:      # final ConvTranspose: no BN, no activation (kwarg default)
            scale = jnp.ones((chans[i + 1],), jnp.float32)
            bias = jnp.zeros((chans[i + 1],), jnp.float32)
        params.append((w, scale, bias, strides[i]))
    return params


def prepare_params(params, compute_dtype=jnp.bfloat16):
    """Pack PyTorch-style params into the layouts the fused kernel consumes."""
    ws = [np.asarray(p[0], np.float32) for p in params]
    scales = [np.asarray(p[1], np.float32) for p in params]
    biases = [np.asarray(p[2], np.float32) for p in params]
    strides = [int(p[3]) for p in params]

    sizes = [1]
    for s in strides:
        sizes.append((sizes[-1] - 1) * s + K)          # [1, 4, 10, 22, 25, 28]

    cin, c1 = ws[0].shape[0], ws[0].shape[1]
    c_out = ws[4].shape[1]
    hw = sizes[5]
    out_cols = c_out * hw
    out_cols_pad = _round_up(out_cols, 128)            # lane-dense output stores

    packed = {
        "sizes": sizes,
        "strides": strides,
        "cin": cin,
        "c_out": c_out,
        "out_cols": out_cols,
        "out_cols_pad": out_cols_pad,
        "compute_dtype": compute_dtype,
        # layer-0 dense expansion: w0[i, x*(C1*H0) + c1*H0 + y] = W0[i, c1, y, x]
        "w0": jnp.asarray(
            np.transpose(ws[0], (0, 3, 1, 2)).reshape(cin, K * c1 * sizes[1])),
        "sc0": jnp.asarray(np.tile(np.repeat(scales[0], sizes[1]), K)[None, :]),
        "b0": jnp.asarray(np.tile(np.repeat(biases[0], sizes[1]), K)[None, :]),
    }
    # folded deconv matrices for layers 1..4 (bf16), BN scale/bias per layer (f32)
    for l in range(1, 5):
        mt = _build_mt(ws[l], strides[l], sizes[l], sizes[l + 1])
        if l == 4:
            mt = np.pad(mt, ((0, 0), (0, 0), (0, out_cols_pad - out_cols)))
        packed[f"mt{l}"] = jnp.asarray(mt, dtype=compute_dtype)
        if l < 4:
            packed[f"sc{l}"] = jnp.asarray(np.repeat(scales[l], sizes[l + 1])[None, :])
            packed[f"b{l}"] = jnp.asarray(np.repeat(biases[l], sizes[l + 1])[None, :])
    return packed


# ----------------------------------------------------------------------------
# Forward pass: one pallas_call for the whole network, BB samples per grid step.
# ----------------------------------------------------------------------------
def _const_spec(a):
    if a.ndim == 2:
        return pl.BlockSpec(a.shape, lambda i: (0, 0))
    return pl.BlockSpec(a.shape, lambda i: (0, 0, 0))


def model_forward(x, packed, block_batch=16):
    x = x.reshape(x.shape[0], -1).astype(jnp.float32)   # == x.view(N, -1, 1, 1)
    n, cin = x.shape
    sizes = packed["sizes"]
    strides = packed["strides"]
    hw = sizes[5]
    c_out = packed["c_out"]
    out_cols = packed["out_cols"]
    out_cols_pad = packed["out_cols_pad"]
    cdt = packed["compute_dtype"]

    # samples per grid step: multiple of 16 keeps every bf16 row slice aligned to the
    # 16-row sublane packing and gives the MXU an M dim of 160..448 rows.
    bb = _round_up(max(8, min(block_batch, n)), 16)
    n_pad = _round_up(n, bb)
    if n_pad != n:
        x = jnp.pad(x, ((0, n_pad - n), (0, 0)))
    n_blk = n_pad // bb

    consts = [packed[name] for name in
              ("w0", "sc0", "b0",
               "mt1", "sc1", "b1",
               "mt2", "sc2", "b2",
               "mt3", "sc3", "b3",
               "mt4")]

    in_specs = [pl.BlockSpec((bb, cin), lambda i: (i, 0))]
    in_specs += [_const_spec(a) for a in consts]
    # NOTE: the constant specs re-use the same block every step; at these sizes the
    # (double-buffered) residency is < 2 MiB so no pl.Buffered(1) override is needed.

    # width-dilated + padded activation scratch, rows = x_stored*bb + b
    scratch_shapes = []
    for l in range(4):
        w_stored = (sizes[l + 1] - 1) * strides[l + 1] + 2 * K - 1
        cols = packed[f"mt{l + 1}"].shape[1]
        scratch_shapes.append(pltpu.VMEM((w_stored * bb, cols), cdt))

    out = pl.pallas_call(
        functools.partial(_fused_kernel, bb=bb, k=K, sizes=tuple(sizes)),
        out_shape=jax.ShapeDtypeStruct((n_blk, hw * bb, out_cols_pad), jnp.float32),
        grid=(n_blk,),
        in_specs=in_specs,
        out_specs=pl.BlockSpec((1, hw * bb, out_cols_pad), lambda i: (i, 0, 0)),
        scratch_shapes=scratch_shapes,
        compiler_params=pltpu.CompilerParams(
            dimension_semantics=("parallel",)),
    )(x, *consts)

    # out[blk, x*bb + b, c*hw + y (+ lane pad)]  ->  NCHW (n, c, y, x)
    out = out.reshape(n_blk, hw, bb, out_cols_pad)[..., :out_cols]
    out = out.reshape(n_blk, hw, bb, c_out, hw)
    out = jnp.transpose(out, (0, 2, 3, 4, 1)).reshape(n_pad, c_out, hw, hw)
    return out[:n]


# ----------------------------------------------------------------------------
# Pure-JAX reference (XLA conv) for numerical validation.
# ----------------------------------------------------------------------------
def reference_forward(x, params):
    n = x.shape[0]
    h = x.reshape(n, -1, 1, 1).astype(jnp.float32)  # NCHW
    for i, (w, scale, bias, stride) in enumerate(params):
        k = w.shape[2]
        rhs = jnp.flip(jnp.transpose(w, (1, 0, 2, 3)), axis=(2, 3))  # OIHW
        h = jax.lax.conv_general_dilated(
            h, rhs, window_strides=(1, 1),
            padding=[(k - 1, k - 1), (k - 1, k - 1)],
            lhs_dilation=(stride, stride),
            dimension_numbers=("NCHW", "OIHW", "NCHW"),
            precision=jax.lax.Precision.HIGHEST)
        h = h * scale[None, :, None, None] + bias[None, :, None, None]
        if i < 4:
            h = jnp.maximum(h, 0.0)
    return h


if __name__ == "__main__":
    batch = 2
    in_channels = 16
    mid_channels = 4
    out_channels = 3

    key = jax.random.PRNGKey(0)
    key_p, key_x = jax.random.split(key)
    params = init_params(key_p, in_channels, mid_channels, out_channels)
    packed = prepare_params(params)
    x = jax.random.normal(key_x, (batch, in_channels), jnp.float32)

    out = jax.block_until_ready(model_forward(x, packed))
    assert out.shape == (batch, out_channels, 28, 28), out.shape

    ref = jax.block_until_ready(reference_forward(x, params))
    # bf16 weights/activations across 4 folded layers -> slightly loosened tolerance.
    np.testing.assert_allclose(np.asarray(out), np.asarray(ref),
                               rtol=5e-2, atol=5e-3)

    print("KERNEL_OK")
</pallas_src>

<mosaic_0001>
module attributes {stable_mosaic.version = 11 : i64} {
  func.func @_fused_kernel(%arg0: i32, %arg1: memref<16x16xf32, #tpu.memory_space<vmem>>, %arg2: memref<16x512xf32, #tpu.memory_space<vmem>>, %arg3: memref<1x512xf32, #tpu.memory_space<vmem>>, %arg4: memref<1x512xf32, #tpu.memory_space<vmem>>, %arg5: memref<4x128x160xbf16, #tpu.memory_space<vmem>>, %arg6: memref<1x160xf32, #tpu.memory_space<vmem>>, %arg7: memref<1x160xf32, #tpu.memory_space<vmem>>, %arg8: memref<4x160x176xbf16, #tpu.memory_space<vmem>>, %arg9: memref<1x176xf32, #tpu.memory_space<vmem>>, %arg10: memref<1x176xf32, #tpu.memory_space<vmem>>, %arg11: memref<4x176x100xbf16, #tpu.memory_space<vmem>>, %arg12: memref<1x100xf32, #tpu.memory_space<vmem>>, %arg13: memref<1x100xf32, #tpu.memory_space<vmem>>, %arg14: memref<4x100x128xbf16, #tpu.memory_space<vmem>>, %arg15: memref<1x448x128xf32, #tpu.memory_space<vmem>>, %arg16: memref<208x128xbf16, #tpu.memory_space<vmem>>, %arg17: memref<400x160xbf16, #tpu.memory_space<vmem>>, %arg18: memref<448x176xbf16, #tpu.memory_space<vmem>>, %arg19: memref<496x100xbf16, #tpu.memory_space<vmem>>) attributes {dimension_semantics = [#tpu.dimension_semantics<parallel>], iteration_bounds = array<i64: 1>, scalar_prefetch = 0 : i64, scratch_operands = 4 : i64, tpu.core_type = #tpu.core_type<tc>, window_params = [{transform_indices = @transform_0, window_bounds = array<i64: 16, 16>}, {pipeline_mode = #tpu.pipeline_mode<synchronous>, transform_indices = @transform_1, window_bounds = array<i64: 16, 512>}, {pipeline_mode = #tpu.pipeline_mode<synchronous>, transform_indices = @transform_2, window_bounds = array<i64: 1, 512>}, {pipeline_mode = #tpu.pipeline_mode<synchronous>, transform_indices = @transform_3, window_bounds = array<i64: 1, 512>}, {pipeline_mode = #tpu.pipeline_mode<synchronous>, transform_indices = @transform_4, window_bounds = array<i64: 4, 128, 160>}, {pipeline_mode = #tpu.pipeline_mode<synchronous>, transform_indices = @transform_5, window_bounds = array<i64: 1, 160>}, {pipeline_mode = #tpu.pipeline_mode<synchronous>, transform_indices = @transform_6, window_bounds = array<i64: 1, 160>}, {pipeline_mode = #tpu.pipeline_mode<synchronous>, transform_indices = @transform_7, window_bounds = array<i64: 4, 160, 176>}, {pipeline_mode = #tpu.pipeline_mode<synchronous>, transform_indices = @transform_8, window_bounds = array<i64: 1, 176>}, {pipeline_mode = #tpu.pipeline_mode<synchronous>, transform_indices = @transform_9, window_bounds = array<i64: 1, 176>}, {pipeline_mode = #tpu.pipeline_mode<synchronous>, transform_indices = @transform_10, window_bounds = array<i64: 4, 176, 100>}, {pipeline_mode = #tpu.pipeline_mode<synchronous>, transform_indices = @transform_11, window_bounds = array<i64: 1, 100>}, {pipeline_mode = #tpu.pipeline_mode<synchronous>, transform_indices = @transform_12, window_bounds = array<i64: 1, 100>}, {pipeline_mode = #tpu.pipeline_mode<synchronous>, transform_indices = @transform_13, window_bounds = array<i64: 4, 100, 128>}, {transform_indices = @transform_14, window_bounds = array<i64: 1, 448, 128>}]} {
    %c0 = arith.constant 0 : index
    %c0_0 = arith.constant 0 : index
    %0 = vector.load %arg1[%c0, %c0_0] : memref<16x16xf32, #tpu.memory_space<vmem>>, vector<16x16xf32>
    %c0_1 = arith.constant 0 : index
    %c0_2 = arith.constant 0 : index
    %1 = vector.load %arg2[%c0_1, %c0_2] : memref<16x512xf32, #tpu.memory_space<vmem>>, vector<16x512xf32>
    %cst = arith.constant dense<0.000000e+00> : vector<16x512xf32>
    %2 = tpu.matmul %0, %1, %cst {dimension_numbers = #tpu.dot_dimension_numbers<[1], [0], [0], [1], [0, 0, 1, 1], [], []>} : vector<16x16xf32>, vector<16x512xf32>, vector<16x512xf32> -> vector<16x512xf32>
    %c0_3 = arith.constant 0 : index
    %c0_4 = arith.constant 0 : index
    %3 = vector.load %arg3[%c0_3, %c0_4] : memref<1x512xf32, #tpu.memory_space<vmem>>, vector<1x512xf32>
    %4 = vector.broadcast %3 : vector<1x512xf32> to vector<16x512xf32>
    %5 = arith.mulf %2, %4 : vector<16x512xf32>
    %c0_5 = arith.constant 0 : index
    %c0_6 = arith.constant 0 : index
    %6 = vector.load %arg4[%c0_5, %c0_6] : memref<1x512xf32, #tpu.memory_space<vmem>>, vector<1x512xf32>
    %7 = vector.broadcast %6 : vector<1x512xf32> to vector<16x512xf32>
    %8 = arith.addf %5, %7 : vector<16x512xf32>
    %cst_7 = arith.constant 0.000000e+00 : f32
    %9 = vector.broadcast %cst_7 : f32 to vector<16x512xf32>
    %10 = arith.maximumf %8, %9 : vector<16x512xf32>
    %cst_8 = arith.constant 0.000000e+00 : bf16
    %11 = vector.broadcast %cst_8 : bf16 to vector<208x128xbf16>
    %c0_9 = arith.constant 0 : index
    %c0_10 = arith.constant 0 : index
    %12 = vector.load %arg16[%c0_9, %c0_10] : memref<208x128xbf16, #tpu.memory_space<vmem>>, vector<208x128xbf16>
    tpu.vector_store %arg16[%c0_9, %c0_10], %11 {strides = array<i32>} : memref<208x128xbf16, #tpu.memory_space<vmem>>, vector<208x128xbf16>,
    %13 = vector.extract_strided_slice %10 {offsets = [0, 0], sizes = [16, 128], strides = [1, 1]} : vector<16x512xf32> to vector<16x128xf32>
    %14 = arith.truncf %13 : vector<16x128xf32> to vector<16x128xbf16>
    %c48 = arith.constant 48 : index
    %c0_11 = arith.constant 0 : index
    %15 = vector.load %arg16[%c48, %c0_11] : memref<208x128xbf16, #tpu.memory_space<vmem>>, vector<16x128xbf16>
    tpu.vector_store %arg16[%c48, %c0_11], %14 {strides = array<i32>} : memref<208x128xbf16, #tpu.memory_space<vmem>>, vector<16x128xbf16>,
    %16 = vector.extract_strided_slice %10 {offsets = [0, 128], sizes = [16, 128], strides = [1, 1]} : vector<16x512xf32> to vector<16x128xf32>
    %17 = arith.truncf %16 : vector<16x128xf32> to vector<16x128xbf16>
    %c80 = arith.constant 80 : index
    %c0_12 = arith.constant 0 : index
    %18 = vector.load %arg16[%c80, %c0_12] : memref<208x128xbf16, #tpu.memory_space<vmem>>, vector<16x128xbf16>
    tpu.vector_store %arg16[%c80, %c0_12], %17 {strides = array<i32>} : memref<208x128xbf16, #tpu.memory_space<vmem>>, vector<16x128xbf16>,
    %19 = vector.extract_strided_slice %10 {offsets = [0, 256], sizes = [16, 128], strides = [1, 1]} : vector<16x512xf32> to vector<16x128xf32>
    %20 = arith.truncf %19 : vector<16x128xf32> to vector<16x128xbf16>
    %c112 = arith.constant 112 : index
    %c0_13 = arith.constant 0 : index
    %21 = vector.load %arg16[%c112, %c0_13] : memref<208x128xbf16, #tpu.memory_space<vmem>>, vector<16x128xbf16>
    tpu.vector_store %arg16[%c112, %c0_13], %20 {strides = array<i32>} : memref<208x128xbf16, #tpu.memory_space<vmem>>, vector<16x128xbf16>,
    %22 = vector.extract_strided_slice %10 {offsets = [0, 384], sizes = [16, 128], strides = [1, 1]} : vector<16x512xf32> to vector<16x128xf32>
    %23 = arith.truncf %22 : vector<16x128xf32> to vector<16x128xbf16>
    %c144 = arith.constant 144 : index
    %c0_14 = arith.constant 0 : index
    %24 = vector.load %arg16[%c144, %c0_14] : memref<208x128xbf16, #tpu.memory_space<vmem>>, vector<16x128xbf16>
    tpu.vector_store %arg16[%c144, %c0_14], %23 {strides = array<i32>} : memref<208x128xbf16, #tpu.memory_space<vmem>>, vector<16x128xbf16>,
    %c0_15 = arith.constant 0 : index
    %c0_16 = arith.constant 0 : index
    %25 = vector.load %arg16[%c0_15, %c0_16] : memref<208x128xbf16, #tpu.memory_space<vmem>>, vector<160x128xbf16>
    %c0_17 = arith.constant 0 : index
    %c0_18 = arith.constant 0 : index
    %c0_19 = arith.constant 0 : index
    %26 = vector.load %arg5[%c0_17, %c0_18, %c0_19] : memref<4x128x160xbf16, #tpu.memory_space<vmem>>, vector<1x128x160xbf16>
    %27 = vector.shape_cast %26 : vector<1x128x160xbf16> to vector<128x160xbf16>
    %cst_20 = arith.constant dense<0.000000e+00> : vector<160x160xf32>
    %28 = tpu.matmul %25, %27, %cst_20 {dimension_numbers = #tpu.dot_dimension_numbers<[1], [0], [0], [1], [0, 0, 1, 1], [], []>} : vector<160x128xbf16>, vector<128x160xbf16>, vector<160x160xf32> -> vector<160x160xf32>
    %c16 = arith.constant 16 : index
    %c0_21 = arith.constant 0 : index
    %29 = vector.load %arg16[%c16, %c0_21] : memref<208x128xbf16, #tpu.memory_space<vmem>>, vector<160x128xbf16>
    %c1 = arith.constant 1 : index
    %c0_22 = arith.constant 0 : index
    %c0_23 = arith.constant 0 : index
    %30 = vector.load %arg5[%c1, %c0_22, %c0_23] : memref<4x128x160xbf16, #tpu.memory_space<vmem>>, vector<1x128x160xbf16>
    %31 = vector.shape_cast %30 : vector<1x128x160xbf16> to vector<128x160xbf16>
    %cst_24 = arith.constant dense<0.000000e+00> : vector<160x160xf32>
    %32 = tpu.matmul %29, %31, %cst_24 {dimension_numbers = #tpu.dot_dimension_numbers<[1], [0], [0], [1], [0, 0, 1, 1], [], []>} : vector<160x128xbf16>, vector<128x160xbf16>, vector<160x160xf32> -> vector<160x160xf32>
    %33 = arith.addf %28, %32 : vector<160x160xf32>
    %c32 = arith.constant 32 : index
    %c0_25 = arith.constant 0 : index
    %34 = vector.load %arg16[%c32, %c0_25] : memref<208x128xbf16, #tpu.memory_space<vmem>>, vector<160x128xbf16>
    %c2 = arith.constant 2 : index
    %c0_26 = arith.constant 0 : index
    %c0_27 = arith.constant 0 : index
    %35 = vector.load %arg5[%c2, %c0_26, %c0_27] : memref<4x128x160xbf16, #tpu.memory_space<vmem>>, vector<1x128x160xbf16>
    %36 = vector.shape_cast %35 : vector<1x128x160xbf16> to vector<128x160xbf16>
    %cst_28 = arith.constant dense<0.000000e+00> : vector<160x160xf32>
    %37 = tpu.matmul %34, %36, %cst_28 {dimension_numbers = #tpu.dot_dimension_numbers<[1], [0], [0], [1], [0, 0, 1, 1], [], []>} : vector<160x128xbf16>, vector<128x160xbf16>, vector<160x160xf32> -> vector<160x160xf32>
    %38 = arith.addf %33, %37 : vector<160x160xf32>
    %c48_29 = arith.constant 48 : index
    %c0_30 = arith.constant 0 : index
    %39 = vector.load %arg16[%c48_29, %c0_30] : memref<208x128xbf16, #tpu.memory_space<vmem>>, vector<160x128xbf16>
    %c3 = arith.constant 3 : index
    %c0_31 = arith.constant 0 : index
    %c0_32 = arith.constant 0 : index
    %40 = vector.load %arg5[%c3, %c0_31, %c0_32] : memref<4x128x160xbf16, #tpu.memory_space<vmem>>, vector<1x128x160xbf16>
    %41 = vector.shape_cast %40 : vector<1x128x160xbf16> to vector<128x160xbf16>
    %cst_33 = arith.constant dense<0.000000e+00> : vector<160x160xf32>
    %42 = tpu.matmul %39, %41, %cst_33 {dimension_numbers = #tpu.dot_dimension_numbers<[1], [0], [0], [1], [0, 0, 1, 1], [], []>} : vector<160x128xbf16>, vector<128x160xbf16>, vector<160x160xf32> -> vector<160x160xf32>
    %43 = arith.addf %38, %42 : vector<160x160xf32>
    %c0_34 = arith.constant 0 : index
    %c0_35 = arith.constant 0 : index
    %44 = vector.load %arg6[%c0_34, %c0_35] : memref<1x160xf32, #tpu.memory_space<vmem>>, vector<1x160xf32>
    %45 = vector.broadcast %44 : vector<1x160xf32> to vector<160x160xf32>
    %46 = arith.mulf %43, %45 : vector<160x160xf32>
    %c0_36 = arith.constant 0 : index
    %c0_37 = arith.constant 0 : index
    %47 = vector.load %arg7[%c0_36, %c0_37] : memref<1x160xf32, #tpu.memory_space<vmem>>, vector<1x160xf32>
    %48 = vector.broadcast %47 : vector<1x160xf32> to vector<160x160xf32>
    %49 = arith.addf %46, %48 : vector<160x160xf32>
    %cst_38 = arith.constant 0.000000e+00 : f32
    %50 = vector.broadcast %cst_38 : f32 to vector<160x160xf32>
    %51 = arith.maximumf %49, %50 : vector<160x160xf32>
    %cst_39 = arith.constant 0.000000e+00 : bf16
    %52 = vector.broadcast %cst_39 : bf16 to vector<400x160xbf16>
    %c0_40 = arith.constant 0 : index
    %c0_41 = arith.constant 0 : index
    %53 = vector.load %arg17[%c0_40, %c0_41] : memref<400x160xbf16, #tpu.memory_space<vmem>>, vector<400x160xbf16>
    tpu.vector_store %arg17[%c0_40, %c0_41], %52 {strides = array<i32>} : memref<400x160xbf16, #tpu.memory_space<vmem>>, vector<400x160xbf16>,
    %54 = vector.extract_strided_slice %51 {offsets = [0, 0], sizes = [16, 160], strides = [1, 1]} : vector<160x160xf32> to vector<16x160xf32>
    %55 = arith.truncf %54 : vector<16x160xf32> to vector<16x160xbf16>
    %c48_42 = arith.constant 48 : index
    %c0_43 = arith.constant 0 : index
    %56 = vector.load %arg17[%c48_42, %c0_43] : memref<400x160xbf16, #tpu.memory_space<vmem>>, vector<16x160xbf16>
    tpu.vector_store %arg17[%c48_42, %c0_43], %55 {strides = array<i32>} : memref<400x160xbf16, #tpu.memory_space<vmem>>, vector<16x160xbf16>,
    %57 = vector.extract_strided_slice %51 {offsets = [16, 0], sizes = [16, 160], strides = [1, 1]} : vector<160x160xf32> to vector<16x160xf32>
    %58 = arith.truncf %57 : vector<16x160xf32> to vector<16x160xbf16>
    %c80_44 = arith.constant 80 : index
    %c0_45 = arith.constant 0 : index
    %59 = vector.load %arg17[%c80_44, %c0_45] : memref<400x160xbf16, #tpu.memory_space<vmem>>, vector<16x160xbf16>
    tpu.vector_store %arg17[%c80_44, %c0_45], %58 {strides = array<i32>} : memref<400x160xbf16, #tpu.memory_space<vmem>>, vector<16x160xbf16>,
    %60 = vector.extract_strided_slice %51 {offsets = [32, 0], sizes = [16, 160], strides = [1, 1]} : vector<160x160xf32> to vector<16x160xf32>
    %61 = arith.truncf %60 : vector<16x160xf32> to vector<16x160xbf16>
    %c112_46 = arith.constant 112 : index
    %c0_47 = arith.constant 0 : index
    %62 = vector.load %arg17[%c112_46, %c0_47] : memref<400x160xbf16, #tpu.memory_space<vmem>>, vector<16x160xbf16>
    tpu.vector_store %arg17[%c112_46, %c0_47], %61 {strides = array<i32>} : memref<400x160xbf16, #tpu.memory_space<vmem>>, vector<16x160xbf16>,
    %63 = vector.extract_strided_slice %51 {offsets = [48, 0], sizes = [16, 160], strides = [1, 1]} : vector<160x160xf32> to vector<16x160xf32>
    %64 = arith.truncf %63 : vector<16x160xf32> to vector<16x160xbf16>
    %c144_48 = arith.constant 144 : index
    %c0_49 = arith.constant 0 : index
    %65 = vector.load %arg17[%c144_48, %c0_49] : memref<400x160xbf16, #tpu.memory_space<vmem>>, vector<16x160xbf16>
    tpu.vector_store %arg17[%c144_48, %c0_49], %64 {strides = array<i32>} : memref<400x160xbf16, #tpu.memory_space<vmem>>, vector<16x160xbf16>,
    %66 = vector.extract_strided_slice %51 {offsets = [64, 0], sizes = [16, 160], strides = [1, 1]} : vector<160x160xf32> to vector<16x160xf32>
    %67 = arith.truncf %66 : vector<16x160xf32> to vector<16x160xbf16>
    %c176 = arith.constant 176 : index
    %c0_50 = arith.constant 0 : index
    %68 = vector.load %arg17[%c176, %c0_50] : memref<400x160xbf16, #tpu.memory_space<vmem>>, vector<16x160xbf16>
    tpu.vector_store %arg17[%c176, %c0_50], %67 {strides = array<i32>} : memref<400x160xbf16, #tpu.memory_space<vmem>>, vector<16x160xbf16>,
    %69 = vector.extract_strided_slice %51 {offsets = [80, 0], sizes = [16, 160], strides = [1, 1]} : vector<160x160xf32> to vector<16x160xf32>
    %70 = arith.truncf %69 : vector<16x160xf32> to vector<16x160xbf16>
    %c208 = arith.constant 208 : index
    %c0_51 = arith.constant 0 : index
    %71 = vector.load %arg17[%c208, %c0_51] : memref<400x160xbf16, #tpu.memory_space<vmem>>, vector<16x160xbf16>
    tpu.vector_store %arg17[%c208, %c0_51], %70 {strides = array<i32>} : memref<400x160xbf16, #tpu.memory_space<vmem>>, vector<16x160xbf16>,
    %72 = vector.extract_strided_slice %51 {offsets = [96, 0], sizes = [16, 160], strides = [1, 1]} : vector<160x160xf32> to vector<16x160xf32>
    %73 = arith.truncf %72 : vector<16x160xf32> to vector<16x160xbf16>
    %c240 = arith.constant 240 : index
    %c0_52 = arith.constant 0 : index
    %74 = vector.load %arg17[%c240, %c0_52] : memref<400x160xbf16, #tpu.memory_space<vmem>>, vector<16x160xbf16>
    tpu.vector_store %arg17[%c240, %c0_52], %73 {strides = array<i32>} : memref<400x160xbf16, #tpu.memory_space<vmem>>, vector<16x160xbf16>,
    %75 = vector.extract_strided_slice %51 {offsets = [112, 0], sizes = [16, 160], strides = [1, 1]} : vector<160x160xf32> to vector<16x160xf32>
    %76 = arith.truncf %75 : vector<16x160xf32> to vector<16x160xbf16>
    %c272 = arith.constant 272 : index
    %c0_53 = arith.constant 0 : index
    %77 = vector.load %arg17[%c272, %c0_53] : memref<400x160xbf16, #tpu.memory_space<vmem>>, vector<16x160xbf16>
    tpu.vector_store %arg17[%c272, %c0_53], %76 {strides = array<i32>} : memref<400x160xbf16, #tpu.memory_space<vmem>>, vector<16x160xbf16>,
    %78 = vector.extract_strided_slice %51 {offsets = [128, 0], sizes = [16, 160], strides = [1, 1]} : vector<160x160xf32> to vector<16x160xf32>
    %79 = arith.truncf %78 : vector<16x160xf32> to vector<16x160xbf16>
    %c304 = arith.constant 304 : index
    %c0_54 = arith.constant 0 : index
    %80 = vector.load %arg17[%c304, %c0_54] : memref<400x160xbf16, #tpu.memory_space<vmem>>, vector<16x160xbf16>
    tpu.vector_store %arg17[%c304, %c0_54], %79 {strides = array<i32>} : memref<400x160xbf16, #tpu.memory_space<vmem>>, vector<16x160xbf16>,
    %81 = vector.extract_strided_slice %51 {offsets = [144, 0], sizes = [16, 160], strides = [1, 1]} : vector<160x160xf32> to vector<16x160xf32>
    %82 = arith.truncf %81 : vector<16x160xf32> to vector<16x160xbf16>
    %c336 = arith.constant 336 : index
    %c0_55 = arith.constant 0 : index
    %83 = vector.load %arg17[%c336, %c0_55] : memref<400x160xbf16, #tpu.memory_space<vmem>>, vector<16x160xbf16>
    tpu.vector_store %arg17[%c336, %c0_55], %82 {strides = array<i32>} : memref<400x160xbf16, #tpu.memory_space<vmem>>, vector<16x160xbf16>,
    %c0_56 = arith.constant 0 : index
    %c0_57 = arith.constant 0 : index
    %84 = vector.load %arg17[%c0_56, %c0_57] : memref<400x160xbf16, #tpu.memory_space<vmem>>, vector<352x160xbf16>
    %c0_58 = arith.constant 0 : index
    %c0_59 = arith.constant 0 : index
    %c0_60 = arith.constant 0 : index
    %85 = vector.load %arg8[%c0_58, %c0_59, %c0_60] : memref<4x160x176xbf16, #tpu.memory_space<vmem>>, vector<1x160x176xbf16>
    %86 = vector.shape_cast %85 : vector<1x160x176xbf16> to vector<160x176xbf16>
    %cst_61 = arith.constant dense<0.000000e+00> : vector<352x176xf32>
    %87 = tpu.matmul %84, %86, %cst_61 {dimension_numbers = #tpu.dot_dimension_numbers<[1], [0], [0], [1], [0, 0, 1, 1], [], []>} : vector<352x160xbf16>, vector<160x176xbf16>, vector<352x176xf32> -> vector<352x176xf32>
    %c16_62 = arith.constant 16 : index
    %c0_63 = arith.constant 0 : index
    %88 = vector.load %arg17[%c16_62, %c0_63] : memref<400x160xbf16, #tpu.memory_space<vmem>>, vector<352x160xbf16>
    %c1_64 = arith.constant 1 : index
    %c0_65 = arith.constant 0 : index
    %c0_66 = arith.constant 0 : index
    %89 = vector.load %arg8[%c1_64, %c0_65, %c0_66] : memref<4x160x176xbf16, #tpu.memory_space<vmem>>, vector<1x160x176xbf16>
    %90 = vector.shape_cast %89 : vector<1x160x176xbf16> to vector<160x176xbf16>
    %cst_67 = arith.constant dense<0.000000e+00> : vector<352x176xf32>
    %91 = tpu.matmul %88, %90, %cst_67 {dimension_numbers = #tpu.dot_dimension_numbers<[1], [0], [0], [1], [0, 0, 1, 1], [], []>} : vector<352x160xbf16>, vector<160x176xbf16>, vector<352x176xf32> -> vector<352x176xf32>
    %92 = arith.addf %87, %91 : vector<352x176xf32>
    %c32_68 = arith.constant 32 : index
    %c0_69 = arith.constant 0 : index
    %93 = vector.load %arg17[%c32_68, %c0_69] : memref<400x160xbf16, #tpu.memory_space<vmem>>, vector<352x160xbf16>
    %c2_70 = arith.constant 2 : index
    %c0_71 = arith.constant 0 : index
    %c0_72 = arith.constant 0 : index
    %94 = vector.load %arg8[%c2_70, %c0_71, %c0_72] : memref<4x160x176xbf16, #tpu.memory_space<vmem>>, vector<1x160x176xbf16>
    %95 = vector.shape_cast %94 : vector<1x160x176xbf16> to vector<160x176xbf16>
    %cst_73 = arith.constant dense<0.000000e+00> : vector<352x176xf32>
    %96 = tpu.matmul %93, %95, %cst_73 {dimension_numbers = #tpu.dot_dimension_numbers<[1], [0], [0], [1], [0, 0, 1, 1], [], []>} : vector<352x160xbf16>, vector<160x176xbf16>, vector<352x176xf32> -> vector<352x176xf32>
    %97 = arith.addf %92, %96 : vector<352x176xf32>
    %c48_74 = arith.constant 48 : index
    %c0_75 = arith.constant 0 : index
    %98 = vector.load %arg17[%c48_74, %c0_75] : memref<400x160xbf16, #tpu.memory_space<vmem>>, vector<352x160xbf16>
    %c3_76 = arith.constant 3 : index
    %c0_77 = arith.constant 0 : index
    %c0_78 = arith.constant 0 : index
    %99 = vector.load %arg8[%c3_76, %c0_77, %c0_78] : memref<4x160x176xbf16, #tpu.memory_space<vmem>>, vector<1x160x176xbf16>
    %100 = vector.shape_cast %99 : vector<1x160x176xbf16> to vector<160x176xbf16>
    %cst_79 = arith.constant dense<0.000000e+00> : vector<352x176xf32>
    %101 = tpu.matmul %98, %100, %cst_79 {dimension_numbers = #tpu.dot_dimension_numbers<[1], [0], [0], [1], [0, 0, 1, 1], [], []>} : vector<352x160xbf16>, vector<160x176xbf16>, vector<352x176xf32> -> vector<352x176xf32>
    %102 = arith.addf %97, %101 : vector<352x176xf32>
    %c0_80 = arith.constant 0 : index
    %c0_81 = arith.constant 0 : index
    %103 = vector.load %arg9[%c0_80, %c0_81] : memref<1x176xf32, #tpu.memory_space<vmem>>, vector<1x176xf32>
    %104 = vector.broadcast %103 : vector<1x176xf32> to vector<352x176xf32>
    %105 = arith.mulf %102, %104 : vector<352x176xf32>
    %c0_82 = arith.constant 0 : index
    %c0_83 = arith.constant 0 : index
    %106 = vector.load %arg10[%c0_82, %c0_83] : memref<1x176xf32, #tpu.memory_space<vmem>>, vector<1x176xf32>
    %107 = vector.broadcast %106 : vector<1x176xf32> to vector<352x176xf32>
    %108 = arith.addf %105, %107 : vector<352x176xf32>
    %cst_84 = arith.constant 0.000000e+00 : f32
    %109 = vector.broadcast %cst_84 : f32 to vector<352x176xf32>
    %110 = arith.maximumf %108, %109 : vector<352x176xf32>
    %cst_85 = arith.constant 0.000000e+00 : bf16
    %111 = vector.broadcast %cst_85 : bf16 to vector<48x176xbf16>
    %c0_86 = arith.constant 0 : index
    %c0_87 = arith.constant 0 : index
    %112 = vector.load %arg18[%c0_86, %c0_87] : memref<448x176xbf16, #tpu.memory_space<vmem>>, vector<48x176xbf16>
    tpu.vector_store %arg18[%c0_86, %c0_87], %111 {strides = array<i32>} : memref<448x176xbf16, #tpu.memory_space<vmem>>, vector<48x176xbf16>,
    %cst_88 = arith.constant 0.000000e+00 : bf16
    %113 = vector.broadcast %cst_88 : bf16 to vector<48x176xbf16>
    %c400 = arith.constant 400 : index
    %c0_89 = arith.constant 0 : index
    %114 = vector.load %arg18[%c400, %c0_89] : memref<448x176xbf16, #tpu.memory_space<vmem>>, vector<48x176xbf16>
    tpu.vector_store %arg18[%c400, %c0_89], %113 {strides = array<i32>} : memref<448x176xbf16, #tpu.memory_space<vmem>>, vector<48x176xbf16>,
    %115 = arith.truncf %110 : vector<352x176xf32> to vector<352x176xbf16>
    %c48_90 = arith.constant 48 : index
    %c0_91 = arith.constant 0 : index
    %116 = vector.load %arg18[%c48_90, %c0_91] : memref<448x176xbf16, #tpu.memory_space<vmem>>, vector<352x176xbf16>
    tpu.vector_store %arg18[%c48_90, %c0_91], %115 {strides = array<i32>} : memref<448x176xbf16, #tpu.memory_space<vmem>>, vector<352x176xbf16>,
    %c0_92 = arith.constant 0 : index
    %c0_93 = arith.constant 0 : index
    %117 = vector.load %arg18[%c0_92, %c0_93] : memref<448x176xbf16, #tpu.memory_space<vmem>>, vector<400x176xbf16>
    %c0_94 = arith.constant 0 : index
    %c0_95 = arith.constant 0 : index
    %c0_96 = arith.constant 0 : index
    %118 = vector.load %arg11[%c0_94, %c0_95, %c0_96] : memref<4x176x100xbf16, #tpu.memory_space<vmem>>, vector<1x176x100xbf16>
    %119 = vector.shape_cast %118 : vector<1x176x100xbf16> to vector<176x100xbf16>
    %cst_97 = arith.constant dense<0.000000e+00> : vector<400x100xf32>
    %120 = tpu.matmul %117, %119, %cst_97 {dimension_numbers = #tpu.dot_dimension_numbers<[1], [0], [0], [1], [0, 0, 1, 1], [], []>} : vector<400x176xbf16>, vector<176x100xbf16>, vector<400x100xf32> -> vector<400x100xf32>
    %c16_98 = arith.constant 16 : index
    %c0_99 = arith.constant 0 : index
    %121 = vector.load %arg18[%c16_98, %c0_99] : memref<448x176xbf16, #tpu.memory_space<vmem>>, vector<400x176xbf16>
    %c1_100 = arith.constant 1 : index
    %c0_101 = arith.constant 0 : index
    %c0_102 = arith.constant 0 : index
    %122 = vector.load %arg11[%c1_100, %c0_101, %c0_102] : memref<4x176x100xbf16, #tpu.memory_space<vmem>>, vector<1x176x100xbf16>
    %123 = vector.shape_cast %122 : vector<1x176x100xbf16> to vector<176x100xbf16>
    %cst_103 = arith.constant dense<0.000000e+00> : vector<400x100xf32>
    %124 = tpu.matmul %121, %123, %cst_103 {dimension_numbers = #tpu.dot_dimension_numbers<[1], [0], [0], [1], [0, 0, 1, 1], [], []>} : vector<400x176xbf16>, vector<176x100xbf16>, vector<400x100xf32> -> vector<400x100xf32>
    %125 = arith.addf %120, %124 : vector<400x100xf32>
    %c32_104 = arith.constant 32 : index
    %c0_105 = arith.constant 0 : index
    %126 = vector.load %arg18[%c32_104, %c0_105] : memref<448x176xbf16, #tpu.memory_space<vmem>>, vector<400x176xbf16>
    %c2_106 = arith.constant 2 : index
    %c0_107 = arith.constant 0 : index
    %c0_108 = arith.constant 0 : index
    %127 = vector.load %arg11[%c2_106, %c0_107, %c0_108] : memref<4x176x100xbf16, #tpu.memory_space<vmem>>, vector<1x176x100xbf16>
    %128 = vector.shape_cast %127 : vector<1x176x100xbf16> to vector<176x100xbf16>
    %cst_109 = arith.constant dense<0.000000e+00> : vector<400x100xf32>
    %129 = tpu.matmul %126, %128, %cst_109 {dimension_numbers = #tpu.dot_dimension_numbers<[1], [0], [0], [1], [0, 0, 1, 1], [], []>} : vector<400x176xbf16>, vector<176x100xbf16>, vector<400x100xf32> -> vector<400x100xf32>
    %130 = arith.addf %125, %129 : vector<400x100xf32>
    %c48_110 = arith.constant 48 : index
    %c0_111 = arith.constant 0 : index
    %131 = vector.load %arg18[%c48_110, %c0_111] : memref<448x176xbf16, #tpu.memory_space<vmem>>, vector<400x176xbf16>
    %c3_112 = arith.constant 3 : index
    %c0_113 = arith.constant 0 : index
    %c0_114 = arith.constant 0 : index
    %132 = vector.load %arg11[%c3_112, %c0_113, %c0_114] : memref<4x176x100xbf16, #tpu.memory_space<vmem>>, vector<1x176x100xbf16>
    %133 = vector.shape_cast %132 : vector<1x176x100xbf16> to vector<176x100xbf16>
    %cst_115 = arith.constant dense<0.000000e+00> : vector<400x100xf32>
    %134 = tpu.matmul %131, %133, %cst_115 {dimension_numbers = #tpu.dot_dimension_numbers<[1], [0], [0], [1], [0, 0, 1, 1], [], []>} : vector<400x176xbf16>, vector<176x100xbf16>, vector<400x100xf32> -> vector<400x100xf32>
    %135 = arith.addf %130, %134 : vector<400x100xf32>
    %c0_116 = arith.constant 0 : index
    %c0_117 = arith.constant 0 : index
    %136 = vector.load %arg12[%c0_116, %c0_117] : memref<1x100xf32, #tpu.memory_space<vmem>>, vector<1x100xf32>
    %137 = vector.broadcast %136 : vector<1x100xf32> to vector<400x100xf32>
    %138 = arith.mulf %135, %137 : vector<400x100xf32>
    %c0_118 = arith.constant 0 : index
    %c0_119 = arith.constant 0 : index
    %139 = vector.load %arg13[%c0_118, %c0_119] : memref<1x100xf32, #tpu.memory_space<vmem>>, vector<1x100xf32>
    %140 = vector.broadcast %139 : vector<1x100xf32> to vector<400x100xf32>
    %141 = arith.addf %138, %140 : vector<400x100xf32>
    %cst_120 = arith.constant 0.000000e+00 : f32
    %142 = vector.broadcast %cst_120 : f32 to vector<400x100xf32>
    %143 = arith.maximumf %141, %142 : vector<400x100xf32>
    %cst_121 = arith.constant 0.000000e+00 : bf16
    %144 = vector.broadcast %cst_121 : bf16 to vector<48x100xbf16>
    %c0_122 = arith.constant 0 : index
    %c0_123 = arith.constant 0 : index
    %145 = vector.load %arg19[%c0_122, %c0_123] : memref<496x100xbf16, #tpu.memory_space<vmem>>, vector<48x100xbf16>
    tpu.vector_store %arg19[%c0_122, %c0_123], %144 {strides = array<i32>} : memref<496x100xbf16, #tpu.memory_space<vmem>>, vector<48x100xbf16>,
    %cst_124 = arith.constant 0.000000e+00 : bf16
    %146 = vector.broadcast %cst_124 : bf16 to vector<48x100xbf16>
    %c448 = arith.constant 448 : index
    %c0_125 = arith.constant 0 : index
    %147 = vector.load %arg19[%c448, %c0_125] : memref<496x100xbf16, #tpu.memory_space<vmem>>, vector<48x100xbf16>
    tpu.vector_store %arg19[%c448, %c0_125], %146 {strides = array<i32>} : memref<496x100xbf16, #tpu.memory_space<vmem>>, vector<48x100xbf16>,
    %148 = arith.truncf %143 : vector<400x100xf32> to vector<400x100xbf16>
    %c48_126 = arith.constant 48 : index
    %c0_127 = arith.constant 0 : index
    %149 = vector.load %arg19[%c48_126, %c0_127] : memref<496x100xbf16, #tpu.memory_space<vmem>>, vector<400x100xbf16>
    tpu.vector_store %arg19[%c48_126, %c0_127], %148 {strides = array<i32>} : memref<496x100xbf16, #tpu.memory_space<vmem>>, vector<400x100xbf16>,
    %c0_128 = arith.constant 0 : index
    %c0_129 = arith.constant 0 : index
    %150 = vector.load %arg19[%c0_128, %c0_129] : memref<496x100xbf16, #tpu.memory_space<vmem>>, vector<448x100xbf16>
    %c0_130 = arith.constant 0 : index
    %c0_131 = arith.constant 0 : index
    %c0_132 = arith.constant 0 : index
    %151 = vector.load %arg14[%c0_130, %c0_131, %c0_132] : memref<4x100x128xbf16, #tpu.memory_space<vmem>>, vector<1x100x128xbf16>
    %152 = vector.shape_cast %151 : vector<1x100x128xbf16> to vector<100x128xbf16>
    %cst_133 = arith.constant dense<0.000000e+00> : vector<448x128xf32>
    %153 = tpu.matmul %150, %152, %cst_133 {dimension_numbers = #tpu.dot_dimension_numbers<[1], [0], [0], [1], [0, 0, 1, 1], [], []>} : vector<448x100xbf16>, vector<100x128xbf16>, vector<448x128xf32> -> vector<448x128xf32>
    %c16_134 = arith.constant 16 : index
    %c0_135 = arith.constant 0 : index
    %154 = vector.load %arg19[%c16_134, %c0_135] : memref<496x100xbf16, #tpu.memory_space<vmem>>, vector<448x100xbf16>
    %c1_136 = arith.constant 1 : index
    %c0_137 = arith.constant 0 : index
    %c0_138 = arith.constant 0 : index
    %155 = vector.load %arg14[%c1_136, %c0_137, %c0_138] : memref<4x100x128xbf16, #tpu.memory_space<vmem>>, vector<1x100x128xbf16>
    %156 = vector.shape_cast %155 : vector<1x100x128xbf16> to vector<100x128xbf16>
    %cst_139 = arith.constant dense<0.000000e+00> : vector<448x128xf32>
    %157 = tpu.matmul %154, %156, %cst_139 {dimension_numbers = #tpu.dot_dimension_numbers<[1], [0], [0], [1], [0, 0, 1, 1], [], []>} : vector<448x100xbf16>, vector<100x128xbf16>, vector<448x128xf32> -> vector<448x128xf32>
    %158 = arith.addf %153, %157 : vector<448x128xf32>
    %c32_140 = arith.constant 32 : index
    %c0_141 = arith.constant 0 : index
    %159 = vector.load %arg19[%c32_140, %c0_141] : memref<496x100xbf16, #tpu.memory_space<vmem>>, vector<448x100xbf16>
    %c2_142 = arith.constant 2 : index
    %c0_143 = arith.constant 0 : index
    %c0_144 = arith.constant 0 : index
    %160 = vector.load %arg14[%c2_142, %c0_143, %c0_144] : memref<4x100x128xbf16, #tpu.memory_space<vmem>>, vector<1x100x128xbf16>
    %161 = vector.shape_cast %160 : vector<1x100x128xbf16> to vector<100x128xbf16>
    %cst_145 = arith.constant dense<0.000000e+00> : vector<448x128xf32>
    %162 = tpu.matmul %159, %161, %cst_145 {dimension_numbers = #tpu.dot_dimension_numbers<[1], [0], [0], [1], [0, 0, 1, 1], [], []>} : vector<448x100xbf16>, vector<100x128xbf16>, vector<448x128xf32> -> vector<448x128xf32>
    %163 = arith.addf %158, %162 : vector<448x128xf32>
    %c48_146 = arith.constant 48 : index
    %c0_147 = arith.constant 0 : index
    %164 = vector.load %arg19[%c48_146, %c0_147] : memref<496x100xbf16, #tpu.memory_space<vmem>>, vector<448x100xbf16>
    %c3_148 = arith.constant 3 : index
    %c0_149 = arith.constant 0 : index
    %c0_150 = arith.constant 0 : index
    %165 = vector.load %arg14[%c3_148, %c0_149, %c0_150] : memref<4x100x128xbf16, #tpu.memory_space<vmem>>, vector<1x100x128xbf16>
    %166 = vector.shape_cast %165 : vector<1x100x128xbf16> to vector<100x128xbf16>
    %cst_151 = arith.constant dense<0.000000e+00> : vector<448x128xf32>
    %167 = tpu.matmul %164, %166, %cst_151 {dimension_numbers = #tpu.dot_dimension_numbers<[1], [0], [0], [1], [0, 0, 1, 1], [], []>} : vector<448x100xbf16>, vector<100x128xbf16>, vector<448x128xf32> -> vector<448x128xf32>
    %168 = arith.addf %163, %167 : vector<448x128xf32>
    %c0_152 = arith.constant 0 : index
    %c0_153 = arith.constant 0 : index
    %c0_154 = arith.constant 0 : index
    %169 = vector.load %arg15[%c0_152, %c0_153, %c0_154] : memref<1x448x128xf32, #tpu.memory_space<vmem>>, vector<1x448x128xf32>
    %170 = vector.shape_cast %169 : vector<1x448x128xf32> to vector<448x128xf32>
    %171 = vector.shape_cast %168 : vector<448x128xf32> to vector<1x448x128xf32>
    tpu.vector_store %arg15[%c0_152, %c0_153, %c0_154], %171 {strides = array<i32>} : memref<1x448x128xf32, #tpu.memory_space<vmem>>, vector<1x448x128xf32>,
    return
  }
  func.func @transform_0(%arg0: i32) -> (i32, i32) {
    %c0_i32 = arith.constant 0 : i32
    %c0_i32_0 = arith.constant 0 : i32
    return %arg0, %c0_i32 : i32, i32
  }
  func.func @transform_1(%arg0: i32) -> (i32, i32) {
    %c0_i32 = arith.constant 0 : i32
    %c0_i32_0 = arith.constant 0 : i32
    %c0_i32_1 = arith.constant 0 : i32
    return %c0_i32, %c0_i32_0 : i32, i32
  }
  func.func @transform_2(%arg0: i32) -> (i32, i32) {
    %c0_i32 = arith.constant 0 : i32
    %c0_i32_0 = arith.constant 0 : i32
    %c0_i32_1 = arith.constant 0 : i32
    return %c0_i32, %c0_i32_0 : i32, i32
  }
  func.func @transform_3(%arg0: i32) -> (i32, i32) {
    %c0_i32 = arith.constant 0 : i32
    %c0_i32_0 = arith.constant 0 : i32
    %c0_i32_1 = arith.constant 0 : i32
    return %c0_i32, %c0_i32_0 : i32, i32
  }
  func.func @transform_4(%arg0: i32) -> (i32, i32, i32) {
    %c0_i32 = arith.constant 0 : i32
    %c0_i32_0 = arith.constant 0 : i32
    %c0_i32_1 = arith.constant 0 : i32
    %c0_i32_2 = arith.constant 0 : i32
    return %c0_i32, %c0_i32_0, %c0_i32_1 : i32, i32, i32
  }
  func.func @transform_5(%arg0: i32) -> (i32, i32) {
    %c0_i32 = arith.constant 0 : i32
    %c0_i32_0 = arith.constant 0 : i32
    %c0_i32_1 = arith.constant 0 : i32
    return %c0_i32, %c0_i32_0 : i32, i32
  }
  func.func @transform_6(%arg0: i32) -> (i32, i32) {
    %c0_i32 = arith.constant 0 : i32
    %c0_i32_0 = arith.constant 0 : i32
    %c0_i32_1 = arith.constant 0 : i32
    return %c0_i32, %c0_i32_0 : i32, i32
  }
  func.func @transform_7(%arg0: i32) -> (i32, i32, i32) {
    %c0_i32 = arith.constant 0 : i32
    %c0_i32_0 = arith.constant 0 : i32
    %c0_i32_1 = arith.constant 0 : i32
    %c0_i32_2 = arith.constant 0 : i32
    return %c0_i32, %c0_i32_0, %c0_i32_1 : i32, i32, i32
  }
  func.func @transform_8(%arg0: i32) -> (i32, i32) {
    %c0_i32 = arith.constant 0 : i32
    %c0_i32_0 = arith.constant 0 : i32
    %c0_i32_1 = arith.constant 0 : i32
    return %c0_i32, %c0_i32_0 : i32, i32
  }
  func.func @transform_9(%arg0: i32) -> (i32, i32) {
    %c0_i32 = arith.constant 0 : i32
    %c0_i32_0 = arith.constant 0 : i32
    %c0_i32_1 = arith.constant 0 : i32
    return %c0_i32, %c0_i32_0 : i32, i32
  }
  func.func @transform_10(%arg0: i32) -> (i32, i32, i32) {
    %c0_i32 = arith.constant 0 : i32
    %c0_i32_0 = arith.constant 0 : i32
    %c0_i32_1 = arith.constant 0 : i32
    %c0_i32_2 = arith.constant 0 : i32
    return %c0_i32, %c0_i32_0, %c0_i32_1 : i32, i32, i32
  }
  func.func @transform_11(%arg0: i32) -> (i32, i32) {
    %c0_i32 = arith.constant 0 : i32
    %c0_i32_0 = arith.constant 0 : i32
    %c0_i32_1 = arith.constant 0 : i32
    return %c0_i32, %c0_i32_0 : i32, i32
  }
  func.func @transform_12(%arg0: i32) -> (i32, i32) {
    %c0_i32 = arith.constant 0 : i32
    %c0_i32_0 = arith.constant 0 : i32
    %c0_i32_1 = arith.constant 0 : i32
    return %c0_i32, %c0_i32_0 : i32, i32
  }
  func.func @transform_13(%arg0: i32) -> (i32, i32, i32) {
    %c0_i32 = arith.constant 0 : i32
    %c0_i32_0 = arith.constant 0 : i32
    %c0_i32_1 = arith.constant 0 : i32
    %c0_i32_2 = arith.constant 0 : i32
    return %c0_i32, %c0_i32_0, %c0_i32_1 : i32, i32, i32
  }
  func.func @transform_14(%arg0: i32) -> (i32, i32, i32) {
    %c0_i32 = arith.constant 0 : i32
    %c0_i32_0 = arith.constant 0 : i32
    %c0_i32_1 = arith.constant 0 : i32
    return %arg0, %c0_i32, %c0_i32_0 : i32, i32, i32
  }
}

</mosaic_0001>

<llo_original>
// kernel: tpu_custom_call.1
$region0: #{tpu_custom_call.1}
  #allocation0 [shape = 'u32[]', space=smem, size = 0x4, offset = 0x4, fixed_abs, tag = 'smem constant byte address 0x4 - core index']
  #allocation1 [shape = 'u32[144,128]{1,0:T(1,128)}', space=vmem, size = 0x12000, scoped, tag = 'internal scratch']
  #allocation2 [shape = 'bf16[208,128]{1,0:T(8,128)(2,1)}', space=vmem, size = 0xd000, scoped, tag = 'scratch operand']
  #allocation3 [shape = 'bf16[400,160]{1,0:T(8,128)(2,1)}', space=vmem, size = 0x32000, scoped, tag = 'scratch operand']
  #allocation4 [shape = 'bf16[448,176]{1,0:T(8,128)(2,1)}', space=vmem, size = 0x38000, scoped, tag = 'scratch operand']
  #allocation5 [shape = 'bf16[496,100]{1,0:T(8,128)(2,1)}', space=vmem, size = 0x1f000, scoped, tag = 'scratch operand']
  %s0 = inlined_call_operand.vmem [shape: f32[16,16], index: 0, kind: input, shape index: {}]
  %s1 = inlined_call_operand.vmem [shape: f32[16,512], index: 1, kind: input, shape index: {}]
  %s2 = inlined_call_operand.vmem [shape: f32[1,512], index: 2, kind: input, shape index: {}]
  %s3 = inlined_call_operand.vmem [shape: f32[1,512], index: 3, kind: input, shape index: {}]
  %s4 = inlined_call_operand.vmem [shape: bf16[4,128,160], index: 4, kind: input, shape index: {}]
  %s5 = inlined_call_operand.vmem [shape: f32[1,160], index: 5, kind: input, shape index: {}]
  %s6 = inlined_call_operand.vmem [shape: f32[1,160], index: 6, kind: input, shape index: {}]
  %s7 = inlined_call_operand.vmem [shape: bf16[4,160,176], index: 7, kind: input, shape index: {}]
  %s8 = inlined_call_operand.vmem [shape: f32[1,176], index: 8, kind: input, shape index: {}]
  %s9 = inlined_call_operand.vmem [shape: f32[1,176], index: 9, kind: input, shape index: {}]
  %s10 = inlined_call_operand.vmem [shape: bf16[4,176,100], index: 10, kind: input, shape index: {}]
  %s11 = inlined_call_operand.vmem [shape: f32[1,100], index: 11, kind: input, shape index: {}]
  %s12 = inlined_call_operand.vmem [shape: f32[1,100], index: 12, kind: input, shape index: {}]
  %s13 = inlined_call_operand.vmem [shape: bf16[4,100,128], index: 13, kind: input, shape index: {}]
  %s14 = inlined_call_operand.hbm [shape: f32[1,448,128], index: 14, kind: output, shape index: {}]
  %s15 = sld [smem:[#allocation0]]
  $region66: #{tpu_custom_call.1} parent=0
    _
  %s17 = ssub.s32 1, %s15
  %s18 = scalar_select 0, %s17, %s15
  $region1: #{tpu_custom_call.1} parent=0
    #allocation6 [shape = 'u8[229376]{0}', space=vmem, size = 0x38000, scoped, tag = 'output window, operand 0, single buffered']
    #allocation7 [shape = 's32[1]{0}', space=sflag, size = 0x4, scoped, tag = 'scoped memory for tpu_custom_call.1']
    %19 = vsyncpa [#allocation7], 0
    // Predicated region
    $region2: #{tpu_custom_call.1} parent=1 // pred_check
      _
    $region3: #{tpu_custom_call.1} parent=1 // pred_check_branch
      %21 = sbr.rel (0) target = $region5
    $region4: #{tpu_custom_call.1} parent=1 // pred_region
      _
    $region5: #{tpu_custom_call.1} parent=1 // pred_fallthru
      _
    // Predicated region
    $region6: #{tpu_custom_call.1} parent=1 // pred_check
      _
    $region7: #{tpu_custom_call.1} parent=1 // pred_check_branch
      %23 = sbr.rel (0) target = $region9
    $region8: #{tpu_custom_call.1} parent=1 // pred_region
      _
    $region9: #{tpu_custom_call.1} parent=1 // pred_fallthru
      _
    // Predicated region
    $region10: #{tpu_custom_call.1} parent=1 // pred_check
      _
    $region11: #{tpu_custom_call.1} parent=1 // pred_check_branch
      %25 = sbr.rel (0) target = $region13
    $region12: #{tpu_custom_call.1} parent=1 // pred_region
      _
    $region13: #{tpu_custom_call.1} parent=1 // pred_fallthru
      _
    // Predicated region
    $region14: #{tpu_custom_call.1} parent=1 // pred_check
      _
    $region15: #{tpu_custom_call.1} parent=1 // pred_check_branch
      %27 = sbr.rel (0) target = $region17
    $region16: #{tpu_custom_call.1} parent=1 // pred_region
      _
    $region17: #{tpu_custom_call.1} parent=1 // pred_fallthru
      _
    // Predicated region
    $region18: #{tpu_custom_call.1} parent=1 // pred_check
      _
    $region19: #{tpu_custom_call.1} parent=1 // pred_check_branch
      %29 = sbr.rel (0) target = $region21
    $region20: #{tpu_custom_call.1} parent=1 // pred_region
      _
    $region21: #{tpu_custom_call.1} parent=1 // pred_fallthru
      _
    // Predicated region
    $region22: #{tpu_custom_call.1} parent=1 // pred_check
      _
    $region23: #{tpu_custom_call.1} parent=1 // pred_check_branch
      %31 = sbr.rel (0) target = $region25
    $region24: #{tpu_custom_call.1} parent=1 // pred_region
      _
    $region25: #{tpu_custom_call.1} parent=1 // pred_fallthru
      _
    // Predicated region
    $region26: #{tpu_custom_call.1} parent=1 // pred_check
      _
    $region27: #{tpu_custom_call.1} parent=1 // pred_check_branch
      %33 = sbr.rel (0) target = $region29
    $region28: #{tpu_custom_call.1} parent=1 // pred_region
      _
    $region29: #{tpu_custom_call.1} parent=1 // pred_fallthru
      _
    // Predicated region
    $region30: #{tpu_custom_call.1} parent=1 // pred_check
      _
    $region31: #{tpu_custom_call.1} parent=1 // pred_check_branch
      %35 = sbr.rel (0) target = $region33
    $region32: #{tpu_custom_call.1} parent=1 // pred_region
      _
    $region33: #{tpu_custom_call.1} parent=1 // pred_fallthru
      _
    // Predicated region
    $region34: #{tpu_custom_call.1} parent=1 // pred_check
      _
    $region35: #{tpu_custom_call.1} parent=1 // pred_check_branch
      %37 = sbr.rel (0) target = $region37
    $region36: #{tpu_custom_call.1} parent=1 // pred_region
      _
    $region37: #{tpu_custom_call.1} parent=1 // pred_fallthru
      _
    // Predicated region
    $region38: #{tpu_custom_call.1} parent=1 // pred_check
      _
    $region39: #{tpu_custom_call.1} parent=1 // pred_check_branch
      %39 = sbr.rel (0) target = $region41
    $region40: #{tpu_custom_call.1} parent=1 // pred_region
      _
    $region41: #{tpu_custom_call.1} parent=1 // pred_fallthru
      _
    // Predicated region
    $region42: #{tpu_custom_call.1} parent=1 // pred_check
      _
    $region43: #{tpu_custom_call.1} parent=1 // pred_check_branch
      %41 = sbr.rel (0) target = $region45
    $region44: #{tpu_custom_call.1} parent=1 // pred_region
      _
    $region45: #{tpu_custom_call.1} parent=1 // pred_fallthru
      _
    // Predicated region
    $region46: #{tpu_custom_call.1} parent=1 // pred_check
      _
    $region47: #{tpu_custom_call.1} parent=1 // pred_check_branch
      %43 = sbr.rel (0) target = $region49
    $region48: #{tpu_custom_call.1} parent=1 // pred_region
      _
    $region49: #{tpu_custom_call.1} parent=1 // pred_fallthru
      _
    // Predicated region
    $region50: #{tpu_custom_call.1} parent=1 // pred_check
      _
    $region51: #{tpu_custom_call.1} parent=1 // pred_check_branch
      %45 = sbr.rel (0) target = $region53
    $region52: #{tpu_custom_call.1} parent=1 // pred_region
      _
    $region53: #{tpu_custom_call.1} parent=1 // pred_fallthru
      _
    // Predicated region
    $region54: #{tpu_custom_call.1} parent=1 // pred_check
      _
    $region55: #{tpu_custom_call.1} parent=1 // pred_check_branch
      %47 = sbr.rel (0) target = $region57
    $region56: #{tpu_custom_call.1} parent=1 // pred_region
      _
    $region57: #{tpu_custom_call.1} parent=1 // pred_fallthru
      _
    %v49 = vld [vmem:[%s0] sm:$0xff]
    %v50 = vld [vmem:[%s0 + $0x8] sm:$0xff]
    %v51 = vld [vmem:[%s1] sm:$0xff]
    %v52 = vld [vmem:[%s1 + $0x8] sm:$0xff]
    %v53 = vld [vmem:[%s1 + $0x10] sm:$0xff]
    %v54 = vld [vmem:[%s1 + $0x18] sm:$0xff]
    %v55 = vld [vmem:[%s1 + $0x20] sm:$0xff]
    %v56 = vld [vmem:[%s1 + $0x28] sm:$0xff]
    %v57 = vld [vmem:[%s1 + $0x30] sm:$0xff]
    %v58 = vld [vmem:[%s1 + $0x38] sm:$0xff]
    %vm59 = vcmask 130048
    %v61 = vsel %vm59, %v49, 0
    %v64 = vsel %vm59, %v50, 0
    %66 = vmatprep.subr.mxu0 0.0
    %67 = vmatpush1.msra.mxu0 0.0
    %68 = vmatprep.subr.mxu0 0.0
    %69 = vmatpush1.msra.mxu0 0.0
    %70 = vmatprep.subr.mxu0 0.0
    %71 = vmatpush1.msra.mxu0 0.0
    %72 = vmatprep.subr.mxu0 0.0
    %73 = vmatpush1.msra.mxu0 0.0
    %74 = vmatprep.subr.mxu0 0.0
    %75 = vmatpush1.msra.mxu0 0.0
    %76 = vmatprep.subr.mxu0 0.0
    %77 = vmatpush1.msra.mxu0 0.0
    %78 = vmatprep.subr.mxu0 0.0
    %79 = vmatpush1.msra.mxu0 0.0
    %80 = vmatprep.subr.mxu0 0.0
    %81 = vmatpush1.msra.mxu0 0.0
    %82 = vmatprep.subr.mxu0 0.0
    %83 = vmatpush1.msra.mxu0 0.0
    %84 = vmatprep.subr.mxu0 0.0
    %85 = vmatpush1.msra.mxu0 0.0
    %86 = vmatprep.subr.mxu0 0.0
    %87 = vmatpush1.msra.mxu0 0.0
    %88 = vmatprep.subr.mxu0 0.0
    %89 = vmatpush1.msra.mxu0 0.0
    %90 = vmatprep.subr.mxu0 0.0
    %91 = vmatpush1.msra.mxu0 0.0
    %92 = vmatprep.subr.mxu0 0.0
    %93 = vmatpush1.msra.mxu0 0.0
    %94 = vmatprep.subr.mxu0 %v56
    %95 = vmatpush1.msra.mxu0 %v55
    %96 = vmatprep.subr.mxu0 %v52
    %97 = vmatpush1.msra.mxu0 %v51
    %98 = vmatprep.subr.mxu0 0.0
    %99 = vmatpush2.msra.mxu0 0.0
    %100 = vmatprep.subr.mxu0 0.0
    %101 = vmatpush2.msra.mxu0 0.0
    %102 = vmatprep.subr.mxu0 0.0
    %103 = vmatpush2.msra.mxu0 0.0
    %104 = vmatprep.subr.mxu0 0.0
    %105 = vmatpush2.msra.mxu0 0.0
    %106 = vmatprep.subr.mxu0 0.0
    %107 = vmatpush2.msra.mxu0 0.0
    %108 = vmatprep.subr.mxu0 0.0
    %109 = vmatpush2.msra.mxu0 0.0
    %110 = vmatprep.subr.mxu0 0.0
    %111 = vmatpush2.msra.mxu0 0.0
    %112 = vmatprep.subr.mxu0 0.0
    %113 = vmatpush2.msra.mxu0 0.0
    %114 = vmatprep.subr.mxu0 0.0
    %115 = vmatpush2.msra.mxu0 0.0
    %116 = vmatprep.subr.mxu0 0.0
    %117 = vmatpush2.msra.mxu0 0.0
    %118 = vmatprep.subr.mxu0 0.0
    %119 = vmatpush2.msra.mxu0 0.0
    %120 = vmatprep.subr.mxu0 0.0
    %121 = vmatpush2.msra.mxu0 0.0
    %122 = vmatprep.subr.mxu0 0.0
    %123 = vmatpush2.msra.mxu0 0.0
    %124 = vmatprep.subr.mxu0 0.0
    %125 = vmatpush2.msra.mxu0 0.0
    %126 = vmatprep.subr.mxu0 0.0
    %127 = vmatpush2.msra.mxu0 0.0
    %128 = vmatprep.subr.mxu0 0.0
    %129 = vmatpush2.msra.mxu0 0.0
    %130 = vmatprep.mubr.f32.mxu0 0.0
    %131 = vmatmul.mubr.f32.gmra.mxu0 %v61
    %v132 = vpop.f32.mrf.mxu0
    %v133 = vadd.f32 0.0, %v132
    %v134 = vpop.f32.mrf.mxu0
    %v135 = vadd.f32 0.0, %v134
    %136 = vmatprep.mubr.f32.mxu0 0.0
    %137 = vmatmul.mubr.f32.gmra.mxu0 %v64
    %v138 = vpop.f32.mrf.mxu0
    %v139 = vadd.f32 0.0, %v138
    %v140 = vpop.f32.mrf.mxu0
    %v141 = vadd.f32 0.0, %v140
    %142 = vdwg.mxu0
    %143 = vmatprep.subr.mxu0 0.0
    %144 = vmatpush1.msra.mxu0 0.0
    %145 = vmatprep.subr.mxu0 0.0
    %146 = vmatpush1.msra.mxu0 0.0
    %147 = vmatprep.subr.mxu0 0.0
    %148 = vmatpush1.msra.mxu0 0.0
    %149 = vmatprep.subr.mxu0 0.0
    %150 = vmatpush1.msra.mxu0 0.0
    %151 = vmatprep.subr.mxu0 0.0
    %152 = vmatpush1.msra.mxu0 0.0
    %153 = vmatprep.subr.mxu0 0.0
    %154 = vmatpush1.msra.mxu0 0.0
    %155 = vmatprep.subr.mxu0 0.0
    %156 = vmatpush1.msra.mxu0 0.0
    %157 = vmatprep.subr.mxu0 0.0
    %158 = vmatpush1.msra.mxu0 0.0
    %159 = vmatprep.subr.mxu0 0.0
    %160 = vmatpush1.msra.mxu0 0.0
    %161 = vmatprep.subr.mxu0 0.0
    %162 = vmatpush1.msra.mxu0 0.0
    %163 = vmatprep.subr.mxu0 0.0
    %164 = vmatpush1.msra.mxu0 0.0
    %165 = vmatprep.subr.mxu0 0.0
    %166 = vmatpush1.msra.mxu0 0.0
    %167 = vmatprep.subr.mxu0 0.0
    %168 = vmatpush1.msra.mxu0 0.0
    %169 = vmatprep.subr.mxu0 0.0
    %170 = vmatpush1.msra.mxu0 0.0
    %171 = vmatprep.subr.mxu0 %v58
    %172 = vmatpush1.msra.mxu0 %v57
    %173 = vmatprep.subr.mxu0 %v54
    %174 = vmatpush1.msra.mxu0 %v53
    %175 = vmatprep.subr.mxu0 0.0
    %176 = vmatpush2.msra.mxu0 0.0
    %177 = vmatprep.subr.mxu0 0.0
    %178 = vmatpush2.msra.mxu0 0.0
    %179 = vmatprep.subr.mxu0 0.0
    %180 = vmatpush2.msra.mxu0 0.0
    %181 = vmatprep.subr.mxu0 0.0
    %182 = vmatpush2.msra.mxu0 0.0
    %183 = vmatprep.subr.mxu0 0.0
    %184 = vmatpush2.msra.mxu0 0.0
    %185 = vmatprep.subr.mxu0 0.0
    %186 = vmatpush2.msra.mxu0 0.0
    %187 = vmatprep.subr.mxu0 0.0
    %188 = vmatpush2.msra.mxu0 0.0
    %189 = vmatprep.subr.mxu0 0.0
    %190 = vmatpush2.msra.mxu0 0.0
    %191 = vmatprep.subr.mxu0 0.0
    %192 = vmatpush2.msra.mxu0 0.0
    %193 = vmatprep.subr.mxu0 0.0
    %194 = vmatpush2.msra.mxu0 0.0
    %195 = vmatprep.subr.mxu0 0.0
    %196 = vmatpush2.msra.mxu0 0.0
    %197 = vmatprep.subr.mxu0 0.0
    %198 = vmatpush2.msra.mxu0 0.0
    %199 = vmatprep.subr.mxu0 0.0
    %200 = vmatpush2.msra.mxu0 0.0
    %201 = vmatprep.subr.mxu0 0.0
    %202 = vmatpush2.msra.mxu0 0.0
    %203 = vmatprep.subr.mxu0 0.0
    %204 = vmatpush2.msra.mxu0 0.0
    %205 = vmatprep.subr.mxu0 0.0
    %206 = vmatpush2.msra.mxu0 0.0
    %207 = vmatprep.mubr.f32.mxu0 0.0
    %208 = vmatmul.mubr.f32.gmra.mxu0 %v61
    %v209 = vpop.f32.mrf.mxu0
    %v210 = vadd.f32 0.0, %v209
    %v211 = vpop.f32.mrf.mxu0
    %v212 = vadd.f32 0.0, %v211
    %213 = vmatprep.mubr.f32.mxu0 0.0
    %214 = vmatmul.mubr.f32.gmra.mxu0 %v64
    %v215 = vpop.f32.mrf.mxu0
    %v216 = vadd.f32 0.0, %v215
    %v217 = vpop.f32.mrf.mxu0
    %v218 = vadd.f32 0.0, %v217
    %219 = vdwg.mxu0
    %v220 = vld [vmem:[%s2] sm:$0xf]
    %v222 = vlaneseq
    %v223 = vshrl.u32 %v222, 7
    %v224 = vsub.s32 0, %v223
    %v225 = vrot.slane %v220, %v224
    %v226 = vlaneseq
    %v227 = vshrl.u32 %v226, 7
    %v228 = vsub.s32 1, %v227
    %v229 = vrot.slane %v220, %v228
    %v230 = vlaneseq
    %v231 = vshrl.u32 %v230, 7
    %v232 = vsub.s32 2, %v231
    %v233 = vrot.slane %v220, %v232
    %v234 = vlaneseq
    %v235 = vshrl.u32 %v234, 7
    %v236 = vsub.s32 3, %v235
    %v237 = vrot.slane %v220, %v236
    %v242 = vmul.f32 %v133, %v225
    %v243 = vmul.f32 %v135, %v229
    %v244 = vmul.f32 %v210, %v233
    %v245 = vmul.f32 %v212, %v237
    %v246 = vmul.f32 %v139, %v225
    %v247 = vmul.f32 %v141, %v229
    %v248 = vmul.f32 %v216, %v233
    %v249 = vmul.f32 %v218, %v237
    %v250 = vld [vmem:[%s3] sm:$0xf]
    %v252 = vlaneseq
    %v253 = vshrl.u32 %v252, 7
    %v254 = vsub.s32 0, %v253
    %v255 = vrot.slane %v250, %v254
    %v256 = vlaneseq
    %v257 = vshrl.u32 %v256, 7
    %v258 = vsub.s32 1, %v257
    %v259 = vrot.slane %v250, %v258
    %v260 = vlaneseq
    %v261 = vshrl.u32 %v260, 7
    %v262 = vsub.s32 2, %v261
    %v263 = vrot.slane %v250, %v262
    %v264 = vlaneseq
    %v265 = vshrl.u32 %v264, 7
    %v266 = vsub.s32 3, %v265
    %v267 = vrot.slane %v250, %v266
    %v272 = vadd.f32 %v242, %v255
    %v273 = vadd.f32 %v243, %v259
    %v274 = vadd.f32 %v244, %v263
    %v275 = vadd.f32 %v245, %v267
    %v276 = vadd.f32 %v246, %v255
    %v277 = vadd.f32 %v247, %v259
    %v278 = vadd.f32 %v248, %v263
    %v279 = vadd.f32 %v249, %v267
    %v280 = vmax.f32 %v272, 0.0
    %v281 = vmax.f32 %v273, 0.0
    %v282 = vmax.f32 %v274, 0.0
    %v283 = vmax.f32 %v275, 0.0
    %v284 = vmax.f32 %v276, 0.0
    %v285 = vmax.f32 %v277, 0.0
    %v286 = vmax.f32 %v278, 0.0
    %v287 = vmax.f32 %v279, 0.0
    %288 = vst [vmem:[#allocation2] sm:$0xf] 0
    %289 = vst [vmem:[#allocation2 + $0x4] sm:$0xf] 0
    %290 = vst [vmem:[#allocation2 + $0x8] sm:$0xf] 0
    %291 = vst [vmem:[#allocation2 + $0xc] sm:$0xf] 0
    %292 = vst [vmem:[#allocation2 + $0x10] sm:$0xf] 0
    %293 = vst [vmem:[#allocation2 + $0x14] sm:$0xf] 0
    %294 = vst [vmem:[#allocation2 + $0x18] sm:$0xf] 0
    %295 = vst [vmem:[#allocation2 + $0x1c] sm:$0xf] 0
    %296 = vst [vmem:[#allocation2 + $0x20] sm:$0xf] 0
    %297 = vst [vmem:[#allocation2 + $0x24] sm:$0xf] 0
    %298 = vst [vmem:[#allocation2 + $0x28] sm:$0xf] 0
    %299 = vst [vmem:[#allocation2 + $0x2c] sm:$0xf] 0
    %300 = vst [vmem:[#allocation2 + $0x30] sm:$0xf] 0
    %301 = vst [vmem:[#allocation2 + $0x34] sm:$0xf] 0
    %302 = vst [vmem:[#allocation2 + $0x38] sm:$0xf] 0
    %303 = vst [vmem:[#allocation2 + $0x3c] sm:$0xf] 0
    %304 = vst [vmem:[#allocation2 + $0x40] sm:$0xf] 0
    %305 = vst [vmem:[#allocation2 + $0x44] sm:$0xf] 0
    %306 = vst [vmem:[#allocation2 + $0x48] sm:$0xf] 0
    %307 = vst [vmem:[#allocation2 + $0x4c] sm:$0xf] 0
    %308 = vst [vmem:[#allocation2 + $0x50] sm:$0xf] 0
    %309 = vst [vmem:[#allocation2 + $0x54] sm:$0xf] 0
    %310 = vst [vmem:[#allocation2 + $0x58] sm:$0xf] 0
    %311 = vst [vmem:[#allocation2 + $0x5c] sm:$0xf] 0
    %312 = vst [vmem:[#allocation2 + $0x60] sm:$0xf] 0
    %313 = vst [vmem:[#allocation2 + $0x64] sm:$0xf] 0
    %v314 = vpack.c.bf16 %v284, %v280
    %v316 = vunpack.c.l.b16 %v314
    %v317 = vunpack.c.h.b16 %v314
    %v318 = vpack.c.b16 %v316, %v316
    %v319 = vpack.c.b16 %v317, %v317
    %322 = vst [vmem:[#allocation2 + $0x18] sm:$0xf] %v318
    %323 = vst [vmem:[#allocation2 + $0x1c] sm:$0xf] %v319
    %v324 = vpack.c.bf16 %v285, %v281
    %v326 = vunpack.c.l.b16 %v324
    %v327 = vunpack.c.h.b16 %v324
    %v328 = vpack.c.b16 %v326, %v326
    %v329 = vpack.c.b16 %v327, %v327
    %332 = vst [vmem:[#allocation2 + $0x28] sm:$0xf] %v328
    %333 = vst [vmem:[#allocation2 + $0x2c] sm:$0xf] %v329
    %v334 = vpack.c.bf16 %v286, %v282
    %v336 = vunpack.c.l.b16 %v334
    %v337 = vunpack.c.h.b16 %v334
    %v338 = vpack.c.b16 %v336, %v336
    %v339 = vpack.c.b16 %v337, %v337
    %342 = vst [vmem:[#allocation2 + $0x38] sm:$0xf] %v338
    %343 = vst [vmem:[#allocation2 + $0x3c] sm:$0xf] %v339
    %v344 = vpack.c.bf16 %v287, %v283
    %v346 = vunpack.c.l.b16 %v344
    %v347 = vunpack.c.h.b16 %v344
    %v348 = vpack.c.b16 %v346, %v346
    %v349 = vpack.c.b16 %v347, %v347
    %352 = vst [vmem:[#allocation2 + $0x48] sm:$0xf] %v348
    %353 = vst [vmem:[#allocation2 + $0x4c] sm:$0xf] %v349
    %v354 = vld [vmem:[#allocation2] sm:$0xf]
    %v355 = vld [vmem:[#allocation2 + $0x4] sm:$0xf]
    %v356 = vld [vmem:[#allocation2 + $0x8] sm:$0xf]
    %v357 = vld [vmem:[#allocation2 + $0xc] sm:$0xf]
    %v358 = vld [vmem:[#allocation2 + $0x10] sm:$0xf]
    %v359 = vld [vmem:[#allocation2 + $0x14] sm:$0xf]
    %v360 = vld [vmem:[#allocation2 + $0x18] sm:$0xf]
    %v361 = vld [vmem:[#allocation2 + $0x1c] sm:$0xf]
    %v362 = vld [vmem:[#allocation2 + $0x20] sm:$0xf]
    %v363 = vld [vmem:[#allocation2 + $0x24] sm:$0xf]
    %v364 = vld [vmem:[#allocation2 + $0x28] sm:$0xf]
    %v365 = vld [vmem:[#allocation2 + $0x2c] sm:$0xf]
    %v366 = vld [vmem:[#allocation2 + $0x30] sm:$0xf]
    %v367 = vld [vmem:[#allocation2 + $0x34] sm:$0xf]
    %v368 = vld [vmem:[#allocation2 + $0x38] sm:$0xf]
    %v369 = vld [vmem:[#allocation2 + $0x3c] sm:$0xf]
    %v370 = vld [vmem:[#allocation2 + $0x40] sm:$0xf]
    %v371 = vld [vmem:[#allocation2 + $0x44] sm:$0xf]
    %v372 = vld [vmem:[#allocation2 + $0x48] sm:$0xf]
    %v373 = vld [vmem:[#allocation2 + $0x4c] sm:$0xf]
    %v374 = vld [vmem:[%s4] sm:$0xff]
    %v375 = vld [vmem:[%s4 + $0x8] sm:$0xff]
    %v376 = vld [vmem:[%s4 + $0x10] sm:$0xff]
    %v377 = vld [vmem:[%s4 + $0x18] sm:$0xff]
    %v378 = vld [vmem:[%s4 + $0x20] sm:$0xff]
    %v379 = vld [vmem:[%s4 + $0x28] sm:$0xff]
    %v380 = vld [vmem:[%s4 + $0x30] sm:$0xff]
    %v381 = vld [vmem:[%s4 + $0x38] sm:$0xff]
    %v382 = vld [vmem:[%s4 + $0x40] sm:$0xff]
    %v383 = vld [vmem:[%s4 + $0x48] sm:$0xff]
    %v384 = vld [vmem:[%s4 + $0x50] sm:$0xff]
    %v385 = vld [vmem:[%s4 + $0x58] sm:$0xff]
    %v386 = vld [vmem:[%s4 + $0x60] sm:$0xff]
    %v387 = vld [vmem:[%s4 + $0x68] sm:$0xff]
    %v388 = vld [vmem:[%s4 + $0x70] sm:$0xff]
    %v389 = vld [vmem:[%s4 + $0x78] sm:$0xff]
    %v390 = vld [vmem:[#allocation2 + $0x50] sm:$0xf]
    %v391 = vld [vmem:[#allocation2 + $0x54] sm:$0xf]
    %s392 = scalar_lea.vmem %s4, 128
    %v393 = vld [vmem:[%s392] sm:$0xff]
    %v394 = vld [vmem:[%s392 + $0x8] sm:$0xff]
    %v395 = vld [vmem:[%s392 + $0x10] sm:$0xff]
    %v396 = vld [vmem:[%s392 + $0x18] sm:$0xff]
    %v397 = vld [vmem:[%s392 + $0x20] sm:$0xff]
    %v398 = vld [vmem:[%s392 + $0x28] sm:$0xff]
    %v399 = vld [vmem:[%s392 + $0x30] sm:$0xff]
    %v400 = vld [vmem:[%s392 + $0x38] sm:$0xff]
    %v401 = vld [vmem:[%s392 + $0x40] sm:$0xff]
    %v402 = vld [vmem:[%s392 + $0x48] sm:$0xff]
    %v403 = vld [vmem:[%s392 + $0x50] sm:$0xff]
    %v404 = vld [vmem:[%s392 + $0x58] sm:$0xff]
    %v405 = vld [vmem:[%s392 + $0x60] sm:$0xff]
    %v406 = vld [vmem:[%s392 + $0x68] sm:$0xff]
    %v407 = vld [vmem:[%s392 + $0x70] sm:$0xff]
    %v408 = vld [vmem:[%s392 + $0x78] sm:$0xff]
    %v429 = vunpack.c.l.b16 %v356
    %v430 = vunpack.c.l.b16 %v357
    %v431 = vunpack.c.l.b16 %v358
    %v432 = vunpack.c.l.b16 %v359
    %v433 = vunpack.c.l.b16 %v360
    %v434 = vunpack.c.l.b16 %v361
    %v435 = vunpack.c.l.b16 %v362
    %v436 = vunpack.c.l.b16 %v363
    %v437 = vunpack.c.l.b16 %v364
    %v438 = vunpack.c.l.b16 %v365
    %v439 = vunpack.c.l.b16 %v366
    %v440 = vunpack.c.l.b16 %v367
    %v441 = vunpack.c.l.b16 %v368
    %v442 = vunpack.c.l.b16 %v369
    %v443 = vunpack.c.l.b16 %v370
    %v444 = vunpack.c.l.b16 %v371
    %v445 = vunpack.c.l.b16 %v372
    %v446 = vunpack.c.l.b16 %v373
    %v447 = vunpack.c.l.b16 %v390
    %v448 = vunpack.c.l.b16 %v391
    %v449 = vpack.c.b16 %v430, %v429
    %v450 = vpack.c.b16 %v432, %v431
    %v451 = vpack.c.b16 %v434, %v433
    %v452 = vpack.c.b16 %v436, %v435
    %v453 = vpack.c.b16 %v438, %v437
    %v454 = vpack.c.b16 %v440, %v439
    %v455 = vpack.c.b16 %v442, %v441
    %v456 = vpack.c.b16 %v444, %v443
    %v457 = vpack.c.b16 %v446, %v445
    %v458 = vpack.c.b16 %v448, %v447
    %v485 = vunpack.c.l.b16 %v393
    %v486 = vunpack.c.h.b16 %v393
    %v487 = vunpack.c.l.b16 %v394
    %v488 = vunpack.c.h.b16 %v394
    %v489 = vunpack.c.l.b16 %v395
    %v490 = vunpack.c.h.b16 %v395
    %v491 = vunpack.c.l.b16 %v396
    %v492 = vunpack.c.h.b16 %v396
    %v493 = vunpack.c.l.b16 %v397
    %v494 = vunpack.c.h.b16 %v397
    %v495 = vunpack.c.l.b16 %v398
    %v496 = vunpack.c.h.b16 %v398
    %v497 = vunpack.c.l.b16 %v399
    %v498 = vunpack.c.h.b16 %v399
    %v499 = vunpack.c.l.b16 %v400
    %v500 = vunpack.c.h.b16 %v400
    %v501 = vunpack.c.l.b16 %v401
    %v502 = vunpack.c.h.b16 %v401
    %v503 = vunpack.c.l.b16 %v402
    %v504 = vunpack.c.h.b16 %v402
    %v505 = vunpack.c.l.b16 %v403
    %v506 = vunpack.c.h.b16 %v403
    %v507 = vunpack.c.l.b16 %v404
    %v508 = vunpack.c.h.b16 %v404
    %v509 = vunpack.c.l.b16 %v405
    %v510 = vunpack.c.h.b16 %v405
    %v511 = vunpack.c.l.b16 %v406
    %v512 = vunpack.c.h.b16 %v406
    %v513 = vunpack.c.l.b16 %v407
    %v514 = vunpack.c.h.b16 %v407
    %v515 = vunpack.c.l.b16 %v408
    %v516 = vunpack.c.h.b16 %v408
    %v517 = vpack.c.b16 %v487, %v485
    %v518 = vpack.c.b16 %v488, %v486
    %v519 = vpack.c.b16 %v491, %v489
    %v520 = vpack.c.b16 %v492, %v490
    %v521 = vpack.c.b16 %v495, %v493
    %v522 = vpack.c.b16 %v496, %v494
    %v523 = vpack.c.b16 %v499, %v497
    %v524 = vpack.c.b16 %v500, %v498
    %v525 = vpack.c.b16 %v503, %v501
    %v526 = vpack.c.b16 %v504, %v502
    %v527 = vpack.c.b16 %v507, %v505
    %v528 = vpack.c.b16 %v508, %v506
    %v529 = vpack.c.b16 %v511, %v509
    %v530 = vpack.c.b16 %v512, %v510
    %v531 = vpack.c.b16 %v515, %v513
    %v532 = vpack.c.b16 %v516, %v514
    %549 = vmatprep.subr.bf16.mxu0 %v532
    %550 = vmatpush1.bf16.msra.mxu0 %v531
    %551 = vmatprep.subr.bf16.mxu0 %v530
    %552 = vmatpush1.bf16.msra.mxu0 %v529
    %553 = vmatprep.subr.bf16.mxu0 %v528
    %554 = vmatpush1.bf16.msra.mxu0 %v527
    %555 = vmatprep.subr.bf16.mxu0 %v526
    %556 = vmatpush1.bf16.msra.mxu0 %v525
    %557 = vmatprep.subr.bf16.mxu0 %v524
    %558 = vmatpush1.bf16.msra.mxu0 %v523
    %559 = vmatprep.subr.bf16.mxu0 %v522
    %560 = vmatpush1.bf16.msra.mxu0 %v521
    %561 = vmatprep.subr.bf16.mxu0 %v520
    %562 = vmatpush1.bf16.msra.mxu0 %v519
    %563 = vmatprep.subr.bf16.mxu0 %v518
    %564 = vmatpush1.bf16.msra.mxu0 %v517
    %565 = vmatprep.subr.bf16.mxu0 0
    %566 = vmatpush2.bf16.msra.mxu0 0
    %567 = vmatprep.subr.bf16.mxu0 0
    %568 = vmatpush2.bf16.msra.mxu0 0
    %569 = vmatprep.subr.bf16.mxu0 0
    %570 = vmatpush2.bf16.msra.mxu0 0
    %571 = vmatprep.subr.bf16.mxu0 0
    %572 = vmatpush2.bf16.msra.mxu0 0
    %573 = vmatprep.subr.bf16.mxu0 0
    %574 = vmatpush2.bf16.msra.mxu0 0
    %575 = vmatprep.subr.bf16.mxu0 0
    %576 = vmatpush2.bf16.msra.mxu0 0
    %577 = vmatprep.subr.bf16.mxu0 0
    %578 = vmatpush2.bf16.msra.mxu0 0
    %579 = vmatprep.subr.bf16.mxu0 0
    %580 = vmatpush2.bf16.msra.mxu0 0
    %581 = vmatprep.mubr.bf16.mxu0 0
    %582 = vmatmul.mubr.bf16.gmra.mxu0 %v449
    %v583 = vpop.f32.mrf.mxu0
    %v584 = vadd.f32 0.0, %v583
    %v585 = vpop.f32.mrf.mxu0
    %v586 = vadd.f32 0.0, %v585
    %v587 = vpop.f32.mrf.mxu0
    %v588 = vadd.f32 0.0, %v587
    %v589 = vpop.f32.mrf.mxu0
    %v590 = vadd.f32 0.0, %v589
    %591 = vmatprep.mubr.bf16.mxu0 0
    %592 = vmatmul.mubr.bf16.gmra.mxu0 %v450
    %v593 = vpop.f32.mrf.mxu0
    %v594 = vadd.f32 0.0, %v593
    %v595 = vpop.f32.mrf.mxu0
    %v596 = vadd.f32 0.0, %v595
    %v597 = vpop.f32.mrf.mxu0
    %v598 = vadd.f32 0.0, %v597
    %v599 = vpop.f32.mrf.mxu0
    %v600 = vadd.f32 0.0, %v599
    %601 = vmatprep.mubr.bf16.mxu0 0
    %602 = vmatmul.mubr.bf16.gmra.mxu0 %v451
    %v603 = vpop.f32.mrf.mxu0
    %v604 = vadd.f32 0.0, %v603
    %v605 = vpop.f32.mrf.mxu0
    %v606 = vadd.f32 0.0, %v605
    %v607 = vpop.f32.mrf.mxu0
    %v608 = vadd.f32 0.0, %v607
    %v609 = vpop.f32.mrf.mxu0
    %v610 = vadd.f32 0.0, %v609
    %611 = vmatprep.mubr.bf16.mxu0 0
    %612 = vmatmul.mubr.bf16.gmra.mxu0 %v452
    %v613 = vpop.f32.mrf.mxu0
    %v614 = vadd.f32 0.0, %v613
    %v615 = vpop.f32.mrf.mxu0
    %v616 = vadd.f32 0.0, %v615
    %v617 = vpop.f32.mrf.mxu0
    %v618 = vadd.f32 0.0, %v617
    %v619 = vpop.f32.mrf.mxu0
    %v620 = vadd.f32 0.0, %v619
    %621 = vmatprep.mubr.bf16.mxu0 0
    %622 = vmatmul.mubr.bf16.gmra.mxu0 %v453
    %v623 = vpop.f32.mrf.mxu0
    %v624 = vadd.f32 0.0, %v623
    %v625 = vpop.f32.mrf.mxu0
    %v626 = vadd.f32 0.0, %v625
    %v627 = vpop.f32.mrf.mxu0
    %v628 = vadd.f32 0.0, %v627
    %v629 = vpop.f32.mrf.mxu0
    %v630 = vadd.f32 0.0, %v629
    %631 = vmatprep.mubr.bf16.mxu0 0
    %632 = vmatmul.mubr.bf16.gmra.mxu0 %v454
    %v633 = vpop.f32.mrf.mxu0
    %v634 = vadd.f32 0.0, %v633
    %v635 = vpop.f32.mrf.mxu0
    %v636 = vadd.f32 0.0, %v635
    %v637 = vpop.f32.mrf.mxu0
    %v638 = vadd.f32 0.0, %v637
    %v639 = vpop.f32.mrf.mxu0
    %v640 = vadd.f32 0.0, %v639
    %641 = vmatprep.mubr.bf16.mxu0 0
    %642 = vmatmul.mubr.bf16.gmra.mxu0 %v455
    %v643 = vpop.f32.mrf.mxu0
    %v644 = vadd.f32 0.0, %v643
    %v645 = vpop.f32.mrf.mxu0
    %v646 = vadd.f32 0.0, %v645
    %v647 = vpop.f32.mrf.mxu0
    %v648 = vadd.f32 0.0, %v647
    %v649 = vpop.f32.mrf.mxu0
    %v650 = vadd.f32 0.0, %v649
    %651 = vmatprep.mubr.bf16.mxu0 0
    %652 = vmatmul.mubr.bf16.gmra.mxu0 %v456
    %v653 = vpop.f32.mrf.mxu0
    %v654 = vadd.f32 0.0, %v653
    %v655 = vpop.f32.mrf.mxu0
    %v656 = vadd.f32 0.0, %v655
    %v657 = vpop.f32.mrf.mxu0
    %v658 = vadd.f32 0.0, %v657
    %v659 = vpop.f32.mrf.mxu0
    %v660 = vadd.f32 0.0, %v659
    %661 = vmatprep.mubr.bf16.mxu0 0
    %662 = vmatmul.mubr.bf16.gmra.mxu0 %v457
    %v663 = vpop.f32.mrf.mxu0
    %v664 = vadd.f32 0.0, %v663
    %v665 = vpop.f32.mrf.mxu0
    %v666 = vadd.f32 0.0, %v665
    %v667 = vpop.f32.mrf.mxu0
    %v668 = vadd.f32 0.0, %v667
    %v669 = vpop.f32.mrf.mxu0
    %v670 = vadd.f32 0.0, %v669
    %671 = vmatprep.mubr.bf16.mxu0 0
    %672 = vmatmul.mubr.bf16.gmra.mxu0 %v458
    %v673 = vpop.f32.mrf.mxu0
    %v674 = vadd.f32 0.0, %v673
    %v675 = vpop.f32.mrf.mxu0
    %v676 = vadd.f32 0.0, %v675
    %v677 = vpop.f32.mrf.mxu0
    %v678 = vadd.f32 0.0, %v677
    %v679 = vpop.f32.mrf.mxu0
    %v680 = vadd.f32 0.0, %v679
    %681 = vdwg.mxu0
    %v684 = vunpack.c.l.b16 %v354
    %v685 = vunpack.c.l.b16 %v355
    %v686 = vpack.c.b16 %v685, %v684
    %v704 = vunpack.c.l.b16 %v374
    %v705 = vunpack.c.h.b16 %v374
    %v706 = vunpack.c.l.b16 %v375
    %v707 = vunpack.c.h.b16 %v375
    %v708 = vunpack.c.l.b16 %v376
    %v709 = vunpack.c.h.b16 %v376
    %v710 = vunpack.c.l.b16 %v377
    %v711 = vunpack.c.h.b16 %v377
    %v712 = vunpack.c.l.b16 %v378
    %v713 = vunpack.c.h.b16 %v378
    %v714 = vunpack.c.l.b16 %v379
    %v715 = vunpack.c.h.b16 %v379
    %v716 = vunpack.c.l.b16 %v380
    %v717 = vunpack.c.h.b16 %v380
    %v718 = vunpack.c.l.b16 %v381
    %v719 = vunpack.c.h.b16 %v381
    %v720 = vunpack.c.l.b16 %v382
    %v721 = vunpack.c.h.b16 %v382
    %v722 = vunpack.c.l.b16 %v383
    %v723 = vunpack.c.h.b16 %v383
    %v724 = vunpack.c.l.b16 %v384
    %v725 = vunpack.c.h.b16 %v384
    %v726 = vunpack.c.l.b16 %v385
    %v727 = vunpack.c.h.b16 %v385
    %v728 = vunpack.c.l.b16 %v386
    %v729 = vunpack.c.h.b16 %v386
    %v730 = vunpack.c.l.b16 %v387
    %v731 = vunpack.c.h.b16 %v387
    %v732 = vunpack.c.l.b16 %v388
    %v733 = vunpack.c.h.b16 %v388
    %v734 = vunpack.c.l.b16 %v389
    %v735 = vunpack.c.h.b16 %v389
    %v736 = vpack.c.b16 %v706, %v704
    %v737 = vpack.c.b16 %v707, %v705
    %v738 = vpack.c.b16 %v710, %v708
    %v739 = vpack.c.b16 %v711, %v709
    %v740 = vpack.c.b16 %v714, %v712
    %v741 = vpack.c.b16 %v715, %v713
    %v742 = vpack.c.b16 %v718, %v716
    %v743 = vpack.c.b16 %v719, %v717
    %v744 = vpack.c.b16 %v722, %v720
    %v745 = vpack.c.b16 %v723, %v721
    %v746 = vpack.c.b16 %v726, %v724
    %v747 = vpack.c.b16 %v727, %v725
    %v748 = vpack.c.b16 %v730, %v728
    %v749 = vpack.c.b16 %v731, %v729
    %v750 = vpack.c.b16 %v734, %v732
    %v751 = vpack.c.b16 %v735, %v733
    %768 = vmatprep.subr.bf16.mxu0 %v751
    %769 = vmatpush1.bf16.msra.mxu0 %v750
    %770 = vmatprep.subr.bf16.mxu0 %v749
    %771 = vmatpush1.bf16.msra.mxu0 %v748
    %772 = vmatprep.subr.bf16.mxu0 %v747
    %773 = vmatpush1.bf16.msra.mxu0 %v746
    %774 = vmatprep.subr.bf16.mxu0 %v745
    %775 = vmatpush1.bf16.msra.mxu0 %v744
    %776 = vmatprep.subr.bf16.mxu0 %v743
    %777 = vmatpush1.bf16.msra.mxu0 %v742
    %778 = vmatprep.subr.bf16.mxu0 %v741
    %779 = vmatpush1.bf16.msra.mxu0 %v740
    %780 = vmatprep.subr.bf16.mxu0 %v739
    %781 = vmatpush1.bf16.msra.mxu0 %v738
    %782 = vmatprep.subr.bf16.mxu0 %v737
    %783 = vmatpush1.bf16.msra.mxu0 %v736
    %784 = vmatprep.subr.bf16.mxu0 0
    %785 = vmatpush2.bf16.msra.mxu0 0
    %786 = vmatprep.subr.bf16.mxu0 0
    %787 = vmatpush2.bf16.msra.mxu0 0
    %788 = vmatprep.subr.bf16.mxu0 0
    %789 = vmatpush2.bf16.msra.mxu0 0
    %790 = vmatprep.subr.bf16.mxu0 0
    %791 = vmatpush2.bf16.msra.mxu0 0
    %792 = vmatprep.subr.bf16.mxu0 0
    %793 = vmatpush2.bf16.msra.mxu0 0
    %794 = vmatprep.subr.bf16.mxu0 0
    %795 = vmatpush2.bf16.msra.mxu0 0
    %796 = vmatprep.subr.bf16.mxu0 0
    %797 = vmatpush2.bf16.msra.mxu0 0
    %798 = vmatprep.subr.bf16.mxu0 0
    %799 = vmatpush2.bf16.msra.mxu0 0
    %800 = vmatprep.mubr.bf16.mxu0 0
    %801 = vmatmul.mubr.bf16.gmra.mxu0 %v686
    %v802 = vpop.f32.mrf.mxu0
    %v803 = vadd.f32 %v584, %v802
    %v804 = vpop.f32.mrf.mxu0
    %v805 = vadd.f32 %v586, %v804
    %v806 = vpop.f32.mrf.mxu0
    %v807 = vadd.f32 %v588, %v806
    %v808 = vpop.f32.mrf.mxu0
    %v809 = vadd.f32 %v590, %v808
    %810 = vmatprep.mubr.bf16.mxu0 0
    %811 = vmatmul.mubr.bf16.gmra.mxu0 %v449
    %v812 = vpop.f32.mrf.mxu0
    %v813 = vadd.f32 %v594, %v812
    %v814 = vpop.f32.mrf.mxu0
    %v815 = vadd.f32 %v596, %v814
    %v816 = vpop.f32.mrf.mxu0
    %v817 = vadd.f32 %v598, %v816
    %v818 = vpop.f32.mrf.mxu0
    %v819 = vadd.f32 %v600, %v818
    %820 = vmatprep.mubr.bf16.mxu0 0
    %821 = vmatmul.mubr.bf16.gmra.mxu0 %v450
    %v822 = vpop.f32.mrf.mxu0
    %v823 = vadd.f32 %v604, %v822
    %v824 = vpop.f32.mrf.mxu0
    %v825 = vadd.f32 %v606, %v824
    %v826 = vpop.f32.mrf.mxu0
    %v827 = vadd.f32 %v608, %v826
    %v828 = vpop.f32.mrf.mxu0
    %v829 = vadd.f32 %v610, %v828
    %830 = vmatprep.mubr.bf16.mxu0 0
    %831 = vmatmul.mubr.bf16.gmra.mxu0 %v451
    %v832 = vpop.f32.mrf.mxu0
    %v833 = vadd.f32 %v614, %v832
    %v834 = vpop.f32.mrf.mxu0
    %v835 = vadd.f32 %v616, %v834
    %v836 = vpop.f32.mrf.mxu0
    %v837 = vadd.f32 %v618, %v836
    %v838 = vpop.f32.mrf.mxu0
    %v839 = vadd.f32 %v620, %v838
    %840 = vmatprep.mubr.bf16.mxu0 0
    %841 = vmatmul.mubr.bf16.gmra.mxu0 %v452
    %v842 = vpop.f32.mrf.mxu0
    %v843 = vadd.f32 %v624, %v842
    %v844 = vpop.f32.mrf.mxu0
    %v845 = vadd.f32 %v626, %v844
    %v846 = vpop.f32.mrf.mxu0
    %v847 = vadd.f32 %v628, %v846
    %v848 = vpop.f32.mrf.mxu0
    %v849 = vadd.f32 %v630, %v848
    %850 = vmatprep.mubr.bf16.mxu0 0
    %851 = vmatmul.mubr.bf16.gmra.mxu0 %v453
    %v852 = vpop.f32.mrf.mxu0
    %v853 = vadd.f32 %v634, %v852
    %v854 = vpop.f32.mrf.mxu0
    %v855 = vadd.f32 %v636, %v854
    %v856 = vpop.f32.mrf.mxu0
    %v857 = vadd.f32 %v638, %v856
    %v858 = vpop.f32.mrf.mxu0
    %v859 = vadd.f32 %v640, %v858
    %860 = vmatprep.mubr.bf16.mxu0 0
    %861 = vmatmul.mubr.bf16.gmra.mxu0 %v454
    %v862 = vpop.f32.mrf.mxu0
    %v863 = vadd.f32 %v644, %v862
    %v864 = vpop.f32.mrf.mxu0
    %v865 = vadd.f32 %v646, %v864
    %v866 = vpop.f32.mrf.mxu0
    %v867 = vadd.f32 %v648, %v866
    %v868 = vpop.f32.mrf.mxu0
    %v869 = vadd.f32 %v650, %v868
    %870 = vmatprep.mubr.bf16.mxu0 0
    %871 = vmatmul.mubr.bf16.gmra.mxu0 %v455
    %v872 = vpop.f32.mrf.mxu0
    %v873 = vadd.f32 %v654, %v872
    %v874 = vpop.f32.mrf.mxu0
    %v875 = vadd.f32 %v656, %v874
    %v876 = vpop.f32.mrf.mxu0
    %v877 = vadd.f32 %v658, %v876
    %v878 = vpop.f32.mrf.mxu0
    %v879 = vadd.f32 %v660, %v878
    %880 = vmatprep.mubr.bf16.mxu0 0
    %881 = vmatmul.mubr.bf16.gmra.mxu0 %v456
    %v882 = vpop.f32.mrf.mxu0
    %v883 = vadd.f32 %v664, %v882
    %v884 = vpop.f32.mrf.mxu0
    %v885 = vadd.f32 %v666, %v884
    %v886 = vpop.f32.mrf.mxu0
    %v887 = vadd.f32 %v668, %v886
    %v888 = vpop.f32.mrf.mxu0
    %v889 = vadd.f32 %v670, %v888
    %890 = vmatprep.mubr.bf16.mxu0 0
    %891 = vmatmul.mubr.bf16.gmra.mxu0 %v457
    %v892 = vpop.f32.mrf.mxu0
    %v893 = vadd.f32 %v674, %v892
    %v894 = vpop.f32.mrf.mxu0
    %v895 = vadd.f32 %v676, %v894
    %v896 = vpop.f32.mrf.mxu0
    %v897 = vadd.f32 %v678, %v896
    %v898 = vpop.f32.mrf.mxu0
    %v899 = vadd.f32 %v680, %v898
    %900 = vdwg.mxu0
    %v901 = vld [vmem:[#allocation2 + $0x10] sm:$0xf]
    %v902 = vld [vmem:[#allocation2 + $0x14] sm:$0xf]
    %v903 = vld [vmem:[#allocation2 + $0x18] sm:$0xf]
    %v904 = vld [vmem:[#allocation2 + $0x1c] sm:$0xf]
    %v905 = vld [vmem:[#allocation2 + $0x20] sm:$0xf]
    %v906 = vld [vmem:[#allocation2 + $0x24] sm:$0xf]
    %v907 = vld [vmem:[#allocation2 + $0x28] sm:$0xf]
    %v908 = vld [vmem:[#allocation2 + $0x2c] sm:$0xf]
    %v909 = vld [vmem:[#allocation2 + $0x30] sm:$0xf]
    %v910 = vld [vmem:[#allocation2 + $0x34] sm:$0xf]
    %v911 = vld [vmem:[#allocation2 + $0x38] sm:$0xf]
    %v912 = vld [vmem:[#allocation2 + $0x3c] sm:$0xf]
    %v913 = vld [vmem:[#allocation2 + $0x40] sm:$0xf]
    %v914 = vld [vmem:[#allocation2 + $0x44] sm:$0xf]
    %v915 = vld [vmem:[#allocation2 + $0x48] sm:$0xf]
    %v916 = vld [vmem:[#allocation2 + $0x4c] sm:$0xf]
    %v917 = vld [vmem:[#allocation2 + $0x50] sm:$0xf]
    %v918 = vld [vmem:[#allocation2 + $0x54] sm:$0xf]
    %v919 = vld [vmem:[#allocation2 + $0x58] sm:$0xf]
    %v920 = vld [vmem:[#allocation2 + $0x5c] sm:$0xf]
    %s921 = scalar_lea.vmem %s4, 256
    %v922 = vld [vmem:[%s921] sm:$0xff]
    %v923 = vld [vmem:[%s921 + $0x8] sm:$0xff]
    %v924 = vld [vmem:[%s921 + $0x10] sm:$0xff]
    %v925 = vld [vmem:[%s921 + $0x18] sm:$0xff]
    %v926 = vld [vmem:[%s921 + $0x20] sm:$0xff]
    %v927 = vld [vmem:[%s921 + $0x28] sm:$0xff]
    %v928 = vld [vmem:[%s921 + $0x30] sm:$0xff]
    %v929 = vld [vmem:[%s921 + $0x38] sm:$0xff]
    %v930 = vld [vmem:[%s921 + $0x40] sm:$0xff]
    %v931 = vld [vmem:[%s921 + $0x48] sm:$0xff]
    %v932 = vld [vmem:[%s921 + $0x50] sm:$0xff]
    %v933 = vld [vmem:[%s921 + $0x58] sm:$0xff]
    %v934 = vld [vmem:[%s921 + $0x60] sm:$0xff]
    %v935 = vld [vmem:[%s921 + $0x68] sm:$0xff]
    %v936 = vld [vmem:[%s921 + $0x70] sm:$0xff]
    %v937 = vld [vmem:[%s921 + $0x78] sm:$0xff]
    %v958 = vunpack.c.l.b16 %v901
    %v959 = vunpack.c.l.b16 %v902
    %v960 = vunpack.c.l.b16 %v903
    %v961 = vunpack.c.l.b16 %v904
    %v962 = vunpack.c.l.b16 %v905
    %v963 = vunpack.c.l.b16 %v906
    %v964 = vunpack.c.l.b16 %v907
    %v965 = vunpack.c.l.b16 %v908
    %v966 = vunpack.c.l.b16 %v909
    %v967 = vunpack.c.l.b16 %v910
    %v968 = vunpack.c.l.b16 %v911
    %v969 = vunpack.c.l.b16 %v912
    %v970 = vunpack.c.l.b16 %v913
    %v971 = vunpack.c.l.b16 %v914
    %v972 = vunpack.c.l.b16 %v915
    %v973 = vunpack.c.l.b16 %v916
    %v974 = vunpack.c.l.b16 %v917
    %v975 = vunpack.c.l.b16 %v918
    %v976 = vunpack.c.l.b16 %v919
    %v977 = vunpack.c.l.b16 %v920
    %v978 = vpack.c.b16 %v959, %v958
    %v979 = vpack.c.b16 %v961, %v960
    %v980 = vpack.c.b16 %v963, %v962
    %v981 = vpack.c.b16 %v965, %v964
    %v982 = vpack.c.b16 %v967, %v966
    %v983 = vpack.c.b16 %v969, %v968
    %v984 = vpack.c.b16 %v971, %v970
    %v985 = vpack.c.b16 %v973, %v972
    %v986 = vpack.c.b16 %v975, %v974
    %v987 = vpack.c.b16 %v977, %v976
    %v1014 = vunpack.c.l.b16 %v922
    %v1015 = vunpack.c.h.b16 %v922
    %v1016 = vunpack.c.l.b16 %v923
    %v1017 = vunpack.c.h.b16 %v923
    %v1018 = vunpack.c.l.b16 %v924
    %v1019 = vunpack.c.h.b16 %v924
    %v1020 = vunpack.c.l.b16 %v925
    %v1021 = vunpack.c.h.b16 %v925
    %v1022 = vunpack.c.l.b16 %v926
    %v1023 = vunpack.c.h.b16 %v926
    %v1024 = vunpack.c.l.b16 %v927
    %v1025 = vunpack.c.h.b16 %v927
    %v1026 = vunpack.c.l.b16 %v928
    %v1027 = vunpack.c.h.b16 %v928
    %v1028 = vunpack.c.l.b16 %v929
    %v1029 = vunpack.c.h.b16 %v929
    %v1030 = vunpack.c.l.b16 %v930
    %v1031 = vunpack.c.h.b16 %v930
    %v1032 = vunpack.c.l.b16 %v931
    %v1033 = vunpack.c.h.b16 %v931
    %v1034 = vunpack.c.l.b16 %v932
    %v1035 = vunpack.c.h.b16 %v932
    %v1036 = vunpack.c.l.b16 %v933
    %v1037 = vunpack.c.h.b16 %v933
    %v1038 = vunpack.c.l.b16 %v934
    %v1039 = vunpack.c.h.b16 %v934
    %v1040 = vunpack.c.l.b16 %v935
    %v1041 = vunpack.c.h.b16 %v935
    %v1042 = vunpack.c.l.b16 %v936
    %v1043 = vunpack.c.h.b16 %v936
    %v1044 = vunpack.c.l.b16 %v937
    %v1045 = vunpack.c.h.b16 %v937
    %v1046 = vpack.c.b16 %v1016, %v1014
    %v1047 = vpack.c.b16 %v1017, %v1015
    %v1048 = vpack.c.b16 %v1020, %v1018
    %v1049 = vpack.c.b16 %v1021, %v1019
    %v1050 = vpack.c.b16 %v1024, %v1022
    %v1051 = vpack.c.b16 %v1025, %v1023
    %v1052 = vpack.c.b16 %v1028, %v1026
    %v1053 = vpack.c.b16 %v1029, %v1027
    %v1054 = vpack.c.b16 %v1032, %v1030
    %v1055 = vpack.c.b16 %v1033, %v1031
    %v1056 = vpack.c.b16 %v1036, %v1034
    %v1057 = vpack.c.b16 %v1037, %v1035
    %v1058 = vpack.c.b16 %v1040, %v1038
    %v1059 = vpack.c.b16 %v1041, %v1039
    %v1060 = vpack.c.b16 %v1044, %v1042
    %v1061 = vpack.c.b16 %v1045, %v1043
    %1078 = vmatprep.subr.bf16.mxu0 %v1061
    %1079 = vmatpush1.bf16.msra.mxu0 %v1060
    %1080 = vmatprep.subr.bf16.mxu0 %v1059
    %1081 = vmatpush1.bf16.msra.mxu0 %v1058
    %1082 = vmatprep.subr.bf16.mxu0 %v1057
    %1083 = vmatpush1.bf16.msra.mxu0 %v1056
    %1084 = vmatprep.subr.bf16.mxu0 %v1055
    %1085 = vmatpush1.bf16.msra.mxu0 %v1054
    %1086 = vmatprep.subr.bf16.mxu0 %v1053
    %1087 = vmatpush1.bf16.msra.mxu0 %v1052
    %1088 = vmatprep.subr.bf16.mxu0 %v1051
    %1089 = vmatpush1.bf16.msra.mxu0 %v1050
    %1090 = vmatprep.subr.bf16.mxu0 %v1049
    %1091 = vmatpush1.bf16.msra.mxu0 %v1048
    %1092 = vmatprep.subr.bf16.mxu0 %v1047
    %1093 = vmatpush1.bf16.msra.mxu0 %v1046
    %1094 = vmatprep.subr.bf16.mxu0 0
    %1095 = vmatpush2.bf16.msra.mxu0 0
    %1096 = vmatprep.subr.bf16.mxu0 0
    %1097 = vmatpush2.bf16.msra.mxu0 0
    %1098 = vmatprep.subr.bf16.mxu0 0
    %1099 = vmatpush2.bf16.msra.mxu0 0
    %1100 = vmatprep.subr.bf16.mxu0 0
    %1101 = vmatpush2.bf16.msra.mxu0 0
    %1102 = vmatprep.subr.bf16.mxu0 0
    %1103 = vmatpush2.bf16.msra.mxu0 0
    %1104 = vmatprep.subr.bf16.mxu0 0
    %1105 = vmatpush2.bf16.msra.mxu0 0
    %1106 = vmatprep.subr.bf16.mxu0 0
    %1107 = vmatpush2.bf16.msra.mxu0 0
    %1108 = vmatprep.subr.bf16.mxu0 0
    %1109 = vmatpush2.bf16.msra.mxu0 0
    %1110 = vmatprep.mubr.bf16.mxu0 0
    %1111 = vmatmul.mubr.bf16.gmra.mxu0 %v978
    %v1112 = vpop.f32.mrf.mxu0
    %v1113 = vadd.f32 0.0, %v1112
    %v1114 = vpop.f32.mrf.mxu0
    %v1115 = vadd.f32 0.0, %v1114
    %v1116 = vpop.f32.mrf.mxu0
    %v1117 = vadd.f32 0.0, %v1116
    %v1118 = vpop.f32.mrf.mxu0
    %v1119 = vadd.f32 0.0, %v1118
    %1120 = vmatprep.mubr.bf16.mxu0 0
    %1121 = vmatmul.mubr.bf16.gmra.mxu0 %v979
    %v1122 = vpop.f32.mrf.mxu0
    %v1123 = vadd.f32 0.0, %v1122
    %v1124 = vpop.f32.mrf.mxu0
    %v1125 = vadd.f32 0.0, %v1124
    %v1126 = vpop.f32.mrf.mxu0
    %v1127 = vadd.f32 0.0, %v1126
    %v1128 = vpop.f32.mrf.mxu0
    %v1129 = vadd.f32 0.0, %v1128
    %1130 = vmatprep.mubr.bf16.mxu0 0
    %1131 = vmatmul.mubr.bf16.gmra.mxu0 %v980
    %v1132 = vpop.f32.mrf.mxu0
    %v1133 = vadd.f32 0.0, %v1132
    %v1134 = vpop.f32.mrf.mxu0
    %v1135 = vadd.f32 0.0, %v1134
    %v1136 = vpop.f32.mrf.mxu0
    %v1137 = vadd.f32 0.0, %v1136
    %v1138 = vpop.f32.mrf.mxu0
    %v1139 = vadd.f32 0.0, %v1138
    %1140 = vmatprep.mubr.bf16.mxu0 0
    %1141 = vmatmul.mubr.bf16.gmra.mxu0 %v981
    %v1142 = vpop.f32.mrf.mxu0
    %v1143 = vadd.f32 0.0, %v1142
    %v1144 = vpop.f32.mrf.mxu0
    %v1145 = vadd.f32 0.0, %v1144
    %v1146 = vpop.f32.mrf.mxu0
    %v1147 = vadd.f32 0.0, %v1146
    %v1148 = vpop.f32.mrf.mxu0
    %v1149 = vadd.f32 0.0, %v1148
    %1150 = vmatprep.mubr.bf16.mxu0 0
    %1151 = vmatmul.mubr.bf16.gmra.mxu0 %v982
    %v1152 = vpop.f32.mrf.mxu0
    %v1153 = vadd.f32 0.0, %v1152
    %v1154 = vpop.f32.mrf.mxu0
    %v1155 = vadd.f32 0.0, %v1154
    %v1156 = vpop.f32.mrf.mxu0
    %v1157 = vadd.f32 0.0, %v1156
    %v1158 = vpop.f32.mrf.mxu0
    %v1159 = vadd.f32 0.0, %v1158
    %1160 = vmatprep.mubr.bf16.mxu0 0
    %1161 = vmatmul.mubr.bf16.gmra.mxu0 %v983
    %v1162 = vpop.f32.mrf.mxu0
    %v1163 = vadd.f32 0.0, %v1162
    %v1164 = vpop.f32.mrf.mxu0
    %v1165 = vadd.f32 0.0, %v1164
    %v1166 = vpop.f32.mrf.mxu0
    %v1167 = vadd.f32 0.0, %v1166
    %v1168 = vpop.f32.mrf.mxu0
    %v1169 = vadd.f32 0.0, %v1168
    %1170 = vmatprep.mubr.bf16.mxu0 0
    %1171 = vmatmul.mubr.bf16.gmra.mxu0 %v984
    %v1172 = vpop.f32.mrf.mxu0
    %v1173 = vadd.f32 0.0, %v1172
    %v1174 = vpop.f32.mrf.mxu0
    %v1175 = vadd.f32 0.0, %v1174
    %v1176 = vpop.f32.mrf.mxu0
    %v1177 = vadd.f32 0.0, %v1176
    %v1178 = vpop.f32.mrf.mxu0
    %v1179 = vadd.f32 0.0, %v1178
    %1180 = vmatprep.mubr.bf16.mxu0 0
    %1181 = vmatmul.mubr.bf16.gmra.mxu0 %v985
    %v1182 = vpop.f32.mrf.mxu0
    %v1183 = vadd.f32 0.0, %v1182
    %v1184 = vpop.f32.mrf.mxu0
    %v1185 = vadd.f32 0.0, %v1184
    %v1186 = vpop.f32.mrf.mxu0
    %v1187 = vadd.f32 0.0, %v1186
    %v1188 = vpop.f32.mrf.mxu0
    %v1189 = vadd.f32 0.0, %v1188
    %1190 = vmatprep.mubr.bf16.mxu0 0
    %1191 = vmatmul.mubr.bf16.gmra.mxu0 %v986
    %v1192 = vpop.f32.mrf.mxu0
    %v1193 = vadd.f32 0.0, %v1192
    %v1194 = vpop.f32.mrf.mxu0
    %v1195 = vadd.f32 0.0, %v1194
    %v1196 = vpop.f32.mrf.mxu0
    %v1197 = vadd.f32 0.0, %v1196
    %v1198 = vpop.f32.mrf.mxu0
    %v1199 = vadd.f32 0.0, %v1198
    %1200 = vmatprep.mubr.bf16.mxu0 0
    %1201 = vmatmul.mubr.bf16.gmra.mxu0 %v987
    %v1202 = vpop.f32.mrf.mxu0
    %v1203 = vadd.f32 0.0, %v1202
    %v1204 = vpop.f32.mrf.mxu0
    %v1205 = vadd.f32 0.0, %v1204
    %v1206 = vpop.f32.mrf.mxu0
    %v1207 = vadd.f32 0.0, %v1206
    %v1208 = vpop.f32.mrf.mxu0
    %v1209 = vadd.f32 0.0, %v1208
    %1210 = vdwg.mxu0
    %v1211 = vadd.f32 %v803, %v1113
    %v1212 = vadd.f32 %v805, %v1115
    %v1213 = vadd.f32 %v807, %v1117
    %v1214 = vadd.f32 %v809, %v1119
    %v1215 = vadd.f32 %v813, %v1123
    %v1216 = vadd.f32 %v815, %v1125
    %v1217 = vadd.f32 %v817, %v1127
    %v1218 = vadd.f32 %v819, %v1129
    %v1219 = vadd.f32 %v823, %v1133
    %v1220 = vadd.f32 %v825, %v1135
    %v1221 = vadd.f32 %v827, %v1137
    %v1222 = vadd.f32 %v829, %v1139
    %v1223 = vadd.f32 %v833, %v1143
    %v1224 = vadd.f32 %v835, %v1145
    %v1225 = vadd.f32 %v837, %v1147
    %v1226 = vadd.f32 %v839, %v1149
    %v1227 = vadd.f32 %v843, %v1153
    %v1228 = vadd.f32 %v845, %v1155
    %v1229 = vadd.f32 %v847, %v1157
    %v1230 = vadd.f32 %v849, %v1159
    %v1231 = vadd.f32 %v853, %v1163
    %v1232 = vadd.f32 %v855, %v1165
    %v1233 = vadd.f32 %v857, %v1167
    %v1234 = vadd.f32 %v859, %v1169
    %v1235 = vadd.f32 %v863, %v1173
    %v1236 = vadd.f32 %v865, %v1175
    %v1237 = vadd.f32 %v867, %v1177
    %v1238 = vadd.f32 %v869, %v1179
    %v1239 = vadd.f32 %v873, %v1183
    %v1240 = vadd.f32 %v875, %v1185
    %v1241 = vadd.f32 %v877, %v1187
    %v1242 = vadd.f32 %v879, %v1189
    %v1243 = vadd.f32 %v883, %v1193
    %v1244 = vadd.f32 %v885, %v1195
    %v1245 = vadd.f32 %v887, %v1197
    %v1246 = vadd.f32 %v889, %v1199
    %v1247 = vadd.f32 %v893, %v1203
    %v1248 = vadd.f32 %v895, %v1205
    %v1249 = vadd.f32 %v897, %v1207
    %v1250 = vadd.f32 %v899, %v1209
    %v1251 = vld [vmem:[#allocation2 + $0x18] sm:$0xf]
    %v1252 = vld [vmem:[#allocation2 + $0x1c] sm:$0xf]
    %v1253 = vld [vmem:[#allocation2 + $0x20] sm:$0xf]
    %v1254 = vld [vmem:[#allocation2 + $0x24] sm:$0xf]
    %v1255 = vld [vmem:[#allocation2 + $0x28] sm:$0xf]
    %v1256 = vld [vmem:[#allocation2 + $0x2c] sm:$0xf]
    %v1257 = vld [vmem:[#allocation2 + $0x30] sm:$0xf]
    %v1258 = vld [vmem:[#allocation2 + $0x34] sm:$0xf]
    %v1259 = vld [vmem:[#allocation2 + $0x38] sm:$0xf]
    %v1260 = vld [vmem:[#allocation2 + $0x3c] sm:$0xf]
    %v1261 = vld [vmem:[#allocation2 + $0x40] sm:$0xf]
    %v1262 = vld [vmem:[#allocation2 + $0x44] sm:$0xf]
    %v1263 = vld [vmem:[#allocation2 + $0x48] sm:$0xf]
    %v1264 = vld [vmem:[#allocation2 + $0x4c] sm:$0xf]
    %v1265 = vld [vmem:[#allocation2 + $0x50] sm:$0xf]
    %v1266 = vld [vmem:[#allocation2 + $0x54] sm:$0xf]
    %v1267 = vld [vmem:[#allocation2 + $0x58] sm:$0xf]
    %v1268 = vld [vmem:[#allocation2 + $0x5c] sm:$0xf]
    %v1269 = vld [vmem:[#allocation2 + $0x60] sm:$0xf]
    %v1270 = vld [vmem:[#allocation2 + $0x64] sm:$0xf]
    %s1271 = scalar_lea.vmem %s4, 384
    %v1272 = vld [vmem:[%s1271] sm:$0xff]
    %v1273 = vld [vmem:[%s1271 + $0x8] sm:$0xff]
    %v1274 = vld [vmem:[%s1271 + $0x10] sm:$0xff]
    %v1275 = vld [vmem:[%s1271 + $0x18] sm:$0xff]
    %v1276 = vld [vmem:[%s1271 + $0x20] sm:$0xff]
    %v1277 = vld [vmem:[%s1271 + $0x28] sm:$0xff]
    %v1278 = vld [vmem:[%s1271 + $0x30] sm:$0xff]
    %v1279 = vld [vmem:[%s1271 + $0x38] sm:$0xff]
    %v1280 = vld [vmem:[%s1271 + $0x40] sm:$0xff]
    %v1281 = vld [vmem:[%s1271 + $0x48] sm:$0xff]
    %v1282 = vld [vmem:[%s1271 + $0x50] sm:$0xff]
    %v1283 = vld [vmem:[%s1271 + $0x58] sm:$0xff]
    %v1284 = vld [vmem:[%s1271 + $0x60] sm:$0xff]
    %v1285 = vld [vmem:[%s1271 + $0x68] sm:$0xff]
    %v1286 = vld [vmem:[%s1271 + $0x70] sm:$0xff]
    %v1287 = vld [vmem:[%s1271 + $0x78] sm:$0xff]
    %v1308 = vunpack.c.l.b16 %v1251
    %v1309 = vunpack.c.l.b16 %v1252
    %v1310 = vunpack.c.l.b16 %v1253
    %v1311 = vunpack.c.l.b16 %v1254
    %v1312 = vunpack.c.l.b16 %v1255
    %v1313 = vunpack.c.l.b16 %v1256
    %v1314 = vunpack.c.l.b16 %v1257
    %v1315 = vunpack.c.l.b16 %v1258
    %v1316 = vunpack.c.l.b16 %v1259
    %v1317 = vunpack.c.l.b16 %v1260
    %v1318 = vunpack.c.l.b16 %v1261
    %v1319 = vunpack.c.l.b16 %v1262
    %v1320 = vunpack.c.l.b16 %v1263
    %v1321 = vunpack.c.l.b16 %v1264
    %v1322 = vunpack.c.l.b16 %v1265
    %v1323 = vunpack.c.l.b16 %v1266
    %v1324 = vunpack.c.l.b16 %v1267
    %v1325 = vunpack.c.l.b16 %v1268
    %v1326 = vunpack.c.l.b16 %v1269
    %v1327 = vunpack.c.l.b16 %v1270
    %v1328 = vpack.c.b16 %v1309, %v1308
    %v1329 = vpack.c.b16 %v1311, %v1310
    %v1330 = vpack.c.b16 %v1313, %v1312
    %v1331 = vpack.c.b16 %v1315, %v1314
    %v1332 = vpack.c.b16 %v1317, %v1316
    %v1333 = vpack.c.b16 %v1319, %v1318
    %v1334 = vpack.c.b16 %v1321, %v1320
    %v1335 = vpack.c.b16 %v1323, %v1322
    %v1336 = vpack.c.b16 %v1325, %v1324
    %v1337 = vpack.c.b16 %v1327, %v1326
    %v1364 = vunpack.c.l.b16 %v1272
    %v1365 = vunpack.c.h.b16 %v1272
    %v1366 = vunpack.c.l.b16 %v1273
    %v1367 = vunpack.c.h.b16 %v1273
    %v1368 = vunpack.c.l.b16 %v1274
    %v1369 = vunpack.c.h.b16 %v1274
    %v1370 = vunpack.c.l.b16 %v1275
    %v1371 = vunpack.c.h.b16 %v1275
    %v1372 = vunpack.c.l.b16 %v1276
    %v1373 = vunpack.c.h.b16 %v1276
    %v1374 = vunpack.c.l.b16 %v1277
    %v1375 = vunpack.c.h.b16 %v1277
    %v1376 = vunpack.c.l.b16 %v1278
    %v1377 = vunpack.c.h.b16 %v1278
    %v1378 = vunpack.c.l.b16 %v1279
    %v1379 = vunpack.c.h.b16 %v1279
    %v1380 = vunpack.c.l.b16 %v1280
    %v1381 = vunpack.c.h.b16 %v1280
    %v1382 = vunpack.c.l.b16 %v1281
    %v1383 = vunpack.c.h.b16 %v1281
    %v1384 = vunpack.c.l.b16 %v1282
    %v1385 = vunpack.c.h.b16 %v1282
    %v1386 = vunpack.c.l.b16 %v1283
    %v1387 = vunpack.c.h.b16 %v1283
    %v1388 = vunpack.c.l.b16 %v1284
    %v1389 = vunpack.c.h.b16 %v1284
    %v1390 = vunpack.c.l.b16 %v1285
    %v1391 = vunpack.c.h.b16 %v1285
    %v1392 = vunpack.c.l.b16 %v1286
    %v1393 = vunpack.c.h.b16 %v1286
    %v1394 = vunpack.c.l.b16 %v1287
    %v1395 = vunpack.c.h.b16 %v1287
    %v1396 = vpack.c.b16 %v1366, %v1364
    %v1397 = vpack.c.b16 %v1367, %v1365
    %v1398 = vpack.c.b16 %v1370, %v1368
    %v1399 = vpack.c.b16 %v1371, %v1369
    %v1400 = vpack.c.b16 %v1374, %v1372
    %v1401 = vpack.c.b16 %v1375, %v1373
    %v1402 = vpack.c.b16 %v1378, %v1376
    %v1403 = vpack.c.b16 %v1379, %v1377
    %v1404 = vpack.c.b16 %v1382, %v1380
    %v1405 = vpack.c.b16 %v1383, %v1381
    %v1406 = vpack.c.b16 %v1386, %v1384
    %v1407 = vpack.c.b16 %v1387, %v1385
    %v1408 = vpack.c.b16 %v1390, %v1388
    %v1409 = vpack.c.b16 %v1391, %v1389
    %v1410 = vpack.c.b16 %v1394, %v1392
    %v1411 = vpack.c.b16 %v1395, %v1393
    %1428 = vmatprep.subr.bf16.mxu0 %v1411
    %1429 = vmatpush1.bf16.msra.mxu0 %v1410
    %1430 = vmatprep.subr.bf16.mxu0 %v1409
    %1431 = vmatpush1.bf16.msra.mxu0 %v1408
    %1432 = vmatprep.subr.bf16.mxu0 %v1407
    %1433 = vmatpush1.bf16.msra.mxu0 %v1406
    %1434 = vmatprep.subr.bf16.mxu0 %v1405
    %1435 = vmatpush1.bf16.msra.mxu0 %v1404
    %1436 = vmatprep.subr.bf16.mxu0 %v1403
    %1437 = vmatpush1.bf16.msra.mxu0 %v1402
    %1438 = vmatprep.subr.bf16.mxu0 %v1401
    %1439 = vmatpush1.bf16.msra.mxu0 %v1400
    %1440 = vmatprep.subr.bf16.mxu0 %v1399
    %1441 = vmatpush1.bf16.msra.mxu0 %v1398
    %1442 = vmatprep.subr.bf16.mxu0 %v1397
    %1443 = vmatpush1.bf16.msra.mxu0 %v1396
    %1444 = vmatprep.subr.bf16.mxu0 0
    %1445 = vmatpush2.bf16.msra.mxu0 0
    %1446 = vmatprep.subr.bf16.mxu0 0
    %1447 = vmatpush2.bf16.msra.mxu0 0
    %1448 = vmatprep.subr.bf16.mxu0 0
    %1449 = vmatpush2.bf16.msra.mxu0 0
    %1450 = vmatprep.subr.bf16.mxu0 0
    %1451 = vmatpush2.bf16.msra.mxu0 0
    %1452 = vmatprep.subr.bf16.mxu0 0
    %1453 = vmatpush2.bf16.msra.mxu0 0
    %1454 = vmatprep.subr.bf16.mxu0 0
    %1455 = vmatpush2.bf16.msra.mxu0 0
    %1456 = vmatprep.subr.bf16.mxu0 0
    %1457 = vmatpush2.bf16.msra.mxu0 0
    %1458 = vmatprep.subr.bf16.mxu0 0
    %1459 = vmatpush2.bf16.msra.mxu0 0
    %1460 = vmatprep.mubr.bf16.mxu0 0
    %1461 = vmatmul.mubr.bf16.gmra.mxu0 %v1328
    %v1462 = vpop.f32.mrf.mxu0
    %v1463 = vadd.f32 0.0, %v1462
    %v1464 = vpop.f32.mrf.mxu0
    %v1465 = vadd.f32 0.0, %v1464
    %v1466 = vpop.f32.mrf.mxu0
    %v1467 = vadd.f32 0.0, %v1466
    %v1468 = vpop.f32.mrf.mxu0
    %v1469 = vadd.f32 0.0, %v1468
    %1470 = vmatprep.mubr.bf16.mxu0 0
    %1471 = vmatmul.mubr.bf16.gmra.mxu0 %v1329
    %v1472 = vpop.f32.mrf.mxu0
    %v1473 = vadd.f32 0.0, %v1472
    %v1474 = vpop.f32.mrf.mxu0
    %v1475 = vadd.f32 0.0, %v1474
    %v1476 = vpop.f32.mrf.mxu0
    %v1477 = vadd.f32 0.0, %v1476
    %v1478 = vpop.f32.mrf.mxu0
    %v1479 = vadd.f32 0.0, %v1478
    %1480 = vmatprep.mubr.bf16.mxu0 0
    %1481 = vmatmul.mubr.bf16.gmra.mxu0 %v1330
    %v1482 = vpop.f32.mrf.mxu0
    %v1483 = vadd.f32 0.0, %v1482
    %v1484 = vpop.f32.mrf.mxu0
    %v1485 = vadd.f32 0.0, %v1484
    %v1486 = vpop.f32.mrf.mxu0
    %v1487 = vadd.f32 0.0, %v1486
    %v1488 = vpop.f32.mrf.mxu0
    %v1489 = vadd.f32 0.0, %v1488
    %1490 = vmatprep.mubr.bf16.mxu0 0
    %1491 = vmatmul.mubr.bf16.gmra.mxu0 %v1331
    %v1492 = vpop.f32.mrf.mxu0
    %v1493 = vadd.f32 0.0, %v1492
    %v1494 = vpop.f32.mrf.mxu0
    %v1495 = vadd.f32 0.0, %v1494
    %v1496 = vpop.f32.mrf.mxu0
    %v1497 = vadd.f32 0.0, %v1496
    %v1498 = vpop.f32.mrf.mxu0
    %v1499 = vadd.f32 0.0, %v1498
    %1500 = vmatprep.mubr.bf16.mxu0 0
    %1501 = vmatmul.mubr.bf16.gmra.mxu0 %v1332
    %v1502 = vpop.f32.mrf.mxu0
    %v1503 = vadd.f32 0.0, %v1502
    %v1504 = vpop.f32.mrf.mxu0
    %v1505 = vadd.f32 0.0, %v1504
    %v1506 = vpop.f32.mrf.mxu0
    %v1507 = vadd.f32 0.0, %v1506
    %v1508 = vpop.f32.mrf.mxu0
    %v1509 = vadd.f32 0.0, %v1508
    %1510 = vmatprep.mubr.bf16.mxu0 0
    %1511 = vmatmul.mubr.bf16.gmra.mxu0 %v1333
    %v1512 = vpop.f32.mrf.mxu0
    %v1513 = vadd.f32 0.0, %v1512
    %v1514 = vpop.f32.mrf.mxu0
    %v1515 = vadd.f32 0.0, %v1514
    %v1516 = vpop.f32.mrf.mxu0
    %v1517 = vadd.f32 0.0, %v1516
    %v1518 = vpop.f32.mrf.mxu0
    %v1519 = vadd.f32 0.0, %v1518
    %1520 = vmatprep.mubr.bf16.mxu0 0
    %1521 = vmatmul.mubr.bf16.gmra.mxu0 %v1334
    %v1522 = vpop.f32.mrf.mxu0
    %v1523 = vadd.f32 0.0, %v1522
    %v1524 = vpop.f32.mrf.mxu0
    %v1525 = vadd.f32 0.0, %v1524
    %v1526 = vpop.f32.mrf.mxu0
    %v1527 = vadd.f32 0.0, %v1526
    %v1528 = vpop.f32.mrf.mxu0
    %v1529 = vadd.f32 0.0, %v1528
    %1530 = vmatprep.mubr.bf16.mxu0 0
    %1531 = vmatmul.mubr.bf16.gmra.mxu0 %v1335
    %v1532 = vpop.f32.mrf.mxu0
    %v1533 = vadd.f32 0.0, %v1532
    %v1534 = vpop.f32.mrf.mxu0
    %v1535 = vadd.f32 0.0, %v1534
    %v1536 = vpop.f32.mrf.mxu0
    %v1537 = vadd.f32 0.0, %v1536
    %v1538 = vpop.f32.mrf.mxu0
    %v1539 = vadd.f32 0.0, %v1538
    %1540 = vmatprep.mubr.bf16.mxu0 0
    %1541 = vmatmul.mubr.bf16.gmra.mxu0 %v1336
    %v1542 = vpop.f32.mrf.mxu0
    %v1543 = vadd.f32 0.0, %v1542
    %v1544 = vpop.f32.mrf.mxu0
    %v1545 = vadd.f32 0.0, %v1544
    %v1546 = vpop.f32.mrf.mxu0
    %v1547 = vadd.f32 0.0, %v1546
    %v1548 = vpop.f32.mrf.mxu0
    %v1549 = vadd.f32 0.0, %v1548
    %1550 = vmatprep.mubr.bf16.mxu0 0
    %1551 = vmatmul.mubr.bf16.gmra.mxu0 %v1337
    %v1552 = vpop.f32.mrf.mxu0
    %v1553 = vadd.f32 0.0, %v1552
    %v1554 = vpop.f32.mrf.mxu0
    %v1555 = vadd.f32 0.0, %v1554
    %v1556 = vpop.f32.mrf.mxu0
    %v1557 = vadd.f32 0.0, %v1556
    %v1558 = vpop.f32.mrf.mxu0
    %v1559 = vadd.f32 0.0, %v1558
    %1560 = vdwg.mxu0
    %v1561 = vadd.f32 %v1211, %v1463
    %v1562 = vadd.f32 %v1212, %v1465
    %v1563 = vadd.f32 %v1213, %v1467
    %v1564 = vadd.f32 %v1214, %v1469
    %v1565 = vadd.f32 %v1215, %v1473
    %v1566 = vadd.f32 %v1216, %v1475
    %v1567 = vadd.f32 %v1217, %v1477
    %v1568 = vadd.f32 %v1218, %v1479
    %v1569 = vadd.f32 %v1219, %v1483
    %v1570 = vadd.f32 %v1220, %v1485
    %v1571 = vadd.f32 %v1221, %v1487
    %v1572 = vadd.f32 %v1222, %v1489
    %v1573 = vadd.f32 %v1223, %v1493
    %v1574 = vadd.f32 %v1224, %v1495
    %v1575 = vadd.f32 %v1225, %v1497
    %v1576 = vadd.f32 %v1226, %v1499
    %v1577 = vadd.f32 %v1227, %v1503
    %v1578 = vadd.f32 %v1228, %v1505
    %v1579 = vadd.f32 %v1229, %v1507
    %v1580 = vadd.f32 %v1230, %v1509
    %v1581 = vadd.f32 %v1231, %v1513
    %v1582 = vadd.f32 %v1232, %v1515
    %v1583 = vadd.f32 %v1233, %v1517
    %v1584 = vadd.f32 %v1234, %v1519
    %v1585 = vadd.f32 %v1235, %v1523
    %v1586 = vadd.f32 %v1236, %v1525
    %v1587 = vadd.f32 %v1237, %v1527
    %v1588 = vadd.f32 %v1238, %v1529
    %v1589 = vadd.f32 %v1239, %v1533
    %v1590 = vadd.f32 %v1240, %v1535
    %v1591 = vadd.f32 %v1241, %v1537
    %v1592 = vadd.f32 %v1242, %v1539
    %v1593 = vadd.f32 %v1243, %v1543
    %v1594 = vadd.f32 %v1244, %v1545
    %v1595 = vadd.f32 %v1245, %v1547
    %v1596 = vadd.f32 %v1246, %v1549
    %v1597 = vadd.f32 %v1247, %v1553
    %v1598 = vadd.f32 %v1248, %v1555
    %v1599 = vadd.f32 %v1249, %v1557
    %v1600 = vadd.f32 %v1250, %v1559
    %v1601 = vld [vmem:[%s5] sm:$0x3]
    %v1603 = vlaneseq
    %v1604 = vshrl.u32 %v1603, 7
    %v1605 = vsub.s32 0, %v1604
    %v1606 = vrot.slane %v1601, %v1605
    %v1607 = vlaneseq
    %v1608 = vshrl.u32 %v1607, 7
    %v1609 = vsub.s32 1, %v1608
    %v1610 = vrot.slane %v1601, %v1609
    %v1613 = vmul.f32 %v1561, %v1606
    %v1614 = vmul.f32 %v1562, %v1610
    %v1615 = vmul.f32 %v1563, %v1606
    %v1616 = vmul.f32 %v1564, %v1610
    %v1617 = vmul.f32 %v1565, %v1606
    %v1618 = vmul.f32 %v1566, %v1610
    %v1619 = vmul.f32 %v1567, %v1606
    %v1620 = vmul.f32 %v1568, %v1610
    %v1621 = vmul.f32 %v1569, %v1606
    %v1622 = vmul.f32 %v1570, %v1610
    %v1623 = vmul.f32 %v1571, %v1606
    %v1624 = vmul.f32 %v1572, %v1610
    %v1625 = vmul.f32 %v1573, %v1606
    %v1626 = vmul.f32 %v1574, %v1610
    %v1627 = vmul.f32 %v1575, %v1606
    %v1628 = vmul.f32 %v1576, %v1610
    %v1629 = vmul.f32 %v1577, %v1606
    %v1630 = vmul.f32 %v1578, %v1610
    %v1631 = vmul.f32 %v1579, %v1606
    %v1632 = vmul.f32 %v1580, %v1610
    %v1633 = vmul.f32 %v1581, %v1606
    %v1634 = vmul.f32 %v1582, %v1610
    %v1635 = vmul.f32 %v1583, %v1606
    %v1636 = vmul.f32 %v1584, %v1610
    %v1637 = vmul.f32 %v1585, %v1606
    %v1638 = vmul.f32 %v1586, %v1610
    %v1639 = vmul.f32 %v1587, %v1606
    %v1640 = vmul.f32 %v1588, %v1610
    %v1641 = vmul.f32 %v1589, %v1606
    %v1642 = vmul.f32 %v1590, %v1610
    %v1643 = vmul.f32 %v1591, %v1606
    %v1644 = vmul.f32 %v1592, %v1610
    %v1645 = vmul.f32 %v1593, %v1606
    %v1646 = vmul.f32 %v1594, %v1610
    %v1647 = vmul.f32 %v1595, %v1606
    %v1648 = vmul.f32 %v1596, %v1610
    %v1649 = vmul.f32 %v1597, %v1606
    %v1650 = vmul.f32 %v1598, %v1610
    %v1651 = vmul.f32 %v1599, %v1606
    %v1652 = vmul.f32 %v1600, %v1610
    %v1653 = vld [vmem:[%s6] sm:$0x3]
    %v1655 = vlaneseq
    %v1656 = vshrl.u32 %v1655, 7
    %v1657 = vsub.s32 0, %v1656
    %v1658 = vrot.slane %v1653, %v1657
    %v1659 = vlaneseq
    %v1660 = vshrl.u32 %v1659, 7
    %v1661 = vsub.s32 1, %v1660
    %v1662 = vrot.slane %v1653, %v1661
    %v1665 = vadd.f32 %v1613, %v1658
    %v1666 = vadd.f32 %v1614, %v1662
    %v1667 = vadd.f32 %v1615, %v1658
    %v1668 = vadd.f32 %v1616, %v1662
    %v1669 = vadd.f32 %v1617, %v1658
    %v1670 = vadd.f32 %v1618, %v1662
    %v1671 = vadd.f32 %v1619, %v1658
    %v1672 = vadd.f32 %v1620, %v1662
    %v1673 = vadd.f32 %v1621, %v1658
    %v1674 = vadd.f32 %v1622, %v1662
    %v1675 = vadd.f32 %v1623, %v1658
    %v1676 = vadd.f32 %v1624, %v1662
    %v1677 = vadd.f32 %v1625, %v1658
    %v1678 = vadd.f32 %v1626, %v1662
    %v1679 = vadd.f32 %v1627, %v1658
    %v1680 = vadd.f32 %v1628, %v1662
    %v1681 = vadd.f32 %v1629, %v1658
    %v1682 = vadd.f32 %v1630, %v1662
    %v1683 = vadd.f32 %v1631, %v1658
    %v1684 = vadd.f32 %v1632, %v1662
    %v1685 = vadd.f32 %v1633, %v1658
    %v1686 = vadd.f32 %v1634, %v1662
    %v1687 = vadd.f32 %v1635, %v1658
    %v1688 = vadd.f32 %v1636, %v1662
    %v1689 = vadd.f32 %v1637, %v1658
    %v1690 = vadd.f32 %v1638, %v1662
    %v1691 = vadd.f32 %v1639, %v1658
    %v1692 = vadd.f32 %v1640, %v1662
    %v1693 = vadd.f32 %v1641, %v1658
    %v1694 = vadd.f32 %v1642, %v1662
    %v1695 = vadd.f32 %v1643, %v1658
    %v1696 = vadd.f32 %v1644, %v1662
    %v1697 = vadd.f32 %v1645, %v1658
    %v1698 = vadd.f32 %v1646, %v1662
    %v1699 = vadd.f32 %v1647, %v1658
    %v1700 = vadd.f32 %v1648, %v1662
    %v1701 = vadd.f32 %v1649, %v1658
    %v1702 = vadd.f32 %v1650, %v1662
    %v1703 = vadd.f32 %v1651, %v1658
    %v1704 = vadd.f32 %v1652, %v1662
    %v1705 = vmax.f32 %v1665, 0.0
    %v1706 = vmax.f32 %v1666, 0.0
    %v1707 = vmax.f32 %v1667, 0.0
    %v1708 = vmax.f32 %v1668, 0.0
    %v1709 = vmax.f32 %v1669, 0.0
    %v1710 = vmax.f32 %v1670, 0.0
    %v1711 = vmax.f32 %v1671, 0.0
    %v1712 = vmax.f32 %v1672, 0.0
    %v1713 = vmax.f32 %v1673, 0.0
    %v1714 = vmax.f32 %v1674, 0.0
    %v1715 = vmax.f32 %v1675, 0.0
    %v1716 = vmax.f32 %v1676, 0.0
    %v1717 = vmax.f32 %v1677, 0.0
    %v1718 = vmax.f32 %v1678, 0.0
    %v1719 = vmax.f32 %v1679, 0.0
    %v1720 = vmax.f32 %v1680, 0.0
    %v1721 = vmax.f32 %v1681, 0.0
    %v1722 = vmax.f32 %v1682, 0.0
    %v1723 = vmax.f32 %v1683, 0.0
    %v1724 = vmax.f32 %v1684, 0.0
    %v1725 = vmax.f32 %v1685, 0.0
    %v1726 = vmax.f32 %v1686, 0.0
    %v1727 = vmax.f32 %v1687, 0.0
    %v1728 = vmax.f32 %v1688, 0.0
    %v1729 = vmax.f32 %v1689, 0.0
    %v1730 = vmax.f32 %v1690, 0.0
    %v1731 = vmax.f32 %v1691, 0.0
    %v1732 = vmax.f32 %v1692, 0.0
    %v1733 = vmax.f32 %v1693, 0.0
    %v1734 = vmax.f32 %v1694, 0.0
    %v1735 = vmax.f32 %v1695, 0.0
    %v1736 = vmax.f32 %v1696, 0.0
    %v1737 = vmax.f32 %v1697, 0.0
    %v1738 = vmax.f32 %v1698, 0.0
    %v1739 = vmax.f32 %v1699, 0.0
    %v1740 = vmax.f32 %v1700, 0.0
    %v1741 = vmax.f32 %v1701, 0.0
    %v1742 = vmax.f32 %v1702, 0.0
    %v1743 = vmax.f32 %v1703, 0.0
    %v1744 = vmax.f32 %v1704, 0.0
    %vm1745 = vcmask 1043456
    %vm1746 = vcmask 261124
    %vm1747 = vmor %vm1746, %vm1745
    %1748 = vst.msk [vmem:[#allocation3] sm:$0xff] %vm1747, 0
    %1749 = vst.msk [vmem:[#allocation3 + $0x8] sm:$0xff] %vm1747, 0
    %1750 = vst.msk [vmem:[#allocation3 + $0x10] sm:$0xff] %vm1747, 0
    %1751 = vst.msk [vmem:[#allocation3 + $0x18] sm:$0xff] %vm1747, 0
    %1752 = vst.msk [vmem:[#allocation3 + $0x20] sm:$0xff] %vm1747, 0
    %1753 = vst.msk [vmem:[#allocation3 + $0x28] sm:$0xff] %vm1747, 0
    %1754 = vst.msk [vmem:[#allocation3 + $0x30] sm:$0xff] %vm1747, 0
    %1755 = vst.msk [vmem:[#allocation3 + $0x38] sm:$0xff] %vm1747, 0
    %1756 = vst.msk [vmem:[#allocation3 + $0x40] sm:$0xff] %vm1747, 0
    %1757 = vst.msk [vmem:[#allocation3 + $0x48] sm:$0xff] %vm1747, 0
    %1758 = vst.msk [vmem:[#allocation3 + $0x50] sm:$0xff] %vm1747, 0
    %1759 = vst.msk [vmem:[#allocation3 + $0x58] sm:$0xff] %vm1747, 0
    %1760 = vst.msk [vmem:[#allocation3 + $0x60] sm:$0xff] %vm1747, 0
    %1761 = vst.msk [vmem:[#allocation3 + $0x68] sm:$0xff] %vm1747, 0
    %1762 = vst.msk [vmem:[#allocation3 + $0x70] sm:$0xff] %vm1747, 0
    %1763 = vst.msk [vmem:[#allocation3 + $0x78] sm:$0xff] %vm1747, 0
    %1764 = vst.msk [vmem:[#allocation3 + $0x80] sm:$0xff] %vm1747, 0
    %1765 = vst.msk [vmem:[#allocation3 + $0x88] sm:$0xff] %vm1747, 0
    %1766 = vst.msk [vmem:[#allocation3 + $0x90] sm:$0xff] %vm1747, 0
    %1767 = vst.msk [vmem:[#allocation3 + $0x98] sm:$0xff] %vm1747, 0
    %1768 = vst.msk [vmem:[#allocation3 + $0xa0] sm:$0xff] %vm1747, 0
    %1769 = vst.msk [vmem:[#allocation3 + $0xa8] sm:$0xff] %vm1747, 0
    %1770 = vst.msk [vmem:[#allocation3 + $0xb0] sm:$0xff] %vm1747, 0
    %1771 = vst.msk [vmem:[#allocation3 + $0xb8] sm:$0xff] %vm1747, 0
    %1772 = vst.msk [vmem:[#allocation3 + $0xc0] sm:$0xff] %vm1747, 0
    %1773 = vst.msk [vmem:[#allocation3 + $0xc8] sm:$0xff] %vm1747, 0
    %1774 = vst.msk [vmem:[#allocation3 + $0xd0] sm:$0xff] %vm1747, 0
    %1775 = vst.msk [vmem:[#allocation3 + $0xd8] sm:$0xff] %vm1747, 0
    %1776 = vst.msk [vmem:[#allocation3 + $0xe0] sm:$0xff] %vm1747, 0
    %1777 = vst.msk [vmem:[#allocation3 + $0xe8] sm:$0xff] %vm1747, 0
    %1778 = vst.msk [vmem:[#allocation3 + $0xf0] sm:$0xff] %vm1747, 0
    %1779 = vst.msk [vmem:[#allocation3 + $0xf8] sm:$0xff] %vm1747, 0
    %1780 = vst.msk [vmem:[#allocation3 + $0x100] sm:$0xff] %vm1747, 0
    %1781 = vst.msk [vmem:[#allocation3 + $0x108] sm:$0xff] %vm1747, 0
    %1782 = vst.msk [vmem:[#allocation3 + $0x110] sm:$0xff] %vm1747, 0
    %1783 = vst.msk [vmem:[#allocation3 + $0x118] sm:$0xff] %vm1747, 0
    %1784 = vst.msk [vmem:[#allocation3 + $0x120] sm:$0xff] %vm1747, 0
    %1785 = vst.msk [vmem:[#allocation3 + $0x128] sm:$0xff] %vm1747, 0
    %1786 = vst.msk [vmem:[#allocation3 + $0x130] sm:$0xff] %vm1747, 0
    %1787 = vst.msk [vmem:[#allocation3 + $0x138] sm:$0xff] %vm1747, 0
    %1788 = vst.msk [vmem:[#allocation3 + $0x140] sm:$0xff] %vm1747, 0
    %1789 = vst.msk [vmem:[#allocation3 + $0x148] sm:$0xff] %vm1747, 0
    %1790 = vst.msk [vmem:[#allocation3 + $0x150] sm:$0xff] %vm1747, 0
    %1791 = vst.msk [vmem:[#allocation3 + $0x158] sm:$0xff] %vm1747, 0
    %1792 = vst.msk [vmem:[#allocation3 + $0x160] sm:$0xff] %vm1747, 0
    %1793 = vst.msk [vmem:[#allocation3 + $0x168] sm:$0xff] %vm1747, 0
    %1794 = vst.msk [vmem:[#allocation3 + $0x170] sm:$0xff] %vm1747, 0
    %1795 = vst.msk [vmem:[#allocation3 + $0x178] sm:$0xff] %vm1747, 0
    %1796 = vst.msk [vmem:[#allocation3 + $0x180] sm:$0xff] %vm1747, 0
    %1797 = vst.msk [vmem:[#allocation3 + $0x188] sm:$0xff] %vm1747, 0
    %v1798 = vpack.c.bf16 %v1707, %v1705
    %v1799 = vpack.c.bf16 %v1708, %v1706
    %v1802 = vunpack.c.l.b16 %v1798
    %v1803 = vunpack.c.l.b16 %v1799
    %v1804 = vunpack.c.h.b16 %v1798
    %v1805 = vunpack.c.h.b16 %v1799
    %v1806 = vpack.c.b16 %v1803, %v1802
    %v1807 = vpack.c.b16 %v1805, %v1804
    %1810 = vst.msk [vmem:[#allocation3 + $0x30] sm:$0xff] %vm1747, %v1806
    %1811 = vst.msk [vmem:[#allocation3 + $0x38] sm:$0xff] %vm1747, %v1807
    %v1812 = vpack.c.bf16 %v1711, %v1709
    %v1813 = vpack.c.bf16 %v1712, %v1710
    %v1816 = vunpack.c.l.b16 %v1812
    %v1817 = vunpack.c.l.b16 %v1813
    %v1818 = vunpack.c.h.b16 %v1812
    %v1819 = vunpack.c.h.b16 %v1813
    %v1820 = vpack.c.b16 %v1817, %v1816
    %v1821 = vpack.c.b16 %v1819, %v1818
    %1824 = vst.msk [vmem:[#allocation3 + $0x50] sm:$0xff] %vm1747, %v1820
    %1825 = vst.msk [vmem:[#allocation3 + $0x58] sm:$0xff] %vm1747, %v1821
    %v1826 = vpack.c.bf16 %v1715, %v1713
    %v1827 = vpack.c.bf16 %v1716, %v1714
    %v1830 = vunpack.c.l.b16 %v1826
    %v1831 = vunpack.c.l.b16 %v1827
    %v1832 = vunpack.c.h.b16 %v1826
    %v1833 = vunpack.c.h.b16 %v1827
    %v1834 = vpack.c.b16 %v1831, %v1830
    %v1835 = vpack.c.b16 %v1833, %v1832
    %1838 = vst.msk [vmem:[#allocation3 + $0x70] sm:$0xff] %vm1747, %v1834
    %1839 = vst.msk [vmem:[#allocation3 + $0x78] sm:$0xff] %vm1747, %v1835
    %v1840 = vpack.c.bf16 %v1719, %v1717
    %v1841 = vpack.c.bf16 %v1720, %v1718
    %v1844 = vunpack.c.l.b16 %v1840
    %v1845 = vunpack.c.l.b16 %v1841
    %v1846 = vunpack.c.h.b16 %v1840
    %v1847 = vunpack.c.h.b16 %v1841
    %v1848 = vpack.c.b16 %v1845, %v1844
    %v1849 = vpack.c.b16 %v1847, %v1846
    %1852 = vst.msk [vmem:[#allocation3 + $0x90] sm:$0xff] %vm1747, %v1848
    %1853 = vst.msk [vmem:[#allocation3 + $0x98] sm:$0xff] %vm1747, %v1849
    %v1854 = vpack.c.bf16 %v1723, %v1721
    %v1855 = vpack.c.bf16 %v1724, %v1722
    %v1858 = vunpack.c.l.b16 %v1854
    %v1859 = vunpack.c.l.b16 %v1855
    %v1860 = vunpack.c.h.b16 %v1854
    %v1861 = vunpack.c.h.b16 %v1855
    %v1862 = vpack.c.b16 %v1859, %v1858
    %v1863 = vpack.c.b16 %v1861, %v1860
    %1866 = vst.msk [vmem:[#allocation3 + $0xb0] sm:$0xff] %vm1747, %v1862
    %1867 = vst.msk [vmem:[#allocation3 + $0xb8] sm:$0xff] %vm1747, %v1863
    %v1868 = vpack.c.bf16 %v1727, %v1725
    %v1869 = vpack.c.bf16 %v1728, %v1726
    %v1872 = vunpack.c.l.b16 %v1868
    %v1873 = vunpack.c.l.b16 %v1869
    %v1874 = vunpack.c.h.b16 %v1868
    %v1875 = vunpack.c.h.b16 %v1869
    %v1876 = vpack.c.b16 %v1873, %v1872
    %v1877 = vpack.c.b16 %v1875, %v1874
    %1880 = vst.msk [vmem:[#allocation3 + $0xd0] sm:$0xff] %vm1747, %v1876
    %1881 = vst.msk [vmem:[#allocation3 + $0xd8] sm:$0xff] %vm1747, %v1877
    %v1882 = vpack.c.bf16 %v1731, %v1729
    %v1883 = vpack.c.bf16 %v1732, %v1730
    %v1886 = vunpack.c.l.b16 %v1882
    %v1887 = vunpack.c.l.b16 %v1883
    %v1888 = vunpack.c.h.b16 %v1882
    %v1889 = vunpack.c.h.b16 %v1883
    %v1890 = vpack.c.b16 %v1887, %v1886
    %v1891 = vpack.c.b16 %v1889, %v1888
    %1894 = vst.msk [vmem:[#allocation3 + $0xf0] sm:$0xff] %vm1747, %v1890
    %1895 = vst.msk [vmem:[#allocation3 + $0xf8] sm:$0xff] %vm1747, %v1891
    %v1896 = vpack.c.bf16 %v1735, %v1733
    %v1897 = vpack.c.bf16 %v1736, %v1734
    %v1900 = vunpack.c.l.b16 %v1896
    %v1901 = vunpack.c.l.b16 %v1897
    %v1902 = vunpack.c.h.b16 %v1896
    %v1903 = vunpack.c.h.b16 %v1897
    %v1904 = vpack.c.b16 %v1901, %v1900
    %v1905 = vpack.c.b16 %v1903, %v1902
    %1908 = vst.msk [vmem:[#allocation3 + $0x110] sm:$0xff] %vm1747, %v1904
    %1909 = vst.msk [vmem:[#allocation3 + $0x118] sm:$0xff] %vm1747, %v1905
    %v1910 = vpack.c.bf16 %v1739, %v1737
    %v1911 = vpack.c.bf16 %v1740, %v1738
    %v1914 = vunpack.c.l.b16 %v1910
    %v1915 = vunpack.c.l.b16 %v1911
    %v1916 = vunpack.c.h.b16 %v1910
    %v1917 = vunpack.c.h.b16 %v1911
    %v1918 = vpack.c.b16 %v1915, %v1914
    %v1919 = vpack.c.b16 %v1917, %v1916
    %1922 = vst.msk [vmem:[#allocation3 + $0x130] sm:$0xff] %vm1747, %v1918
    %1923 = vst.msk [vmem:[#allocation3 + $0x138] sm:$0xff] %vm1747, %v1919
    %v1924 = vpack.c.bf16 %v1743, %v1741
    %v1925 = vpack.c.bf16 %v1744, %v1742
    %v1928 = vunpack.c.l.b16 %v1924
    %v1929 = vunpack.c.l.b16 %v1925
    %v1930 = vunpack.c.h.b16 %v1924
    %v1931 = vunpack.c.h.b16 %v1925
    %v1932 = vpack.c.b16 %v1929, %v1928
    %v1933 = vpack.c.b16 %v1931, %v1930
    %1936 = vst.msk [vmem:[#allocation3 + $0x150] sm:$0xff] %vm1747, %v1932
    %1937 = vst.msk [vmem:[#allocation3 + $0x158] sm:$0xff] %vm1747, %v1933
    %v1938 = vld [vmem:[#allocation3] sm:$0xff]
    %v1939 = vld [vmem:[#allocation3 + $0x8] sm:$0xff]
    %v1940 = vld [vmem:[#allocation3 + $0x10] sm:$0xff]
    %v1941 = vld [vmem:[#allocation3 + $0x18] sm:$0xff]
    %v1942 = vld [vmem:[#allocation3 + $0x20] sm:$0xff]
    %v1943 = vld [vmem:[#allocation3 + $0x28] sm:$0xff]
    %v1944 = vld [vmem:[#allocation3 + $0x30] sm:$0xff]
    %v1945 = vld [vmem:[#allocation3 + $0x38] sm:$0xff]
    %v1946 = vld [vmem:[#allocation3 + $0x40] sm:$0xff]
    %v1947 = vld [vmem:[#allocation3 + $0x48] sm:$0xff]
    %v1948 = vld [vmem:[#allocation3 + $0x50] sm:$0xff]
    %v1949 = vld [vmem:[#allocation3 + $0x58] sm:$0xff]
    %v1950 = vld [vmem:[#allocation3 + $0x60] sm:$0xff]
    %v1951 = vld [vmem:[#allocation3 + $0x68] sm:$0xff]
    %v1952 = vld [vmem:[#allocation3 + $0x70] sm:$0xff]
    %v1953 = vld [vmem:[#allocation3 + $0x78] sm:$0xff]
    %v1954 = vld [vmem:[#allocation3 + $0x80] sm:$0xff]
    %v1955 = vld [vmem:[#allocation3 + $0x88] sm:$0xff]
    %v1956 = vld [vmem:[#allocation3 + $0x90] sm:$0xff]
    %v1957 = vld [vmem:[#allocation3 + $0x98] sm:$0xff]
    %v1958 = vld [vmem:[#allocation3 + $0xa0] sm:$0xff]
    %v1959 = vld [vmem:[#allocation3 + $0xa8] sm:$0xff]
    %v1960 = vld [vmem:[#allocation3 + $0xb0] sm:$0xff]
    %v1961 = vld [vmem:[#allocation3 + $0xb8] sm:$0xff]
    %v1962 = vld [vmem:[#allocation3 + $0xc0] sm:$0xff]
    %v1963 = vld [vmem:[#allocation3 + $0xc8] sm:$0xff]
    %v1964 = vld [vmem:[#allocation3 + $0xd0] sm:$0xff]
    %v1965 = vld [vmem:[#allocation3 + $0xd8] sm:$0xff]
    %v1966 = vld [vmem:[#allocation3 + $0xe0] sm:$0xff]
    %v1967 = vld [vmem:[#allocation3 + $0xe8] sm:$0xff]
    %v1968 = vld [vmem:[#allocation3 + $0xf0] sm:$0xff]
    %v1969 = vld [vmem:[#allocation3 + $0xf8] sm:$0xff]
    %v1970 = vld [vmem:[#allocation3 + $0x100] sm:$0xff]
    %v1971 = vld [vmem:[#allocation3 + $0x108] sm:$0xff]
    %v1972 = vld [vmem:[#allocation3 + $0x110] sm:$0xff]
    %v1973 = vld [vmem:[#allocation3 + $0x118] sm:$0xff]
    %v1974 = vld [vmem:[#allocation3 + $0x120] sm:$0xff]
    %v1975 = vld [vmem:[#allocation3 + $0x128] sm:$0xff]
    %v1976 = vld [vmem:[#allocation3 + $0x130] sm:$0xff]
    %v1977 = vld [vmem:[#allocation3 + $0x138] sm:$0xff]
    %v1978 = vld [vmem:[#allocation3 + $0x140] sm:$0xff]
    %v1979 = vld [vmem:[#allocation3 + $0x148] sm:$0xff]
    %v1980 = vld [vmem:[#allocation3 + $0x150] sm:$0xff]
    %v1981 = vld [vmem:[#allocation3 + $0x158] sm:$0xff]
    %v1982 = vld [vmem:[%s7] sm:$0xff]
    %v1983 = vld [vmem:[%s7 + $0x8] sm:$0xff]
    %v1984 = vld [vmem:[%s7 + $0x10] sm:$0xff]
    %v1985 = vld [vmem:[%s7 + $0x18] sm:$0xff]
    %v1986 = vld [vmem:[%s7 + $0x20] sm:$0xff]
    %v1987 = vld [vmem:[%s7 + $0x28] sm:$0xff]
    %v1988 = vld [vmem:[%s7 + $0x30] sm:$0xff]
    %v1989 = vld [vmem:[%s7 + $0x38] sm:$0xff]
    %v1990 = vld [vmem:[%s7 + $0x40] sm:$0xff]
    %v1991 = vld [vmem:[%s7 + $0x48] sm:$0xff]
    %v1992 = vld [vmem:[%s7 + $0x50] sm:$0xff]
    %v1993 = vld [vmem:[%s7 + $0x58] sm:$0xff]
    %v1994 = vld [vmem:[%s7 + $0x60] sm:$0xff]
    %v1995 = vld [vmem:[%s7 + $0x68] sm:$0xff]
    %v1996 = vld [vmem:[%s7 + $0x70] sm:$0xff]
    %v1997 = vld [vmem:[%s7 + $0x78] sm:$0xff]
    %v1998 = vld [vmem:[%s7 + $0x80] sm:$0xff]
    %v1999 = vld [vmem:[%s7 + $0x88] sm:$0xff]
    %v2000 = vld [vmem:[%s7 + $0x90] sm:$0xff]
    %v2001 = vld [vmem:[%s7 + $0x98] sm:$0xff]
    %v2002 = vld [vmem:[#allocation3 + $0x160] sm:$0xff]
    %v2003 = vld [vmem:[#allocation3 + $0x168] sm:$0xff]
    %s2004 = scalar_lea.vmem %s7, 160
    %v2005 = vld [vmem:[%s2004] sm:$0xff]
    %v2006 = vld [vmem:[%s2004 + $0x8] sm:$0xff]
    %v2007 = vld [vmem:[%s2004 + $0x10] sm:$0xff]
    %v2008 = vld [vmem:[%s2004 + $0x18] sm:$0xff]
    %v2009 = vld [vmem:[%s2004 + $0x20] sm:$0xff]
    %v2010 = vld [vmem:[%s2004 + $0x28] sm:$0xff]
    %v2011 = vld [vmem:[%s2004 + $0x30] sm:$0xff]
    %v2012 = vld [vmem:[%s2004 + $0x38] sm:$0xff]
    %v2013 = vld [vmem:[%s2004 + $0x40] sm:$0xff]
    %v2014 = vld [vmem:[%s2004 + $0x48] sm:$0xff]
    %v2015 = vld [vmem:[%s2004 + $0x50] sm:$0xff]
    %v2016 = vld [vmem:[%s2004 + $0x58] sm:$0xff]
    %v2017 = vld [vmem:[%s2004 + $0x60] sm:$0xff]
    %v2018 = vld [vmem:[%s2004 + $0x68] sm:$0xff]
    %v2019 = vld [vmem:[%s2004 + $0x70] sm:$0xff]
    %v2020 = vld [vmem:[%s2004 + $0x78] sm:$0xff]
    %v2021 = vld [vmem:[%s2004 + $0x80] sm:$0xff]
    %v2022 = vld [vmem:[%s2004 + $0x88] sm:$0xff]
    %v2023 = vld [vmem:[%s2004 + $0x90] sm:$0xff]
    %v2024 = vld [vmem:[%s2004 + $0x98] sm:$0xff]
    %v2069 = vunpack.c.l.b16 %v1940
    %v2070 = vunpack.c.h.b16 %v1940
    %v2071 = vunpack.c.l.b16 %v1941
    %v2072 = vunpack.c.h.b16 %v1941
    %v2073 = vunpack.c.l.b16 %v1942
    %v2074 = vunpack.c.h.b16 %v1942
    %v2075 = vunpack.c.l.b16 %v1943
    %v2076 = vunpack.c.h.b16 %v1943
    %v2077 = vunpack.c.l.b16 %v1944
    %v2078 = vunpack.c.h.b16 %v1944
    %v2079 = vunpack.c.l.b16 %v1945
    %v2080 = vunpack.c.h.b16 %v1945
    %v2081 = vunpack.c.l.b16 %v1946
    %v2082 = vunpack.c.h.b16 %v1946
    %v2083 = vunpack.c.l.b16 %v1947
    %v2084 = vunpack.c.h.b16 %v1947
    %v2085 = vunpack.c.l.b16 %v1948
    %v2086 = vunpack.c.h.b16 %v1948
    %v2087 = vunpack.c.l.b16 %v1949
    %v2088 = vunpack.c.h.b16 %v1949
    %v2089 = vunpack.c.l.b16 %v1950
    %v2090 = vunpack.c.h.b16 %v1950
    %v2091 = vunpack.c.l.b16 %v1951
    %v2092 = vunpack.c.h.b16 %v1951
    %v2093 = vunpack.c.l.b16 %v1952
    %v2094 = vunpack.c.h.b16 %v1952
    %v2095 = vunpack.c.l.b16 %v1953
    %v2096 = vunpack.c.h.b16 %v1953
    %v2097 = vunpack.c.l.b16 %v1954
    %v2098 = vunpack.c.h.b16 %v1954
    %v2099 = vunpack.c.l.b16 %v1955
    %v2100 = vunpack.c.h.b16 %v1955
    %v2101 = vunpack.c.l.b16 %v1956
    %v2102 = vunpack.c.h.b16 %v1956
    %v2103 = vunpack.c.l.b16 %v1957
    %v2104 = vunpack.c.h.b16 %v1957
    %v2105 = vunpack.c.l.b16 %v1958
    %v2106 = vunpack.c.h.b16 %v1958
    %v2107 = vunpack.c.l.b16 %v1959
    %v2108 = vunpack.c.h.b16 %v1959
    %v2109 = vunpack.c.l.b16 %v1960
    %v2110 = vunpack.c.h.b16 %v1960
    %v2111 = vunpack.c.l.b16 %v1961
    %v2112 = vunpack.c.h.b16 %v1961
    %v2113 = vunpack.c.l.b16 %v1962
    %v2114 = vunpack.c.h.b16 %v1962
    %v2115 = vunpack.c.l.b16 %v1963
    %v2116 = vunpack.c.h.b16 %v1963
    %v2117 = vunpack.c.l.b16 %v1964
    %v2118 = vunpack.c.h.b16 %v1964
    %v2119 = vunpack.c.l.b16 %v1965
    %v2120 = vunpack.c.h.b16 %v1965
    %v2121 = vunpack.c.l.b16 %v1966
    %v2122 = vunpack.c.h.b16 %v1966
    %v2123 = vunpack.c.l.b16 %v1967
    %v2124 = vunpack.c.h.b16 %v1967
    %v2125 = vunpack.c.l.b16 %v1968
    %v2126 = vunpack.c.h.b16 %v1968
    %v2127 = vunpack.c.l.b16 %v1969
    %v2128 = vunpack.c.h.b16 %v1969
    %v2129 = vunpack.c.l.b16 %v1970
    %v2130 = vunpack.c.h.b16 %v1970
    %v2131 = vunpack.c.l.b16 %v1971
    %v2132 = vunpack.c.h.b16 %v1971
    %v2133 = vunpack.c.l.b16 %v1972
    %v2134 = vunpack.c.h.b16 %v1972
    %v2135 = vunpack.c.l.b16 %v1973
    %v2136 = vunpack.c.h.b16 %v1973
    %v2137 = vunpack.c.l.b16 %v1974
    %v2138 = vunpack.c.h.b16 %v1974
    %v2139 = vunpack.c.l.b16 %v1975
    %v2140 = vunpack.c.h.b16 %v1975
    %v2141 = vunpack.c.l.b16 %v1976
    %v2142 = vunpack.c.h.b16 %v1976
    %v2143 = vunpack.c.l.b16 %v1977
    %v2144 = vunpack.c.h.b16 %v1977
    %v2145 = vunpack.c.l.b16 %v1978
    %v2146 = vunpack.c.h.b16 %v1978
    %v2147 = vunpack.c.l.b16 %v1979
    %v2148 = vunpack.c.h.b16 %v1979
    %v2149 = vunpack.c.l.b16 %v1980
    %v2150 = vunpack.c.h.b16 %v1980
    %v2151 = vunpack.c.l.b16 %v1981
    %v2152 = vunpack.c.h.b16 %v1981
    %v2153 = vunpack.c.l.b16 %v2002
    %v2154 = vunpack.c.h.b16 %v2002
    %v2155 = vunpack.c.l.b16 %v2003
    %v2156 = vunpack.c.h.b16 %v2003
    %v2157 = vpack.c.b16 %v2071, %v2069
    %v2158 = vpack.c.b16 %v2072, %v2070
    %v2159 = vpack.c.b16 %v2075, %v2073
    %v2160 = vpack.c.b16 %v2076, %v2074
    %v2161 = vpack.c.b16 %v2079, %v2077
    %v2162 = vpack.c.b16 %v2080, %v2078
    %v2163 = vpack.c.b16 %v2083, %v2081
    %v2164 = vpack.c.b16 %v2084, %v2082
    %v2165 = vpack.c.b16 %v2087, %v2085
    %v2166 = vpack.c.b16 %v2088, %v2086
    %v2167 = vpack.c.b16 %v2091, %v2089
    %v2168 = vpack.c.b16 %v2092, %v2090
    %v2169 = vpack.c.b16 %v2095, %v2093
    %v2170 = vpack.c.b16 %v2096, %v2094
    %v2171 = vpack.c.b16 %v2099, %v2097
    %v2172 = vpack.c.b16 %v2100, %v2098
    %v2173 = vpack.c.b16 %v2103, %v2101
    %v2174 = vpack.c.b16 %v2104, %v2102
    %v2175 = vpack.c.b16 %v2107, %v2105
    %v2176 = vpack.c.b16 %v2108, %v2106
    %v2177 = vpack.c.b16 %v2111, %v2109
    %v2178 = vpack.c.b16 %v2112, %v2110
    %v2179 = vpack.c.b16 %v2115, %v2113
    %v2180 = vpack.c.b16 %v2116, %v2114
    %v2181 = vpack.c.b16 %v2119, %v2117
    %v2182 = vpack.c.b16 %v2120, %v2118
    %v2183 = vpack.c.b16 %v2123, %v2121
    %v2184 = vpack.c.b16 %v2124, %v2122
    %v2185 = vpack.c.b16 %v2127, %v2125
    %v2186 = vpack.c.b16 %v2128, %v2126
    %v2187 = vpack.c.b16 %v2131, %v2129
    %v2188 = vpack.c.b16 %v2132, %v2130
    %v2189 = vpack.c.b16 %v2135, %v2133
    %v2190 = vpack.c.b16 %v2136, %v2134
    %v2191 = vpack.c.b16 %v2139, %v2137
    %v2192 = vpack.c.b16 %v2140, %v2138
    %v2193 = vpack.c.b16 %v2143, %v2141
    %v2194 = vpack.c.b16 %v2144, %v2142
    %v2195 = vpack.c.b16 %v2147, %v2145
    %v2196 = vpack.c.b16 %v2148, %v2146
    %v2197 = vpack.c.b16 %v2151, %v2149
    %v2198 = vpack.c.b16 %v2152, %v2150
    %v2199 = vpack.c.b16 %v2155, %v2153
    %v2200 = vpack.c.b16 %v2156, %v2154
    %v2243 = vunpack.c.l.b16 %v2005
    %v2244 = vunpack.c.h.b16 %v2005
    %v2245 = vunpack.c.l.b16 %v2006
    %v2246 = vunpack.c.h.b16 %v2006
    %v2247 = vunpack.c.l.b16 %v2007
    %v2248 = vunpack.c.h.b16 %v2007
    %v2249 = vunpack.c.l.b16 %v2008
    %v2250 = vunpack.c.h.b16 %v2008
    %v2251 = vunpack.c.l.b16 %v2009
    %v2252 = vunpack.c.h.b16 %v2009
    %v2253 = vunpack.c.l.b16 %v2010
    %v2254 = vunpack.c.h.b16 %v2010
    %v2255 = vunpack.c.l.b16 %v2011
    %v2256 = vunpack.c.h.b16 %v2011
    %v2257 = vunpack.c.l.b16 %v2012
    %v2258 = vunpack.c.h.b16 %v2012
    %v2259 = vunpack.c.l.b16 %v2013
    %v2260 = vunpack.c.h.b16 %v2013
    %v2261 = vunpack.c.l.b16 %v2014
    %v2262 = vunpack.c.h.b16 %v2014
    %v2263 = vunpack.c.l.b16 %v2015
    %v2264 = vunpack.c.h.b16 %v2015
    %v2265 = vunpack.c.l.b16 %v2016
    %v2266 = vunpack.c.h.b16 %v2016
    %v2267 = vunpack.c.l.b16 %v2017
    %v2268 = vunpack.c.h.b16 %v2017
    %v2269 = vunpack.c.l.b16 %v2018
    %v2270 = vunpack.c.h.b16 %v2018
    %v2271 = vunpack.c.l.b16 %v2019
    %v2272 = vunpack.c.h.b16 %v2019
    %v2273 = vunpack.c.l.b16 %v2020
    %v2274 = vunpack.c.h.b16 %v2020
    %v2275 = vunpack.c.l.b16 %v2021
    %v2276 = vunpack.c.h.b16 %v2021
    %v2277 = vunpack.c.l.b16 %v2022
    %v2278 = vunpack.c.h.b16 %v2022
    %v2279 = vunpack.c.l.b16 %v2023
    %v2280 = vunpack.c.h.b16 %v2023
    %v2281 = vunpack.c.l.b16 %v2024
    %v2282 = vunpack.c.h.b16 %v2024
    %v2283 = vpack.c.b16 %v2245, %v2243
    %v2284 = vpack.c.b16 %v2246, %v2244
    %v2285 = vpack.c.b16 %v2249, %v2247
    %v2286 = vpack.c.b16 %v2250, %v2248
    %v2287 = vpack.c.b16 %v2253, %v2251
    %v2288 = vpack.c.b16 %v2254, %v2252
    %v2289 = vpack.c.b16 %v2257, %v2255
    %v2290 = vpack.c.b16 %v2258, %v2256
    %v2291 = vpack.c.b16 %v2261, %v2259
    %v2292 = vpack.c.b16 %v2262, %v2260
    %v2293 = vpack.c.b16 %v2265, %v2263
    %v2294 = vpack.c.b16 %v2266, %v2264
    %v2295 = vpack.c.b16 %v2269, %v2267
    %v2296 = vpack.c.b16 %v2270, %v2268
    %v2297 = vpack.c.b16 %v2273, %v2271
    %v2298 = vpack.c.b16 %v2274, %v2272
    %v2299 = vpack.c.b16 %v2277, %v2275
    %v2300 = vpack.c.b16 %v2278, %v2276
    %v2301 = vpack.c.b16 %v2281, %v2279
    %v2302 = vpack.c.b16 %v2282, %v2280
    %vm2323 = vcmask 261120
    %v2325 = vsel %vm2323, %v2158, 0
    %v2328 = vsel %vm2323, %v2160, 0
    %v2331 = vsel %vm2323, %v2162, 0
    %v2334 = vsel %vm2323, %v2164, 0
    %v2337 = vsel %vm2323, %v2166, 0
    %v2340 = vsel %vm2323, %v2168, 0
    %v2343 = vsel %vm2323, %v2170, 0
    %v2346 = vsel %vm2323, %v2172, 0
    %v2349 = vsel %vm2323, %v2174, 0
    %v2352 = vsel %vm2323, %v2176, 0
    %v2355 = vsel %vm2323, %v2178, 0
    %v2358 = vsel %vm2323, %v2180, 0
    %v2361 = vsel %vm2323, %v2182, 0
    %v2364 = vsel %vm2323, %v2184, 0
    %v2367 = vsel %vm2323, %v2186, 0
    %v2370 = vsel %vm2323, %v2188, 0
    %v2373 = vsel %vm2323, %v2190, 0
    %v2376 = vsel %vm2323, %v2192, 0
    %v2379 = vsel %vm2323, %v2194, 0
    %v2382 = vsel %vm2323, %v2196, 0
    %v2385 = vsel %vm2323, %v2198, 0
    %v2388 = vsel %vm2323, %v2200, 0
    %2390 = vmatprep.subr.bf16.mxu0 %v2298
    %2391 = vmatpush1.bf16.msra.mxu0 %v2297
    %2392 = vmatprep.subr.bf16.mxu0 %v2296
    %2393 = vmatpush1.bf16.msra.mxu0 %v2295
    %2394 = vmatprep.subr.bf16.mxu0 %v2294
    %2395 = vmatpush1.bf16.msra.mxu0 %v2293
    %2396 = vmatprep.subr.bf16.mxu0 %v2292
    %2397 = vmatpush1.bf16.msra.mxu0 %v2291
    %2398 = vmatprep.subr.bf16.mxu0 %v2290
    %2399 = vmatpush1.bf16.msra.mxu0 %v2289
    %2400 = vmatprep.subr.bf16.mxu0 %v2288
    %2401 = vmatpush1.bf16.msra.mxu0 %v2287
    %2402 = vmatprep.subr.bf16.mxu0 %v2286
    %2403 = vmatpush1.bf16.msra.mxu0 %v2285
    %2404 = vmatprep.subr.bf16.mxu0 %v2284
    %2405 = vmatpush1.bf16.msra.mxu0 %v2283
    %2406 = vmatprep.subr.bf16.mxu0 0
    %2407 = vmatpush2.bf16.msra.mxu0 0
    %2408 = vmatprep.subr.bf16.mxu0 0
    %2409 = vmatpush2.bf16.msra.mxu0 0
    %2410 = vmatprep.subr.bf16.mxu0 0
    %2411 = vmatpush2.bf16.msra.mxu0 0
    %2412 = vmatprep.subr.bf16.mxu0 0
    %2413 = vmatpush2.bf16.msra.mxu0 0
    %2414 = vmatprep.subr.bf16.mxu0 0
    %2415 = vmatpush2.bf16.msra.mxu0 0
    %2416 = vmatprep.subr.bf16.mxu0 0
    %2417 = vmatpush2.bf16.msra.mxu0 0
    %2418 = vmatprep.subr.bf16.mxu0 %v2302
    %2419 = vmatpush2.bf16.msra.mxu0 %v2301
    %2420 = vmatprep.subr.bf16.mxu0 %v2300
    %2421 = vmatpush2.bf16.msra.mxu0 %v2299
    %2422 = vmatprep.mubr.bf16.mxu0 %v2325
    %2423 = vmatmul.mubr.bf16.gmra.mxu0 %v2157
    %v2424 = vpop.f32.mrf.mxu0
    %v2425 = vadd.f32 0.0, %v2424
    %v2426 = vpop.f32.mrf.mxu0
    %v2427 = vadd.f32 0.0, %v2426
    %v2428 = vpop.f32.mrf.mxu0
    %v2429 = vadd.f32 0.0, %v2428
    %v2430 = vpop.f32.mrf.mxu0
    %v2431 = vadd.f32 0.0, %v2430
    %2432 = vmatprep.mubr.bf16.mxu0 %v2328
    %2433 = vmatmul.mubr.bf16.gmra.mxu0 %v2159
    %v2434 = vpop.f32.mrf.mxu0
    %v2435 = vadd.f32 0.0, %v2434
    %v2436 = vpop.f32.mrf.mxu0
    %v2437 = vadd.f32 0.0, %v2436
    %v2438 = vpop.f32.mrf.mxu0
    %v2439 = vadd.f32 0.0, %v2438
    %v2440 = vpop.f32.mrf.mxu0
    %v2441 = vadd.f32 0.0, %v2440
    %2442 = vmatprep.mubr.bf16.mxu0 %v2331
    %2443 = vmatmul.mubr.bf16.gmra.mxu0 %v2161
    %v2444 = vpop.f32.mrf.mxu0
    %v2445 = vadd.f32 0.0, %v2444
    %v2446 = vpop.f32.mrf.mxu0
    %v2447 = vadd.f32 0.0, %v2446
    %v2448 = vpop.f32.mrf.mxu0
    %v2449 = vadd.f32 0.0, %v2448
    %v2450 = vpop.f32.mrf.mxu0
    %v2451 = vadd.f32 0.0, %v2450
    %2452 = vmatprep.mubr.bf16.mxu0 %v2334
    %2453 = vmatmul.mubr.bf16.gmra.mxu0 %v2163
    %v2454 = vpop.f32.mrf.mxu0
    %v2455 = vadd.f32 0.0, %v2454
    %v2456 = vpop.f32.mrf.mxu0
    %v2457 = vadd.f32 0.0, %v2456
    %v2458 = vpop.f32.mrf.mxu0
    %v2459 = vadd.f32 0.0, %v2458
    %v2460 = vpop.f32.mrf.mxu0
    %v2461 = vadd.f32 0.0, %v2460
    %2462 = vmatprep.mubr.bf16.mxu0 %v2337
    %2463 = vmatmul.mubr.bf16.gmra.mxu0 %v2165
    %v2464 = vpop.f32.mrf.mxu0
    %v2465 = vadd.f32 0.0, %v2464
    %v2466 = vpop.f32.mrf.mxu0
    %v2467 = vadd.f32 0.0, %v2466
    %v2468 = vpop.f32.mrf.mxu0
    %v2469 = vadd.f32 0.0, %v2468
    %v2470 = vpop.f32.mrf.mxu0
    %v2471 = vadd.f32 0.0, %v2470
    %2472 = vmatprep.mubr.bf16.mxu0 %v2340
    %2473 = vmatmul.mubr.bf16.gmra.mxu0 %v2167
    %v2474 = vpop.f32.mrf.mxu0
    %v2475 = vadd.f32 0.0, %v2474
    %v2476 = vpop.f32.mrf.mxu0
    %v2477 = vadd.f32 0.0, %v2476
    %v2478 = vpop.f32.mrf.mxu0
    %v2479 = vadd.f32 0.0, %v2478
    %v2480 = vpop.f32.mrf.mxu0
    %v2481 = vadd.f32 0.0, %v2480
    %2482 = vmatprep.mubr.bf16.mxu0 %v2343
    %2483 = vmatmul.mubr.bf16.gmra.mxu0 %v2169
    %v2484 = vpop.f32.mrf.mxu0
    %v2485 = vadd.f32 0.0, %v2484
    %v2486 = vpop.f32.mrf.mxu0
    %v2487 = vadd.f32 0.0, %v2486
    %v2488 = vpop.f32.mrf.mxu0
    %v2489 = vadd.f32 0.0, %v2488
    %v2490 = vpop.f32.mrf.mxu0
    %v2491 = vadd.f32 0.0, %v2490
    %2492 = vmatprep.mubr.bf16.mxu0 %v2346
    %2493 = vmatmul.mubr.bf16.gmra.mxu0 %v2171
    %v2494 = vpop.f32.mrf.mxu0
    %v2495 = vadd.f32 0.0, %v2494
    %v2496 = vpop.f32.mrf.mxu0
    %v2497 = vadd.f32 0.0, %v2496
    %v2498 = vpop.f32.mrf.mxu0
    %v2499 = vadd.f32 0.0, %v2498
    %v2500 = vpop.f32.mrf.mxu0
    %v2501 = vadd.f32 0.0, %v2500
    %2502 = vmatprep.mubr.bf16.mxu0 %v2349
    %2503 = vmatmul.mubr.bf16.gmra.mxu0 %v2173
    %v2504 = vpop.f32.mrf.mxu0
    %v2505 = vadd.f32 0.0, %v2504
    %v2506 = vpop.f32.mrf.mxu0
    %v2507 = vadd.f32 0.0, %v2506
    %v2508 = vpop.f32.mrf.mxu0
    %v2509 = vadd.f32 0.0, %v2508
    %v2510 = vpop.f32.mrf.mxu0
    %v2511 = vadd.f32 0.0, %v2510
    %2512 = vmatprep.mubr.bf16.mxu0 %v2352
    %2513 = vmatmul.mubr.bf16.gmra.mxu0 %v2175
    %v2514 = vpop.f32.mrf.mxu0
    %v2515 = vadd.f32 0.0, %v2514
    %v2516 = vpop.f32.mrf.mxu0
    %v2517 = vadd.f32 0.0, %v2516
    %v2518 = vpop.f32.mrf.mxu0
    %v2519 = vadd.f32 0.0, %v2518
    %v2520 = vpop.f32.mrf.mxu0
    %v2521 = vadd.f32 0.0, %v2520
    %2522 = vmatprep.mubr.bf16.mxu0 %v2355
    %2523 = vmatmul.mubr.bf16.gmra.mxu0 %v2177
    %v2524 = vpop.f32.mrf.mxu0
    %v2525 = vadd.f32 0.0, %v2524
    %v2526 = vpop.f32.mrf.mxu0
    %v2527 = vadd.f32 0.0, %v2526
    %v2528 = vpop.f32.mrf.mxu0
    %v2529 = vadd.f32 0.0, %v2528
    %v2530 = vpop.f32.mrf.mxu0
    %v2531 = vadd.f32 0.0, %v2530
    %2532 = vmatprep.mubr.bf16.mxu0 %v2358
    %2533 = vmatmul.mubr.bf16.gmra.mxu0 %v2179
    %v2534 = vpop.f32.mrf.mxu0
    %v2535 = vadd.f32 0.0, %v2534
    %v2536 = vpop.f32.mrf.mxu0
    %v2537 = vadd.f32 0.0, %v2536
    %v2538 = vpop.f32.mrf.mxu0
    %v2539 = vadd.f32 0.0, %v2538
    %v2540 = vpop.f32.mrf.mxu0
    %v2541 = vadd.f32 0.0, %v2540
    %2542 = vmatprep.mubr.bf16.mxu0 %v2361
    %2543 = vmatmul.mubr.bf16.gmra.mxu0 %v2181
    %v2544 = vpop.f32.mrf.mxu0
    %v2545 = vadd.f32 0.0, %v2544
    %v2546 = vpop.f32.mrf.mxu0
    %v2547 = vadd.f32 0.0, %v2546
    %v2548 = vpop.f32.mrf.mxu0
    %v2549 = vadd.f32 0.0, %v2548
    %v2550 = vpop.f32.mrf.mxu0
    %v2551 = vadd.f32 0.0, %v2550
    %2552 = vmatprep.mubr.bf16.mxu0 %v2364
    %2553 = vmatmul.mubr.bf16.gmra.mxu0 %v2183
    %v2554 = vpop.f32.mrf.mxu0
    %v2555 = vadd.f32 0.0, %v2554
    %v2556 = vpop.f32.mrf.mxu0
    %v2557 = vadd.f32 0.0, %v2556
    %v2558 = vpop.f32.mrf.mxu0
    %v2559 = vadd.f32 0.0, %v2558
    %v2560 = vpop.f32.mrf.mxu0
    %v2561 = vadd.f32 0.0, %v2560
    %2562 = vmatprep.mubr.bf16.mxu0 %v2367
    %2563 = vmatmul.mubr.bf16.gmra.mxu0 %v2185
    %v2564 = vpop.f32.mrf.mxu0
    %v2565 = vadd.f32 0.0, %v2564
    %v2566 = vpop.f32.mrf.mxu0
    %v2567 = vadd.f32 0.0, %v2566
    %v2568 = vpop.f32.mrf.mxu0
    %v2569 = vadd.f32 0.0, %v2568
    %v2570 = vpop.f32.mrf.mxu0
    %v2571 = vadd.f32 0.0, %v2570
    %2572 = vmatprep.mubr.bf16.mxu0 %v2370
    %2573 = vmatmul.mubr.bf16.gmra.mxu0 %v2187
    %v2574 = vpop.f32.mrf.mxu0
    %v2575 = vadd.f32 0.0, %v2574
    %v2576 = vpop.f32.mrf.mxu0
    %v2577 = vadd.f32 0.0, %v2576
    %v2578 = vpop.f32.mrf.mxu0
    %v2579 = vadd.f32 0.0, %v2578
    %v2580 = vpop.f32.mrf.mxu0
    %v2581 = vadd.f32 0.0, %v2580
    %2582 = vmatprep.mubr.bf16.mxu0 %v2373
    %2583 = vmatmul.mubr.bf16.gmra.mxu0 %v2189
    %v2584 = vpop.f32.mrf.mxu0
    %v2585 = vadd.f32 0.0, %v2584
    %v2586 = vpop.f32.mrf.mxu0
    %v2587 = vadd.f32 0.0, %v2586
    %v2588 = vpop.f32.mrf.mxu0
    %v2589 = vadd.f32 0.0, %v2588
    %v2590 = vpop.f32.mrf.mxu0
    %v2591 = vadd.f32 0.0, %v2590
    %2592 = vmatprep.mubr.bf16.mxu0 %v2376
    %2593 = vmatmul.mubr.bf16.gmra.mxu0 %v2191
    %v2594 = vpop.f32.mrf.mxu0
    %v2595 = vadd.f32 0.0, %v2594
    %v2596 = vpop.f32.mrf.mxu0
    %v2597 = vadd.f32 0.0, %v2596
    %v2598 = vpop.f32.mrf.mxu0
    %v2599 = vadd.f32 0.0, %v2598
    %v2600 = vpop.f32.mrf.mxu0
    %v2601 = vadd.f32 0.0, %v2600
    %2602 = vmatprep.mubr.bf16.mxu0 %v2379
    %2603 = vmatmul.mubr.bf16.gmra.mxu0 %v2193
    %v2604 = vpop.f32.mrf.mxu0
    %v2605 = vadd.f32 0.0, %v2604
    %v2606 = vpop.f32.mrf.mxu0
    %v2607 = vadd.f32 0.0, %v2606
    %v2608 = vpop.f32.mrf.mxu0
    %v2609 = vadd.f32 0.0, %v2608
    %v2610 = vpop.f32.mrf.mxu0
    %v2611 = vadd.f32 0.0, %v2610
    %2612 = vmatprep.mubr.bf16.mxu0 %v2382
    %2613 = vmatmul.mubr.bf16.gmra.mxu0 %v2195
    %v2614 = vpop.f32.mrf.mxu0
    %v2615 = vadd.f32 0.0, %v2614
    %v2616 = vpop.f32.mrf.mxu0
    %v2617 = vadd.f32 0.0, %v2616
    %v2618 = vpop.f32.mrf.mxu0
    %v2619 = vadd.f32 0.0, %v2618
    %v2620 = vpop.f32.mrf.mxu0
    %v2621 = vadd.f32 0.0, %v2620
    %2622 = vmatprep.mubr.bf16.mxu0 %v2385
    %2623 = vmatmul.mubr.bf16.gmra.mxu0 %v2197
    %v2624 = vpop.f32.mrf.mxu0
    %v2625 = vadd.f32 0.0, %v2624
    %v2626 = vpop.f32.mrf.mxu0
    %v2627 = vadd.f32 0.0, %v2626
    %v2628 = vpop.f32.mrf.mxu0
    %v2629 = vadd.f32 0.0, %v2628
    %v2630 = vpop.f32.mrf.mxu0
    %v2631 = vadd.f32 0.0, %v2630
    %2632 = vmatprep.mubr.bf16.mxu0 %v2388
    %2633 = vmatmul.mubr.bf16.gmra.mxu0 %v2199
    %v2634 = vpop.f32.mrf.mxu0
    %v2635 = vadd.f32 0.0, %v2634
    %v2636 = vpop.f32.mrf.mxu0
    %v2637 = vadd.f32 0.0, %v2636
    %v2638 = vpop.f32.mrf.mxu0
    %v2639 = vadd.f32 0.0, %v2638
    %v2640 = vpop.f32.mrf.mxu0
    %v2641 = vadd.f32 0.0, %v2640
    %2642 = vdwg.mxu0
    %v2645 = vunpack.c.l.b16 %v1938
    %v2646 = vunpack.c.h.b16 %v1938
    %v2647 = vunpack.c.l.b16 %v1939
    %v2648 = vunpack.c.h.b16 %v1939
    %v2649 = vpack.c.b16 %v2647, %v2645
    %v2650 = vpack.c.b16 %v2648, %v2646
    %v2672 = vunpack.c.l.b16 %v1982
    %v2673 = vunpack.c.h.b16 %v1982
    %v2674 = vunpack.c.l.b16 %v1983
    %v2675 = vunpack.c.h.b16 %v1983
    %v2676 = vunpack.c.l.b16 %v1984
    %v2677 = vunpack.c.h.b16 %v1984
    %v2678 = vunpack.c.l.b16 %v1985
    %v2679 = vunpack.c.h.b16 %v1985
    %v2680 = vunpack.c.l.b16 %v1986
    %v2681 = vunpack.c.h.b16 %v1986
    %v2682 = vunpack.c.l.b16 %v1987
    %v2683 = vunpack.c.h.b16 %v1987
    %v2684 = vunpack.c.l.b16 %v1988
    %v2685 = vunpack.c.h.b16 %v1988
    %v2686 = vunpack.c.l.b16 %v1989
    %v2687 = vunpack.c.h.b16 %v1989
    %v2688 = vunpack.c.l.b16 %v1990
    %v2689 = vunpack.c.h.b16 %v1990
    %v2690 = vunpack.c.l.b16 %v1991
    %v2691 = vunpack.c.h.b16 %v1991
    %v2692 = vunpack.c.l.b16 %v1992
    %v2693 = vunpack.c.h.b16 %v1992
    %v2694 = vunpack.c.l.b16 %v1993
    %v2695 = vunpack.c.h.b16 %v1993
    %v2696 = vunpack.c.l.b16 %v1994
    %v2697 = vunpack.c.h.b16 %v1994
    %v2698 = vunpack.c.l.b16 %v1995
    %v2699 = vunpack.c.h.b16 %v1995
    %v2700 = vunpack.c.l.b16 %v1996
    %v2701 = vunpack.c.h.b16 %v1996
    %v2702 = vunpack.c.l.b16 %v1997
    %v2703 = vunpack.c.h.b16 %v1997
    %v2704 = vunpack.c.l.b16 %v1998
    %v2705 = vunpack.c.h.b16 %v1998
    %v2706 = vunpack.c.l.b16 %v1999
    %v2707 = vunpack.c.h.b16 %v1999
    %v2708 = vunpack.c.l.b16 %v2000
    %v2709 = vunpack.c.h.b16 %v2000
    %v2710 = vunpack.c.l.b16 %v2001
    %v2711 = vunpack.c.h.b16 %v2001
    %v2712 = vpack.c.b16 %v2674, %v2672
    %v2713 = vpack.c.b16 %v2675, %v2673
    %v2714 = vpack.c.b16 %v2678, %v2676
    %v2715 = vpack.c.b16 %v2679, %v2677
    %v2716 = vpack.c.b16 %v2682, %v2680
    %v2717 = vpack.c.b16 %v2683, %v2681
    %v2718 = vpack.c.b16 %v2686, %v2684
    %v2719 = vpack.c.b16 %v2687, %v2685
    %v2720 = vpack.c.b16 %v2690, %v2688
    %v2721 = vpack.c.b16 %v2691, %v2689
    %v2722 = vpack.c.b16 %v2694, %v2692
    %v2723 = vpack.c.b16 %v2695, %v2693
    %v2724 = vpack.c.b16 %v2698, %v2696
    %v2725 = vpack.c.b16 %v2699, %v2697
    %v2726 = vpack.c.b16 %v2702, %v2700
    %v2727 = vpack.c.b16 %v2703, %v2701
    %v2728 = vpack.c.b16 %v2706, %v2704
    %v2729 = vpack.c.b16 %v2707, %v2705
    %v2730 = vpack.c.b16 %v2710, %v2708
    %v2731 = vpack.c.b16 %v2711, %v2709
    %v2753 = vsel %vm2323, %v2650, 0
    %2755 = vmatprep.subr.bf16.mxu0 %v2727
    %2756 = vmatpush1.bf16.msra.mxu0 %v2726
    %2757 = vmatprep.subr.bf16.mxu0 %v2725
    %2758 = vmatpush1.bf16.msra.mxu0 %v2724
    %2759 = vmatprep.subr.bf16.mxu0 %v2723
    %2760 = vmatpush1.bf16.msra.mxu0 %v2722
    %2761 = vmatprep.subr.bf16.mxu0 %v2721
    %2762 = vmatpush1.bf16.msra.mxu0 %v2720
    %2763 = vmatprep.subr.bf16.mxu0 %v2719
    %2764 = vmatpush1.bf16.msra.mxu0 %v2718
    %2765 = vmatprep.subr.bf16.mxu0 %v2717
    %2766 = vmatpush1.bf16.msra.mxu0 %v2716
    %2767 = vmatprep.subr.bf16.mxu0 %v2715
    %2768 = vmatpush1.bf16.msra.mxu0 %v2714
    %2769 = vmatprep.subr.bf16.mxu0 %v2713
    %2770 = vmatpush1.bf16.msra.mxu0 %v2712
    %2771 = vmatprep.subr.bf16.mxu0 0
    %2772 = vmatpush2.bf16.msra.mxu0 0
    %2773 = vmatprep.subr.bf16.mxu0 0
    %2774 = vmatpush2.bf16.msra.mxu0 0
    %2775 = vmatprep.subr.bf16.mxu0 0
    %2776 = vmatpush2.bf16.msra.mxu0 0
    %2777 = vmatprep.subr.bf16.mxu0 0
    %2778 = vmatpush2.bf16.msra.mxu0 0
    %2779 = vmatprep.subr.bf16.mxu0 0
    %2780 = vmatpush2.bf16.msra.mxu0 0
    %2781 = vmatprep.subr.bf16.mxu0 0
    %2782 = vmatpush2.bf16.msra.mxu0 0
    %2783 = vmatprep.subr.bf16.mxu0 %v2731
    %2784 = vmatpush2.bf16.msra.mxu0 %v2730
    %2785 = vmatprep.subr.bf16.mxu0 %v2729
    %2786 = vmatpush2.bf16.msra.mxu0 %v2728
    %2787 = vmatprep.mubr.bf16.mxu0 %v2753
    %2788 = vmatmul.mubr.bf16.gmra.mxu0 %v2649
    %v2789 = vpop.f32.mrf.mxu0
    %v2790 = vadd.f32 %v2425, %v2789
    %v2791 = vpop.f32.mrf.mxu0
    %v2792 = vadd.f32 %v2427, %v2791
    %v2793 = vpop.f32.mrf.mxu0
    %v2794 = vadd.f32 %v2429, %v2793
    %v2795 = vpop.f32.mrf.mxu0
    %v2796 = vadd.f32 %v2431, %v2795
    %2797 = vmatprep.mubr.bf16.mxu0 %v2325
    %2798 = vmatmul.mubr.bf16.gmra.mxu0 %v2157
    %v2799 = vpop.f32.mrf.mxu0
    %v2800 = vadd.f32 %v2435, %v2799
    %v2801 = vpop.f32.mrf.mxu0
    %v2802 = vadd.f32 %v2437, %v2801
    %v2803 = vpop.f32.mrf.mxu0
    %v2804 = vadd.f32 %v2439, %v2803
    %v2805 = vpop.f32.mrf.mxu0
    %v2806 = vadd.f32 %v2441, %v2805
    %2807 = vmatprep.mubr.bf16.mxu0 %v2328
    %2808 = vmatmul.mubr.bf16.gmra.mxu0 %v2159
    %v2809 = vpop.f32.mrf.mxu0
    %v2810 = vadd.f32 %v2445, %v2809
    %v2811 = vpop.f32.mrf.mxu0
    %v2812 = vadd.f32 %v2447, %v2811
    %v2813 = vpop.f32.mrf.mxu0
    %v2814 = vadd.f32 %v2449, %v2813
    %v2815 = vpop.f32.mrf.mxu0
    %v2816 = vadd.f32 %v2451, %v2815
    %2817 = vmatprep.mubr.bf16.mxu0 %v2331
    %2818 = vmatmul.mubr.bf16.gmra.mxu0 %v2161
    %v2819 = vpop.f32.mrf.mxu0
    %v2820 = vadd.f32 %v2455, %v2819
    %v2821 = vpop.f32.mrf.mxu0
    %v2822 = vadd.f32 %v2457, %v2821
    %v2823 = vpop.f32.mrf.mxu0
    %v2824 = vadd.f32 %v2459, %v2823
    %v2825 = vpop.f32.mrf.mxu0
    %v2826 = vadd.f32 %v2461, %v2825
    %2827 = vmatprep.mubr.bf16.mxu0 %v2334
    %2828 = vmatmul.mubr.bf16.gmra.mxu0 %v2163
    %v2829 = vpop.f32.mrf.mxu0
    %v2830 = vadd.f32 %v2465, %v2829
    %v2831 = vpop.f32.mrf.mxu0
    %v2832 = vadd.f32 %v2467, %v2831
    %v2833 = vpop.f32.mrf.mxu0
    %v2834 = vadd.f32 %v2469, %v2833
    %v2835 = vpop.f32.mrf.mxu0
    %v2836 = vadd.f32 %v2471, %v2835
    %2837 = vmatprep.mubr.bf16.mxu0 %v2337
    %2838 = vmatmul.mubr.bf16.gmra.mxu0 %v2165
    %v2839 = vpop.f32.mrf.mxu0
    %v2840 = vadd.f32 %v2475, %v2839
    %v2841 = vpop.f32.mrf.mxu0
    %v2842 = vadd.f32 %v2477, %v2841
    %v2843 = vpop.f32.mrf.mxu0
    %v2844 = vadd.f32 %v2479, %v2843
    %v2845 = vpop.f32.mrf.mxu0
    %v2846 = vadd.f32 %v2481, %v2845
    %2847 = vmatprep.mubr.bf16.mxu0 %v2340
    %2848 = vmatmul.mubr.bf16.gmra.mxu0 %v2167
    %v2849 = vpop.f32.mrf.mxu0
    %v2850 = vadd.f32 %v2485, %v2849
    %v2851 = vpop.f32.mrf.mxu0
    %v2852 = vadd.f32 %v2487, %v2851
    %v2853 = vpop.f32.mrf.mxu0
    %v2854 = vadd.f32 %v2489, %v2853
    %v2855 = vpop.f32.mrf.mxu0
    %v2856 = vadd.f32 %v2491, %v2855
    %2857 = vmatprep.mubr.bf16.mxu0 %v2343
    %2858 = vmatmul.mubr.bf16.gmra.mxu0 %v2169
    %v2859 = vpop.f32.mrf.mxu0
    %v2860 = vadd.f32 %v2495, %v2859
    %v2861 = vpop.f32.mrf.mxu0
    %v2862 = vadd.f32 %v2497, %v2861
    %v2863 = vpop.f32.mrf.mxu0
    %v2864 = vadd.f32 %v2499, %v2863
    %v2865 = vpop.f32.mrf.mxu0
    %v2866 = vadd.f32 %v2501, %v2865
    %2867 = vmatprep.mubr.bf16.mxu0 %v2346
    %2868 = vmatmul.mubr.bf16.gmra.mxu0 %v2171
    %v2869 = vpop.f32.mrf.mxu0
    %v2870 = vadd.f32 %v2505, %v2869
    %v2871 = vpop.f32.mrf.mxu0
    %v2872 = vadd.f32 %v2507, %v2871
    %v2873 = vpop.f32.mrf.mxu0
    %v2874 = vadd.f32 %v2509, %v2873
    %v2875 = vpop.f32.mrf.mxu0
    %v2876 = vadd.f32 %v2511, %v2875
    %2877 = vmatprep.mubr.bf16.mxu0 %v2349
    %2878 = vmatmul.mubr.bf16.gmra.mxu0 %v2173
    %v2879 = vpop.f32.mrf.mxu0
    %v2880 = vadd.f32 %v2515, %v2879
    %v2881 = vpop.f32.mrf.mxu0
    %v2882 = vadd.f32 %v2517, %v2881
    %v2883 = vpop.f32.mrf.mxu0
    %v2884 = vadd.f32 %v2519, %v2883
    %v2885 = vpop.f32.mrf.mxu0
    %v2886 = vadd.f32 %v2521, %v2885
    %2887 = vmatprep.mubr.bf16.mxu0 %v2352
    %2888 = vmatmul.mubr.bf16.gmra.mxu0 %v2175
    %v2889 = vpop.f32.mrf.mxu0
    %v2890 = vadd.f32 %v2525, %v2889
    %v2891 = vpop.f32.mrf.mxu0
    %v2892 = vadd.f32 %v2527, %v2891
    %v2893 = vpop.f32.mrf.mxu0
    %v2894 = vadd.f32 %v2529, %v2893
    %v2895 = vpop.f32.mrf.mxu0
    %v2896 = vadd.f32 %v2531, %v2895
    %2897 = vmatprep.mubr.bf16.mxu0 %v2355
    %2898 = vmatmul.mubr.bf16.gmra.mxu0 %v2177
    %v2899 = vpop.f32.mrf.mxu0
    %v2900 = vadd.f32 %v2535, %v2899
    %v2901 = vpop.f32.mrf.mxu0
    %v2902 = vadd.f32 %v2537, %v2901
    %v2903 = vpop.f32.mrf.mxu0
    %v2904 = vadd.f32 %v2539, %v2903
    %v2905 = vpop.f32.mrf.mxu0
    %v2906 = vadd.f32 %v2541, %v2905
    %2907 = vmatprep.mubr.bf16.mxu0 %v2358
    %2908 = vmatmul.mubr.bf16.gmra.mxu0 %v2179
    %v2909 = vpop.f32.mrf.mxu0
    %v2910 = vadd.f32 %v2545, %v2909
    %v2911 = vpop.f32.mrf.mxu0
    %v2912 = vadd.f32 %v2547, %v2911
    %v2913 = vpop.f32.mrf.mxu0
    %v2914 = vadd.f32 %v2549, %v2913
    %v2915 = vpop.f32.mrf.mxu0
    %v2916 = vadd.f32 %v2551, %v2915
    %2917 = vmatprep.mubr.bf16.mxu0 %v2361
    %2918 = vmatmul.mubr.bf16.gmra.mxu0 %v2181
    %v2919 = vpop.f32.mrf.mxu0
    %v2920 = vadd.f32 %v2555, %v2919
    %v2921 = vpop.f32.mrf.mxu0
    %v2922 = vadd.f32 %v2557, %v2921
    %v2923 = vpop.f32.mrf.mxu0
    %v2924 = vadd.f32 %v2559, %v2923
    %v2925 = vpop.f32.mrf.mxu0
    %v2926 = vadd.f32 %v2561, %v2925
    %2927 = vmatprep.mubr.bf16.mxu0 %v2364
    %2928 = vmatmul.mubr.bf16.gmra.mxu0 %v2183
    %v2929 = vpop.f32.mrf.mxu0
    %v2930 = vadd.f32 %v2565, %v2929
    %v2931 = vpop.f32.mrf.mxu0
    %v2932 = vadd.f32 %v2567, %v2931
    %v2933 = vpop.f32.mrf.mxu0
    %v2934 = vadd.f32 %v2569, %v2933
    %v2935 = vpop.f32.mrf.mxu0
    %v2936 = vadd.f32 %v2571, %v2935
    %2937 = vmatprep.mubr.bf16.mxu0 %v2367
    %2938 = vmatmul.mubr.bf16.gmra.mxu0 %v2185
    %v2939 = vpop.f32.mrf.mxu0
    %v2940 = vadd.f32 %v2575, %v2939
    %v2941 = vpop.f32.mrf.mxu0
    %v2942 = vadd.f32 %v2577, %v2941
    %v2943 = vpop.f32.mrf.mxu0
    %v2944 = vadd.f32 %v2579, %v2943
    %v2945 = vpop.f32.mrf.mxu0
    %v2946 = vadd.f32 %v2581, %v2945
    %2947 = vmatprep.mubr.bf16.mxu0 %v2370
    %2948 = vmatmul.mubr.bf16.gmra.mxu0 %v2187
    %v2949 = vpop.f32.mrf.mxu0
    %v2950 = vadd.f32 %v2585, %v2949
    %v2951 = vpop.f32.mrf.mxu0
    %v2952 = vadd.f32 %v2587, %v2951
    %v2953 = vpop.f32.mrf.mxu0
    %v2954 = vadd.f32 %v2589, %v2953
    %v2955 = vpop.f32.mrf.mxu0
    %v2956 = vadd.f32 %v2591, %v2955
    %2957 = vmatprep.mubr.bf16.mxu0 %v2373
    %2958 = vmatmul.mubr.bf16.gmra.mxu0 %v2189
    %v2959 = vpop.f32.mrf.mxu0
    %v2960 = vadd.f32 %v2595, %v2959
    %v2961 = vpop.f32.mrf.mxu0
    %v2962 = vadd.f32 %v2597, %v2961
    %v2963 = vpop.f32.mrf.mxu0
    %v2964 = vadd.f32 %v2599, %v2963
    %v2965 = vpop.f32.mrf.mxu0
    %v2966 = vadd.f32 %v2601, %v2965
    %2967 = vmatprep.mubr.bf16.mxu0 %v2376
    %2968 = vmatmul.mubr.bf16.gmra.mxu0 %v2191
    %v2969 = vpop.f32.mrf.mxu0
    %v2970 = vadd.f32 %v2605, %v2969
    %v2971 = vpop.f32.mrf.mxu0
    %v2972 = vadd.f32 %v2607, %v2971
    %v2973 = vpop.f32.mrf.mxu0
    %v2974 = vadd.f32 %v2609, %v2973
    %v2975 = vpop.f32.mrf.mxu0
    %v2976 = vadd.f32 %v2611, %v2975
    %2977 = vmatprep.mubr.bf16.mxu0 %v2379
    %2978 = vmatmul.mubr.bf16.gmra.mxu0 %v2193
    %v2979 = vpop.f32.mrf.mxu0
    %v2980 = vadd.f32 %v2615, %v2979
    %v2981 = vpop.f32.mrf.mxu0
    %v2982 = vadd.f32 %v2617, %v2981
    %v2983 = vpop.f32.mrf.mxu0
    %v2984 = vadd.f32 %v2619, %v2983
    %v2985 = vpop.f32.mrf.mxu0
    %v2986 = vadd.f32 %v2621, %v2985
    %2987 = vmatprep.mubr.bf16.mxu0 %v2382
    %2988 = vmatmul.mubr.bf16.gmra.mxu0 %v2195
    %v2989 = vpop.f32.mrf.mxu0
    %v2990 = vadd.f32 %v2625, %v2989
    %v2991 = vpop.f32.mrf.mxu0
    %v2992 = vadd.f32 %v2627, %v2991
    %v2993 = vpop.f32.mrf.mxu0
    %v2994 = vadd.f32 %v2629, %v2993
    %v2995 = vpop.f32.mrf.mxu0
    %v2996 = vadd.f32 %v2631, %v2995
    %2997 = vmatprep.mubr.bf16.mxu0 %v2385
    %2998 = vmatmul.mubr.bf16.gmra.mxu0 %v2197
    %v2999 = vpop.f32.mrf.mxu0
    %v3000 = vadd.f32 %v2635, %v2999
    %v3001 = vpop.f32.mrf.mxu0
    %v3002 = vadd.f32 %v2637, %v3001
    %v3003 = vpop.f32.mrf.mxu0
    %v3004 = vadd.f32 %v2639, %v3003
    %v3005 = vpop.f32.mrf.mxu0
    %v3006 = vadd.f32 %v2641, %v3005
    %3007 = vdwg.mxu0
    %v3008 = vld [vmem:[#allocation3 + $0x20] sm:$0xff]
    %v3009 = vld [vmem:[#allocation3 + $0x28] sm:$0xff]
    %v3010 = vld [vmem:[#allocation3 + $0x30] sm:$0xff]
    %v3011 = vld [vmem:[#allocation3 + $0x38] sm:$0xff]
    %v3012 = vld [vmem:[#allocation3 + $0x40] sm:$0xff]
    %v3013 = vld [vmem:[#allocation3 + $0x48] sm:$0xff]
    %v3014 = vld [vmem:[#allocation3 + $0x50] sm:$0xff]
    %v3015 = vld [vmem:[#allocation3 + $0x58] sm:$0xff]
    %v3016 = vld [vmem:[#allocation3 + $0x60] sm:$0xff]
    %v3017 = vld [vmem:[#allocation3 + $0x68] sm:$0xff]
    %v3018 = vld [vmem:[#allocation3 + $0x70] sm:$0xff]
    %v3019 = vld [vmem:[#allocation3 + $0x78] sm:$0xff]
    %v3020 = vld [vmem:[#allocation3 + $0x80] sm:$0xff]
    %v3021 = vld [vmem:[#allocation3 + $0x88] sm:$0xff]
    %v3022 = vld [vmem:[#allocation3 + $0x90] sm:$0xff]
    %v3023 = vld [vmem:[#allocation3 + $0x98] sm:$0xff]
    %v3024 = vld [vmem:[#allocation3 + $0xa0] sm:$0xff]
    %v3025 = vld [vmem:[#allocation3 + $0xa8] sm:$0xff]
    %v3026 = vld [vmem:[#allocation3 + $0xb0] sm:$0xff]
    %v3027 = vld [vmem:[#allocation3 + $0xb8] sm:$0xff]
    %v3028 = vld [vmem:[#allocation3 + $0xc0] sm:$0xff]
    %v3029 = vld [vmem:[#allocation3 + $0xc8] sm:$0xff]
    %v3030 = vld [vmem:[#allocation3 + $0xd0] sm:$0xff]
    %v3031 = vld [vmem:[#allocation3 + $0xd8] sm:$0xff]
    %v3032 = vld [vmem:[#allocation3 + $0xe0] sm:$0xff]
    %v3033 = vld [vmem:[#allocation3 + $0xe8] sm:$0xff]
    %v3034 = vld [vmem:[#allocation3 + $0xf0] sm:$0xff]
    %v3035 = vld [vmem:[#allocation3 + $0xf8] sm:$0xff]
    %v3036 = vld [vmem:[#allocation3 + $0x100] sm:$0xff]
    %v3037 = vld [vmem:[#allocation3 + $0x108] sm:$0xff]
    %v3038 = vld [vmem:[#allocation3 + $0x110] sm:$0xff]
    %v3039 = vld [vmem:[#allocation3 + $0x118] sm:$0xff]
    %v3040 = vld [vmem:[#allocation3 + $0x120] sm:$0xff]
    %v3041 = vld [vmem:[#allocation3 + $0x128] sm:$0xff]
    %v3042 = vld [vmem:[#allocation3 + $0x130] sm:$0xff]
    %v3043 = vld [vmem:[#allocation3 + $0x138] sm:$0xff]
    %v3044 = vld [vmem:[#allocation3 + $0x140] sm:$0xff]
    %v3045 = vld [vmem:[#allocation3 + $0x148] sm:$0xff]
    %v3046 = vld [vmem:[#allocation3 + $0x150] sm:$0xff]
    %v3047 = vld [vmem:[#allocation3 + $0x158] sm:$0xff]
    %v3048 = vld [vmem:[#allocation3 + $0x160] sm:$0xff]
    %v3049 = vld [vmem:[#allocation3 + $0x168] sm:$0xff]
    %v3050 = vld [vmem:[#allocation3 + $0x170] sm:$0xff]
    %v3051 = vld [vmem:[#allocation3 + $0x178] sm:$0xff]
    %s3052 = scalar_lea.vmem %s7, 320
    %v3053 = vld [vmem:[%s3052] sm:$0xff]
    %v3054 = vld [vmem:[%s3052 + $0x8] sm:$0xff]
    %v3055 = vld [vmem:[%s3052 + $0x10] sm:$0xff]
    %v3056 = vld [vmem:[%s3052 + $0x18] sm:$0xff]
    %v3057 = vld [vmem:[%s3052 + $0x20] sm:$0xff]
    %v3058 = vld [vmem:[%s3052 + $0x28] sm:$0xff]
    %v3059 = vld [vmem:[%s3052 + $0x30] sm:$0xff]
    %v3060 = vld [vmem:[%s3052 + $0x38] sm:$0xff]
    %v3061 = vld [vmem:[%s3052 + $0x40] sm:$0xff]
    %v3062 = vld [vmem:[%s3052 + $0x48] sm:$0xff]
    %v3063 = vld [vmem:[%s3052 + $0x50] sm:$0xff]
    %v3064 = vld [vmem:[%s3052 + $0x58] sm:$0xff]
    %v3065 = vld [vmem:[%s3052 + $0x60] sm:$0xff]
    %v3066 = vld [vmem:[%s3052 + $0x68] sm:$0xff]
    %v3067 = vld [vmem:[%s3052 + $0x70] sm:$0xff]
    %v3068 = vld [vmem:[%s3052 + $0x78] sm:$0xff]
    %v3069 = vld [vmem:[%s3052 + $0x80] sm:$0xff]
    %v3070 = vld [vmem:[%s3052 + $0x88] sm:$0xff]
    %v3071 = vld [vmem:[%s3052 + $0x90] sm:$0xff]
    %v3072 = vld [vmem:[%s3052 + $0x98] sm:$0xff]
    %v3117 = vunpack.c.l.b16 %v3008
    %v3118 = vunpack.c.h.b16 %v3008
    %v3119 = vunpack.c.l.b16 %v3009
    %v3120 = vunpack.c.h.b16 %v3009
    %v3121 = vunpack.c.l.b16 %v3010
    %v3122 = vunpack.c.h.b16 %v3010
    %v3123 = vunpack.c.l.b16 %v3011
    %v3124 = vunpack.c.h.b16 %v3011
    %v3125 = vunpack.c.l.b16 %v3012
    %v3126 = vunpack.c.h.b16 %v3012
    %v3127 = vunpack.c.l.b16 %v3013
    %v3128 = vunpack.c.h.b16 %v3013
    %v3129 = vunpack.c.l.b16 %v3014
    %v3130 = vunpack.c.h.b16 %v3014
    %v3131 = vunpack.c.l.b16 %v3015
    %v3132 = vunpack.c.h.b16 %v3015
    %v3133 = vunpack.c.l.b16 %v3016
    %v3134 = vunpack.c.h.b16 %v3016
    %v3135 = vunpack.c.l.b16 %v3017
    %v3136 = vunpack.c.h.b16 %v3017
    %v3137 = vunpack.c.l.b16 %v3018
    %v3138 = vunpack.c.h.b16 %v3018
    %v3139 = vunpack.c.l.b16 %v3019
    %v3140 = vunpack.c.h.b16 %v3019
    %v3141 = vunpack.c.l.b16 %v3020
    %v3142 = vunpack.c.h.b16 %v3020
    %v3143 = vunpack.c.l.b16 %v3021
    %v3144 = vunpack.c.h.b16 %v3021
    %v3145 = vunpack.c.l.b16 %v3022
    %v3146 = vunpack.c.h.b16 %v3022
    %v3147 = vunpack.c.l.b16 %v3023
    %v3148 = vunpack.c.h.b16 %v3023
    %v3149 = vunpack.c.l.b16 %v3024
    %v3150 = vunpack.c.h.b16 %v3024
    %v3151 = vunpack.c.l.b16 %v3025
    %v3152 = vunpack.c.h.b16 %v3025
    %v3153 = vunpack.c.l.b16 %v3026
    %v3154 = vunpack.c.h.b16 %v3026
    %v3155 = vunpack.c.l.b16 %v3027
    %v3156 = vunpack.c.h.b16 %v3027
    %v3157 = vunpack.c.l.b16 %v3028
    %v3158 = vunpack.c.h.b16 %v3028
    %v3159 = vunpack.c.l.b16 %v3029
    %v3160 = vunpack.c.h.b16 %v3029
    %v3161 = vunpack.c.l.b16 %v3030
    %v3162 = vunpack.c.h.b16 %v3030
    %v3163 = vunpack.c.l.b16 %v3031
    %v3164 = vunpack.c.h.b16 %v3031
    %v3165 = vunpack.c.l.b16 %v3032
    %v3166 = vunpack.c.h.b16 %v3032
    %v3167 = vunpack.c.l.b16 %v3033
    %v3168 = vunpack.c.h.b16 %v3033
    %v3169 = vunpack.c.l.b16 %v3034
    %v3170 = vunpack.c.h.b16 %v3034
    %v3171 = vunpack.c.l.b16 %v3035
    %v3172 = vunpack.c.h.b16 %v3035
    %v3173 = vunpack.c.l.b16 %v3036
    %v3174 = vunpack.c.h.b16 %v3036
    %v3175 = vunpack.c.l.b16 %v3037
    %v3176 = vunpack.c.h.b16 %v3037
    %v3177 = vunpack.c.l.b16 %v3038
    %v3178 = vunpack.c.h.b16 %v3038
    %v3179 = vunpack.c.l.b16 %v3039
    %v3180 = vunpack.c.h.b16 %v3039
    %v3181 = vunpack.c.l.b16 %v3040
    %v3182 = vunpack.c.h.b16 %v3040
    %v3183 = vunpack.c.l.b16 %v3041
    %v3184 = vunpack.c.h.b16 %v3041
    %v3185 = vunpack.c.l.b16 %v3042
    %v3186 = vunpack.c.h.b16 %v3042
    %v3187 = vunpack.c.l.b16 %v3043
    %v3188 = vunpack.c.h.b16 %v3043
    %v3189 = vunpack.c.l.b16 %v3044
    %v3190 = vunpack.c.h.b16 %v3044
    %v3191 = vunpack.c.l.b16 %v3045
    %v3192 = vunpack.c.h.b16 %v3045
    %v3193 = vunpack.c.l.b16 %v3046
    %v3194 = vunpack.c.h.b16 %v3046
    %v3195 = vunpack.c.l.b16 %v3047
    %v3196 = vunpack.c.h.b16 %v3047
    %v3197 = vunpack.c.l.b16 %v3048
    %v3198 = vunpack.c.h.b16 %v3048
    %v3199 = vunpack.c.l.b16 %v3049
    %v3200 = vunpack.c.h.b16 %v3049
    %v3201 = vunpack.c.l.b16 %v3050
    %v3202 = vunpack.c.h.b16 %v3050
    %v3203 = vunpack.c.l.b16 %v3051
    %v3204 = vunpack.c.h.b16 %v3051
    %v3205 = vpack.c.b16 %v3119, %v3117
    %v3206 = vpack.c.b16 %v3120, %v3118
    %v3207 = vpack.c.b16 %v3123, %v3121
    %v3208 = vpack.c.b16 %v3124, %v3122
    %v3209 = vpack.c.b16 %v3127, %v3125
    %v3210 = vpack.c.b16 %v3128, %v3126
    %v3211 = vpack.c.b16 %v3131, %v3129
    %v3212 = vpack.c.b16 %v3132, %v3130
    %v3213 = vpack.c.b16 %v3135, %v3133
    %v3214 = vpack.c.b16 %v3136, %v3134
    %v3215 = vpack.c.b16 %v3139, %v3137
    %v3216 = vpack.c.b16 %v3140, %v3138
    %v3217 = vpack.c.b16 %v3143, %v3141
    %v3218 = vpack.c.b16 %v3144, %v3142
    %v3219 = vpack.c.b16 %v3147, %v3145
    %v3220 = vpack.c.b16 %v3148, %v3146
    %v3221 = vpack.c.b16 %v3151, %v3149
    %v3222 = vpack.c.b16 %v3152, %v3150
    %v3223 = vpack.c.b16 %v3155, %v3153
    %v3224 = vpack.c.b16 %v3156, %v3154
    %v3225 = vpack.c.b16 %v3159, %v3157
    %v3226 = vpack.c.b16 %v3160, %v3158
    %v3227 = vpack.c.b16 %v3163, %v3161
    %v3228 = vpack.c.b16 %v3164, %v3162
    %v3229 = vpack.c.b16 %v3167, %v3165
    %v3230 = vpack.c.b16 %v3168, %v3166
    %v3231 = vpack.c.b16 %v3171, %v3169
    %v3232 = vpack.c.b16 %v3172, %v3170
    %v3233 = vpack.c.b16 %v3175, %v3173
    %v3234 = vpack.c.b16 %v3176, %v3174
    %v3235 = vpack.c.b16 %v3179, %v3177
    %v3236 = vpack.c.b16 %v3180, %v3178
    %v3237 = vpack.c.b16 %v3183, %v3181
    %v3238 = vpack.c.b16 %v3184, %v3182
    %v3239 = vpack.c.b16 %v3187, %v3185
    %v3240 = vpack.c.b16 %v3188, %v3186
    %v3241 = vpack.c.b16 %v3191, %v3189
    %v3242 = vpack.c.b16 %v3192, %v3190
    %v3243 = vpack.c.b16 %v3195, %v3193
    %v3244 = vpack.c.b16 %v3196, %v3194
    %v3245 = vpack.c.b16 %v3199, %v3197
    %v3246 = vpack.c.b16 %v3200, %v3198
    %v3247 = vpack.c.b16 %v3203, %v3201
    %v3248 = vpack.c.b16 %v3204, %v3202
    %v3291 = vunpack.c.l.b16 %v3053
    %v3292 = vunpack.c.h.b16 %v3053
    %v3293 = vunpack.c.l.b16 %v3054
    %v3294 = vunpack.c.h.b16 %v3054
    %v3295 = vunpack.c.l.b16 %v3055
    %v3296 = vunpack.c.h.b16 %v3055
    %v3297 = vunpack.c.l.b16 %v3056
    %v3298 = vunpack.c.h.b16 %v3056
    %v3299 = vunpack.c.l.b16 %v3057
    %v3300 = vunpack.c.h.b16 %v3057
    %v3301 = vunpack.c.l.b16 %v3058
    %v3302 = vunpack.c.h.b16 %v3058
    %v3303 = vunpack.c.l.b16 %v3059
    %v3304 = vunpack.c.h.b16 %v3059
    %v3305 = vunpack.c.l.b16 %v3060
    %v3306 = vunpack.c.h.b16 %v3060
    %v3307 = vunpack.c.l.b16 %v3061
    %v3308 = vunpack.c.h.b16 %v3061
    %v3309 = vunpack.c.l.b16 %v3062
    %v3310 = vunpack.c.h.b16 %v3062
    %v3311 = vunpack.c.l.b16 %v3063
    %v3312 = vunpack.c.h.b16 %v3063
    %v3313 = vunpack.c.l.b16 %v3064
    %v3314 = vunpack.c.h.b16 %v3064
    %v3315 = vunpack.c.l.b16 %v3065
    %v3316 = vunpack.c.h.b16 %v3065
    %v3317 = vunpack.c.l.b16 %v3066
    %v3318 = vunpack.c.h.b16 %v3066
    %v3319 = vunpack.c.l.b16 %v3067
    %v3320 = vunpack.c.h.b16 %v3067
    %v3321 = vunpack.c.l.b16 %v3068
    %v3322 = vunpack.c.h.b16 %v3068
    %v3323 = vunpack.c.l.b16 %v3069
    %v3324 = vunpack.c.h.b16 %v3069
    %v3325 = vunpack.c.l.b16 %v3070
    %v3326 = vunpack.c.h.b16 %v3070
    %v3327 = vunpack.c.l.b16 %v3071
    %v3328 = vunpack.c.h.b16 %v3071
    %v3329 = vunpack.c.l.b16 %v3072
    %v3330 = vunpack.c.h.b16 %v3072
    %v3331 = vpack.c.b16 %v3293, %v3291
    %v3332 = vpack.c.b16 %v3294, %v3292
    %v3333 = vpack.c.b16 %v3297, %v3295
    %v3334 = vpack.c.b16 %v3298, %v3296
    %v3335 = vpack.c.b16 %v3301, %v3299
    %v3336 = vpack.c.b16 %v3302, %v3300
    %v3337 = vpack.c.b16 %v3305, %v3303
    %v3338 = vpack.c.b16 %v3306, %v3304
    %v3339 = vpack.c.b16 %v3309, %v3307
    %v3340 = vpack.c.b16 %v3310, %v3308
    %v3341 = vpack.c.b16 %v3313, %v3311
    %v3342 = vpack.c.b16 %v3314, %v3312
    %v3343 = vpack.c.b16 %v3317, %v3315
    %v3344 = vpack.c.b16 %v3318, %v3316
    %v3345 = vpack.c.b16 %v3321, %v3319
    %v3346 = vpack.c.b16 %v3322, %v3320
    %v3347 = vpack.c.b16 %v3325, %v3323
    %v3348 = vpack.c.b16 %v3326, %v3324
    %v3349 = vpack.c.b16 %v3329, %v3327
    %v3350 = vpack.c.b16 %v3330, %v3328
    %v3372 = vsel %vm2323, %v3206, 0
    %v3375 = vsel %vm2323, %v3208, 0
    %v3378 = vsel %vm2323, %v3210, 0
    %v3381 = vsel %vm2323, %v3212, 0
    %v3384 = vsel %vm2323, %v3214, 0
    %v3387 = vsel %vm2323, %v3216, 0
    %v3390 = vsel %vm2323, %v3218, 0
    %v3393 = vsel %vm2323, %v3220, 0
    %v3396 = vsel %vm2323, %v3222, 0
    %v3399 = vsel %vm2323, %v3224, 0
    %v3402 = vsel %vm2323, %v3226, 0
    %v3405 = vsel %vm2323, %v3228, 0
    %v3408 = vsel %vm2323, %v3230, 0
    %v3411 = vsel %vm2323, %v3232, 0
    %v3414 = vsel %vm2323, %v3234, 0
    %v3417 = vsel %vm2323, %v3236, 0
    %v3420 = vsel %vm2323, %v3238, 0
    %v3423 = vsel %vm2323, %v3240, 0
    %v3426 = vsel %vm2323, %v3242, 0
    %v3429 = vsel %vm2323, %v3244, 0
    %v3432 = vsel %vm2323, %v3246, 0
    %v3435 = vsel %vm2323, %v3248, 0
    %3437 = vmatprep.subr.bf16.mxu0 %v3346
    %3438 = vmatpush1.bf16.msra.mxu0 %v3345
    %3439 = vmatprep.subr.bf16.mxu0 %v3344
    %3440 = vmatpush1.bf16.msra.mxu0 %v3343
    %3441 = vmatprep.subr.bf16.mxu0 %v3342
    %3442 = vmatpush1.bf16.msra.mxu0 %v3341
    %3443 = vmatprep.subr.bf16.mxu0 %v3340
    %3444 = vmatpush1.bf16.msra.mxu0 %v3339
    %3445 = vmatprep.subr.bf16.mxu0 %v3338
    %3446 = vmatpush1.bf16.msra.mxu0 %v3337
    %3447 = vmatprep.subr.bf16.mxu0 %v3336
    %3448 = vmatpush1.bf16.msra.mxu0 %v3335
    %3449 = vmatprep.subr.bf16.mxu0 %v3334
    %3450 = vmatpush1.bf16.msra.mxu0 %v3333
    %3451 = vmatprep.subr.bf16.mxu0 %v3332
    %3452 = vmatpush1.bf16.msra.mxu0 %v3331
    %3453 = vmatprep.subr.bf16.mxu0 0
    %3454 = vmatpush2.bf16.msra.mxu0 0
    %3455 = vmatprep.subr.bf16.mxu0 0
    %3456 = vmatpush2.bf16.msra.mxu0 0
    %3457 = vmatprep.subr.bf16.mxu0 0
    %3458 = vmatpush2.bf16.msra.mxu0 0
    %3459 = vmatprep.subr.bf16.mxu0 0
    %3460 = vmatpush2.bf16.msra.mxu0 0
    %3461 = vmatprep.subr.bf16.mxu0 0
    %3462 = vmatpush2.bf16.msra.mxu0 0
    %3463 = vmatprep.subr.bf16.mxu0 0
    %3464 = vmatpush2.bf16.msra.mxu0 0
    %3465 = vmatprep.subr.bf16.mxu0 %v3350
    %3466 = vmatpush2.bf16.msra.mxu0 %v3349
    %3467 = vmatprep.subr.bf16.mxu0 %v3348
    %3468 = vmatpush2.bf16.msra.mxu0 %v3347
    %3469 = vmatprep.mubr.bf16.mxu0 %v3372
    %3470 = vmatmul.mubr.bf16.gmra.mxu0 %v3205
    %v3471 = vpop.f32.mrf.mxu0
    %v3472 = vadd.f32 0.0, %v3471
    %v3473 = vpop.f32.mrf.mxu0
    %v3474 = vadd.f32 0.0, %v3473
    %v3475 = vpop.f32.mrf.mxu0
    %v3476 = vadd.f32 0.0, %v3475
    %v3477 = vpop.f32.mrf.mxu0
    %v3478 = vadd.f32 0.0, %v3477
    %3479 = vmatprep.mubr.bf16.mxu0 %v3375
    %3480 = vmatmul.mubr.bf16.gmra.mxu0 %v3207
    %v3481 = vpop.f32.mrf.mxu0
    %v3482 = vadd.f32 0.0, %v3481
    %v3483 = vpop.f32.mrf.mxu0
    %v3484 = vadd.f32 0.0, %v3483
    %v3485 = vpop.f32.mrf.mxu0
    %v3486 = vadd.f32 0.0, %v3485
    %v3487 = vpop.f32.mrf.mxu0
    %v3488 = vadd.f32 0.0, %v3487
    %3489 = vmatprep.mubr.bf16.mxu0 %v3378
    %3490 = vmatmul.mubr.bf16.gmra.mxu0 %v3209
    %v3491 = vpop.f32.mrf.mxu0
    %v3492 = vadd.f32 0.0, %v3491
    %v3493 = vpop.f32.mrf.mxu0
    %v3494 = vadd.f32 0.0, %v3493
    %v3495 = vpop.f32.mrf.mxu0
    %v3496 = vadd.f32 0.0, %v3495
    %v3497 = vpop.f32.mrf.mxu0
    %v3498 = vadd.f32 0.0, %v3497
    %3499 = vmatprep.mubr.bf16.mxu0 %v3381
    %3500 = vmatmul.mubr.bf16.gmra.mxu0 %v3211
    %v3501 = vpop.f32.mrf.mxu0
    %v3502 = vadd.f32 0.0, %v3501
    %v3503 = vpop.f32.mrf.mxu0
    %v3504 = vadd.f32 0.0, %v3503
    %v3505 = vpop.f32.mrf.mxu0
    %v3506 = vadd.f32 0.0, %v3505
    %v3507 = vpop.f32.mrf.mxu0
    %v3508 = vadd.f32 0.0, %v3507
    %3509 = vmatprep.mubr.bf16.mxu0 %v3384
    %3510 = vmatmul.mubr.bf16.gmra.mxu0 %v3213
    %v3511 = vpop.f32.mrf.mxu0
    %v3512 = vadd.f32 0.0, %v3511
    %v3513 = vpop.f32.mrf.mxu0
    %v3514 = vadd.f32 0.0, %v3513
    %v3515 = vpop.f32.mrf.mxu0
    %v3516 = vadd.f32 0.0, %v3515
    %v3517 = vpop.f32.mrf.mxu0
    %v3518 = vadd.f32 0.0, %v3517
    %3519 = vmatprep.mubr.bf16.mxu0 %v3387
    %3520 = vmatmul.mubr.bf16.gmra.mxu0 %v3215
    %v3521 = vpop.f32.mrf.mxu0
    %v3522 = vadd.f32 0.0, %v3521
    %v3523 = vpop.f32.mrf.mxu0
    %v3524 = vadd.f32 0.0, %v3523
    %v3525 = vpop.f32.mrf.mxu0
    %v3526 = vadd.f32 0.0, %v3525
    %v3527 = vpop.f32.mrf.mxu0
    %v3528 = vadd.f32 0.0, %v3527
    %3529 = vmatprep.mubr.bf16.mxu0 %v3390
    %3530 = vmatmul.mubr.bf16.gmra.mxu0 %v3217
    %v3531 = vpop.f32.mrf.mxu0
    %v3532 = vadd.f32 0.0, %v3531
    %v3533 = vpop.f32.mrf.mxu0
    %v3534 = vadd.f32 0.0, %v3533
    %v3535 = vpop.f32.mrf.mxu0
    %v3536 = vadd.f32 0.0, %v3535
    %v3537 = vpop.f32.mrf.mxu0
    %v3538 = vadd.f32 0.0, %v3537
    %3539 = vmatprep.mubr.bf16.mxu0 %v3393
    %3540 = vmatmul.mubr.bf16.gmra.mxu0 %v3219
    %v3541 = vpop.f32.mrf.mxu0
    %v3542 = vadd.f32 0.0, %v3541
    %v3543 = vpop.f32.mrf.mxu0
    %v3544 = vadd.f32 0.0, %v3543
    %v3545 = vpop.f32.mrf.mxu0
    %v3546 = vadd.f32 0.0, %v3545
    %v3547 = vpop.f32.mrf.mxu0
    %v3548 = vadd.f32 0.0, %v3547
    %3549 = vmatprep.mubr.bf16.mxu0 %v3396
    %3550 = vmatmul.mubr.bf16.gmra.mxu0 %v3221
    %v3551 = vpop.f32.mrf.mxu0
    %v3552 = vadd.f32 0.0, %v3551
    %v3553 = vpop.f32.mrf.mxu0
    %v3554 = vadd.f32 0.0, %v3553
    %v3555 = vpop.f32.mrf.mxu0
    %v3556 = vadd.f32 0.0, %v3555
    %v3557 = vpop.f32.mrf.mxu0
    %v3558 = vadd.f32 0.0, %v3557
    %3559 = vmatprep.mubr.bf16.mxu0 %v3399
    %3560 = vmatmul.mubr.bf16.gmra.mxu0 %v3223
    %v3561 = vpop.f32.mrf.mxu0
    %v3562 = vadd.f32 0.0, %v3561
    %v3563 = vpop.f32.mrf.mxu0
    %v3564 = vadd.f32 0.0, %v3563
    %v3565 = vpop.f32.mrf.mxu0
    %v3566 = vadd.f32 0.0, %v3565
    %v3567 = vpop.f32.mrf.mxu0
    %v3568 = vadd.f32 0.0, %v3567
    %3569 = vmatprep.mubr.bf16.mxu0 %v3402
    %3570 = vmatmul.mubr.bf16.gmra.mxu0 %v3225
    %v3571 = vpop.f32.mrf.mxu0
    %v3572 = vadd.f32 0.0, %v3571
    %v3573 = vpop.f32.mrf.mxu0
    %v3574 = vadd.f32 0.0, %v3573
    %v3575 = vpop.f32.mrf.mxu0
    %v3576 = vadd.f32 0.0, %v3575
    %v3577 = vpop.f32.mrf.mxu0
    %v3578 = vadd.f32 0.0, %v3577
    %3579 = vmatprep.mubr.bf16.mxu0 %v3405
    %3580 = vmatmul.mubr.bf16.gmra.mxu0 %v3227
    %v3581 = vpop.f32.mrf.mxu0
    %v3582 = vadd.f32 0.0, %v3581
    %v3583 = vpop.f32.mrf.mxu0
    %v3584 = vadd.f32 0.0, %v3583
    %v3585 = vpop.f32.mrf.mxu0
    %v3586 = vadd.f32 0.0, %v3585
    %v3587 = vpop.f32.mrf.mxu0
    %v3588 = vadd.f32 0.0, %v3587
    %3589 = vmatprep.mubr.bf16.mxu0 %v3408
    %3590 = vmatmul.mubr.bf16.gmra.mxu0 %v3229
    %v3591 = vpop.f32.mrf.mxu0
    %v3592 = vadd.f32 0.0, %v3591
    %v3593 = vpop.f32.mrf.mxu0
    %v3594 = vadd.f32 0.0, %v3593
    %v3595 = vpop.f32.mrf.mxu0
    %v3596 = vadd.f32 0.0, %v3595
    %v3597 = vpop.f32.mrf.mxu0
    %v3598 = vadd.f32 0.0, %v3597
    %3599 = vmatprep.mubr.bf16.mxu0 %v3411
    %3600 = vmatmul.mubr.bf16.gmra.mxu0 %v3231
    %v3601 = vpop.f32.mrf.mxu0
    %v3602 = vadd.f32 0.0, %v3601
    %v3603 = vpop.f32.mrf.mxu0
    %v3604 = vadd.f32 0.0, %v3603
    %v3605 = vpop.f32.mrf.mxu0
    %v3606 = vadd.f32 0.0, %v3605
    %v3607 = vpop.f32.mrf.mxu0
    %v3608 = vadd.f32 0.0, %v3607
    %3609 = vmatprep.mubr.bf16.mxu0 %v3414
    %3610 = vmatmul.mubr.bf16.gmra.mxu0 %v3233
    %v3611 = vpop.f32.mrf.mxu0
    %v3612 = vadd.f32 0.0, %v3611
    %v3613 = vpop.f32.mrf.mxu0
    %v3614 = vadd.f32 0.0, %v3613
    %v3615 = vpop.f32.mrf.mxu0
    %v3616 = vadd.f32 0.0, %v3615
    %v3617 = vpop.f32.mrf.mxu0
    %v3618 = vadd.f32 0.0, %v3617
    %3619 = vmatprep.mubr.bf16.mxu0 %v3417
    %3620 = vmatmul.mubr.bf16.gmra.mxu0 %v3235
    %v3621 = vpop.f32.mrf.mxu0
    %v3622 = vadd.f32 0.0, %v3621
    %v3623 = vpop.f32.mrf.mxu0
    %v3624 = vadd.f32 0.0, %v3623
    %v3625 = vpop.f32.mrf.mxu0
    %v3626 = vadd.f32 0.0, %v3625
    %v3627 = vpop.f32.mrf.mxu0
    %v3628 = vadd.f32 0.0, %v3627
    %3629 = vmatprep.mubr.bf16.mxu0 %v3420
    %3630 = vmatmul.mubr.bf16.gmra.mxu0 %v3237
    %v3631 = vpop.f32.mrf.mxu0
    %v3632 = vadd.f32 0.0, %v3631
    %v3633 = vpop.f32.mrf.mxu0
    %v3634 = vadd.f32 0.0, %v3633
    %v3635 = vpop.f32.mrf.mxu0
    %v3636 = vadd.f32 0.0, %v3635
    %v3637 = vpop.f32.mrf.mxu0
    %v3638 = vadd.f32 0.0, %v3637
    %3639 = vmatprep.mubr.bf16.mxu0 %v3423
    %3640 = vmatmul.mubr.bf16.gmra.mxu0 %v3239
    %v3641 = vpop.f32.mrf.mxu0
    %v3642 = vadd.f32 0.0, %v3641
    %v3643 = vpop.f32.mrf.mxu0
    %v3644 = vadd.f32 0.0, %v3643
    %v3645 = vpop.f32.mrf.mxu0
    %v3646 = vadd.f32 0.0, %v3645
    %v3647 = vpop.f32.mrf.mxu0
    %v3648 = vadd.f32 0.0, %v3647
    %3649 = vmatprep.mubr.bf16.mxu0 %v3426
    %3650 = vmatmul.mubr.bf16.gmra.mxu0 %v3241
    %v3651 = vpop.f32.mrf.mxu0
    %v3652 = vadd.f32 0.0, %v3651
    %v3653 = vpop.f32.mrf.mxu0
    %v3654 = vadd.f32 0.0, %v3653
    %v3655 = vpop.f32.mrf.mxu0
    %v3656 = vadd.f32 0.0, %v3655
    %v3657 = vpop.f32.mrf.mxu0
    %v3658 = vadd.f32 0.0, %v3657
    %3659 = vmatprep.mubr.bf16.mxu0 %v3429
    %3660 = vmatmul.mubr.bf16.gmra.mxu0 %v3243
    %v3661 = vpop.f32.mrf.mxu0
    %v3662 = vadd.f32 0.0, %v3661
    %v3663 = vpop.f32.mrf.mxu0
    %v3664 = vadd.f32 0.0, %v3663
    %v3665 = vpop.f32.mrf.mxu0
    %v3666 = vadd.f32 0.0, %v3665
    %v3667 = vpop.f32.mrf.mxu0
    %v3668 = vadd.f32 0.0, %v3667
    %3669 = vmatprep.mubr.bf16.mxu0 %v3432
    %3670 = vmatmul.mubr.bf16.gmra.mxu0 %v3245
    %v3671 = vpop.f32.mrf.mxu0
    %v3672 = vadd.f32 0.0, %v3671
    %v3673 = vpop.f32.mrf.mxu0
    %v3674 = vadd.f32 0.0, %v3673
    %v3675 = vpop.f32.mrf.mxu0
    %v3676 = vadd.f32 0.0, %v3675
    %v3677 = vpop.f32.mrf.mxu0
    %v3678 = vadd.f32 0.0, %v3677
    %3679 = vmatprep.mubr.bf16.mxu0 %v3435
    %3680 = vmatmul.mubr.bf16.gmra.mxu0 %v3247
    %v3681 = vpop.f32.mrf.mxu0
    %v3682 = vadd.f32 0.0, %v3681
    %v3683 = vpop.f32.mrf.mxu0
    %v3684 = vadd.f32 0.0, %v3683
    %v3685 = vpop.f32.mrf.mxu0
    %v3686 = vadd.f32 0.0, %v3685
    %v3687 = vpop.f32.mrf.mxu0
    %v3688 = vadd.f32 0.0, %v3687
    %3689 = vdwg.mxu0
    %v3690 = vadd.f32 %v2790, %v3472
    %v3691 = vadd.f32 %v2792, %v3474
    %v3692 = vadd.f32 %v2794, %v3476
    %v3693 = vadd.f32 %v2796, %v3478
    %v3694 = vadd.f32 %v2800, %v3482
    %v3695 = vadd.f32 %v2802, %v3484
    %v3696 = vadd.f32 %v2804, %v3486
    %v3697 = vadd.f32 %v2806, %v3488
    %v3698 = vadd.f32 %v2810, %v3492
    %v3699 = vadd.f32 %v2812, %v3494
    %v3700 = vadd.f32 %v2814, %v3496
    %v3701 = vadd.f32 %v2816, %v3498
    %v3702 = vadd.f32 %v2820, %v3502
    %v3703 = vadd.f32 %v2822, %v3504
    %v3704 = vadd.f32 %v2824, %v3506
    %v3705 = vadd.f32 %v2826, %v3508
    %v3706 = vadd.f32 %v2830, %v3512
    %v3707 = vadd.f32 %v2832, %v3514
    %v3708 = vadd.f32 %v2834, %v3516
    %v3709 = vadd.f32 %v2836, %v3518
    %v3710 = vadd.f32 %v2840, %v3522
    %v3711 = vadd.f32 %v2842, %v3524
    %v3712 = vadd.f32 %v2844, %v3526
    %v3713 = vadd.f32 %v2846, %v3528
    %v3714 = vadd.f32 %v2850, %v3532
    %v3715 = vadd.f32 %v2852, %v3534
    %v3716 = vadd.f32 %v2854, %v3536
    %v3717 = vadd.f32 %v2856, %v3538
    %v3718 = vadd.f32 %v2860, %v3542
    %v3719 = vadd.f32 %v2862, %v3544
    %v3720 = vadd.f32 %v2864, %v3546
    %v3721 = vadd.f32 %v2866, %v3548
    %v3722 = vadd.f32 %v2870, %v3552
    %v3723 = vadd.f32 %v2872, %v3554
    %v3724 = vadd.f32 %v2874, %v3556
    %v3725 = vadd.f32 %v2876, %v3558
    %v3726 = vadd.f32 %v2880, %v3562
    %v3727 = vadd.f32 %v2882, %v3564
    %v3728 = vadd.f32 %v2884, %v3566
    %v3729 = vadd.f32 %v2886, %v3568
    %v3730 = vadd.f32 %v2890, %v3572
    %v3731 = vadd.f32 %v2892, %v3574
    %v3732 = vadd.f32 %v2894, %v3576
    %v3733 = vadd.f32 %v2896, %v3578
    %v3734 = vadd.f32 %v2900, %v3582
    %v3735 = vadd.f32 %v2902, %v3584
    %v3736 = vadd.f32 %v2904, %v3586
    %v3737 = vadd.f32 %v2906, %v3588
    %v3738 = vadd.f32 %v2910, %v3592
    %v3739 = vadd.f32 %v2912, %v3594
    %v3740 = vadd.f32 %v2914, %v3596
    %v3741 = vadd.f32 %v2916, %v3598
    %v3742 = vadd.f32 %v2920, %v3602
    %v3743 = vadd.f32 %v2922, %v3604
    %v3744 = vadd.f32 %v2924, %v3606
    %v3745 = vadd.f32 %v2926, %v3608
    %v3746 = vadd.f32 %v2930, %v3612
    %v3747 = vadd.f32 %v2932, %v3614
    %v3748 = vadd.f32 %v2934, %v3616
    %v3749 = vadd.f32 %v2936, %v3618
    %v3750 = vadd.f32 %v2940, %v3622
    %v3751 = vadd.f32 %v2942, %v3624
    %v3752 = vadd.f32 %v2944, %v3626
    %v3753 = vadd.f32 %v2946, %v3628
    %v3754 = vadd.f32 %v2950, %v3632
    %v3755 = vadd.f32 %v2952, %v3634
    %v3756 = vadd.f32 %v2954, %v3636
    %v3757 = vadd.f32 %v2956, %v3638
    %v3758 = vadd.f32 %v2960, %v3642
    %v3759 = vadd.f32 %v2962, %v3644
    %v3760 = vadd.f32 %v2964, %v3646
    %v3761 = vadd.f32 %v2966, %v3648
    %v3762 = vadd.f32 %v2970, %v3652
    %v3763 = vadd.f32 %v2972, %v3654
    %v3764 = vadd.f32 %v2974, %v3656
    %v3765 = vadd.f32 %v2976, %v3658
    %v3766 = vadd.f32 %v2980, %v3662
    %v3767 = vadd.f32 %v2982, %v3664
    %v3768 = vadd.f32 %v2984, %v3666
    %v3769 = vadd.f32 %v2986, %v3668
    %v3770 = vadd.f32 %v2990, %v3672
    %v3771 = vadd.f32 %v2992, %v3674
    %v3772 = vadd.f32 %v2994, %v3676
    %v3773 = vadd.f32 %v2996, %v3678
    %v3774 = vadd.f32 %v3000, %v3682
    %v3775 = vadd.f32 %v3002, %v3684
    %v3776 = vadd.f32 %v3004, %v3686
    %v3777 = vadd.f32 %v3006, %v3688
    %v3778 = vld [vmem:[#allocation3 + $0x30] sm:$0xff]
    %v3779 = vld [vmem:[#allocation3 + $0x38] sm:$0xff]
    %v3780 = vld [vmem:[#allocation3 + $0x40] sm:$0xff]
    %v3781 = vld [vmem:[#allocation3 + $0x48] sm:$0xff]
    %v3782 = vld [vmem:[#allocation3 + $0x50] sm:$0xff]
    %v3783 = vld [vmem:[#allocation3 + $0x58] sm:$0xff]
    %v3784 = vld [vmem:[#allocation3 + $0x60] sm:$0xff]
    %v3785 = vld [vmem:[#allocation3 + $0x68] sm:$0xff]
    %v3786 = vld [vmem:[#allocation3 + $0x70] sm:$0xff]
    %v3787 = vld [vmem:[#allocation3 + $0x78] sm:$0xff]
    %v3788 = vld [vmem:[#allocation3 + $0x80] sm:$0xff]
    %v3789 = vld [vmem:[#allocation3 + $0x88] sm:$0xff]
    %v3790 = vld [vmem:[#allocation3 + $0x90] sm:$0xff]
    %v3791 = vld [vmem:[#allocation3 + $0x98] sm:$0xff]
    %v3792 = vld [vmem:[#allocation3 + $0xa0] sm:$0xff]
    %v3793 = vld [vmem:[#allocation3 + $0xa8] sm:$0xff]
    %v3794 = vld [vmem:[#allocation3 + $0xb0] sm:$0xff]
    %v3795 = vld [vmem:[#allocation3 + $0xb8] sm:$0xff]
    %v3796 = vld [vmem:[#allocation3 + $0xc0] sm:$0xff]
    %v3797 = vld [vmem:[#allocation3 + $0xc8] sm:$0xff]
    %v3798 = vld [vmem:[#allocation3 + $0xd0] sm:$0xff]
    %v3799 = vld [vmem:[#allocation3 + $0xd8] sm:$0xff]
    %v3800 = vld [vmem:[#allocation3 + $0xe0] sm:$0xff]
    %v3801 = vld [vmem:[#allocation3 + $0xe8] sm:$0xff]
    %v3802 = vld [vmem:[#allocation3 + $0xf0] sm:$0xff]
    %v3803 = vld [vmem:[#allocation3 + $0xf8] sm:$0xff]
    %v3804 = vld [vmem:[#allocation3 + $0x100] sm:$0xff]
    %v3805 = vld [vmem:[#allocation3 + $0x108] sm:$0xff]
    %v3806 = vld [vmem:[#allocation3 + $0x110] sm:$0xff]
    %v3807 = vld [vmem:[#allocation3 + $0x118] sm:$0xff]
    %v3808 = vld [vmem:[#allocation3 + $0x120] sm:$0xff]
    %v3809 = vld [vmem:[#allocation3 + $0x128] sm:$0xff]
    %v3810 = vld [vmem:[#allocation3 + $0x130] sm:$0xff]
    %v3811 = vld [vmem:[#allocation3 + $0x138] sm:$0xff]
    %v3812 = vld [vmem:[#allocation3 + $0x140] sm:$0xff]
    %v3813 = vld [vmem:[#allocation3 + $0x148] sm:$0xff]
    %v3814 = vld [vmem:[#allocation3 + $0x150] sm:$0xff]
    %v3815 = vld [vmem:[#allocation3 + $0x158] sm:$0xff]
    %v3816 = vld [vmem:[#allocation3 + $0x160] sm:$0xff]
    %v3817 = vld [vmem:[#allocation3 + $0x168] sm:$0xff]
    %v3818 = vld [vmem:[#allocation3 + $0x170] sm:$0xff]
    %v3819 = vld [vmem:[#allocation3 + $0x178] sm:$0xff]
    %v3820 = vld [vmem:[#allocation3 + $0x180] sm:$0xff]
    %v3821 = vld [vmem:[#allocation3 + $0x188] sm:$0xff]
    %s3822 = scalar_lea.vmem %s7, 480
    %v3823 = vld [vmem:[%s3822] sm:$0xff]
    %v3824 = vld [vmem:[%s3822 + $0x8] sm:$0xff]
    %v3825 = vld [vmem:[%s3822 + $0x10] sm:$0xff]
    %v3826 = vld [vmem:[%s3822 + $0x18] sm:$0xff]
    %v3827 = vld [vmem:[%s3822 + $0x20] sm:$0xff]
    %v3828 = vld [vmem:[%s3822 + $0x28] sm:$0xff]
    %v3829 = vld [vmem:[%s3822 + $0x30] sm:$0xff]
    %v3830 = vld [vmem:[%s3822 + $0x38] sm:$0xff]
    %v3831 = vld [vmem:[%s3822 + $0x40] sm:$0xff]
    %v3832 = vld [vmem:[%s3822 + $0x48] sm:$0xff]
    %v3833 = vld [vmem:[%s3822 + $0x50] sm:$0xff]
    %v3834 = vld [vmem:[%s3822 + $0x58] sm:$0xff]
    %v3835 = vld [vmem:[%s3822 + $0x60] sm:$0xff]
    %v3836 = vld [vmem:[%s3822 + $0x68] sm:$0xff]
    %v3837 = vld [vmem:[%s3822 + $0x70] sm:$0xff]
    %v3838 = vld [vmem:[%s3822 + $0x78] sm:$0xff]
    %v3839 = vld [vmem:[%s3822 + $0x80] sm:$0xff]
    %v3840 = vld [vmem:[%s3822 + $0x88] sm:$0xff]
    %v3841 = vld [vmem:[%s3822 + $0x90] sm:$0xff]
    %v3842 = vld [vmem:[%s3822 + $0x98] sm:$0xff]
    %v3887 = vunpack.c.l.b16 %v3778
    %v3888 = vunpack.c.h.b16 %v3778
    %v3889 = vunpack.c.l.b16 %v3779
    %v3890 = vunpack.c.h.b16 %v3779
    %v3891 = vunpack.c.l.b16 %v3780
    %v3892 = vunpack.c.h.b16 %v3780
    %v3893 = vunpack.c.l.b16 %v3781
    %v3894 = vunpack.c.h.b16 %v3781
    %v3895 = vunpack.c.l.b16 %v3782
    %v3896 = vunpack.c.h.b16 %v3782
    %v3897 = vunpack.c.l.b16 %v3783
    %v3898 = vunpack.c.h.b16 %v3783
    %v3899 = vunpack.c.l.b16 %v3784
    %v3900 = vunpack.c.h.b16 %v3784
    %v3901 = vunpack.c.l.b16 %v3785
    %v3902 = vunpack.c.h.b16 %v3785
    %v3903 = vunpack.c.l.b16 %v3786
    %v3904 = vunpack.c.h.b16 %v3786
    %v3905 = vunpack.c.l.b16 %v3787
    %v3906 = vunpack.c.h.b16 %v3787
    %v3907 = vunpack.c.l.b16 %v3788
    %v3908 = vunpack.c.h.b16 %v3788
    %v3909 = vunpack.c.l.b16 %v3789
    %v3910 = vunpack.c.h.b16 %v3789
    %v3911 = vunpack.c.l.b16 %v3790
    %v3912 = vunpack.c.h.b16 %v3790
    %v3913 = vunpack.c.l.b16 %v3791
    %v3914 = vunpack.c.h.b16 %v3791
    %v3915 = vunpack.c.l.b16 %v3792
    %v3916 = vunpack.c.h.b16 %v3792
    %v3917 = vunpack.c.l.b16 %v3793
    %v3918 = vunpack.c.h.b16 %v3793
    %v3919 = vunpack.c.l.b16 %v3794
    %v3920 = vunpack.c.h.b16 %v3794
    %v3921 = vunpack.c.l.b16 %v3795
    %v3922 = vunpack.c.h.b16 %v3795
    %v3923 = vunpack.c.l.b16 %v3796
    %v3924 = vunpack.c.h.b16 %v3796
    %v3925 = vunpack.c.l.b16 %v3797
    %v3926 = vunpack.c.h.b16 %v3797
    %v3927 = vunpack.c.l.b16 %v3798
    %v3928 = vunpack.c.h.b16 %v3798
    %v3929 = vunpack.c.l.b16 %v3799
    %v3930 = vunpack.c.h.b16 %v3799
    %v3931 = vunpack.c.l.b16 %v3800
    %v3932 = vunpack.c.h.b16 %v3800
    %v3933 = vunpack.c.l.b16 %v3801
    %v3934 = vunpack.c.h.b16 %v3801
    %v3935 = vunpack.c.l.b16 %v3802
    %v3936 = vunpack.c.h.b16 %v3802
    %v3937 = vunpack.c.l.b16 %v3803
    %v3938 = vunpack.c.h.b16 %v3803
    %v3939 = vunpack.c.l.b16 %v3804
    %v3940 = vunpack.c.h.b16 %v3804
    %v3941 = vunpack.c.l.b16 %v3805
    %v3942 = vunpack.c.h.b16 %v3805
    %v3943 = vunpack.c.l.b16 %v3806
    %v3944 = vunpack.c.h.b16 %v3806
    %v3945 = vunpack.c.l.b16 %v3807
    %v3946 = vunpack.c.h.b16 %v3807
    %v3947 = vunpack.c.l.b16 %v3808
    %v3948 = vunpack.c.h.b16 %v3808
    %v3949 = vunpack.c.l.b16 %v3809
    %v3950 = vunpack.c.h.b16 %v3809
    %v3951 = vunpack.c.l.b16 %v3810
    %v3952 = vunpack.c.h.b16 %v3810
    %v3953 = vunpack.c.l.b16 %v3811
    %v3954 = vunpack.c.h.b16 %v3811
    %v3955 = vunpack.c.l.b16 %v3812
    %v3956 = vunpack.c.h.b16 %v3812
    %v3957 = vunpack.c.l.b16 %v3813
    %v3958 = vunpack.c.h.b16 %v3813
    %v3959 = vunpack.c.l.b16 %v3814
    %v3960 = vunpack.c.h.b16 %v3814
    %v3961 = vunpack.c.l.b16 %v3815
    %v3962 = vunpack.c.h.b16 %v3815
    %v3963 = vunpack.c.l.b16 %v3816
    %v3964 = vunpack.c.h.b16 %v3816
    %v3965 = vunpack.c.l.b16 %v3817
    %v3966 = vunpack.c.h.b16 %v3817
    %v3967 = vunpack.c.l.b16 %v3818
    %v3968 = vunpack.c.h.b16 %v3818
    %v3969 = vunpack.c.l.b16 %v3819
    %v3970 = vunpack.c.h.b16 %v3819
    %v3971 = vunpack.c.l.b16 %v3820
    %v3972 = vunpack.c.h.b16 %v3820
    %v3973 = vunpack.c.l.b16 %v3821
    %v3974 = vunpack.c.h.b16 %v3821
    %v3975 = vpack.c.b16 %v3889, %v3887
    %v3976 = vpack.c.b16 %v3890, %v3888
    %v3977 = vpack.c.b16 %v3893, %v3891
    %v3978 = vpack.c.b16 %v3894, %v3892
    %v3979 = vpack.c.b16 %v3897, %v3895
    %v3980 = vpack.c.b16 %v3898, %v3896
    %v3981 = vpack.c.b16 %v3901, %v3899
    %v3982 = vpack.c.b16 %v3902, %v3900
    %v3983 = vpack.c.b16 %v3905, %v3903
    %v3984 = vpack.c.b16 %v3906, %v3904
    %v3985 = vpack.c.b16 %v3909, %v3907
    %v3986 = vpack.c.b16 %v3910, %v3908
    %v3987 = vpack.c.b16 %v3913, %v3911
    %v3988 = vpack.c.b16 %v3914, %v3912
    %v3989 = vpack.c.b16 %v3917, %v3915
    %v3990 = vpack.c.b16 %v3918, %v3916
    %v3991 = vpack.c.b16 %v3921, %v3919
    %v3992 = vpack.c.b16 %v3922, %v3920
    %v3993 = vpack.c.b16 %v3925, %v3923
    %v3994 = vpack.c.b16 %v3926, %v3924
    %v3995 = vpack.c.b16 %v3929, %v3927
    %v3996 = vpack.c.b16 %v3930, %v3928
    %v3997 = vpack.c.b16 %v3933, %v3931
    %v3998 = vpack.c.b16 %v3934, %v3932
    %v3999 = vpack.c.b16 %v3937, %v3935
    %v4000 = vpack.c.b16 %v3938, %v3936
    %v4001 = vpack.c.b16 %v3941, %v3939
    %v4002 = vpack.c.b16 %v3942, %v3940
    %v4003 = vpack.c.b16 %v3945, %v3943
    %v4004 = vpack.c.b16 %v3946, %v3944
    %v4005 = vpack.c.b16 %v3949, %v3947
    %v4006 = vpack.c.b16 %v3950, %v3948
    %v4007 = vpack.c.b16 %v3953, %v3951
    %v4008 = vpack.c.b16 %v3954, %v3952
    %v4009 = vpack.c.b16 %v3957, %v3955
    %v4010 = vpack.c.b16 %v3958, %v3956
    %v4011 = vpack.c.b16 %v3961, %v3959
    %v4012 = vpack.c.b16 %v3962, %v3960
    %v4013 = vpack.c.b16 %v3965, %v3963
    %v4014 = vpack.c.b16 %v3966, %v3964
    %v4015 = vpack.c.b16 %v3969, %v3967
    %v4016 = vpack.c.b16 %v3970, %v3968
    %v4017 = vpack.c.b16 %v3973, %v3971
    %v4018 = vpack.c.b16 %v3974, %v3972
    %v4061 = vunpack.c.l.b16 %v3823
    %v4062 = vunpack.c.h.b16 %v3823
    %v4063 = vunpack.c.l.b16 %v3824
    %v4064 = vunpack.c.h.b16 %v3824
    %v4065 = vunpack.c.l.b16 %v3825
    %v4066 = vunpack.c.h.b16 %v3825
    %v4067 = vunpack.c.l.b16 %v3826
    %v4068 = vunpack.c.h.b16 %v3826
    %v4069 = vunpack.c.l.b16 %v3827
    %v4070 = vunpack.c.h.b16 %v3827
    %v4071 = vunpack.c.l.b16 %v3828
    %v4072 = vunpack.c.h.b16 %v3828
    %v4073 = vunpack.c.l.b16 %v3829
    %v4074 = vunpack.c.h.b16 %v3829
    %v4075 = vunpack.c.l.b16 %v3830
    %v4076 = vunpack.c.h.b16 %v3830
    %v4077 = vunpack.c.l.b16 %v3831
    %v4078 = vunpack.c.h.b16 %v3831
    %v4079 = vunpack.c.l.b16 %v3832
    %v4080 = vunpack.c.h.b16 %v3832
    %v4081 = vunpack.c.l.b16 %v3833
    %v4082 = vunpack.c.h.b16 %v3833
    %v4083 = vunpack.c.l.b16 %v3834
    %v4084 = vunpack.c.h.b16 %v3834
    %v4085 = vunpack.c.l.b16 %v3835
    %v4086 = vunpack.c.h.b16 %v3835
    %v4087 = vunpack.c.l.b16 %v3836
    %v4088 = vunpack.c.h.b16 %v3836
    %v4089 = vunpack.c.l.b16 %v3837
    %v4090 = vunpack.c.h.b16 %v3837
    %v4091 = vunpack.c.l.b16 %v3838
    %v4092 = vunpack.c.h.b16 %v3838
    %v4093 = vunpack.c.l.b16 %v3839
    %v4094 = vunpack.c.h.b16 %v3839
    %v4095 = vunpack.c.l.b16 %v3840
    %v4096 = vunpack.c.h.b16 %v3840
    %v4097 = vunpack.c.l.b16 %v3841
    %v4098 = vunpack.c.h.b16 %v3841
    %v4099 = vunpack.c.l.b16 %v3842
    %v4100 = vunpack.c.h.b16 %v3842
    %v4101 = vpack.c.b16 %v4063, %v4061
    %v4102 = vpack.c.b16 %v4064, %v4062
    %v4103 = vpack.c.b16 %v4067, %v4065
    %v4104 = vpack.c.b16 %v4068, %v4066
    %v4105 = vpack.c.b16 %v4071, %v4069
    %v4106 = vpack.c.b16 %v4072, %v4070
    %v4107 = vpack.c.b16 %v4075, %v4073
    %v4108 = vpack.c.b16 %v4076, %v4074
    %v4109 = vpack.c.b16 %v4079, %v4077
    %v4110 = vpack.c.b16 %v4080, %v4078
    %v4111 = vpack.c.b16 %v4083, %v4081
    %v4112 = vpack.c.b16 %v4084, %v4082
    %v4113 = vpack.c.b16 %v4087, %v4085
    %v4114 = vpack.c.b16 %v4088, %v4086
    %v4115 = vpack.c.b16 %v4091, %v4089
    %v4116 = vpack.c.b16 %v4092, %v4090
    %v4117 = vpack.c.b16 %v4095, %v4093
    %v4118 = vpack.c.b16 %v4096, %v4094
    %v4119 = vpack.c.b16 %v4099, %v4097
    %v4120 = vpack.c.b16 %v4100, %v4098
    %v4142 = vsel %vm2323, %v3976, 0
    %v4145 = vsel %vm2323, %v3978, 0
    %v4148 = vsel %vm2323, %v3980, 0
    %v4151 = vsel %vm2323, %v3982, 0
    %v4154 = vsel %vm2323, %v3984, 0
    %v4157 = vsel %vm2323, %v3986, 0
    %v4160 = vsel %vm2323, %v3988, 0
    %v4163 = vsel %vm2323, %v3990, 0
    %v4166 = vsel %vm2323, %v3992, 0
    %v4169 = vsel %vm2323, %v3994, 0
    %v4172 = vsel %vm2323, %v3996, 0
    %v4175 = vsel %vm2323, %v3998, 0
    %v4178 = vsel %vm2323, %v4000, 0
    %v4181 = vsel %vm2323, %v4002, 0
    %v4184 = vsel %vm2323, %v4004, 0
    %v4187 = vsel %vm2323, %v4006, 0
    %v4190 = vsel %vm2323, %v4008, 0
    %v4193 = vsel %vm2323, %v4010, 0
    %v4196 = vsel %vm2323, %v4012, 0
    %v4199 = vsel %vm2323, %v4014, 0
    %v4202 = vsel %vm2323, %v4016, 0
    %v4205 = vsel %vm2323, %v4018, 0
    %4207 = vmatprep.subr.bf16.mxu0 %v4116
    %4208 = vmatpush1.bf16.msra.mxu0 %v4115
    %4209 = vmatprep.subr.bf16.mxu0 %v4114
    %4210 = vmatpush1.bf16.msra.mxu0 %v4113
    %4211 = vmatprep.subr.bf16.mxu0 %v4112
    %4212 = vmatpush1.bf16.msra.mxu0 %v4111
    %4213 = vmatprep.subr.bf16.mxu0 %v4110
    %4214 = vmatpush1.bf16.msra.mxu0 %v4109
    %4215 = vmatprep.subr.bf16.mxu0 %v4108
    %4216 = vmatpush1.bf16.msra.mxu0 %v4107
    %4217 = vmatprep.subr.bf16.mxu0 %v4106
    %4218 = vmatpush1.bf16.msra.mxu0 %v4105
    %4219 = vmatprep.subr.bf16.mxu0 %v4104
    %4220 = vmatpush1.bf16.msra.mxu0 %v4103
    %4221 = vmatprep.subr.bf16.mxu0 %v4102
    %4222 = vmatpush1.bf16.msra.mxu0 %v4101
    %4223 = vmatprep.subr.bf16.mxu0 0
    %4224 = vmatpush2.bf16.msra.mxu0 0
    %4225 = vmatprep.subr.bf16.mxu0 0
    %4226 = vmatpush2.bf16.msra.mxu0 0
    %4227 = vmatprep.subr.bf16.mxu0 0
    %4228 = vmatpush2.bf16.msra.mxu0 0
    %4229 = vmatprep.subr.bf16.mxu0 0
    %4230 = vmatpush2.bf16.msra.mxu0 0
    %4231 = vmatprep.subr.bf16.mxu0 0
    %4232 = vmatpush2.bf16.msra.mxu0 0
    %4233 = vmatprep.subr.bf16.mxu0 0
    %4234 = vmatpush2.bf16.msra.mxu0 0
    %4235 = vmatprep.subr.bf16.mxu0 %v4120
    %4236 = vmatpush2.bf16.msra.mxu0 %v4119
    %4237 = vmatprep.subr.bf16.mxu0 %v4118
    %4238 = vmatpush2.bf16.msra.mxu0 %v4117
    %4239 = vmatprep.mubr.bf16.mxu0 %v4142
    %4240 = vmatmul.mubr.bf16.gmra.mxu0 %v3975
    %v4241 = vpop.f32.mrf.mxu0
    %v4242 = vadd.f32 0.0, %v4241
    %v4243 = vpop.f32.mrf.mxu0
    %v4244 = vadd.f32 0.0, %v4243
    %v4245 = vpop.f32.mrf.mxu0
    %v4246 = vadd.f32 0.0, %v4245
    %v4247 = vpop.f32.mrf.mxu0
    %v4248 = vadd.f32 0.0, %v4247
    %4249 = vmatprep.mubr.bf16.mxu0 %v4145
    %4250 = vmatmul.mubr.bf16.gmra.mxu0 %v3977
    %v4251 = vpop.f32.mrf.mxu0
    %v4252 = vadd.f32 0.0, %v4251
    %v4253 = vpop.f32.mrf.mxu0
    %v4254 = vadd.f32 0.0, %v4253
    %v4255 = vpop.f32.mrf.mxu0
    %v4256 = vadd.f32 0.0, %v4255
    %v4257 = vpop.f32.mrf.mxu0
    %v4258 = vadd.f32 0.0, %v4257
    %4259 = vmatprep.mubr.bf16.mxu0 %v4148
    %4260 = vmatmul.mubr.bf16.gmra.mxu0 %v3979
    %v4261 = vpop.f32.mrf.mxu0
    %v4262 = vadd.f32 0.0, %v4261
    %v4263 = vpop.f32.mrf.mxu0
    %v4264 = vadd.f32 0.0, %v4263
    %v4265 = vpop.f32.mrf.mxu0
    %v4266 = vadd.f32 0.0, %v4265
    %v4267 = vpop.f32.mrf.mxu0
    %v4268 = vadd.f32 0.0, %v4267
    %4269 = vmatprep.mubr.bf16.mxu0 %v4151
    %4270 = vmatmul.mubr.bf16.gmra.mxu0 %v3981
    %v4271 = vpop.f32.mrf.mxu0
    %v4272 = vadd.f32 0.0, %v4271
    %v4273 = vpop.f32.mrf.mxu0
    %v4274 = vadd.f32 0.0, %v4273
    %v4275 = vpop.f32.mrf.mxu0
    %v4276 = vadd.f32 0.0, %v4275
    %v4277 = vpop.f32.mrf.mxu0
    %v4278 = vadd.f32 0.0, %v4277
    %4279 = vmatprep.mubr.bf16.mxu0 %v4154
    %4280 = vmatmul.mubr.bf16.gmra.mxu0 %v3983
    %v4281 = vpop.f32.mrf.mxu0
    %v4282 = vadd.f32 0.0, %v4281
    %v4283 = vpop.f32.mrf.mxu0
    %v4284 = vadd.f32 0.0, %v4283
    %v4285 = vpop.f32.mrf.mxu0
    %v4286 = vadd.f32 0.0, %v4285
    %v4287 = vpop.f32.mrf.mxu0
    %v4288 = vadd.f32 0.0, %v4287
    %4289 = vmatprep.mubr.bf16.mxu0 %v4157
    %4290 = vmatmul.mubr.bf16.gmra.mxu0 %v3985
    %v4291 = vpop.f32.mrf.mxu0
    %v4292 = vadd.f32 0.0, %v4291
    %v4293 = vpop.f32.mrf.mxu0
    %v4294 = vadd.f32 0.0, %v4293
    %v4295 = vpop.f32.mrf.mxu0
    %v4296 = vadd.f32 0.0, %v4295
    %v4297 = vpop.f32.mrf.mxu0
    %v4298 = vadd.f32 0.0, %v4297
    %4299 = vmatprep.mubr.bf16.mxu0 %v4160
    %4300 = vmatmul.mubr.bf16.gmra.mxu0 %v3987
    %v4301 = vpop.f32.mrf.mxu0
    %v4302 = vadd.f32 0.0, %v4301
    %v4303 = vpop.f32.mrf.mxu0
    %v4304 = vadd.f32 0.0, %v4303
    %v4305 = vpop.f32.mrf.mxu0
    %v4306 = vadd.f32 0.0, %v4305
    %v4307 = vpop.f32.mrf.mxu0
    %v4308 = vadd.f32 0.0, %v4307
    %4309 = vmatprep.mubr.bf16.mxu0 %v4163
    %4310 = vmatmul.mubr.bf16.gmra.mxu0 %v3989
    %v4311 = vpop.f32.mrf.mxu0
    %v4312 = vadd.f32 0.0, %v4311
    %v4313 = vpop.f32.mrf.mxu0
    %v4314 = vadd.f32 0.0, %v4313
    %v4315 = vpop.f32.mrf.mxu0
    %v4316 = vadd.f32 0.0, %v4315
    %v4317 = vpop.f32.mrf.mxu0
    %v4318 = vadd.f32 0.0, %v4317
    %4319 = vmatprep.mubr.bf16.mxu0 %v4166
    %4320 = vmatmul.mubr.bf16.gmra.mxu0 %v3991
    %v4321 = vpop.f32.mrf.mxu0
    %v4322 = vadd.f32 0.0, %v4321
    %v4323 = vpop.f32.mrf.mxu0
    %v4324 = vadd.f32 0.0, %v4323
    %v4325 = vpop.f32.mrf.mxu0
    %v4326 = vadd.f32 0.0, %v4325
    %v4327 = vpop.f32.mrf.mxu0
    %v4328 = vadd.f32 0.0, %v4327
    %4329 = vmatprep.mubr.bf16.mxu0 %v4169
    %4330 = vmatmul.mubr.bf16.gmra.mxu0 %v3993
    %v4331 = vpop.f32.mrf.mxu0
    %v4332 = vadd.f32 0.0, %v4331
    %v4333 = vpop.f32.mrf.mxu0
    %v4334 = vadd.f32 0.0, %v4333
    %v4335 = vpop.f32.mrf.mxu0
    %v4336 = vadd.f32 0.0, %v4335
    %v4337 = vpop.f32.mrf.mxu0
    %v4338 = vadd.f32 0.0, %v4337
    %4339 = vmatprep.mubr.bf16.mxu0 %v4172
    %4340 = vmatmul.mubr.bf16.gmra.mxu0 %v3995
    %v4341 = vpop.f32.mrf.mxu0
    %v4342 = vadd.f32 0.0, %v4341
    %v4343 = vpop.f32.mrf.mxu0
    %v4344 = vadd.f32 0.0, %v4343
    %v4345 = vpop.f32.mrf.mxu0
    %v4346 = vadd.f32 0.0, %v4345
    %v4347 = vpop.f32.mrf.mxu0
    %v4348 = vadd.f32 0.0, %v4347
    %4349 = vmatprep.mubr.bf16.mxu0 %v4175
    %4350 = vmatmul.mubr.bf16.gmra.mxu0 %v3997
    %v4351 = vpop.f32.mrf.mxu0
    %v4352 = vadd.f32 0.0, %v4351
    %v4353 = vpop.f32.mrf.mxu0
    %v4354 = vadd.f32 0.0, %v4353
    %v4355 = vpop.f32.mrf.mxu0
    %v4356 = vadd.f32 0.0, %v4355
    %v4357 = vpop.f32.mrf.mxu0
    %v4358 = vadd.f32 0.0, %v4357
    %4359 = vmatprep.mubr.bf16.mxu0 %v4178
    %4360 = vmatmul.mubr.bf16.gmra.mxu0 %v3999
    %v4361 = vpop.f32.mrf.mxu0
    %v4362 = vadd.f32 0.0, %v4361
    %v4363 = vpop.f32.mrf.mxu0
    %v4364 = vadd.f32 0.0, %v4363
    %v4365 = vpop.f32.mrf.mxu0
    %v4366 = vadd.f32 0.0, %v4365
    %v4367 = vpop.f32.mrf.mxu0
    %v4368 = vadd.f32 0.0, %v4367
    %4369 = vmatprep.mubr.bf16.mxu0 %v4181
    %4370 = vmatmul.mubr.bf16.gmra.mxu0 %v4001
    %v4371 = vpop.f32.mrf.mxu0
    %v4372 = vadd.f32 0.0, %v4371
    %v4373 = vpop.f32.mrf.mxu0
    %v4374 = vadd.f32 0.0, %v4373
    %v4375 = vpop.f32.mrf.mxu0
    %v4376 = vadd.f32 0.0, %v4375
    %v4377 = vpop.f32.mrf.mxu0
    %v4378 = vadd.f32 0.0, %v4377
    %4379 = vmatprep.mubr.bf16.mxu0 %v4184
    %4380 = vmatmul.mubr.bf16.gmra.mxu0 %v4003
    %v4381 = vpop.f32.mrf.mxu0
    %v4382 = vadd.f32 0.0, %v4381
    %v4383 = vpop.f32.mrf.mxu0
    %v4384 = vadd.f32 0.0, %v4383
    %v4385 = vpop.f32.mrf.mxu0
    %v4386 = vadd.f32 0.0, %v4385
    %v4387 = vpop.f32.mrf.mxu0
    %v4388 = vadd.f32 0.0, %v4387
    %4389 = vmatprep.mubr.bf16.mxu0 %v4187
    %4390 = vmatmul.mubr.bf16.gmra.mxu0 %v4005
    %v4391 = vpop.f32.mrf.mxu0
    %v4392 = vadd.f32 0.0, %v4391
    %v4393 = vpop.f32.mrf.mxu0
    %v4394 = vadd.f32 0.0, %v4393
    %v4395 = vpop.f32.mrf.mxu0
    %v4396 = vadd.f32 0.0, %v4395
    %v4397 = vpop.f32.mrf.mxu0
    %v4398 = vadd.f32 0.0, %v4397
    %4399 = vmatprep.mubr.bf16.mxu0 %v4190
    %4400 = vmatmul.mubr.bf16.gmra.mxu0 %v4007
    %v4401 = vpop.f32.mrf.mxu0
    %v4402 = vadd.f32 0.0, %v4401
    %v4403 = vpop.f32.mrf.mxu0
    %v4404 = vadd.f32 0.0, %v4403
    %v4405 = vpop.f32.mrf.mxu0
    %v4406 = vadd.f32 0.0, %v4405
    %v4407 = vpop.f32.mrf.mxu0
    %v4408 = vadd.f32 0.0, %v4407
    %4409 = vmatprep.mubr.bf16.mxu0 %v4193
    %4410 = vmatmul.mubr.bf16.gmra.mxu0 %v4009
    %v4411 = vpop.f32.mrf.mxu0
    %v4412 = vadd.f32 0.0, %v4411
    %v4413 = vpop.f32.mrf.mxu0
    %v4414 = vadd.f32 0.0, %v4413
    %v4415 = vpop.f32.mrf.mxu0
    %v4416 = vadd.f32 0.0, %v4415
    %v4417 = vpop.f32.mrf.mxu0
    %v4418 = vadd.f32 0.0, %v4417
    %4419 = vmatprep.mubr.bf16.mxu0 %v4196
    %4420 = vmatmul.mubr.bf16.gmra.mxu0 %v4011
    %v4421 = vpop.f32.mrf.mxu0
    %v4422 = vadd.f32 0.0, %v4421
    %v4423 = vpop.f32.mrf.mxu0
    %v4424 = vadd.f32 0.0, %v4423
    %v4425 = vpop.f32.mrf.mxu0
    %v4426 = vadd.f32 0.0, %v4425
    %v4427 = vpop.f32.mrf.mxu0
    %v4428 = vadd.f32 0.0, %v4427
    %4429 = vmatprep.mubr.bf16.mxu0 %v4199
    %4430 = vmatmul.mubr.bf16.gmra.mxu0 %v4013
    %v4431 = vpop.f32.mrf.mxu0
    %v4432 = vadd.f32 0.0, %v4431
    %v4433 = vpop.f32.mrf.mxu0
    %v4434 = vadd.f32 0.0, %v4433
    %v4435 = vpop.f32.mrf.mxu0
    %v4436 = vadd.f32 0.0, %v4435
    %v4437 = vpop.f32.mrf.mxu0
    %v4438 = vadd.f32 0.0, %v4437
    %4439 = vmatprep.mubr.bf16.mxu0 %v4202
    %4440 = vmatmul.mubr.bf16.gmra.mxu0 %v4015
    %v4441 = vpop.f32.mrf.mxu0
    %v4442 = vadd.f32 0.0, %v4441
    %v4443 = vpop.f32.mrf.mxu0
    %v4444 = vadd.f32 0.0, %v4443
    %v4445 = vpop.f32.mrf.mxu0
    %v4446 = vadd.f32 0.0, %v4445
    %v4447 = vpop.f32.mrf.mxu0
    %v4448 = vadd.f32 0.0, %v4447
    %4449 = vmatprep.mubr.bf16.mxu0 %v4205
    %4450 = vmatmul.mubr.bf16.gmra.mxu0 %v4017
    %v4451 = vpop.f32.mrf.mxu0
    %v4452 = vadd.f32 0.0, %v4451
    %v4453 = vpop.f32.mrf.mxu0
    %v4454 = vadd.f32 0.0, %v4453
    %v4455 = vpop.f32.mrf.mxu0
    %v4456 = vadd.f32 0.0, %v4455
    %v4457 = vpop.f32.mrf.mxu0
    %v4458 = vadd.f32 0.0, %v4457
    %4459 = vdwg.mxu0
    %v4460 = vadd.f32 %v3690, %v4242
    %v4461 = vadd.f32 %v3691, %v4244
    %v4462 = vadd.f32 %v3692, %v4246
    %v4463 = vadd.f32 %v3693, %v4248
    %v4464 = vadd.f32 %v3694, %v4252
    %v4465 = vadd.f32 %v3695, %v4254
    %v4466 = vadd.f32 %v3696, %v4256
    %v4467 = vadd.f32 %v3697, %v4258
    %v4468 = vadd.f32 %v3698, %v4262
    %v4469 = vadd.f32 %v3699, %v4264
    %v4470 = vadd.f32 %v3700, %v4266
    %v4471 = vadd.f32 %v3701, %v4268
    %v4472 = vadd.f32 %v3702, %v4272
    %v4473 = vadd.f32 %v3703, %v4274
    %v4474 = vadd.f32 %v3704, %v4276
    %v4475 = vadd.f32 %v3705, %v4278
    %v4476 = vadd.f32 %v3706, %v4282
    %v4477 = vadd.f32 %v3707, %v4284
    %v4478 = vadd.f32 %v3708, %v4286
    %v4479 = vadd.f32 %v3709, %v4288
    %v4480 = vadd.f32 %v3710, %v4292
    %v4481 = vadd.f32 %v3711, %v4294
    %v4482 = vadd.f32 %v3712, %v4296
    %v4483 = vadd.f32 %v3713, %v4298
    %v4484 = vadd.f32 %v3714, %v4302
    %v4485 = vadd.f32 %v3715, %v4304
    %v4486 = vadd.f32 %v3716, %v4306
    %v4487 = vadd.f32 %v3717, %v4308
    %v4488 = vadd.f32 %v3718, %v4312
    %v4489 = vadd.f32 %v3719, %v4314
    %v4490 = vadd.f32 %v3720, %v4316
    %v4491 = vadd.f32 %v3721, %v4318
    %v4492 = vadd.f32 %v3722, %v4322
    %v4493 = vadd.f32 %v3723, %v4324
    %v4494 = vadd.f32 %v3724, %v4326
    %v4495 = vadd.f32 %v3725, %v4328
    %v4496 = vadd.f32 %v3726, %v4332
    %v4497 = vadd.f32 %v3727, %v4334
    %v4498 = vadd.f32 %v3728, %v4336
    %v4499 = vadd.f32 %v3729, %v4338
    %v4500 = vadd.f32 %v3730, %v4342
    %v4501 = vadd.f32 %v3731, %v4344
    %v4502 = vadd.f32 %v3732, %v4346
    %v4503 = vadd.f32 %v3733, %v4348
    %v4504 = vadd.f32 %v3734, %v4352
    %v4505 = vadd.f32 %v3735, %v4354
    %v4506 = vadd.f32 %v3736, %v4356
    %v4507 = vadd.f32 %v3737, %v4358
    %v4508 = vadd.f32 %v3738, %v4362
    %v4509 = vadd.f32 %v3739, %v4364
    %v4510 = vadd.f32 %v3740, %v4366
    %v4511 = vadd.f32 %v3741, %v4368
    %v4512 = vadd.f32 %v3742, %v4372
    %v4513 = vadd.f32 %v3743, %v4374
    %v4514 = vadd.f32 %v3744, %v4376
    %v4515 = vadd.f32 %v3745, %v4378
    %v4516 = vadd.f32 %v3746, %v4382
    %v4517 = vadd.f32 %v3747, %v4384
    %v4518 = vadd.f32 %v3748, %v4386
    %v4519 = vadd.f32 %v3749, %v4388
    %v4520 = vadd.f32 %v3750, %v4392
    %v4521 = vadd.f32 %v3751, %v4394
    %v4522 = vadd.f32 %v3752, %v4396
    %v4523 = vadd.f32 %v3753, %v4398
    %v4524 = vadd.f32 %v3754, %v4402
    %v4525 = vadd.f32 %v3755, %v4404
    %v4526 = vadd.f32 %v3756, %v4406
    %v4527 = vadd.f32 %v3757, %v4408
    %v4528 = vadd.f32 %v3758, %v4412
    %v4529 = vadd.f32 %v3759, %v4414
    %v4530 = vadd.f32 %v3760, %v4416
    %v4531 = vadd.f32 %v3761, %v4418
    %v4532 = vadd.f32 %v3762, %v4422
    %v4533 = vadd.f32 %v3763, %v4424
    %v4534 = vadd.f32 %v3764, %v4426
    %v4535 = vadd.f32 %v3765, %v4428
    %v4536 = vadd.f32 %v3766, %v4432
    %v4537 = vadd.f32 %v3767, %v4434
    %v4538 = vadd.f32 %v3768, %v4436
    %v4539 = vadd.f32 %v3769, %v4438
    %v4540 = vadd.f32 %v3770, %v4442
    %v4541 = vadd.f32 %v3771, %v4444
    %v4542 = vadd.f32 %v3772, %v4446
    %v4543 = vadd.f32 %v3773, %v4448
    %v4544 = vadd.f32 %v3774, %v4452
    %v4545 = vadd.f32 %v3775, %v4454
    %v4546 = vadd.f32 %v3776, %v4456
    %v4547 = vadd.f32 %v3777, %v4458
    %v4548 = vld [vmem:[%s8] sm:$0x3]
    %v4550 = vlaneseq
    %v4551 = vshrl.u32 %v4550, 7
    %v4552 = vsub.s32 0, %v4551
    %v4553 = vrot.slane %v4548, %v4552
    %v4554 = vlaneseq
    %v4555 = vshrl.u32 %v4554, 7
    %v4556 = vsub.s32 1, %v4555
    %v4557 = vrot.slane %v4548, %v4556
    %v4560 = vmul.f32 %v4460, %v4553
    %v4561 = vmul.f32 %v4461, %v4557
    %v4562 = vmul.f32 %v4462, %v4553
    %v4563 = vmul.f32 %v4463, %v4557
    %v4564 = vmul.f32 %v4464, %v4553
    %v4565 = vmul.f32 %v4465, %v4557
    %v4566 = vmul.f32 %v4466, %v4553
    %v4567 = vmul.f32 %v4467, %v4557
    %v4568 = vmul.f32 %v4468, %v4553
    %v4569 = vmul.f32 %v4469, %v4557
    %v4570 = vmul.f32 %v4470, %v4553
    %v4571 = vmul.f32 %v4471, %v4557
    %v4572 = vmul.f32 %v4472, %v4553
    %v4573 = vmul.f32 %v4473, %v4557
    %v4574 = vmul.f32 %v4474, %v4553
    %v4575 = vmul.f32 %v4475, %v4557
    %v4576 = vmul.f32 %v4476, %v4553
    %v4577 = vmul.f32 %v4477, %v4557
    %v4578 = vmul.f32 %v4478, %v4553
    %v4579 = vmul.f32 %v4479, %v4557
    %v4580 = vmul.f32 %v4480, %v4553
    %v4581 = vmul.f32 %v4481, %v4557
    %v4582 = vmul.f32 %v4482, %v4553
    %v4583 = vmul.f32 %v4483, %v4557
    %v4584 = vmul.f32 %v4484, %v4553
    %v4585 = vmul.f32 %v4485, %v4557
    %v4586 = vmul.f32 %v4486, %v4553
    %v4587 = vmul.f32 %v4487, %v4557
    %v4588 = vmul.f32 %v4488, %v4553
    %v4589 = vmul.f32 %v4489, %v4557
    %v4590 = vmul.f32 %v4490, %v4553
    %v4591 = vmul.f32 %v4491, %v4557
    %v4592 = vmul.f32 %v4492, %v4553
    %v4593 = vmul.f32 %v4493, %v4557
    %v4594 = vmul.f32 %v4494, %v4553
    %v4595 = vmul.f32 %v4495, %v4557
    %v4596 = vmul.f32 %v4496, %v4553
    %v4597 = vmul.f32 %v4497, %v4557
    %v4598 = vmul.f32 %v4498, %v4553
    %v4599 = vmul.f32 %v4499, %v4557
    %v4600 = vmul.f32 %v4500, %v4553
    %v4601 = vmul.f32 %v4501, %v4557
    %v4602 = vmul.f32 %v4502, %v4553
    %v4603 = vmul.f32 %v4503, %v4557
    %v4604 = vmul.f32 %v4504, %v4553
    %v4605 = vmul.f32 %v4505, %v4557
    %v4606 = vmul.f32 %v4506, %v4553
    %v4607 = vmul.f32 %v4507, %v4557
    %v4608 = vmul.f32 %v4508, %v4553
    %v4609 = vmul.f32 %v4509, %v4557
    %v4610 = vmul.f32 %v4510, %v4553
    %v4611 = vmul.f32 %v4511, %v4557
    %v4612 = vmul.f32 %v4512, %v4553
    %v4613 = vmul.f32 %v4513, %v4557
    %v4614 = vmul.f32 %v4514, %v4553
    %v4615 = vmul.f32 %v4515, %v4557
    %v4616 = vmul.f32 %v4516, %v4553
    %v4617 = vmul.f32 %v4517, %v4557
    %v4618 = vmul.f32 %v4518, %v4553
    %v4619 = vmul.f32 %v4519, %v4557
    %v4620 = vmul.f32 %v4520, %v4553
    %v4621 = vmul.f32 %v4521, %v4557
    %v4622 = vmul.f32 %v4522, %v4553
    %v4623 = vmul.f32 %v4523, %v4557
    %v4624 = vmul.f32 %v4524, %v4553
    %v4625 = vmul.f32 %v4525, %v4557
    %v4626 = vmul.f32 %v4526, %v4553
    %v4627 = vmul.f32 %v4527, %v4557
    %v4628 = vmul.f32 %v4528, %v4553
    %v4629 = vmul.f32 %v4529, %v4557
    %v4630 = vmul.f32 %v4530, %v4553
    %v4631 = vmul.f32 %v4531, %v4557
    %v4632 = vmul.f32 %v4532, %v4553
    %v4633 = vmul.f32 %v4533, %v4557
    %v4634 = vmul.f32 %v4534, %v4553
    %v4635 = vmul.f32 %v4535, %v4557
    %v4636 = vmul.f32 %v4536, %v4553
    %v4637 = vmul.f32 %v4537, %v4557
    %v4638 = vmul.f32 %v4538, %v4553
    %v4639 = vmul.f32 %v4539, %v4557
    %v4640 = vmul.f32 %v4540, %v4553
    %v4641 = vmul.f32 %v4541, %v4557
    %v4642 = vmul.f32 %v4542, %v4553
    %v4643 = vmul.f32 %v4543, %v4557
    %v4644 = vmul.f32 %v4544, %v4553
    %v4645 = vmul.f32 %v4545, %v4557
    %v4646 = vmul.f32 %v4546, %v4553
    %v4647 = vmul.f32 %v4547, %v4557
    %v4648 = vld [vmem:[%s9] sm:$0x3]
    %v4650 = vlaneseq
    %v4651 = vshrl.u32 %v4650, 7
    %v4652 = vsub.s32 0, %v4651
    %v4653 = vrot.slane %v4648, %v4652
    %v4654 = vlaneseq
    %v4655 = vshrl.u32 %v4654, 7
    %v4656 = vsub.s32 1, %v4655
    %v4657 = vrot.slane %v4648, %v4656
    %v4660 = vadd.f32 %v4560, %v4653
    %v4661 = vadd.f32 %v4561, %v4657
    %v4662 = vadd.f32 %v4562, %v4653
    %v4663 = vadd.f32 %v4563, %v4657
    %v4664 = vadd.f32 %v4564, %v4653
    %v4665 = vadd.f32 %v4565, %v4657
    %v4666 = vadd.f32 %v4566, %v4653
    %v4667 = vadd.f32 %v4567, %v4657
    %v4668 = vadd.f32 %v4568, %v4653
    %v4669 = vadd.f32 %v4569, %v4657
    %v4670 = vadd.f32 %v4570, %v4653
    %v4671 = vadd.f32 %v4571, %v4657
    %v4672 = vadd.f32 %v4572, %v4653
    %v4673 = vadd.f32 %v4573, %v4657
    %v4674 = vadd.f32 %v4574, %v4653
    %v4675 = vadd.f32 %v4575, %v4657
    %v4676 = vadd.f32 %v4576, %v4653
    %v4677 = vadd.f32 %v4577, %v4657
    %v4678 = vadd.f32 %v4578, %v4653
    %v4679 = vadd.f32 %v4579, %v4657
    %v4680 = vadd.f32 %v4580, %v4653
    %v4681 = vadd.f32 %v4581, %v4657
    %v4682 = vadd.f32 %v4582, %v4653
    %v4683 = vadd.f32 %v4583, %v4657
    %v4684 = vadd.f32 %v4584, %v4653
    %v4685 = vadd.f32 %v4585, %v4657
    %v4686 = vadd.f32 %v4586, %v4653
    %v4687 = vadd.f32 %v4587, %v4657
    %v4688 = vadd.f32 %v4588, %v4653
    %v4689 = vadd.f32 %v4589, %v4657
    %v4690 = vadd.f32 %v4590, %v4653
    %v4691 = vadd.f32 %v4591, %v4657
    %v4692 = vadd.f32 %v4592, %v4653
    %v4693 = vadd.f32 %v4593, %v4657
    %v4694 = vadd.f32 %v4594, %v4653
    %v4695 = vadd.f32 %v4595, %v4657
    %v4696 = vadd.f32 %v4596, %v4653
    %v4697 = vadd.f32 %v4597, %v4657
    %v4698 = vadd.f32 %v4598, %v4653
    %v4699 = vadd.f32 %v4599, %v4657
    %v4700 = vadd.f32 %v4600, %v4653
    %v4701 = vadd.f32 %v4601, %v4657
    %v4702 = vadd.f32 %v4602, %v4653
    %v4703 = vadd.f32 %v4603, %v4657
    %v4704 = vadd.f32 %v4604, %v4653
    %v4705 = vadd.f32 %v4605, %v4657
    %v4706 = vadd.f32 %v4606, %v4653
    %v4707 = vadd.f32 %v4607, %v4657
    %v4708 = vadd.f32 %v4608, %v4653
    %v4709 = vadd.f32 %v4609, %v4657
    %v4710 = vadd.f32 %v4610, %v4653
    %v4711 = vadd.f32 %v4611, %v4657
    %v4712 = vadd.f32 %v4612, %v4653
    %v4713 = vadd.f32 %v4613, %v4657
    %v4714 = vadd.f32 %v4614, %v4653
    %v4715 = vadd.f32 %v4615, %v4657
    %v4716 = vadd.f32 %v4616, %v4653
    %v4717 = vadd.f32 %v4617, %v4657
    %v4718 = vadd.f32 %v4618, %v4653
    %v4719 = vadd.f32 %v4619, %v4657
    %v4720 = vadd.f32 %v4620, %v4653
    %v4721 = vadd.f32 %v4621, %v4657
    %v4722 = vadd.f32 %v4622, %v4653
    %v4723 = vadd.f32 %v4623, %v4657
    %v4724 = vadd.f32 %v4624, %v4653
    %v4725 = vadd.f32 %v4625, %v4657
    %v4726 = vadd.f32 %v4626, %v4653
    %v4727 = vadd.f32 %v4627, %v4657
    %v4728 = vadd.f32 %v4628, %v4653
    %v4729 = vadd.f32 %v4629, %v4657
    %v4730 = vadd.f32 %v4630, %v4653
    %v4731 = vadd.f32 %v4631, %v4657
    %v4732 = vadd.f32 %v4632, %v4653
    %v4733 = vadd.f32 %v4633, %v4657
    %v4734 = vadd.f32 %v4634, %v4653
    %v4735 = vadd.f32 %v4635, %v4657
    %v4736 = vadd.f32 %v4636, %v4653
    %v4737 = vadd.f32 %v4637, %v4657
    %v4738 = vadd.f32 %v4638, %v4653
    %v4739 = vadd.f32 %v4639, %v4657
    %v4740 = vadd.f32 %v4640, %v4653
    %v4741 = vadd.f32 %v4641, %v4657
    %v4742 = vadd.f32 %v4642, %v4653
    %v4743 = vadd.f32 %v4643, %v4657
    %v4744 = vadd.f32 %v4644, %v4653
    %v4745 = vadd.f32 %v4645, %v4657
    %v4746 = vadd.f32 %v4646, %v4653
    %v4747 = vadd.f32 %v4647, %v4657
    %v4748 = vmax.f32 %v4660, 0.0
    %v4749 = vmax.f32 %v4661, 0.0
    %v4750 = vmax.f32 %v4662, 0.0
    %v4751 = vmax.f32 %v4663, 0.0
    %v4752 = vmax.f32 %v4664, 0.0
    %v4753 = vmax.f32 %v4665, 0.0
    %v4754 = vmax.f32 %v4666, 0.0
    %v4755 = vmax.f32 %v4667, 0.0
    %v4756 = vmax.f32 %v4668, 0.0
    %v4757 = vmax.f32 %v4669, 0.0
    %v4758 = vmax.f32 %v4670, 0.0
    %v4759 = vmax.f32 %v4671, 0.0
    %v4760 = vmax.f32 %v4672, 0.0
    %v4761 = vmax.f32 %v4673, 0.0
    %v4762 = vmax.f32 %v4674, 0.0
    %v4763 = vmax.f32 %v4675, 0.0
    %v4764 = vmax.f32 %v4676, 0.0
    %v4765 = vmax.f32 %v4677, 0.0
    %v4766 = vmax.f32 %v4678, 0.0
    %v4767 = vmax.f32 %v4679, 0.0
    %v4768 = vmax.f32 %v4680, 0.0
    %v4769 = vmax.f32 %v4681, 0.0
    %v4770 = vmax.f32 %v4682, 0.0
    %v4771 = vmax.f32 %v4683, 0.0
    %v4772 = vmax.f32 %v4684, 0.0
    %v4773 = vmax.f32 %v4685, 0.0
    %v4774 = vmax.f32 %v4686, 0.0
    %v4775 = vmax.f32 %v4687, 0.0
    %v4776 = vmax.f32 %v4688, 0.0
    %v4777 = vmax.f32 %v4689, 0.0
    %v4778 = vmax.f32 %v4690, 0.0
    %v4779 = vmax.f32 %v4691, 0.0
    %v4780 = vmax.f32 %v4692, 0.0
    %v4781 = vmax.f32 %v4693, 0.0
    %v4782 = vmax.f32 %v4694, 0.0
    %v4783 = vmax.f32 %v4695, 0.0
    %v4784 = vmax.f32 %v4696, 0.0
    %v4785 = vmax.f32 %v4697, 0.0
    %v4786 = vmax.f32 %v4698, 0.0
    %v4787 = vmax.f32 %v4699, 0.0
    %v4788 = vmax.f32 %v4700, 0.0
    %v4789 = vmax.f32 %v4701, 0.0
    %v4790 = vmax.f32 %v4702, 0.0
    %v4791 = vmax.f32 %v4703, 0.0
    %v4792 = vmax.f32 %v4704, 0.0
    %v4793 = vmax.f32 %v4705, 0.0
    %v4794 = vmax.f32 %v4706, 0.0
    %v4795 = vmax.f32 %v4707, 0.0
    %v4796 = vmax.f32 %v4708, 0.0
    %v4797 = vmax.f32 %v4709, 0.0
    %v4798 = vmax.f32 %v4710, 0.0
    %v4799 = vmax.f32 %v4711, 0.0
    %v4800 = vmax.f32 %v4712, 0.0
    %v4801 = vmax.f32 %v4713, 0.0
    %v4802 = vmax.f32 %v4714, 0.0
    %v4803 = vmax.f32 %v4715, 0.0
    %v4804 = vmax.f32 %v4716, 0.0
    %v4805 = vmax.f32 %v4717, 0.0
    %v4806 = vmax.f32 %v4718, 0.0
    %v4807 = vmax.f32 %v4719, 0.0
    %v4808 = vmax.f32 %v4720, 0.0
    %v4809 = vmax.f32 %v4721, 0.0
    %v4810 = vmax.f32 %v4722, 0.0
    %v4811 = vmax.f32 %v4723, 0.0
    %v4812 = vmax.f32 %v4724, 0.0
    %v4813 = vmax.f32 %v4725, 0.0
    %v4814 = vmax.f32 %v4726, 0.0
    %v4815 = vmax.f32 %v4727, 0.0
    %v4816 = vmax.f32 %v4728, 0.0
    %v4817 = vmax.f32 %v4729, 0.0
    %v4818 = vmax.f32 %v4730, 0.0
    %v4819 = vmax.f32 %v4731, 0.0
    %v4820 = vmax.f32 %v4732, 0.0
    %v4821 = vmax.f32 %v4733, 0.0
    %v4822 = vmax.f32 %v4734, 0.0
    %v4823 = vmax.f32 %v4735, 0.0
    %v4824 = vmax.f32 %v4736, 0.0
    %v4825 = vmax.f32 %v4737, 0.0
    %v4826 = vmax.f32 %v4738, 0.0
    %v4827 = vmax.f32 %v4739, 0.0
    %v4828 = vmax.f32 %v4740, 0.0
    %v4829 = vmax.f32 %v4741, 0.0
    %v4830 = vmax.f32 %v4742, 0.0
    %v4831 = vmax.f32 %v4743, 0.0
    %v4832 = vmax.f32 %v4744, 0.0
    %v4833 = vmax.f32 %v4745, 0.0
    %v4834 = vmax.f32 %v4746, 0.0
    %v4835 = vmax.f32 %v4747, 0.0
    %vm4836 = vcmask 392196
    %vm4837 = vmor %vm4836, %vm1745
    %4838 = vst.msk [vmem:[#allocation4] sm:$0xff] %vm4837, 0
    %4839 = vst.msk [vmem:[#allocation4 + $0x8] sm:$0xff] %vm4837, 0
    %4840 = vst.msk [vmem:[#allocation4 + $0x10] sm:$0xff] %vm4837, 0
    %4841 = vst.msk [vmem:[#allocation4 + $0x18] sm:$0xff] %vm4837, 0
    %4842 = vst.msk [vmem:[#allocation4 + $0x20] sm:$0xff] %vm4837, 0
    %4843 = vst.msk [vmem:[#allocation4 + $0x28] sm:$0xff] %vm4837, 0
    %4844 = vst.msk [vmem:[#allocation4 + $0x190] sm:$0xff] %vm4837, 0
    %4845 = vst.msk [vmem:[#allocation4 + $0x198] sm:$0xff] %vm4837, 0
    %4846 = vst.msk [vmem:[#allocation4 + $0x1a0] sm:$0xff] %vm4837, 0
    %4847 = vst.msk [vmem:[#allocation4 + $0x1a8] sm:$0xff] %vm4837, 0
    %4848 = vst.msk [vmem:[#allocation4 + $0x1b0] sm:$0xff] %vm4837, 0
    %4849 = vst.msk [vmem:[#allocation4 + $0x1b8] sm:$0xff] %vm4837, 0
    %v4850 = vpack.c.bf16 %v4750, %v4748
    %v4851 = vpack.c.bf16 %v4751, %v4749
    %v4852 = vpack.c.bf16 %v4754, %v4752
    %v4853 = vpack.c.bf16 %v4755, %v4753
    %v4854 = vpack.c.bf16 %v4758, %v4756
    %v4855 = vpack.c.bf16 %v4759, %v4757
    %v4856 = vpack.c.bf16 %v4762, %v4760
    %v4857 = vpack.c.bf16 %v4763, %v4761
    %v4858 = vpack.c.bf16 %v4766, %v4764
    %v4859 = vpack.c.bf16 %v4767, %v4765
    %v4860 = vpack.c.bf16 %v4770, %v4768
    %v4861 = vpack.c.bf16 %v4771, %v4769
    %v4862 = vpack.c.bf16 %v4774, %v4772
    %v4863 = vpack.c.bf16 %v4775, %v4773
    %v4864 = vpack.c.bf16 %v4778, %v4776
    %v4865 = vpack.c.bf16 %v4779, %v4777
    %v4866 = vpack.c.bf16 %v4782, %v4780
    %v4867 = vpack.c.bf16 %v4783, %v4781
    %v4868 = vpack.c.bf16 %v4786, %v4784
    %v4869 = vpack.c.bf16 %v4787, %v4785
    %v4870 = vpack.c.bf16 %v4790, %v4788
    %v4871 = vpack.c.bf16 %v4791, %v4789
    %v4872 = vpack.c.bf16 %v4794, %v4792
    %v4873 = vpack.c.bf16 %v4795, %v4793
    %v4874 = vpack.c.bf16 %v4798, %v4796
    %v4875 = vpack.c.bf16 %v4799, %v4797
    %v4876 = vpack.c.bf16 %v4802, %v4800
    %v4877 = vpack.c.bf16 %v4803, %v4801
    %v4878 = vpack.c.bf16 %v4806, %v4804
    %v4879 = vpack.c.bf16 %v4807, %v4805
    %v4880 = vpack.c.bf16 %v4810, %v4808
    %v4881 = vpack.c.bf16 %v4811, %v4809
    %v4882 = vpack.c.bf16 %v4814, %v4812
    %v4883 = vpack.c.bf16 %v4815, %v4813
    %v4884 = vpack.c.bf16 %v4818, %v4816
    %v4885 = vpack.c.bf16 %v4819, %v4817
    %v4886 = vpack.c.bf16 %v4822, %v4820
    %v4887 = vpack.c.bf16 %v4823, %v4821
    %v4888 = vpack.c.bf16 %v4826, %v4824
    %v4889 = vpack.c.bf16 %v4827, %v4825
    %v4890 = vpack.c.bf16 %v4830, %v4828
    %v4891 = vpack.c.bf16 %v4831, %v4829
    %v4892 = vpack.c.bf16 %v4834, %v4832
    %v4893 = vpack.c.bf16 %v4835, %v4833
    %v4938 = vunpack.c.l.b16 %v4850
    %v4939 = vunpack.c.l.b16 %v4851
    %v4940 = vunpack.c.h.b16 %v4850
    %v4941 = vunpack.c.h.b16 %v4851
    %v4942 = vunpack.c.l.b16 %v4852
    %v4943 = vunpack.c.l.b16 %v4853
    %v4944 = vunpack.c.h.b16 %v4852
    %v4945 = vunpack.c.h.b16 %v4853
    %v4946 = vunpack.c.l.b16 %v4854
    %v4947 = vunpack.c.l.b16 %v4855
    %v4948 = vunpack.c.h.b16 %v4854
    %v4949 = vunpack.c.h.b16 %v4855
    %v4950 = vunpack.c.l.b16 %v4856
    %v4951 = vunpack.c.l.b16 %v4857
    %v4952 = vunpack.c.h.b16 %v4856
    %v4953 = vunpack.c.h.b16 %v4857
    %v4954 = vunpack.c.l.b16 %v4858
    %v4955 = vunpack.c.l.b16 %v4859
    %v4956 = vunpack.c.h.b16 %v4858
    %v4957 = vunpack.c.h.b16 %v4859
    %v4958 = vunpack.c.l.b16 %v4860
    %v4959 = vunpack.c.l.b16 %v4861
    %v4960 = vunpack.c.h.b16 %v4860
    %v4961 = vunpack.c.h.b16 %v4861
    %v4962 = vunpack.c.l.b16 %v4862
    %v4963 = vunpack.c.l.b16 %v4863
    %v4964 = vunpack.c.h.b16 %v4862
    %v4965 = vunpack.c.h.b16 %v4863
    %v4966 = vunpack.c.l.b16 %v4864
    %v4967 = vunpack.c.l.b16 %v4865
    %v4968 = vunpack.c.h.b16 %v4864
    %v4969 = vunpack.c.h.b16 %v4865
    %v4970 = vunpack.c.l.b16 %v4866
    %v4971 = vunpack.c.l.b16 %v4867
    %v4972 = vunpack.c.h.b16 %v4866
    %v4973 = vunpack.c.h.b16 %v4867
    %v4974 = vunpack.c.l.b16 %v4868
    %v4975 = vunpack.c.l.b16 %v4869
    %v4976 = vunpack.c.h.b16 %v4868
    %v4977 = vunpack.c.h.b16 %v4869
    %v4978 = vunpack.c.l.b16 %v4870
    %v4979 = vunpack.c.l.b16 %v4871
    %v4980 = vunpack.c.h.b16 %v4870
    %v4981 = vunpack.c.h.b16 %v4871
    %v4982 = vunpack.c.l.b16 %v4872
    %v4983 = vunpack.c.l.b16 %v4873
    %v4984 = vunpack.c.h.b16 %v4872
    %v4985 = vunpack.c.h.b16 %v4873
    %v4986 = vunpack.c.l.b16 %v4874
    %v4987 = vunpack.c.l.b16 %v4875
    %v4988 = vunpack.c.h.b16 %v4874
    %v4989 = vunpack.c.h.b16 %v4875
    %v4990 = vunpack.c.l.b16 %v4876
    %v4991 = vunpack.c.l.b16 %v4877
    %v4992 = vunpack.c.h.b16 %v4876
    %v4993 = vunpack.c.h.b16 %v4877
    %v4994 = vunpack.c.l.b16 %v4878
    %v4995 = vunpack.c.l.b16 %v4879
    %v4996 = vunpack.c.h.b16 %v4878
    %v4997 = vunpack.c.h.b16 %v4879
    %v4998 = vunpack.c.l.b16 %v4880
    %v4999 = vunpack.c.l.b16 %v4881
    %v5000 = vunpack.c.h.b16 %v4880
    %v5001 = vunpack.c.h.b16 %v4881
    %v5002 = vunpack.c.l.b16 %v4882
    %v5003 = vunpack.c.l.b16 %v4883
    %v5004 = vunpack.c.h.b16 %v4882
    %v5005 = vunpack.c.h.b16 %v4883
    %v5006 = vunpack.c.l.b16 %v4884
    %v5007 = vunpack.c.l.b16 %v4885
    %v5008 = vunpack.c.h.b16 %v4884
    %v5009 = vunpack.c.h.b16 %v4885
    %v5010 = vunpack.c.l.b16 %v4886
    %v5011 = vunpack.c.l.b16 %v4887
    %v5012 = vunpack.c.h.b16 %v4886
    %v5013 = vunpack.c.h.b16 %v4887
    %v5014 = vunpack.c.l.b16 %v4888
    %v5015 = vunpack.c.l.b16 %v4889
    %v5016 = vunpack.c.h.b16 %v4888
    %v5017 = vunpack.c.h.b16 %v4889
    %v5018 = vunpack.c.l.b16 %v4890
    %v5019 = vunpack.c.l.b16 %v4891
    %v5020 = vunpack.c.h.b16 %v4890
    %v5021 = vunpack.c.h.b16 %v4891
    %v5022 = vunpack.c.l.b16 %v4892
    %v5023 = vunpack.c.l.b16 %v4893
    %v5024 = vunpack.c.h.b16 %v4892
    %v5025 = vunpack.c.h.b16 %v4893
    %v5026 = vpack.c.b16 %v4939, %v4938
    %v5027 = vpack.c.b16 %v4941, %v4940
    %v5028 = vpack.c.b16 %v4943, %v4942
    %v5029 = vpack.c.b16 %v4945, %v4944
    %v5030 = vpack.c.b16 %v4947, %v4946
    %v5031 = vpack.c.b16 %v4949, %v4948
    %v5032 = vpack.c.b16 %v4951, %v4950
    %v5033 = vpack.c.b16 %v4953, %v4952
    %v5034 = vpack.c.b16 %v4955, %v4954
    %v5035 = vpack.c.b16 %v4957, %v4956
    %v5036 = vpack.c.b16 %v4959, %v4958
    %v5037 = vpack.c.b16 %v4961, %v4960
    %v5038 = vpack.c.b16 %v4963, %v4962
    %v5039 = vpack.c.b16 %v4965, %v4964
    %v5040 = vpack.c.b16 %v4967, %v4966
    %v5041 = vpack.c.b16 %v4969, %v4968
    %v5042 = vpack.c.b16 %v4971, %v4970
    %v5043 = vpack.c.b16 %v4973, %v4972
    %v5044 = vpack.c.b16 %v4975, %v4974
    %v5045 = vpack.c.b16 %v4977, %v4976
    %v5046 = vpack.c.b16 %v4979, %v4978
    %v5047 = vpack.c.b16 %v4981, %v4980
    %v5048 = vpack.c.b16 %v4983, %v4982
    %v5049 = vpack.c.b16 %v4985, %v4984
    %v5050 = vpack.c.b16 %v4987, %v4986
    %v5051 = vpack.c.b16 %v4989, %v4988
    %v5052 = vpack.c.b16 %v4991, %v4990
    %v5053 = vpack.c.b16 %v4993, %v4992
    %v5054 = vpack.c.b16 %v4995, %v4994
    %v5055 = vpack.c.b16 %v4997, %v4996
    %v5056 = vpack.c.b16 %v4999, %v4998
    %v5057 = vpack.c.b16 %v5001, %v5000
    %v5058 = vpack.c.b16 %v5003, %v5002
    %v5059 = vpack.c.b16 %v5005, %v5004
    %v5060 = vpack.c.b16 %v5007, %v5006
    %v5061 = vpack.c.b16 %v5009, %v5008
    %v5062 = vpack.c.b16 %v5011, %v5010
    %v5063 = vpack.c.b16 %v5013, %v5012
    %v5064 = vpack.c.b16 %v5015, %v5014
    %v5065 = vpack.c.b16 %v5017, %v5016
    %v5066 = vpack.c.b16 %v5019, %v5018
    %v5067 = vpack.c.b16 %v5021, %v5020
    %v5068 = vpack.c.b16 %v5023, %v5022
    %v5069 = vpack.c.b16 %v5025, %v5024
    %5114 = vst.msk [vmem:[#allocation4 + $0x30] sm:$0xff] %vm4837, %v5026
    %5115 = vst.msk [vmem:[#allocation4 + $0x38] sm:$0xff] %vm4837, %v5027
    %5116 = vst.msk [vmem:[#allocation4 + $0x40] sm:$0xff] %vm4837, %v5028
    %5117 = vst.msk [vmem:[#allocation4 + $0x48] sm:$0xff] %vm4837, %v5029
    %5118 = vst.msk [vmem:[#allocation4 + $0x50] sm:$0xff] %vm4837, %v5030
    %5119 = vst.msk [vmem:[#allocation4 + $0x58] sm:$0xff] %vm4837, %v5031
    %5120 = vst.msk [vmem:[#allocation4 + $0x60] sm:$0xff] %vm4837, %v5032
    %5121 = vst.msk [vmem:[#allocation4 + $0x68] sm:$0xff] %vm4837, %v5033
    %5122 = vst.msk [vmem:[#allocation4 + $0x70] sm:$0xff] %vm4837, %v5034
    %5123 = vst.msk [vmem:[#allocation4 + $0x78] sm:$0xff] %vm4837, %v5035
    %5124 = vst.msk [vmem:[#allocation4 + $0x80] sm:$0xff] %vm4837, %v5036
    %5125 = vst.msk [vmem:[#allocation4 + $0x88] sm:$0xff] %vm4837, %v5037
    %5126 = vst.msk [vmem:[#allocation4 + $0x90] sm:$0xff] %vm4837, %v5038
    %5127 = vst.msk [vmem:[#allocation4 + $0x98] sm:$0xff] %vm4837, %v5039
    %5128 = vst.msk [vmem:[#allocation4 + $0xa0] sm:$0xff] %vm4837, %v5040
    %5129 = vst.msk [vmem:[#allocation4 + $0xa8] sm:$0xff] %vm4837, %v5041
    %5130 = vst.msk [vmem:[#allocation4 + $0xb0] sm:$0xff] %vm4837, %v5042
    %5131 = vst.msk [vmem:[#allocation4 + $0xb8] sm:$0xff] %vm4837, %v5043
    %5132 = vst.msk [vmem:[#allocation4 + $0xc0] sm:$0xff] %vm4837, %v5044
    %5133 = vst.msk [vmem:[#allocation4 + $0xc8] sm:$0xff] %vm4837, %v5045
    %5134 = vst.msk [vmem:[#allocation4 + $0xd0] sm:$0xff] %vm4837, %v5046
    %5135 = vst.msk [vmem:[#allocation4 + $0xd8] sm:$0xff] %vm4837, %v5047
    %5136 = vst.msk [vmem:[#allocation4 + $0xe0] sm:$0xff] %vm4837, %v5048
    %5137 = vst.msk [vmem:[#allocation4 + $0xe8] sm:$0xff] %vm4837, %v5049
    %5138 = vst.msk [vmem:[#allocation4 + $0xf0] sm:$0xff] %vm4837, %v5050
    %5139 = vst.msk [vmem:[#allocation4 + $0xf8] sm:$0xff] %vm4837, %v5051
    %5140 = vst.msk [vmem:[#allocation4 + $0x100] sm:$0xff] %vm4837, %v5052
    %5141 = vst.msk [vmem:[#allocation4 + $0x108] sm:$0xff] %vm4837, %v5053
    %5142 = vst.msk [vmem:[#allocation4 + $0x110] sm:$0xff] %vm4837, %v5054
    %5143 = vst.msk [vmem:[#allocation4 + $0x118] sm:$0xff] %vm4837, %v5055
    %5144 = vst.msk [vmem:[#allocation4 + $0x120] sm:$0xff] %vm4837, %v5056
    %5145 = vst.msk [vmem:[#allocation4 + $0x128] sm:$0xff] %vm4837, %v5057
    %5146 = vst.msk [vmem:[#allocation4 + $0x130] sm:$0xff] %vm4837, %v5058
    %5147 = vst.msk [vmem:[#allocation4 + $0x138] sm:$0xff] %vm4837, %v5059
    %5148 = vst.msk [vmem:[#allocation4 + $0x140] sm:$0xff] %vm4837, %v5060
    %5149 = vst.msk [vmem:[#allocation4 + $0x148] sm:$0xff] %vm4837, %v5061
    %5150 = vst.msk [vmem:[#allocation4 + $0x150] sm:$0xff] %vm4837, %v5062
    %5151 = vst.msk [vmem:[#allocation4 + $0x158] sm:$0xff] %vm4837, %v5063
    %5152 = vst.msk [vmem:[#allocation4 + $0x160] sm:$0xff] %vm4837, %v5064
    %5153 = vst.msk [vmem:[#allocation4 + $0x168] sm:$0xff] %vm4837, %v5065
    %5154 = vst.msk [vmem:[#allocation4 + $0x170] sm:$0xff] %vm4837, %v5066
    %5155 = vst.msk [vmem:[#allocation4 + $0x178] sm:$0xff] %vm4837, %v5067
    %5156 = vst.msk [vmem:[#allocation4 + $0x180] sm:$0xff] %vm4837, %v5068
    %5157 = vst.msk [vmem:[#allocation4 + $0x188] sm:$0xff] %vm4837, %v5069
    %v5158 = vld [vmem:[#allocation4] sm:$0xff]
    %v5159 = vld [vmem:[#allocation4 + $0x8] sm:$0xff]
    %v5160 = vld [vmem:[#allocation4 + $0x10] sm:$0xff]
    %v5161 = vld [vmem:[#allocation4 + $0x18] sm:$0xff]
    %v5162 = vld [vmem:[#allocation4 + $0x20] sm:$0xff]
    %v5163 = vld [vmem:[#allocation4 + $0x28] sm:$0xff]
    %v5164 = vld [vmem:[#allocation4 + $0x30] sm:$0xff]
    %v5165 = vld [vmem:[#allocation4 + $0x38] sm:$0xff]
    %v5166 = vld [vmem:[#allocation4 + $0x40] sm:$0xff]
    %v5167 = vld [vmem:[#allocation4 + $0x48] sm:$0xff]
    %v5168 = vld [vmem:[#allocation4 + $0x50] sm:$0xff]
    %v5169 = vld [vmem:[#allocation4 + $0x58] sm:$0xff]
    %v5170 = vld [vmem:[#allocation4 + $0x60] sm:$0xff]
    %v5171 = vld [vmem:[#allocation4 + $0x68] sm:$0xff]
    %v5172 = vld [vmem:[#allocation4 + $0x70] sm:$0xff]
    %v5173 = vld [vmem:[#allocation4 + $0x78] sm:$0xff]
    %v5174 = vld [vmem:[#allocation4 + $0x80] sm:$0xff]
    %v5175 = vld [vmem:[#allocation4 + $0x88] sm:$0xff]
    %v5176 = vld [vmem:[#allocation4 + $0x90] sm:$0xff]
    %v5177 = vld [vmem:[#allocation4 + $0x98] sm:$0xff]
    %v5178 = vld [vmem:[#allocation4 + $0xa0] sm:$0xff]
    %v5179 = vld [vmem:[#allocation4 + $0xa8] sm:$0xff]
    %v5180 = vld [vmem:[#allocation4 + $0xb0] sm:$0xff]
    %v5181 = vld [vmem:[#allocation4 + $0xb8] sm:$0xff]
    %v5182 = vld [vmem:[#allocation4 + $0xc0] sm:$0xff]
    %v5183 = vld [vmem:[#allocation4 + $0xc8] sm:$0xff]
    %v5184 = vld [vmem:[#allocation4 + $0xd0] sm:$0xff]
    %v5185 = vld [vmem:[#allocation4 + $0xd8] sm:$0xff]
    %v5186 = vld [vmem:[#allocation4 + $0xe0] sm:$0xff]
    %v5187 = vld [vmem:[#allocation4 + $0xe8] sm:$0xff]
    %v5188 = vld [vmem:[#allocation4 + $0xf0] sm:$0xff]
    %v5189 = vld [vmem:[#allocation4 + $0xf8] sm:$0xff]
    %v5190 = vld [vmem:[#allocation4 + $0x100] sm:$0xff]
    %v5191 = vld [vmem:[#allocation4 + $0x108] sm:$0xff]
    %v5192 = vld [vmem:[#allocation4 + $0x110] sm:$0xff]
    %v5193 = vld [vmem:[#allocation4 + $0x118] sm:$0xff]
    %v5194 = vld [vmem:[#allocation4 + $0x120] sm:$0xff]
    %v5195 = vld [vmem:[#allocation4 + $0x128] sm:$0xff]
    %v5196 = vld [vmem:[#allocation4 + $0x130] sm:$0xff]
    %v5197 = vld [vmem:[#allocation4 + $0x138] sm:$0xff]
    %v5198 = vld [vmem:[#allocation4 + $0x140] sm:$0xff]
    %v5199 = vld [vmem:[#allocation4 + $0x148] sm:$0xff]
    %v5200 = vld [vmem:[#allocation4 + $0x150] sm:$0xff]
    %v5201 = vld [vmem:[#allocation4 + $0x158] sm:$0xff]
    %v5202 = vld [vmem:[#allocation4 + $0x160] sm:$0xff]
    %v5203 = vld [vmem:[#allocation4 + $0x168] sm:$0xff]
    %v5204 = vld [vmem:[#allocation4 + $0x170] sm:$0xff]
    %v5205 = vld [vmem:[#allocation4 + $0x178] sm:$0xff]
    %v5206 = vld [vmem:[#allocation4 + $0x180] sm:$0xff]
    %v5207 = vld [vmem:[#allocation4 + $0x188] sm:$0xff]
    %v5208 = vld [vmem:[%s10] sm:$0xf]
    %v5209 = vld [vmem:[%s10 + $0x4] sm:$0xf]
    %v5210 = vld [vmem:[%s10 + $0x8] sm:$0xf]
    %v5211 = vld [vmem:[%s10 + $0xc] sm:$0xf]
    %v5212 = vld [vmem:[%s10 + $0x10] sm:$0xf]
    %v5213 = vld [vmem:[%s10 + $0x14] sm:$0xf]
    %v5214 = vld [vmem:[%s10 + $0x18] sm:$0xf]
    %v5215 = vld [vmem:[%s10 + $0x1c] sm:$0xf]
    %v5216 = vld [vmem:[%s10 + $0x20] sm:$0xf]
    %v5217 = vld [vmem:[%s10 + $0x24] sm:$0xf]
    %v5218 = vld [vmem:[%s10 + $0x28] sm:$0xf]
    %v5219 = vld [vmem:[%s10 + $0x2c] sm:$0xf]
    %v5220 = vld [vmem:[%s10 + $0x30] sm:$0xf]
    %v5221 = vld [vmem:[%s10 + $0x34] sm:$0xf]
    %v5222 = vld [vmem:[%s10 + $0x38] sm:$0xf]
    %v5223 = vld [vmem:[%s10 + $0x3c] sm:$0xf]
    %v5224 = vld [vmem:[%s10 + $0x40] sm:$0xf]
    %v5225 = vld [vmem:[%s10 + $0x44] sm:$0xf]
    %v5226 = vld [vmem:[%s10 + $0x48] sm:$0xf]
    %v5227 = vld [vmem:[%s10 + $0x4c] sm:$0xf]
    %v5228 = vld [vmem:[%s10 + $0x50] sm:$0xf]
    %v5229 = vld [vmem:[%s10 + $0x54] sm:$0xf]
    %v5230 = vld [vmem:[#allocation4 + $0x190] sm:$0xff]
    %v5231 = vld [vmem:[#allocation4 + $0x198] sm:$0xff]
    %s5232 = scalar_lea.vmem %s10, 88
    %v5233 = vld [vmem:[%s5232] sm:$0xf]
    %v5234 = vld [vmem:[%s5232 + $0x4] sm:$0xf]
    %v5235 = vld [vmem:[%s5232 + $0x8] sm:$0xf]
    %v5236 = vld [vmem:[%s5232 + $0xc] sm:$0xf]
    %v5237 = vld [vmem:[%s5232 + $0x10] sm:$0xf]
    %v5238 = vld [vmem:[%s5232 + $0x14] sm:$0xf]
    %v5239 = vld [vmem:[%s5232 + $0x18] sm:$0xf]
    %v5240 = vld [vmem:[%s5232 + $0x1c] sm:$0xf]
    %v5241 = vld [vmem:[%s5232 + $0x20] sm:$0xf]
    %v5242 = vld [vmem:[%s5232 + $0x24] sm:$0xf]
    %v5243 = vld [vmem:[%s5232 + $0x28] sm:$0xf]
    %v5244 = vld [vmem:[%s5232 + $0x2c] sm:$0xf]
    %v5245 = vld [vmem:[%s5232 + $0x30] sm:$0xf]
    %v5246 = vld [vmem:[%s5232 + $0x34] sm:$0xf]
    %v5247 = vld [vmem:[%s5232 + $0x38] sm:$0xf]
    %v5248 = vld [vmem:[%s5232 + $0x3c] sm:$0xf]
    %v5249 = vld [vmem:[%s5232 + $0x40] sm:$0xf]
    %v5250 = vld [vmem:[%s5232 + $0x44] sm:$0xf]
    %v5251 = vld [vmem:[%s5232 + $0x48] sm:$0xf]
    %v5252 = vld [vmem:[%s5232 + $0x4c] sm:$0xf]
    %v5253 = vld [vmem:[%s5232 + $0x50] sm:$0xf]
    %v5254 = vld [vmem:[%s5232 + $0x54] sm:$0xf]
    %v5305 = vunpack.c.l.b16 %v5160
    %v5306 = vunpack.c.h.b16 %v5160
    %v5307 = vunpack.c.l.b16 %v5161
    %v5308 = vunpack.c.h.b16 %v5161
    %v5309 = vunpack.c.l.b16 %v5162
    %v5310 = vunpack.c.h.b16 %v5162
    %v5311 = vunpack.c.l.b16 %v5163
    %v5312 = vunpack.c.h.b16 %v5163
    %v5313 = vunpack.c.l.b16 %v5164
    %v5314 = vunpack.c.h.b16 %v5164
    %v5315 = vunpack.c.l.b16 %v5165
    %v5316 = vunpack.c.h.b16 %v5165
    %v5317 = vunpack.c.l.b16 %v5166
    %v5318 = vunpack.c.h.b16 %v5166
    %v5319 = vunpack.c.l.b16 %v5167
    %v5320 = vunpack.c.h.b16 %v5167
    %v5321 = vunpack.c.l.b16 %v5168
    %v5322 = vunpack.c.h.b16 %v5168
    %v5323 = vunpack.c.l.b16 %v5169
    %v5324 = vunpack.c.h.b16 %v5169
    %v5325 = vunpack.c.l.b16 %v5170
    %v5326 = vunpack.c.h.b16 %v5170
    %v5327 = vunpack.c.l.b16 %v5171
    %v5328 = vunpack.c.h.b16 %v5171
    %v5329 = vunpack.c.l.b16 %v5172
    %v5330 = vunpack.c.h.b16 %v5172
    %v5331 = vunpack.c.l.b16 %v5173
    %v5332 = vunpack.c.h.b16 %v5173
    %v5333 = vunpack.c.l.b16 %v5174
    %v5334 = vunpack.c.h.b16 %v5174
    %v5335 = vunpack.c.l.b16 %v5175
    %v5336 = vunpack.c.h.b16 %v5175
    %v5337 = vunpack.c.l.b16 %v5176
    %v5338 = vunpack.c.h.b16 %v5176
    %v5339 = vunpack.c.l.b16 %v5177
    %v5340 = vunpack.c.h.b16 %v5177
    %v5341 = vunpack.c.l.b16 %v5178
    %v5342 = vunpack.c.h.b16 %v5178
    %v5343 = vunpack.c.l.b16 %v5179
    %v5344 = vunpack.c.h.b16 %v5179
    %v5345 = vunpack.c.l.b16 %v5180
    %v5346 = vunpack.c.h.b16 %v5180
    %v5347 = vunpack.c.l.b16 %v5181
    %v5348 = vunpack.c.h.b16 %v5181
    %v5349 = vunpack.c.l.b16 %v5182
    %v5350 = vunpack.c.h.b16 %v5182
    %v5351 = vunpack.c.l.b16 %v5183
    %v5352 = vunpack.c.h.b16 %v5183
    %v5353 = vunpack.c.l.b16 %v5184
    %v5354 = vunpack.c.h.b16 %v5184
    %v5355 = vunpack.c.l.b16 %v5185
    %v5356 = vunpack.c.h.b16 %v5185
    %v5357 = vunpack.c.l.b16 %v5186
    %v5358 = vunpack.c.h.b16 %v5186
    %v5359 = vunpack.c.l.b16 %v5187
    %v5360 = vunpack.c.h.b16 %v5187
    %v5361 = vunpack.c.l.b16 %v5188
    %v5362 = vunpack.c.h.b16 %v5188
    %v5363 = vunpack.c.l.b16 %v5189
    %v5364 = vunpack.c.h.b16 %v5189
    %v5365 = vunpack.c.l.b16 %v5190
    %v5366 = vunpack.c.h.b16 %v5190
    %v5367 = vunpack.c.l.b16 %v5191
    %v5368 = vunpack.c.h.b16 %v5191
    %v5369 = vunpack.c.l.b16 %v5192
    %v5370 = vunpack.c.h.b16 %v5192
    %v5371 = vunpack.c.l.b16 %v5193
    %v5372 = vunpack.c.h.b16 %v5193
    %v5373 = vunpack.c.l.b16 %v5194
    %v5374 = vunpack.c.h.b16 %v5194
    %v5375 = vunpack.c.l.b16 %v5195
    %v5376 = vunpack.c.h.b16 %v5195
    %v5377 = vunpack.c.l.b16 %v5196
    %v5378 = vunpack.c.h.b16 %v5196
    %v5379 = vunpack.c.l.b16 %v5197
    %v5380 = vunpack.c.h.b16 %v5197
    %v5381 = vunpack.c.l.b16 %v5198
    %v5382 = vunpack.c.h.b16 %v5198
    %v5383 = vunpack.c.l.b16 %v5199
    %v5384 = vunpack.c.h.b16 %v5199
    %v5385 = vunpack.c.l.b16 %v5200
    %v5386 = vunpack.c.h.b16 %v5200
    %v5387 = vunpack.c.l.b16 %v5201
    %v5388 = vunpack.c.h.b16 %v5201
    %v5389 = vunpack.c.l.b16 %v5202
    %v5390 = vunpack.c.h.b16 %v5202
    %v5391 = vunpack.c.l.b16 %v5203
    %v5392 = vunpack.c.h.b16 %v5203
    %v5393 = vunpack.c.l.b16 %v5204
    %v5394 = vunpack.c.h.b16 %v5204
    %v5395 = vunpack.c.l.b16 %v5205
    %v5396 = vunpack.c.h.b16 %v5205
    %v5397 = vunpack.c.l.b16 %v5206
    %v5398 = vunpack.c.h.b16 %v5206
    %v5399 = vunpack.c.l.b16 %v5207
    %v5400 = vunpack.c.h.b16 %v5207
    %v5401 = vunpack.c.l.b16 %v5230
    %v5402 = vunpack.c.h.b16 %v5230
    %v5403 = vunpack.c.l.b16 %v5231
    %v5404 = vunpack.c.h.b16 %v5231
    %v5405 = vpack.c.b16 %v5307, %v5305
    %v5406 = vpack.c.b16 %v5308, %v5306
    %v5407 = vpack.c.b16 %v5311, %v5309
    %v5408 = vpack.c.b16 %v5312, %v5310
    %v5409 = vpack.c.b16 %v5315, %v5313
    %v5410 = vpack.c.b16 %v5316, %v5314
    %v5411 = vpack.c.b16 %v5319, %v5317
    %v5412 = vpack.c.b16 %v5320, %v5318
    %v5413 = vpack.c.b16 %v5323, %v5321
    %v5414 = vpack.c.b16 %v5324, %v5322
    %v5415 = vpack.c.b16 %v5327, %v5325
    %v5416 = vpack.c.b16 %v5328, %v5326
    %v5417 = vpack.c.b16 %v5331, %v5329
    %v5418 = vpack.c.b16 %v5332, %v5330
    %v5419 = vpack.c.b16 %v5335, %v5333
    %v5420 = vpack.c.b16 %v5336, %v5334
    %v5421 = vpack.c.b16 %v5339, %v5337
    %v5422 = vpack.c.b16 %v5340, %v5338
    %v5423 = vpack.c.b16 %v5343, %v5341
    %v5424 = vpack.c.b16 %v5344, %v5342
    %v5425 = vpack.c.b16 %v5347, %v5345
    %v5426 = vpack.c.b16 %v5348, %v5346
    %v5427 = vpack.c.b16 %v5351, %v5349
    %v5428 = vpack.c.b16 %v5352, %v5350
    %v5429 = vpack.c.b16 %v5355, %v5353
    %v5430 = vpack.c.b16 %v5356, %v5354
    %v5431 = vpack.c.b16 %v5359, %v5357
    %v5432 = vpack.c.b16 %v5360, %v5358
    %v5433 = vpack.c.b16 %v5363, %v5361
    %v5434 = vpack.c.b16 %v5364, %v5362
    %v5435 = vpack.c.b16 %v5367, %v5365
    %v5436 = vpack.c.b16 %v5368, %v5366
    %v5437 = vpack.c.b16 %v5371, %v5369
    %v5438 = vpack.c.b16 %v5372, %v5370
    %v5439 = vpack.c.b16 %v5375, %v5373
    %v5440 = vpack.c.b16 %v5376, %v5374
    %v5441 = vpack.c.b16 %v5379, %v5377
    %v5442 = vpack.c.b16 %v5380, %v5378
    %v5443 = vpack.c.b16 %v5383, %v5381
    %v5444 = vpack.c.b16 %v5384, %v5382
    %v5445 = vpack.c.b16 %v5387, %v5385
    %v5446 = vpack.c.b16 %v5388, %v5386
    %v5447 = vpack.c.b16 %v5391, %v5389
    %v5448 = vpack.c.b16 %v5392, %v5390
    %v5449 = vpack.c.b16 %v5395, %v5393
    %v5450 = vpack.c.b16 %v5396, %v5394
    %v5451 = vpack.c.b16 %v5399, %v5397
    %v5452 = vpack.c.b16 %v5400, %v5398
    %v5453 = vpack.c.b16 %v5403, %v5401
    %v5454 = vpack.c.b16 %v5404, %v5402
    %v5502 = vunpack.c.l.b16 %v5233
    %v5503 = vunpack.c.l.b16 %v5234
    %v5504 = vunpack.c.l.b16 %v5235
    %v5505 = vunpack.c.l.b16 %v5236
    %v5506 = vunpack.c.l.b16 %v5237
    %v5507 = vunpack.c.l.b16 %v5238
    %v5508 = vunpack.c.l.b16 %v5239
    %v5509 = vunpack.c.l.b16 %v5240
    %v5510 = vunpack.c.l.b16 %v5241
    %v5511 = vunpack.c.l.b16 %v5242
    %v5512 = vunpack.c.l.b16 %v5243
    %v5513 = vunpack.c.l.b16 %v5244
    %v5514 = vunpack.c.l.b16 %v5245
    %v5515 = vunpack.c.l.b16 %v5246
    %v5516 = vunpack.c.l.b16 %v5247
    %v5517 = vunpack.c.l.b16 %v5248
    %v5518 = vunpack.c.l.b16 %v5249
    %v5519 = vunpack.c.l.b16 %v5250
    %v5520 = vunpack.c.l.b16 %v5251
    %v5521 = vunpack.c.l.b16 %v5252
    %v5522 = vunpack.c.l.b16 %v5253
    %v5523 = vunpack.c.l.b16 %v5254
    %v5524 = vpack.c.b16 %v5503, %v5502
    %v5525 = vpack.c.b16 %v5505, %v5504
    %v5526 = vpack.c.b16 %v5507, %v5506
    %v5527 = vpack.c.b16 %v5509, %v5508
    %v5528 = vpack.c.b16 %v5511, %v5510
    %v5529 = vpack.c.b16 %v5513, %v5512
    %v5530 = vpack.c.b16 %v5515, %v5514
    %v5531 = vpack.c.b16 %v5517, %v5516
    %v5532 = vpack.c.b16 %v5519, %v5518
    %v5533 = vpack.c.b16 %v5521, %v5520
    %v5534 = vpack.c.b16 %v5523, %v5522
    %vm5546 = vcmask 392192
    %v5548 = vsel %vm5546, %v5406, 0
    %v5551 = vsel %vm5546, %v5408, 0
    %v5554 = vsel %vm5546, %v5410, 0
    %v5557 = vsel %vm5546, %v5412, 0
    %v5560 = vsel %vm5546, %v5414, 0
    %v5563 = vsel %vm5546, %v5416, 0
    %v5566 = vsel %vm5546, %v5418, 0
    %v5569 = vsel %vm5546, %v5420, 0
    %v5572 = vsel %vm5546, %v5422, 0
    %v5575 = vsel %vm5546, %v5424, 0
    %v5578 = vsel %vm5546, %v5426, 0
    %v5581 = vsel %vm5546, %v5428, 0
    %v5584 = vsel %vm5546, %v5430, 0
    %v5587 = vsel %vm5546, %v5432, 0
    %v5590 = vsel %vm5546, %v5434, 0
    %v5593 = vsel %vm5546, %v5436, 0
    %v5596 = vsel %vm5546, %v5438, 0
    %v5599 = vsel %vm5546, %v5440, 0
    %v5602 = vsel %vm5546, %v5442, 0
    %v5605 = vsel %vm5546, %v5444, 0
    %v5608 = vsel %vm5546, %v5446, 0
    %v5611 = vsel %vm5546, %v5448, 0
    %v5614 = vsel %vm5546, %v5450, 0
    %v5617 = vsel %vm5546, %v5452, 0
    %v5620 = vsel %vm5546, %v5454, 0
    %5622 = vmatprep.subr.bf16.mxu0 0
    %5623 = vmatpush1.bf16.msra.mxu0 %v5531
    %5624 = vmatprep.subr.bf16.mxu0 0
    %5625 = vmatpush1.bf16.msra.mxu0 %v5530
    %5626 = vmatprep.subr.bf16.mxu0 0
    %5627 = vmatpush1.bf16.msra.mxu0 %v5529
    %5628 = vmatprep.subr.bf16.mxu0 0
    %5629 = vmatpush1.bf16.msra.mxu0 %v5528
    %5630 = vmatprep.subr.bf16.mxu0 0
    %5631 = vmatpush1.bf16.msra.mxu0 %v5527
    %5632 = vmatprep.subr.bf16.mxu0 0
    %5633 = vmatpush1.bf16.msra.mxu0 %v5526
    %5634 = vmatprep.subr.bf16.mxu0 0
    %5635 = vmatpush1.bf16.msra.mxu0 %v5525
    %5636 = vmatprep.subr.bf16.mxu0 0
    %5637 = vmatpush1.bf16.msra.mxu0 %v5524
    %5638 = vmatprep.subr.bf16.mxu0 0
    %5639 = vmatpush2.bf16.msra.mxu0 0
    %5640 = vmatprep.subr.bf16.mxu0 0
    %5641 = vmatpush2.bf16.msra.mxu0 0
    %5642 = vmatprep.subr.bf16.mxu0 0
    %5643 = vmatpush2.bf16.msra.mxu0 0
    %5644 = vmatprep.subr.bf16.mxu0 0
    %5645 = vmatpush2.bf16.msra.mxu0 0
    %5646 = vmatprep.subr.bf16.mxu0 0
    %5647 = vmatpush2.bf16.msra.mxu0 0
    %5648 = vmatprep.subr.bf16.mxu0 0
    %5649 = vmatpush2.bf16.msra.mxu0 %v5534
    %5650 = vmatprep.subr.bf16.mxu0 0
    %5651 = vmatpush2.bf16.msra.mxu0 %v5533
    %5652 = vmatprep.subr.bf16.mxu0 0
    %5653 = vmatpush2.bf16.msra.mxu0 %v5532
    %5654 = vmatprep.mubr.bf16.mxu0 %v5548
    %5655 = vmatmul.mubr.bf16.gmra.mxu0 %v5405
    %v5656 = vpop.f32.mrf.mxu0
    %v5657 = vadd.f32 0.0, %v5656
    %v5658 = vpop.f32.mrf.mxu0
    %v5659 = vpop.f32.mrf.mxu0
    %v5660 = vadd.f32 0.0, %v5659
    %v5661 = vpop.f32.mrf.mxu0
    %5662 = vmatprep.mubr.bf16.mxu0 %v5551
    %5663 = vmatmul.mubr.bf16.gmra.mxu0 %v5407
    %v5664 = vpop.f32.mrf.mxu0
    %v5665 = vadd.f32 0.0, %v5664
    %v5666 = vpop.f32.mrf.mxu0
    %v5667 = vpop.f32.mrf.mxu0
    %v5668 = vadd.f32 0.0, %v5667
    %v5669 = vpop.f32.mrf.mxu0
    %5670 = vmatprep.mubr.bf16.mxu0 %v5554
    %5671 = vmatmul.mubr.bf16.gmra.mxu0 %v5409
    %v5672 = vpop.f32.mrf.mxu0
    %v5673 = vadd.f32 0.0, %v5672
    %v5674 = vpop.f32.mrf.mxu0
    %v5675 = vpop.f32.mrf.mxu0
    %v5676 = vadd.f32 0.0, %v5675
    %v5677 = vpop.f32.mrf.mxu0
    %5678 = vmatprep.mubr.bf16.mxu0 %v5557
    %5679 = vmatmul.mubr.bf16.gmra.mxu0 %v5411
    %v5680 = vpop.f32.mrf.mxu0
    %v5681 = vadd.f32 0.0, %v5680
    %v5682 = vpop.f32.mrf.mxu0
    %v5683 = vpop.f32.mrf.mxu0
    %v5684 = vadd.f32 0.0, %v5683
    %v5685 = vpop.f32.mrf.mxu0
    %5686 = vmatprep.mubr.bf16.mxu0 %v5560
    %5687 = vmatmul.mubr.bf16.gmra.mxu0 %v5413
    %v5688 = vpop.f32.mrf.mxu0
    %v5689 = vadd.f32 0.0, %v5688
    %v5690 = vpop.f32.mrf.mxu0
    %v5691 = vpop.f32.mrf.mxu0
    %v5692 = vadd.f32 0.0, %v5691
    %v5693 = vpop.f32.mrf.mxu0
    %5694 = vmatprep.mubr.bf16.mxu0 %v5563
    %5695 = vmatmul.mubr.bf16.gmra.mxu0 %v5415
    %v5696 = vpop.f32.mrf.mxu0
    %v5697 = vadd.f32 0.0, %v5696
    %v5698 = vpop.f32.mrf.mxu0
    %v5699 = vpop.f32.mrf.mxu0
    %v5700 = vadd.f32 0.0, %v5699
    %v5701 = vpop.f32.mrf.mxu0
    %5702 = vmatprep.mubr.bf16.mxu0 %v5566
    %5703 = vmatmul.mubr.bf16.gmra.mxu0 %v5417
    %v5704 = vpop.f32.mrf.mxu0
    %v5705 = vadd.f32 0.0, %v5704
    %v5706 = vpop.f32.mrf.mxu0
    %v5707 = vpop.f32.mrf.mxu0
    %v5708 = vadd.f32 0.0, %v5707
    %v5709 = vpop.f32.mrf.mxu0
    %5710 = vmatprep.mubr.bf16.mxu0 %v5569
    %5711 = vmatmul.mubr.bf16.gmra.mxu0 %v5419
    %v5712 = vpop.f32.mrf.mxu0
    %v5713 = vadd.f32 0.0, %v5712
    %v5714 = vpop.f32.mrf.mxu0
    %v5715 = vpop.f32.mrf.mxu0
    %v5716 = vadd.f32 0.0, %v5715
    %v5717 = vpop.f32.mrf.mxu0
    %5718 = vmatprep.mubr.bf16.mxu0 %v5572
    %5719 = vmatmul.mubr.bf16.gmra.mxu0 %v5421
    %v5720 = vpop.f32.mrf.mxu0
    %v5721 = vadd.f32 0.0, %v5720
    %v5722 = vpop.f32.mrf.mxu0
    %v5723 = vpop.f32.mrf.mxu0
    %v5724 = vadd.f32 0.0, %v5723
    %v5725 = vpop.f32.mrf.mxu0
    %5726 = vmatprep.mubr.bf16.mxu0 %v5575
    %5727 = vmatmul.mubr.bf16.gmra.mxu0 %v5423
    %v5728 = vpop.f32.mrf.mxu0
    %v5729 = vadd.f32 0.0, %v5728
    %v5730 = vpop.f32.mrf.mxu0
    %v5731 = vpop.f32.mrf.mxu0
    %v5732 = vadd.f32 0.0, %v5731
    %v5733 = vpop.f32.mrf.mxu0
    %5734 = vmatprep.mubr.bf16.mxu0 %v5578
    %5735 = vmatmul.mubr.bf16.gmra.mxu0 %v5425
    %v5736 = vpop.f32.mrf.mxu0
    %v5737 = vadd.f32 0.0, %v5736
    %v5738 = vpop.f32.mrf.mxu0
    %v5739 = vpop.f32.mrf.mxu0
    %v5740 = vadd.f32 0.0, %v5739
    %v5741 = vpop.f32.mrf.mxu0
    %5742 = vmatprep.mubr.bf16.mxu0 %v5581
    %5743 = vmatmul.mubr.bf16.gmra.mxu0 %v5427
    %v5744 = vpop.f32.mrf.mxu0
    %v5745 = vadd.f32 0.0, %v5744
    %v5746 = vpop.f32.mrf.mxu0
    %v5747 = vpop.f32.mrf.mxu0
    %v5748 = vadd.f32 0.0, %v5747
    %v5749 = vpop.f32.mrf.mxu0
    %5750 = vmatprep.mubr.bf16.mxu0 %v5584
    %5751 = vmatmul.mubr.bf16.gmra.mxu0 %v5429
    %v5752 = vpop.f32.mrf.mxu0
    %v5753 = vadd.f32 0.0, %v5752
    %v5754 = vpop.f32.mrf.mxu0
    %v5755 = vpop.f32.mrf.mxu0
    %v5756 = vadd.f32 0.0, %v5755
    %v5757 = vpop.f32.mrf.mxu0
    %5758 = vmatprep.mubr.bf16.mxu0 %v5587
    %5759 = vmatmul.mubr.bf16.gmra.mxu0 %v5431
    %v5760 = vpop.f32.mrf.mxu0
    %v5761 = vadd.f32 0.0, %v5760
    %v5762 = vpop.f32.mrf.mxu0
    %v5763 = vpop.f32.mrf.mxu0
    %v5764 = vadd.f32 0.0, %v5763
    %v5765 = vpop.f32.mrf.mxu0
    %5766 = vmatprep.mubr.bf16.mxu0 %v5590
    %5767 = vmatmul.mubr.bf16.gmra.mxu0 %v5433
    %v5768 = vpop.f32.mrf.mxu0
    %v5769 = vadd.f32 0.0, %v5768
    %v5770 = vpop.f32.mrf.mxu0
    %v5771 = vpop.f32.mrf.mxu0
    %v5772 = vadd.f32 0.0, %v5771
    %v5773 = vpop.f32.mrf.mxu0
    %5774 = vmatprep.mubr.bf16.mxu0 %v5593
    %5775 = vmatmul.mubr.bf16.gmra.mxu0 %v5435
    %v5776 = vpop.f32.mrf.mxu0
    %v5777 = vadd.f32 0.0, %v5776
    %v5778 = vpop.f32.mrf.mxu0
    %v5779 = vpop.f32.mrf.mxu0
    %v5780 = vadd.f32 0.0, %v5779
    %v5781 = vpop.f32.mrf.mxu0
    %5782 = vmatprep.mubr.bf16.mxu0 %v5596
    %5783 = vmatmul.mubr.bf16.gmra.mxu0 %v5437
    %v5784 = vpop.f32.mrf.mxu0
    %v5785 = vadd.f32 0.0, %v5784
    %v5786 = vpop.f32.mrf.mxu0
    %v5787 = vpop.f32.mrf.mxu0
    %v5788 = vadd.f32 0.0, %v5787
    %v5789 = vpop.f32.mrf.mxu0
    %5790 = vmatprep.mubr.bf16.mxu0 %v5599
    %5791 = vmatmul.mubr.bf16.gmra.mxu0 %v5439
    %v5792 = vpop.f32.mrf.mxu0
    %v5793 = vadd.f32 0.0, %v5792
    %v5794 = vpop.f32.mrf.mxu0
    %v5795 = vpop.f32.mrf.mxu0
    %v5796 = vadd.f32 0.0, %v5795
    %v5797 = vpop.f32.mrf.mxu0
    %5798 = vmatprep.mubr.bf16.mxu0 %v5602
    %5799 = vmatmul.mubr.bf16.gmra.mxu0 %v5441
    %v5800 = vpop.f32.mrf.mxu0
    %v5801 = vadd.f32 0.0, %v5800
    %v5802 = vpop.f32.mrf.mxu0
    %v5803 = vpop.f32.mrf.mxu0
    %v5804 = vadd.f32 0.0, %v5803
    %v5805 = vpop.f32.mrf.mxu0
    %5806 = vmatprep.mubr.bf16.mxu0 %v5605
    %5807 = vmatmul.mubr.bf16.gmra.mxu0 %v5443
    %v5808 = vpop.f32.mrf.mxu0
    %v5809 = vadd.f32 0.0, %v5808
    %v5810 = vpop.f32.mrf.mxu0
    %v5811 = vpop.f32.mrf.mxu0
    %v5812 = vadd.f32 0.0, %v5811
    %v5813 = vpop.f32.mrf.mxu0
    %5814 = vmatprep.mubr.bf16.mxu0 %v5608
    %5815 = vmatmul.mubr.bf16.gmra.mxu0 %v5445
    %v5816 = vpop.f32.mrf.mxu0
    %v5817 = vadd.f32 0.0, %v5816
    %v5818 = vpop.f32.mrf.mxu0
    %v5819 = vpop.f32.mrf.mxu0
    %v5820 = vadd.f32 0.0, %v5819
    %v5821 = vpop.f32.mrf.mxu0
    %5822 = vmatprep.mubr.bf16.mxu0 %v5611
    %5823 = vmatmul.mubr.bf16.gmra.mxu0 %v5447
    %v5824 = vpop.f32.mrf.mxu0
    %v5825 = vadd.f32 0.0, %v5824
    %v5826 = vpop.f32.mrf.mxu0
    %v5827 = vpop.f32.mrf.mxu0
    %v5828 = vadd.f32 0.0, %v5827
    %v5829 = vpop.f32.mrf.mxu0
    %5830 = vmatprep.mubr.bf16.mxu0 %v5614
    %5831 = vmatmul.mubr.bf16.gmra.mxu0 %v5449
    %v5832 = vpop.f32.mrf.mxu0
    %v5833 = vadd.f32 0.0, %v5832
    %v5834 = vpop.f32.mrf.mxu0
    %v5835 = vpop.f32.mrf.mxu0
    %v5836 = vadd.f32 0.0, %v5835
    %v5837 = vpop.f32.mrf.mxu0
    %5838 = vmatprep.mubr.bf16.mxu0 %v5617
    %5839 = vmatmul.mubr.bf16.gmra.mxu0 %v5451
    %v5840 = vpop.f32.mrf.mxu0
    %v5841 = vadd.f32 0.0, %v5840
    %v5842 = vpop.f32.mrf.mxu0
    %v5843 = vpop.f32.mrf.mxu0
    %v5844 = vadd.f32 0.0, %v5843
    %v5845 = vpop.f32.mrf.mxu0
    %5846 = vmatprep.mubr.bf16.mxu0 %v5620
    %5847 = vmatmul.mubr.bf16.gmra.mxu0 %v5453
    %v5848 = vpop.f32.mrf.mxu0
    %v5849 = vadd.f32 0.0, %v5848
    %v5850 = vpop.f32.mrf.mxu0
    %v5851 = vpop.f32.mrf.mxu0
    %v5852 = vadd.f32 0.0, %v5851
    %v5853 = vpop.f32.mrf.mxu0
    %5854 = vdwg.mxu0
    %v5857 = vunpack.c.l.b16 %v5158
    %v5858 = vunpack.c.h.b16 %v5158
    %v5859 = vunpack.c.l.b16 %v5159
    %v5860 = vunpack.c.h.b16 %v5159
    %v5861 = vpack.c.b16 %v5859, %v5857
    %v5862 = vpack.c.b16 %v5860, %v5858
    %v5886 = vunpack.c.l.b16 %v5208
    %v5887 = vunpack.c.l.b16 %v5209
    %v5888 = vunpack.c.l.b16 %v5210
    %v5889 = vunpack.c.l.b16 %v5211
    %v5890 = vunpack.c.l.b16 %v5212
    %v5891 = vunpack.c.l.b16 %v5213
    %v5892 = vunpack.c.l.b16 %v5214
    %v5893 = vunpack.c.l.b16 %v5215
    %v5894 = vunpack.c.l.b16 %v5216
    %v5895 = vunpack.c.l.b16 %v5217
    %v5896 = vunpack.c.l.b16 %v5218
    %v5897 = vunpack.c.l.b16 %v5219
    %v5898 = vunpack.c.l.b16 %v5220
    %v5899 = vunpack.c.l.b16 %v5221
    %v5900 = vunpack.c.l.b16 %v5222
    %v5901 = vunpack.c.l.b16 %v5223
    %v5902 = vunpack.c.l.b16 %v5224
    %v5903 = vunpack.c.l.b16 %v5225
    %v5904 = vunpack.c.l.b16 %v5226
    %v5905 = vunpack.c.l.b16 %v5227
    %v5906 = vunpack.c.l.b16 %v5228
    %v5907 = vunpack.c.l.b16 %v5229
    %v5908 = vpack.c.b16 %v5887, %v5886
    %v5909 = vpack.c.b16 %v5889, %v5888
    %v5910 = vpack.c.b16 %v5891, %v5890
    %v5911 = vpack.c.b16 %v5893, %v5892
    %v5912 = vpack.c.b16 %v5895, %v5894
    %v5913 = vpack.c.b16 %v5897, %v5896
    %v5914 = vpack.c.b16 %v5899, %v5898
    %v5915 = vpack.c.b16 %v5901, %v5900
    %v5916 = vpack.c.b16 %v5903, %v5902
    %v5917 = vpack.c.b16 %v5905, %v5904
    %v5918 = vpack.c.b16 %v5907, %v5906
    %v5931 = vsel %vm5546, %v5862, 0
    %5933 = vmatprep.subr.bf16.mxu0 0
    %5934 = vmatpush1.bf16.msra.mxu0 %v5915
    %5935 = vmatprep.subr.bf16.mxu0 0
    %5936 = vmatpush1.bf16.msra.mxu0 %v5914
    %5937 = vmatprep.subr.bf16.mxu0 0
    %5938 = vmatpush1.bf16.msra.mxu0 %v5913
    %5939 = vmatprep.subr.bf16.mxu0 0
    %5940 = vmatpush1.bf16.msra.mxu0 %v5912
    %5941 = vmatprep.subr.bf16.mxu0 0
    %5942 = vmatpush1.bf16.msra.mxu0 %v5911
    %5943 = vmatprep.subr.bf16.mxu0 0
    %5944 = vmatpush1.bf16.msra.mxu0 %v5910
    %5945 = vmatprep.subr.bf16.mxu0 0
    %5946 = vmatpush1.bf16.msra.mxu0 %v5909
    %5947 = vmatprep.subr.bf16.mxu0 0
    %5948 = vmatpush1.bf16.msra.mxu0 %v5908
    %5949 = vmatprep.subr.bf16.mxu0 0
    %5950 = vmatpush2.bf16.msra.mxu0 0
    %5951 = vmatprep.subr.bf16.mxu0 0
    %5952 = vmatpush2.bf16.msra.mxu0 0
    %5953 = vmatprep.subr.bf16.mxu0 0
    %5954 = vmatpush2.bf16.msra.mxu0 0
    %5955 = vmatprep.subr.bf16.mxu0 0
    %5956 = vmatpush2.bf16.msra.mxu0 0
    %5957 = vmatprep.subr.bf16.mxu0 0
    %5958 = vmatpush2.bf16.msra.mxu0 0
    %5959 = vmatprep.subr.bf16.mxu0 0
    %5960 = vmatpush2.bf16.msra.mxu0 %v5918
    %5961 = vmatprep.subr.bf16.mxu0 0
    %5962 = vmatpush2.bf16.msra.mxu0 %v5917
    %5963 = vmatprep.subr.bf16.mxu0 0
    %5964 = vmatpush2.bf16.msra.mxu0 %v5916
    %5965 = vmatprep.mubr.bf16.mxu0 %v5931
    %5966 = vmatmul.mubr.bf16.gmra.mxu0 %v5861
    %v5967 = vpop.f32.mrf.mxu0
    %v5968 = vadd.f32 %v5657, %v5967
    %v5969 = vpop.f32.mrf.mxu0
    %v5970 = vpop.f32.mrf.mxu0
    %v5971 = vadd.f32 %v5660, %v5970
    %v5972 = vpop.f32.mrf.mxu0
    %5973 = vmatprep.mubr.bf16.mxu0 %v5548
    %5974 = vmatmul.mubr.bf16.gmra.mxu0 %v5405
    %v5975 = vpop.f32.mrf.mxu0
    %v5976 = vadd.f32 %v5665, %v5975
    %v5977 = vpop.f32.mrf.mxu0
    %v5978 = vpop.f32.mrf.mxu0
    %v5979 = vadd.f32 %v5668, %v5978
    %v5980 = vpop.f32.mrf.mxu0
    %5981 = vmatprep.mubr.bf16.mxu0 %v5551
    %5982 = vmatmul.mubr.bf16.gmra.mxu0 %v5407
    %v5983 = vpop.f32.mrf.mxu0
    %v5984 = vadd.f32 %v5673, %v5983
    %v5985 = vpop.f32.mrf.mxu0
    %v5986 = vpop.f32.mrf.mxu0
    %v5987 = vadd.f32 %v5676, %v5986
    %v5988 = vpop.f32.mrf.mxu0
    %5989 = vmatprep.mubr.bf16.mxu0 %v5554
    %5990 = vmatmul.mubr.bf16.gmra.mxu0 %v5409
    %v5991 = vpop.f32.mrf.mxu0
    %v5992 = vadd.f32 %v5681, %v5991
    %v5993 = vpop.f32.mrf.mxu0
    %v5994 = vpop.f32.mrf.mxu0
    %v5995 = vadd.f32 %v5684, %v5994
    %v5996 = vpop.f32.mrf.mxu0
    %5997 = vmatprep.mubr.bf16.mxu0 %v5557
    %5998 = vmatmul.mubr.bf16.gmra.mxu0 %v5411
    %v5999 = vpop.f32.mrf.mxu0
    %v6000 = vadd.f32 %v5689, %v5999
    %v6001 = vpop.f32.mrf.mxu0
    %v6002 = vpop.f32.mrf.mxu0
    %v6003 = vadd.f32 %v5692, %v6002
    %v6004 = vpop.f32.mrf.mxu0
    %6005 = vmatprep.mubr.bf16.mxu0 %v5560
    %6006 = vmatmul.mubr.bf16.gmra.mxu0 %v5413
    %v6007 = vpop.f32.mrf.mxu0
    %v6008 = vadd.f32 %v5697, %v6007
    %v6009 = vpop.f32.mrf.mxu0
    %v6010 = vpop.f32.mrf.mxu0
    %v6011 = vadd.f32 %v5700, %v6010
    %v6012 = vpop.f32.mrf.mxu0
    %6013 = vmatprep.mubr.bf16.mxu0 %v5563
    %6014 = vmatmul.mubr.bf16.gmra.mxu0 %v5415
    %v6015 = vpop.f32.mrf.mxu0
    %v6016 = vadd.f32 %v5705, %v6015
    %v6017 = vpop.f32.mrf.mxu0
    %v6018 = vpop.f32.mrf.mxu0
    %v6019 = vadd.f32 %v5708, %v6018
    %v6020 = vpop.f32.mrf.mxu0
    %6021 = vmatprep.mubr.bf16.mxu0 %v5566
    %6022 = vmatmul.mubr.bf16.gmra.mxu0 %v5417
    %v6023 = vpop.f32.mrf.mxu0
    %v6024 = vadd.f32 %v5713, %v6023
    %v6025 = vpop.f32.mrf.mxu0
    %v6026 = vpop.f32.mrf.mxu0
    %v6027 = vadd.f32 %v5716, %v6026
    %v6028 = vpop.f32.mrf.mxu0
    %6029 = vmatprep.mubr.bf16.mxu0 %v5569
    %6030 = vmatmul.mubr.bf16.gmra.mxu0 %v5419
    %v6031 = vpop.f32.mrf.mxu0
    %v6032 = vadd.f32 %v5721, %v6031
    %v6033 = vpop.f32.mrf.mxu0
    %v6034 = vpop.f32.mrf.mxu0
    %v6035 = vadd.f32 %v5724, %v6034
    %v6036 = vpop.f32.mrf.mxu0
    %6037 = vmatprep.mubr.bf16.mxu0 %v5572
    %6038 = vmatmul.mubr.bf16.gmra.mxu0 %v5421
    %v6039 = vpop.f32.mrf.mxu0
    %v6040 = vadd.f32 %v5729, %v6039
    %v6041 = vpop.f32.mrf.mxu0
    %v6042 = vpop.f32.mrf.mxu0
    %v6043 = vadd.f32 %v5732, %v6042
    %v6044 = vpop.f32.mrf.mxu0
    %6045 = vmatprep.mubr.bf16.mxu0 %v5575
    %6046 = vmatmul.mubr.bf16.gmra.mxu0 %v5423
    %v6047 = vpop.f32.mrf.mxu0
    %v6048 = vadd.f32 %v5737, %v6047
    %v6049 = vpop.f32.mrf.mxu0
    %v6050 = vpop.f32.mrf.mxu0
    %v6051 = vadd.f32 %v5740, %v6050
    %v6052 = vpop.f32.mrf.mxu0
    %6053 = vmatprep.mubr.bf16.mxu0 %v5578
    %6054 = vmatmul.mubr.bf16.gmra.mxu0 %v5425
    %v6055 = vpop.f32.mrf.mxu0
    %v6056 = vadd.f32 %v5745, %v6055
    %v6057 = vpop.f32.mrf.mxu0
    %v6058 = vpop.f32.mrf.mxu0
    %v6059 = vadd.f32 %v5748, %v6058
    %v6060 = vpop.f32.mrf.mxu0
    %6061 = vmatprep.mubr.bf16.mxu0 %v5581
    %6062 = vmatmul.mubr.bf16.gmra.mxu0 %v5427
    %v6063 = vpop.f32.mrf.mxu0
    %v6064 = vadd.f32 %v5753, %v6063
    %v6065 = vpop.f32.mrf.mxu0
    %v6066 = vpop.f32.mrf.mxu0
    %v6067 = vadd.f32 %v5756, %v6066
    %v6068 = vpop.f32.mrf.mxu0
    %6069 = vmatprep.mubr.bf16.mxu0 %v5584
    %6070 = vmatmul.mubr.bf16.gmra.mxu0 %v5429
    %v6071 = vpop.f32.mrf.mxu0
    %v6072 = vadd.f32 %v5761, %v6071
    %v6073 = vpop.f32.mrf.mxu0
    %v6074 = vpop.f32.mrf.mxu0
    %v6075 = vadd.f32 %v5764, %v6074
    %v6076 = vpop.f32.mrf.mxu0
    %6077 = vmatprep.mubr.bf16.mxu0 %v5587
    %6078 = vmatmul.mubr.bf16.gmra.mxu0 %v5431
    %v6079 = vpop.f32.mrf.mxu0
    %v6080 = vadd.f32 %v5769, %v6079
    %v6081 = vpop.f32.mrf.mxu0
    %v6082 = vpop.f32.mrf.mxu0
    %v6083 = vadd.f32 %v5772, %v6082
    %v6084 = vpop.f32.mrf.mxu0
    %6085 = vmatprep.mubr.bf16.mxu0 %v5590
    %6086 = vmatmul.mubr.bf16.gmra.mxu0 %v5433
    %v6087 = vpop.f32.mrf.mxu0
    %v6088 = vadd.f32 %v5777, %v6087
    %v6089 = vpop.f32.mrf.mxu0
    %v6090 = vpop.f32.mrf.mxu0
    %v6091 = vadd.f32 %v5780, %v6090
    %v6092 = vpop.f32.mrf.mxu0
    %6093 = vmatprep.mubr.bf16.mxu0 %v5593
    %6094 = vmatmul.mubr.bf16.gmra.mxu0 %v5435
    %v6095 = vpop.f32.mrf.mxu0
    %v6096 = vadd.f32 %v5785, %v6095
    %v6097 = vpop.f32.mrf.mxu0
    %v6098 = vpop.f32.mrf.mxu0
    %v6099 = vadd.f32 %v5788, %v6098
    %v6100 = vpop.f32.mrf.mxu0
    %6101 = vmatprep.mubr.bf16.mxu0 %v5596
    %6102 = vmatmul.mubr.bf16.gmra.mxu0 %v5437
    %v6103 = vpop.f32.mrf.mxu0
    %v6104 = vadd.f32 %v5793, %v6103
    %v6105 = vpop.f32.mrf.mxu0
    %v6106 = vpop.f32.mrf.mxu0
    %v6107 = vadd.f32 %v5796, %v6106
    %v6108 = vpop.f32.mrf.mxu0
    %6109 = vmatprep.mubr.bf16.mxu0 %v5599
    %6110 = vmatmul.mubr.bf16.gmra.mxu0 %v5439
    %v6111 = vpop.f32.mrf.mxu0
    %v6112 = vadd.f32 %v5801, %v6111
    %v6113 = vpop.f32.mrf.mxu0
    %v6114 = vpop.f32.mrf.mxu0
    %v6115 = vadd.f32 %v5804, %v6114
    %v6116 = vpop.f32.mrf.mxu0
    %6117 = vmatprep.mubr.bf16.mxu0 %v5602
    %6118 = vmatmul.mubr.bf16.gmra.mxu0 %v5441
    %v6119 = vpop.f32.mrf.mxu0
    %v6120 = vadd.f32 %v5809, %v6119
    %v6121 = vpop.f32.mrf.mxu0
    %v6122 = vpop.f32.mrf.mxu0
    %v6123 = vadd.f32 %v5812, %v6122
    %v6124 = vpop.f32.mrf.mxu0
    %6125 = vmatprep.mubr.bf16.mxu0 %v5605
    %6126 = vmatmul.mubr.bf16.gmra.mxu0 %v5443
    %v6127 = vpop.f32.mrf.mxu0
    %v6128 = vadd.f32 %v5817, %v6127
    %v6129 = vpop.f32.mrf.mxu0
    %v6130 = vpop.f32.mrf.mxu0
    %v6131 = vadd.f32 %v5820, %v6130
    %v6132 = vpop.f32.mrf.mxu0
    %6133 = vmatprep.mubr.bf16.mxu0 %v5608
    %6134 = vmatmul.mubr.bf16.gmra.mxu0 %v5445
    %v6135 = vpop.f32.mrf.mxu0
    %v6136 = vadd.f32 %v5825, %v6135
    %v6137 = vpop.f32.mrf.mxu0
    %v6138 = vpop.f32.mrf.mxu0
    %v6139 = vadd.f32 %v5828, %v6138
    %v6140 = vpop.f32.mrf.mxu0
    %6141 = vmatprep.mubr.bf16.mxu0 %v5611
    %6142 = vmatmul.mubr.bf16.gmra.mxu0 %v5447
    %v6143 = vpop.f32.mrf.mxu0
    %v6144 = vadd.f32 %v5833, %v6143
    %v6145 = vpop.f32.mrf.mxu0
    %v6146 = vpop.f32.mrf.mxu0
    %v6147 = vadd.f32 %v5836, %v6146
    %v6148 = vpop.f32.mrf.mxu0
    %6149 = vmatprep.mubr.bf16.mxu0 %v5614
    %6150 = vmatmul.mubr.bf16.gmra.mxu0 %v5449
    %v6151 = vpop.f32.mrf.mxu0
    %v6152 = vadd.f32 %v5841, %v6151
    %v6153 = vpop.f32.mrf.mxu0
    %v6154 = vpop.f32.mrf.mxu0
    %v6155 = vadd.f32 %v5844, %v6154
    %v6156 = vpop.f32.mrf.mxu0
    %6157 = vmatprep.mubr.bf16.mxu0 %v5617
    %6158 = vmatmul.mubr.bf16.gmra.mxu0 %v5451
    %v6159 = vpop.f32.mrf.mxu0
    %v6160 = vadd.f32 %v5849, %v6159
    %v6161 = vpop.f32.mrf.mxu0
    %v6162 = vpop.f32.mrf.mxu0
    %v6163 = vadd.f32 %v5852, %v6162
    %v6164 = vpop.f32.mrf.mxu0
    %6165 = vdwg.mxu0
    %v6166 = vld [vmem:[#allocation4 + $0x20] sm:$0xff]
    %v6167 = vld [vmem:[#allocation4 + $0x28] sm:$0xff]
    %v6168 = vld [vmem:[#allocation4 + $0x30] sm:$0xff]
    %v6169 = vld [vmem:[#allocation4 + $0x38] sm:$0xff]
    %v6170 = vld [vmem:[#allocation4 + $0x40] sm:$0xff]
    %v6171 = vld [vmem:[#allocation4 + $0x48] sm:$0xff]
    %v6172 = vld [vmem:[#allocation4 + $0x50] sm:$0xff]
    %v6173 = vld [vmem:[#allocation4 + $0x58] sm:$0xff]
    %v6174 = vld [vmem:[#allocation4 + $0x60] sm:$0xff]
    %v6175 = vld [vmem:[#allocation4 + $0x68] sm:$0xff]
    %v6176 = vld [vmem:[#allocation4 + $0x70] sm:$0xff]
    %v6177 = vld [vmem:[#allocation4 + $0x78] sm:$0xff]
    %v6178 = vld [vmem:[#allocation4 + $0x80] sm:$0xff]
    %v6179 = vld [vmem:[#allocation4 + $0x88] sm:$0xff]
    %v6180 = vld [vmem:[#allocation4 + $0x90] sm:$0xff]
    %v6181 = vld [vmem:[#allocation4 + $0x98] sm:$0xff]
    %v6182 = vld [vmem:[#allocation4 + $0xa0] sm:$0xff]
    %v6183 = vld [vmem:[#allocation4 + $0xa8] sm:$0xff]
    %v6184 = vld [vmem:[#allocation4 + $0xb0] sm:$0xff]
    %v6185 = vld [vmem:[#allocation4 + $0xb8] sm:$0xff]
    %v6186 = vld [vmem:[#allocation4 + $0xc0] sm:$0xff]
    %v6187 = vld [vmem:[#allocation4 + $0xc8] sm:$0xff]
    %v6188 = vld [vmem:[#allocation4 + $0xd0] sm:$0xff]
    %v6189 = vld [vmem:[#allocation4 + $0xd8] sm:$0xff]
    %v6190 = vld [vmem:[#allocation4 + $0xe0] sm:$0xff]
    %v6191 = vld [vmem:[#allocation4 + $0xe8] sm:$0xff]
    %v6192 = vld [vmem:[#allocation4 + $0xf0] sm:$0xff]
    %v6193 = vld [vmem:[#allocation4 + $0xf8] sm:$0xff]
    %v6194 = vld [vmem:[#allocation4 + $0x100] sm:$0xff]
    %v6195 = vld [vmem:[#allocation4 + $0x108] sm:$0xff]
    %v6196 = vld [vmem:[#allocation4 + $0x110] sm:$0xff]
    %v6197 = vld [vmem:[#allocation4 + $0x118] sm:$0xff]
    %v6198 = vld [vmem:[#allocation4 + $0x120] sm:$0xff]
    %v6199 = vld [vmem:[#allocation4 + $0x128] sm:$0xff]
    %v6200 = vld [vmem:[#allocation4 + $0x130] sm:$0xff]
    %v6201 = vld [vmem:[#allocation4 + $0x138] sm:$0xff]
    %v6202 = vld [vmem:[#allocation4 + $0x140] sm:$0xff]
    %v6203 = vld [vmem:[#allocation4 + $0x148] sm:$0xff]
    %v6204 = vld [vmem:[#allocation4 + $0x150] sm:$0xff]
    %v6205 = vld [vmem:[#allocation4 + $0x158] sm:$0xff]
    %v6206 = vld [vmem:[#allocation4 + $0x160] sm:$0xff]
    %v6207 = vld [vmem:[#allocation4 + $0x168] sm:$0xff]
    %v6208 = vld [vmem:[#allocation4 + $0x170] sm:$0xff]
    %v6209 = vld [vmem:[#allocation4 + $0x178] sm:$0xff]
    %v6210 = vld [vmem:[#allocation4 + $0x180] sm:$0xff]
    %v6211 = vld [vmem:[#allocation4 + $0x188] sm:$0xff]
    %v6212 = vld [vmem:[#allocation4 + $0x190] sm:$0xff]
    %v6213 = vld [vmem:[#allocation4 + $0x198] sm:$0xff]
    %v6214 = vld [vmem:[#allocation4 + $0x1a0] sm:$0xff]
    %v6215 = vld [vmem:[#allocation4 + $0x1a8] sm:$0xff]
    %s6216 = scalar_lea.vmem %s10, 176
    %v6217 = vld [vmem:[%s6216] sm:$0xf]
    %v6218 = vld [vmem:[%s6216 + $0x4] sm:$0xf]
    %v6219 = vld [vmem:[%s6216 + $0x8] sm:$0xf]
    %v6220 = vld [vmem:[%s6216 + $0xc] sm:$0xf]
    %v6221 = vld [vmem:[%s6216 + $0x10] sm:$0xf]
    %v6222 = vld [vmem:[%s6216 + $0x14] sm:$0xf]
    %v6223 = vld [vmem:[%s6216 + $0x18] sm:$0xf]
    %v6224 = vld [vmem:[%s6216 + $0x1c] sm:$0xf]
    %v6225 = vld [vmem:[%s6216 + $0x20] sm:$0xf]
    %v6226 = vld [vmem:[%s6216 + $0x24] sm:$0xf]
    %v6227 = vld [vmem:[%s6216 + $0x28] sm:$0xf]
    %v6228 = vld [vmem:[%s6216 + $0x2c] sm:$0xf]
    %v6229 = vld [vmem:[%s6216 + $0x30] sm:$0xf]
    %v6230 = vld [vmem:[%s6216 + $0x34] sm:$0xf]
    %v6231 = vld [vmem:[%s6216 + $0x38] sm:$0xf]
    %v6232 = vld [vmem:[%s6216 + $0x3c] sm:$0xf]
    %v6233 = vld [vmem:[%s6216 + $0x40] sm:$0xf]
    %v6234 = vld [vmem:[%s6216 + $0x44] sm:$0xf]
    %v6235 = vld [vmem:[%s6216 + $0x48] sm:$0xf]
    %v6236 = vld [vmem:[%s6216 + $0x4c] sm:$0xf]
    %v6237 = vld [vmem:[%s6216 + $0x50] sm:$0xf]
    %v6238 = vld [vmem:[%s6216 + $0x54] sm:$0xf]
    %v6289 = vunpack.c.l.b16 %v6166
    %v6290 = vunpack.c.h.b16 %v6166
    %v6291 = vunpack.c.l.b16 %v6167
    %v6292 = vunpack.c.h.b16 %v6167
    %v6293 = vunpack.c.l.b16 %v6168
    %v6294 = vunpack.c.h.b16 %v6168
    %v6295 = vunpack.c.l.b16 %v6169
    %v6296 = vunpack.c.h.b16 %v6169
    %v6297 = vunpack.c.l.b16 %v6170
    %v6298 = vunpack.c.h.b16 %v6170
    %v6299 = vunpack.c.l.b16 %v6171
    %v6300 = vunpack.c.h.b16 %v6171
    %v6301 = vunpack.c.l.b16 %v6172
    %v6302 = vunpack.c.h.b16 %v6172
    %v6303 = vunpack.c.l.b16 %v6173
    %v6304 = vunpack.c.h.b16 %v6173
    %v6305 = vunpack.c.l.b16 %v6174
    %v6306 = vunpack.c.h.b16 %v6174
    %v6307 = vunpack.c.l.b16 %v6175
    %v6308 = vunpack.c.h.b16 %v6175
    %v6309 = vunpack.c.l.b16 %v6176
    %v6310 = vunpack.c.h.b16 %v6176
    %v6311 = vunpack.c.l.b16 %v6177
    %v6312 = vunpack.c.h.b16 %v6177
    %v6313 = vunpack.c.l.b16 %v6178
    %v6314 = vunpack.c.h.b16 %v6178
    %v6315 = vunpack.c.l.b16 %v6179
    %v6316 = vunpack.c.h.b16 %v6179
    %v6317 = vunpack.c.l.b16 %v6180
    %v6318 = vunpack.c.h.b16 %v6180
    %v6319 = vunpack.c.l.b16 %v6181
    %v6320 = vunpack.c.h.b16 %v6181
    %v6321 = vunpack.c.l.b16 %v6182
    %v6322 = vunpack.c.h.b16 %v6182
    %v6323 = vunpack.c.l.b16 %v6183
    %v6324 = vunpack.c.h.b16 %v6183
    %v6325 = vunpack.c.l.b16 %v6184
    %v6326 = vunpack.c.h.b16 %v6184
    %v6327 = vunpack.c.l.b16 %v6185
    %v6328 = vunpack.c.h.b16 %v6185
    %v6329 = vunpack.c.l.b16 %v6186
    %v6330 = vunpack.c.h.b16 %v6186
    %v6331 = vunpack.c.l.b16 %v6187
    %v6332 = vunpack.c.h.b16 %v6187
    %v6333 = vunpack.c.l.b16 %v6188
    %v6334 = vunpack.c.h.b16 %v6188
    %v6335 = vunpack.c.l.b16 %v6189
    %v6336 = vunpack.c.h.b16 %v6189
    %v6337 = vunpack.c.l.b16 %v6190
    %v6338 = vunpack.c.h.b16 %v6190
    %v6339 = vunpack.c.l.b16 %v6191
    %v6340 = vunpack.c.h.b16 %v6191
    %v6341 = vunpack.c.l.b16 %v6192
    %v6342 = vunpack.c.h.b16 %v6192
    %v6343 = vunpack.c.l.b16 %v6193
    %v6344 = vunpack.c.h.b16 %v6193
    %v6345 = vunpack.c.l.b16 %v6194
    %v6346 = vunpack.c.h.b16 %v6194
    %v6347 = vunpack.c.l.b16 %v6195
    %v6348 = vunpack.c.h.b16 %v6195
    %v6349 = vunpack.c.l.b16 %v6196
    %v6350 = vunpack.c.h.b16 %v6196
    %v6351 = vunpack.c.l.b16 %v6197
    %v6352 = vunpack.c.h.b16 %v6197
    %v6353 = vunpack.c.l.b16 %v6198
    %v6354 = vunpack.c.h.b16 %v6198
    %v6355 = vunpack.c.l.b16 %v6199
    %v6356 = vunpack.c.h.b16 %v6199
    %v6357 = vunpack.c.l.b16 %v6200
    %v6358 = vunpack.c.h.b16 %v6200
    %v6359 = vunpack.c.l.b16 %v6201
    %v6360 = vunpack.c.h.b16 %v6201
    %v6361 = vunpack.c.l.b16 %v6202
    %v6362 = vunpack.c.h.b16 %v6202
    %v6363 = vunpack.c.l.b16 %v6203
    %v6364 = vunpack.c.h.b16 %v6203
    %v6365 = vunpack.c.l.b16 %v6204
    %v6366 = vunpack.c.h.b16 %v6204
    %v6367 = vunpack.c.l.b16 %v6205
    %v6368 = vunpack.c.h.b16 %v6205
    %v6369 = vunpack.c.l.b16 %v6206
    %v6370 = vunpack.c.h.b16 %v6206
    %v6371 = vunpack.c.l.b16 %v6207
    %v6372 = vunpack.c.h.b16 %v6207
    %v6373 = vunpack.c.l.b16 %v6208
    %v6374 = vunpack.c.h.b16 %v6208
    %v6375 = vunpack.c.l.b16 %v6209
    %v6376 = vunpack.c.h.b16 %v6209
    %v6377 = vunpack.c.l.b16 %v6210
    %v6378 = vunpack.c.h.b16 %v6210
    %v6379 = vunpack.c.l.b16 %v6211
    %v6380 = vunpack.c.h.b16 %v6211
    %v6381 = vunpack.c.l.b16 %v6212
    %v6382 = vunpack.c.h.b16 %v6212
    %v6383 = vunpack.c.l.b16 %v6213
    %v6384 = vunpack.c.h.b16 %v6213
    %v6385 = vunpack.c.l.b16 %v6214
    %v6386 = vunpack.c.h.b16 %v6214
    %v6387 = vunpack.c.l.b16 %v6215
    %v6388 = vunpack.c.h.b16 %v6215
    %v6389 = vpack.c.b16 %v6291, %v6289
    %v6390 = vpack.c.b16 %v6292, %v6290
    %v6391 = vpack.c.b16 %v6295, %v6293
    %v6392 = vpack.c.b16 %v6296, %v6294
    %v6393 = vpack.c.b16 %v6299, %v6297
    %v6394 = vpack.c.b16 %v6300, %v6298
    %v6395 = vpack.c.b16 %v6303, %v6301
    %v6396 = vpack.c.b16 %v6304, %v6302
    %v6397 = vpack.c.b16 %v6307, %v6305
    %v6398 = vpack.c.b16 %v6308, %v6306
    %v6399 = vpack.c.b16 %v6311, %v6309
    %v6400 = vpack.c.b16 %v6312, %v6310
    %v6401 = vpack.c.b16 %v6315, %v6313
    %v6402 = vpack.c.b16 %v6316, %v6314
    %v6403 = vpack.c.b16 %v6319, %v6317
    %v6404 = vpack.c.b16 %v6320, %v6318
    %v6405 = vpack.c.b16 %v6323, %v6321
    %v6406 = vpack.c.b16 %v6324, %v6322
    %v6407 = vpack.c.b16 %v6327, %v6325
    %v6408 = vpack.c.b16 %v6328, %v6326
    %v6409 = vpack.c.b16 %v6331, %v6329
    %v6410 = vpack.c.b16 %v6332, %v6330
    %v6411 = vpack.c.b16 %v6335, %v6333
    %v6412 = vpack.c.b16 %v6336, %v6334
    %v6413 = vpack.c.b16 %v6339, %v6337
    %v6414 = vpack.c.b16 %v6340, %v6338
    %v6415 = vpack.c.b16 %v6343, %v6341
    %v6416 = vpack.c.b16 %v6344, %v6342
    %v6417 = vpack.c.b16 %v6347, %v6345
    %v6418 = vpack.c.b16 %v6348, %v6346
    %v6419 = vpack.c.b16 %v6351, %v6349
    %v6420 = vpack.c.b16 %v6352, %v6350
    %v6421 = vpack.c.b16 %v6355, %v6353
    %v6422 = vpack.c.b16 %v6356, %v6354
    %v6423 = vpack.c.b16 %v6359, %v6357
    %v6424 = vpack.c.b16 %v6360, %v6358
    %v6425 = vpack.c.b16 %v6363, %v6361
    %v6426 = vpack.c.b16 %v6364, %v6362
    %v6427 = vpack.c.b16 %v6367, %v6365
    %v6428 = vpack.c.b16 %v6368, %v6366
    %v6429 = vpack.c.b16 %v6371, %v6369
    %v6430 = vpack.c.b16 %v6372, %v6370
    %v6431 = vpack.c.b16 %v6375, %v6373
    %v6432 = vpack.c.b16 %v6376, %v6374
    %v6433 = vpack.c.b16 %v6379, %v6377
    %v6434 = vpack.c.b16 %v6380, %v6378
    %v6435 = vpack.c.b16 %v6383, %v6381
    %v6436 = vpack.c.b16 %v6384, %v6382
    %v6437 = vpack.c.b16 %v6387, %v6385
    %v6438 = vpack.c.b16 %v6388, %v6386
    %v6486 = vunpack.c.l.b16 %v6217
    %v6487 = vunpack.c.l.b16 %v6218
    %v6488 = vunpack.c.l.b16 %v6219
    %v6489 = vunpack.c.l.b16 %v6220
    %v6490 = vunpack.c.l.b16 %v6221
    %v6491 = vunpack.c.l.b16 %v6222
    %v6492 = vunpack.c.l.b16 %v6223
    %v6493 = vunpack.c.l.b16 %v6224
    %v6494 = vunpack.c.l.b16 %v6225
    %v6495 = vunpack.c.l.b16 %v6226
    %v6496 = vunpack.c.l.b16 %v6227
    %v6497 = vunpack.c.l.b16 %v6228
    %v6498 = vunpack.c.l.b16 %v6229
    %v6499 = vunpack.c.l.b16 %v6230
    %v6500 = vunpack.c.l.b16 %v6231
    %v6501 = vunpack.c.l.b16 %v6232
    %v6502 = vunpack.c.l.b16 %v6233
    %v6503 = vunpack.c.l.b16 %v6234
    %v6504 = vunpack.c.l.b16 %v6235
    %v6505 = vunpack.c.l.b16 %v6236
    %v6506 = vunpack.c.l.b16 %v6237
    %v6507 = vunpack.c.l.b16 %v6238
    %v6508 = vpack.c.b16 %v6487, %v6486
    %v6509 = vpack.c.b16 %v6489, %v6488
    %v6510 = vpack.c.b16 %v6491, %v6490
    %v6511 = vpack.c.b16 %v6493, %v6492
    %v6512 = vpack.c.b16 %v6495, %v6494
    %v6513 = vpack.c.b16 %v6497, %v6496
    %v6514 = vpack.c.b16 %v6499, %v6498
    %v6515 = vpack.c.b16 %v6501, %v6500
    %v6516 = vpack.c.b16 %v6503, %v6502
    %v6517 = vpack.c.b16 %v6505, %v6504
    %v6518 = vpack.c.b16 %v6507, %v6506
    %v6531 = vsel %vm5546, %v6390, 0
    %v6534 = vsel %vm5546, %v6392, 0
    %v6537 = vsel %vm5546, %v6394, 0
    %v6540 = vsel %vm5546, %v6396, 0
    %v6543 = vsel %vm5546, %v6398, 0
    %v6546 = vsel %vm5546, %v6400, 0
    %v6549 = vsel %vm5546, %v6402, 0
    %v6552 = vsel %vm5546, %v6404, 0
    %v6555 = vsel %vm5546, %v6406, 0
    %v6558 = vsel %vm5546, %v6408, 0
    %v6561 = vsel %vm5546, %v6410, 0
    %v6564 = vsel %vm5546, %v6412, 0
    %v6567 = vsel %vm5546, %v6414, 0
    %v6570 = vsel %vm5546, %v6416, 0
    %v6573 = vsel %vm5546, %v6418, 0
    %v6576 = vsel %vm5546, %v6420, 0
    %v6579 = vsel %vm5546, %v6422, 0
    %v6582 = vsel %vm5546, %v6424, 0
    %v6585 = vsel %vm5546, %v6426, 0
    %v6588 = vsel %vm5546, %v6428, 0
    %v6591 = vsel %vm5546, %v6430, 0
    %v6594 = vsel %vm5546, %v6432, 0
    %v6597 = vsel %vm5546, %v6434, 0
    %v6600 = vsel %vm5546, %v6436, 0
    %v6603 = vsel %vm5546, %v6438, 0
    %6605 = vmatprep.subr.bf16.mxu0 0
    %6606 = vmatpush1.bf16.msra.mxu0 %v6515
    %6607 = vmatprep.subr.bf16.mxu0 0
    %6608 = vmatpush1.bf16.msra.mxu0 %v6514
    %6609 = vmatprep.subr.bf16.mxu0 0
    %6610 = vmatpush1.bf16.msra.mxu0 %v6513
    %6611 = vmatprep.subr.bf16.mxu0 0
    %6612 = vmatpush1.bf16.msra.mxu0 %v6512
    %6613 = vmatprep.subr.bf16.mxu0 0
    %6614 = vmatpush1.bf16.msra.mxu0 %v6511
    %6615 = vmatprep.subr.bf16.mxu0 0
    %6616 = vmatpush1.bf16.msra.mxu0 %v6510
    %6617 = vmatprep.subr.bf16.mxu0 0
    %6618 = vmatpush1.bf16.msra.mxu0 %v6509
    %6619 = vmatprep.subr.bf16.mxu0 0
    %6620 = vmatpush1.bf16.msra.mxu0 %v6508
    %6621 = vmatprep.subr.bf16.mxu0 0
    %6622 = vmatpush2.bf16.msra.mxu0 0
    %6623 = vmatprep.subr.bf16.mxu0 0
    %6624 = vmatpush2.bf16.msra.mxu0 0
    %6625 = vmatprep.subr.bf16.mxu0 0
    %6626 = vmatpush2.bf16.msra.mxu0 0
    %6627 = vmatprep.subr.bf16.mxu0 0
    %6628 = vmatpush2.bf16.msra.mxu0 0
    %6629 = vmatprep.subr.bf16.mxu0 0
    %6630 = vmatpush2.bf16.msra.mxu0 0
    %6631 = vmatprep.subr.bf16.mxu0 0
    %6632 = vmatpush2.bf16.msra.mxu0 %v6518
    %6633 = vmatprep.subr.bf16.mxu0 0
    %6634 = vmatpush2.bf16.msra.mxu0 %v6517
    %6635 = vmatprep.subr.bf16.mxu0 0
    %6636 = vmatpush2.bf16.msra.mxu0 %v6516
    %6637 = vmatprep.mubr.bf16.mxu0 %v6531
    %6638 = vmatmul.mubr.bf16.gmra.mxu0 %v6389
    %v6639 = vpop.f32.mrf.mxu0
    %v6640 = vadd.f32 0.0, %v6639
    %v6641 = vpop.f32.mrf.mxu0
    %v6642 = vpop.f32.mrf.mxu0
    %v6643 = vadd.f32 0.0, %v6642
    %v6644 = vpop.f32.mrf.mxu0
    %6645 = vmatprep.mubr.bf16.mxu0 %v6534
    %6646 = vmatmul.mubr.bf16.gmra.mxu0 %v6391
    %v6647 = vpop.f32.mrf.mxu0
    %v6648 = vadd.f32 0.0, %v6647
    %v6649 = vpop.f32.mrf.mxu0
    %v6650 = vpop.f32.mrf.mxu0
    %v6651 = vadd.f32 0.0, %v6650
    %v6652 = vpop.f32.mrf.mxu0
    %6653 = vmatprep.mubr.bf16.mxu0 %v6537
    %6654 = vmatmul.mubr.bf16.gmra.mxu0 %v6393
    %v6655 = vpop.f32.mrf.mxu0
    %v6656 = vadd.f32 0.0, %v6655
    %v6657 = vpop.f32.mrf.mxu0
    %v6658 = vpop.f32.mrf.mxu0
    %v6659 = vadd.f32 0.0, %v6658
    %v6660 = vpop.f32.mrf.mxu0
    %6661 = vmatprep.mubr.bf16.mxu0 %v6540
    %6662 = vmatmul.mubr.bf16.gmra.mxu0 %v6395
    %v6663 = vpop.f32.mrf.mxu0
    %v6664 = vadd.f32 0.0, %v6663
    %v6665 = vpop.f32.mrf.mxu0
    %v6666 = vpop.f32.mrf.mxu0
    %v6667 = vadd.f32 0.0, %v6666
    %v6668 = vpop.f32.mrf.mxu0
    %6669 = vmatprep.mubr.bf16.mxu0 %v6543
    %6670 = vmatmul.mubr.bf16.gmra.mxu0 %v6397
    %v6671 = vpop.f32.mrf.mxu0
    %v6672 = vadd.f32 0.0, %v6671
    %v6673 = vpop.f32.mrf.mxu0
    %v6674 = vpop.f32.mrf.mxu0
    %v6675 = vadd.f32 0.0, %v6674
    %v6676 = vpop.f32.mrf.mxu0
    %6677 = vmatprep.mubr.bf16.mxu0 %v6546
    %6678 = vmatmul.mubr.bf16.gmra.mxu0 %v6399
    %v6679 = vpop.f32.mrf.mxu0
    %v6680 = vadd.f32 0.0, %v6679
    %v6681 = vpop.f32.mrf.mxu0
    %v6682 = vpop.f32.mrf.mxu0
    %v6683 = vadd.f32 0.0, %v6682
    %v6684 = vpop.f32.mrf.mxu0
    %6685 = vmatprep.mubr.bf16.mxu0 %v6549
    %6686 = vmatmul.mubr.bf16.gmra.mxu0 %v6401
    %v6687 = vpop.f32.mrf.mxu0
    %v6688 = vadd.f32 0.0, %v6687
    %v6689 = vpop.f32.mrf.mxu0
    %v6690 = vpop.f32.mrf.mxu0
    %v6691 = vadd.f32 0.0, %v6690
    %v6692 = vpop.f32.mrf.mxu0
    %6693 = vmatprep.mubr.bf16.mxu0 %v6552
    %6694 = vmatmul.mubr.bf16.gmra.mxu0 %v6403
    %v6695 = vpop.f32.mrf.mxu0
    %v6696 = vadd.f32 0.0, %v6695
    %v6697 = vpop.f32.mrf.mxu0
    %v6698 = vpop.f32.mrf.mxu0
    %v6699 = vadd.f32 0.0, %v6698
    %v6700 = vpop.f32.mrf.mxu0
    %6701 = vmatprep.mubr.bf16.mxu0 %v6555
    %6702 = vmatmul.mubr.bf16.gmra.mxu0 %v6405
    %v6703 = vpop.f32.mrf.mxu0
    %v6704 = vadd.f32 0.0, %v6703
    %v6705 = vpop.f32.mrf.mxu0
    %v6706 = vpop.f32.mrf.mxu0
    %v6707 = vadd.f32 0.0, %v6706
    %v6708 = vpop.f32.mrf.mxu0
    %6709 = vmatprep.mubr.bf16.mxu0 %v6558
    %6710 = vmatmul.mubr.bf16.gmra.mxu0 %v6407
    %v6711 = vpop.f32.mrf.mxu0
    %v6712 = vadd.f32 0.0, %v6711
    %v6713 = vpop.f32.mrf.mxu0
    %v6714 = vpop.f32.mrf.mxu0
    %v6715 = vadd.f32 0.0, %v6714
    %v6716 = vpop.f32.mrf.mxu0
    %6717 = vmatprep.mubr.bf16.mxu0 %v6561
    %6718 = vmatmul.mubr.bf16.gmra.mxu0 %v6409
    %v6719 = vpop.f32.mrf.mxu0
    %v6720 = vadd.f32 0.0, %v6719
    %v6721 = vpop.f32.mrf.mxu0
    %v6722 = vpop.f32.mrf.mxu0
    %v6723 = vadd.f32 0.0, %v6722
    %v6724 = vpop.f32.mrf.mxu0
    %6725 = vmatprep.mubr.bf16.mxu0 %v6564
    %6726 = vmatmul.mubr.bf16.gmra.mxu0 %v6411
    %v6727 = vpop.f32.mrf.mxu0
    %v6728 = vadd.f32 0.0, %v6727
    %v6729 = vpop.f32.mrf.mxu0
    %v6730 = vpop.f32.mrf.mxu0
    %v6731 = vadd.f32 0.0, %v6730
    %v6732 = vpop.f32.mrf.mxu0
    %6733 = vmatprep.mubr.bf16.mxu0 %v6567
    %6734 = vmatmul.mubr.bf16.gmra.mxu0 %v6413
    %v6735 = vpop.f32.mrf.mxu0
    %v6736 = vadd.f32 0.0, %v6735
    %v6737 = vpop.f32.mrf.mxu0
    %v6738 = vpop.f32.mrf.mxu0
    %v6739 = vadd.f32 0.0, %v6738
    %v6740 = vpop.f32.mrf.mxu0
    %6741 = vmatprep.mubr.bf16.mxu0 %v6570
    %6742 = vmatmul.mubr.bf16.gmra.mxu0 %v6415
    %v6743 = vpop.f32.mrf.mxu0
    %v6744 = vadd.f32 0.0, %v6743
    %v6745 = vpop.f32.mrf.mxu0
    %v6746 = vpop.f32.mrf.mxu0
    %v6747 = vadd.f32 0.0, %v6746
    %v6748 = vpop.f32.mrf.mxu0
    %6749 = vmatprep.mubr.bf16.mxu0 %v6573
    %6750 = vmatmul.mubr.bf16.gmra.mxu0 %v6417
    %v6751 = vpop.f32.mrf.mxu0
    %v6752 = vadd.f32 0.0, %v6751
    %v6753 = vpop.f32.mrf.mxu0
    %v6754 = vpop.f32.mrf.mxu0
    %v6755 = vadd.f32 0.0, %v6754
    %v6756 = vpop.f32.mrf.mxu0
    %6757 = vmatprep.mubr.bf16.mxu0 %v6576
    %6758 = vmatmul.mubr.bf16.gmra.mxu0 %v6419
    %v6759 = vpop.f32.mrf.mxu0
    %v6760 = vadd.f32 0.0, %v6759
    %v6761 = vpop.f32.mrf.mxu0
    %v6762 = vpop.f32.mrf.mxu0
    %v6763 = vadd.f32 0.0, %v6762
    %v6764 = vpop.f32.mrf.mxu0
    %6765 = vmatprep.mubr.bf16.mxu0 %v6579
    %6766 = vmatmul.mubr.bf16.gmra.mxu0 %v6421
    %v6767 = vpop.f32.mrf.mxu0
    %v6768 = vadd.f32 0.0, %v6767
    %v6769 = vpop.f32.mrf.mxu0
    %v6770 = vpop.f32.mrf.mxu0
    %v6771 = vadd.f32 0.0, %v6770
    %v6772 = vpop.f32.mrf.mxu0
    %6773 = vmatprep.mubr.bf16.mxu0 %v6582
    %6774 = vmatmul.mubr.bf16.gmra.mxu0 %v6423
    %v6775 = vpop.f32.mrf.mxu0
    %v6776 = vadd.f32 0.0, %v6775
    %v6777 = vpop.f32.mrf.mxu0
    %v6778 = vpop.f32.mrf.mxu0
    %v6779 = vadd.f32 0.0, %v6778
    %v6780 = vpop.f32.mrf.mxu0
    %6781 = vmatprep.mubr.bf16.mxu0 %v6585
    %6782 = vmatmul.mubr.bf16.gmra.mxu0 %v6425
    %v6783 = vpop.f32.mrf.mxu0
    %v6784 = vadd.f32 0.0, %v6783
    %v6785 = vpop.f32.mrf.mxu0
    %v6786 = vpop.f32.mrf.mxu0
    %v6787 = vadd.f32 0.0, %v6786
    %v6788 = vpop.f32.mrf.mxu0
    %6789 = vmatprep.mubr.bf16.mxu0 %v6588
    %6790 = vmatmul.mubr.bf16.gmra.mxu0 %v6427
    %v6791 = vpop.f32.mrf.mxu0
    %v6792 = vadd.f32 0.0, %v6791
    %v6793 = vpop.f32.mrf.mxu0
    %v6794 = vpop.f32.mrf.mxu0
    %v6795 = vadd.f32 0.0, %v6794
    %v6796 = vpop.f32.mrf.mxu0
    %6797 = vmatprep.mubr.bf16.mxu0 %v6591
    %6798 = vmatmul.mubr.bf16.gmra.mxu0 %v6429
    %v6799 = vpop.f32.mrf.mxu0
    %v6800 = vadd.f32 0.0, %v6799
    %v6801 = vpop.f32.mrf.mxu0
    %v6802 = vpop.f32.mrf.mxu0
    %v6803 = vadd.f32 0.0, %v6802
    %v6804 = vpop.f32.mrf.mxu0
    %6805 = vmatprep.mubr.bf16.mxu0 %v6594
    %6806 = vmatmul.mubr.bf16.gmra.mxu0 %v6431
    %v6807 = vpop.f32.mrf.mxu0
    %v6808 = vadd.f32 0.0, %v6807
    %v6809 = vpop.f32.mrf.mxu0
    %v6810 = vpop.f32.mrf.mxu0
    %v6811 = vadd.f32 0.0, %v6810
    %v6812 = vpop.f32.mrf.mxu0
    %6813 = vmatprep.mubr.bf16.mxu0 %v6597
    %6814 = vmatmul.mubr.bf16.gmra.mxu0 %v6433
    %v6815 = vpop.f32.mrf.mxu0
    %v6816 = vadd.f32 0.0, %v6815
    %v6817 = vpop.f32.mrf.mxu0
    %v6818 = vpop.f32.mrf.mxu0
    %v6819 = vadd.f32 0.0, %v6818
    %v6820 = vpop.f32.mrf.mxu0
    %6821 = vmatprep.mubr.bf16.mxu0 %v6600
    %6822 = vmatmul.mubr.bf16.gmra.mxu0 %v6435
    %v6823 = vpop.f32.mrf.mxu0
    %v6824 = vadd.f32 0.0, %v6823
    %v6825 = vpop.f32.mrf.mxu0
    %v6826 = vpop.f32.mrf.mxu0
    %v6827 = vadd.f32 0.0, %v6826
    %v6828 = vpop.f32.mrf.mxu0
    %6829 = vmatprep.mubr.bf16.mxu0 %v6603
    %6830 = vmatmul.mubr.bf16.gmra.mxu0 %v6437
    %v6831 = vpop.f32.mrf.mxu0
    %v6832 = vadd.f32 0.0, %v6831
    %v6833 = vpop.f32.mrf.mxu0
    %v6834 = vpop.f32.mrf.mxu0
    %v6835 = vadd.f32 0.0, %v6834
    %v6836 = vpop.f32.mrf.mxu0
    %6837 = vdwg.mxu0
    %v6838 = vadd.f32 %v5968, %v6640
    %v6839 = vadd.f32 %v5971, %v6643
    %v6840 = vadd.f32 %v5976, %v6648
    %v6841 = vadd.f32 %v5979, %v6651
    %v6842 = vadd.f32 %v5984, %v6656
    %v6843 = vadd.f32 %v5987, %v6659
    %v6844 = vadd.f32 %v5992, %v6664
    %v6845 = vadd.f32 %v5995, %v6667
    %v6846 = vadd.f32 %v6000, %v6672
    %v6847 = vadd.f32 %v6003, %v6675
    %v6848 = vadd.f32 %v6008, %v6680
    %v6849 = vadd.f32 %v6011, %v6683
    %v6850 = vadd.f32 %v6016, %v6688
    %v6851 = vadd.f32 %v6019, %v6691
    %v6852 = vadd.f32 %v6024, %v6696
    %v6853 = vadd.f32 %v6027, %v6699
    %v6854 = vadd.f32 %v6032, %v6704
    %v6855 = vadd.f32 %v6035, %v6707
    %v6856 = vadd.f32 %v6040, %v6712
    %v6857 = vadd.f32 %v6043, %v6715
    %v6858 = vadd.f32 %v6048, %v6720
    %v6859 = vadd.f32 %v6051, %v6723
    %v6860 = vadd.f32 %v6056, %v6728
    %v6861 = vadd.f32 %v6059, %v6731
    %v6862 = vadd.f32 %v6064, %v6736
    %v6863 = vadd.f32 %v6067, %v6739
    %v6864 = vadd.f32 %v6072, %v6744
    %v6865 = vadd.f32 %v6075, %v6747
    %v6866 = vadd.f32 %v6080, %v6752
    %v6867 = vadd.f32 %v6083, %v6755
    %v6868 = vadd.f32 %v6088, %v6760
    %v6869 = vadd.f32 %v6091, %v6763
    %v6870 = vadd.f32 %v6096, %v6768
    %v6871 = vadd.f32 %v6099, %v6771
    %v6872 = vadd.f32 %v6104, %v6776
    %v6873 = vadd.f32 %v6107, %v6779
    %v6874 = vadd.f32 %v6112, %v6784
    %v6875 = vadd.f32 %v6115, %v6787
    %v6876 = vadd.f32 %v6120, %v6792
    %v6877 = vadd.f32 %v6123, %v6795
    %v6878 = vadd.f32 %v6128, %v6800
    %v6879 = vadd.f32 %v6131, %v6803
    %v6880 = vadd.f32 %v6136, %v6808
    %v6881 = vadd.f32 %v6139, %v6811
    %v6882 = vadd.f32 %v6144, %v6816
    %v6883 = vadd.f32 %v6147, %v6819
    %v6884 = vadd.f32 %v6152, %v6824
    %v6885 = vadd.f32 %v6155, %v6827
    %v6886 = vadd.f32 %v6160, %v6832
    %v6887 = vadd.f32 %v6163, %v6835
    %v6888 = vld [vmem:[#allocation4 + $0x30] sm:$0xff]
    %v6889 = vld [vmem:[#allocation4 + $0x38] sm:$0xff]
    %v6890 = vld [vmem:[#allocation4 + $0x40] sm:$0xff]
    %v6891 = vld [vmem:[#allocation4 + $0x48] sm:$0xff]
    %v6892 = vld [vmem:[#allocation4 + $0x50] sm:$0xff]
    %v6893 = vld [vmem:[#allocation4 + $0x58] sm:$0xff]
    %v6894 = vld [vmem:[#allocation4 + $0x60] sm:$0xff]
    %v6895 = vld [vmem:[#allocation4 + $0x68] sm:$0xff]
    %v6896 = vld [vmem:[#allocation4 + $0x70] sm:$0xff]
    %v6897 = vld [vmem:[#allocation4 + $0x78] sm:$0xff]
    %v6898 = vld [vmem:[#allocation4 + $0x80] sm:$0xff]
    %v6899 = vld [vmem:[#allocation4 + $0x88] sm:$0xff]
    %v6900 = vld [vmem:[#allocation4 + $0x90] sm:$0xff]
    %v6901 = vld [vmem:[#allocation4 + $0x98] sm:$0xff]
    %v6902 = vld [vmem:[#allocation4 + $0xa0] sm:$0xff]
    %v6903 = vld [vmem:[#allocation4 + $0xa8] sm:$0xff]
    %v6904 = vld [vmem:[#allocation4 + $0xb0] sm:$0xff]
    %v6905 = vld [vmem:[#allocation4 + $0xb8] sm:$0xff]
    %v6906 = vld [vmem:[#allocation4 + $0xc0] sm:$0xff]
    %v6907 = vld [vmem:[#allocation4 + $0xc8] sm:$0xff]
    %v6908 = vld [vmem:[#allocation4 + $0xd0] sm:$0xff]
    %v6909 = vld [vmem:[#allocation4 + $0xd8] sm:$0xff]
    %v6910 = vld [vmem:[#allocation4 + $0xe0] sm:$0xff]
    %v6911 = vld [vmem:[#allocation4 + $0xe8] sm:$0xff]
    %v6912 = vld [vmem:[#allocation4 + $0xf0] sm:$0xff]
    %v6913 = vld [vmem:[#allocation4 + $0xf8] sm:$0xff]
    %v6914 = vld [vmem:[#allocation4 + $0x100] sm:$0xff]
    %v6915 = vld [vmem:[#allocation4 + $0x108] sm:$0xff]
    %v6916 = vld [vmem:[#allocation4 + $0x110] sm:$0xff]
    %v6917 = vld [vmem:[#allocation4 + $0x118] sm:$0xff]
    %v6918 = vld [vmem:[#allocation4 + $0x120] sm:$0xff]
    %v6919 = vld [vmem:[#allocation4 + $0x128] sm:$0xff]
    %v6920 = vld [vmem:[#allocation4 + $0x130] sm:$0xff]
    %v6921 = vld [vmem:[#allocation4 + $0x138] sm:$0xff]
    %v6922 = vld [vmem:[#allocation4 + $0x140] sm:$0xff]
    %v6923 = vld [vmem:[#allocation4 + $0x148] sm:$0xff]
    %v6924 = vld [vmem:[#allocation4 + $0x150] sm:$0xff]
    %v6925 = vld [vmem:[#allocation4 + $0x158] sm:$0xff]
    %v6926 = vld [vmem:[#allocation4 + $0x160] sm:$0xff]
    %v6927 = vld [vmem:[#allocation4 + $0x168] sm:$0xff]
    %v6928 = vld [vmem:[#allocation4 + $0x170] sm:$0xff]
    %v6929 = vld [vmem:[#allocation4 + $0x178] sm:$0xff]
    %v6930 = vld [vmem:[#allocation4 + $0x180] sm:$0xff]
    %v6931 = vld [vmem:[#allocation4 + $0x188] sm:$0xff]
    %v6932 = vld [vmem:[#allocation4 + $0x190] sm:$0xff]
    %v6933 = vld [vmem:[#allocation4 + $0x198] sm:$0xff]
    %v6934 = vld [vmem:[#allocation4 + $0x1a0] sm:$0xff]
    %v6935 = vld [vmem:[#allocation4 + $0x1a8] sm:$0xff]
    %v6936 = vld [vmem:[#allocation4 + $0x1b0] sm:$0xff]
    %v6937 = vld [vmem:[#allocation4 + $0x1b8] sm:$0xff]
    %s6938 = scalar_lea.vmem %s10, 264
    %v6939 = vld [vmem:[%s6938] sm:$0xf]
    %v6940 = vld [vmem:[%s6938 + $0x4] sm:$0xf]
    %v6941 = vld [vmem:[%s6938 + $0x8] sm:$0xf]
    %v6942 = vld [vmem:[%s6938 + $0xc] sm:$0xf]
    %v6943 = vld [vmem:[%s6938 + $0x10] sm:$0xf]
    %v6944 = vld [vmem:[%s6938 + $0x14] sm:$0xf]
    %v6945 = vld [vmem:[%s6938 + $0x18] sm:$0xf]
    %v6946 = vld [vmem:[%s6938 + $0x1c] sm:$0xf]
    %v6947 = vld [vmem:[%s6938 + $0x20] sm:$0xf]
    %v6948 = vld [vmem:[%s6938 + $0x24] sm:$0xf]
    %v6949 = vld [vmem:[%s6938 + $0x28] sm:$0xf]
    %v6950 = vld [vmem:[%s6938 + $0x2c] sm:$0xf]
    %v6951 = vld [vmem:[%s6938 + $0x30] sm:$0xf]
    %v6952 = vld [vmem:[%s6938 + $0x34] sm:$0xf]
    %v6953 = vld [vmem:[%s6938 + $0x38] sm:$0xf]
    %v6954 = vld [vmem:[%s6938 + $0x3c] sm:$0xf]
    %v6955 = vld [vmem:[%s6938 + $0x40] sm:$0xf]
    %v6956 = vld [vmem:[%s6938 + $0x44] sm:$0xf]
    %v6957 = vld [vmem:[%s6938 + $0x48] sm:$0xf]
    %v6958 = vld [vmem:[%s6938 + $0x4c] sm:$0xf]
    %v6959 = vld [vmem:[%s6938 + $0x50] sm:$0xf]
    %v6960 = vld [vmem:[%s6938 + $0x54] sm:$0xf]
    %v7011 = vunpack.c.l.b16 %v6888
    %v7012 = vunpack.c.h.b16 %v6888
    %v7013 = vunpack.c.l.b16 %v6889
    %v7014 = vunpack.c.h.b16 %v6889
    %v7015 = vunpack.c.l.b16 %v6890
    %v7016 = vunpack.c.h.b16 %v6890
    %v7017 = vunpack.c.l.b16 %v6891
    %v7018 = vunpack.c.h.b16 %v6891
    %v7019 = vunpack.c.l.b16 %v6892
    %v7020 = vunpack.c.h.b16 %v6892
    %v7021 = vunpack.c.l.b16 %v6893
    %v7022 = vunpack.c.h.b16 %v6893
    %v7023 = vunpack.c.l.b16 %v6894
    %v7024 = vunpack.c.h.b16 %v6894
    %v7025 = vunpack.c.l.b16 %v6895
    %v7026 = vunpack.c.h.b16 %v6895
    %v7027 = vunpack.c.l.b16 %v6896
    %v7028 = vunpack.c.h.b16 %v6896
    %v7029 = vunpack.c.l.b16 %v6897
    %v7030 = vunpack.c.h.b16 %v6897
    %v7031 = vunpack.c.l.b16 %v6898
    %v7032 = vunpack.c.h.b16 %v6898
    %v7033 = vunpack.c.l.b16 %v6899
    %v7034 = vunpack.c.h.b16 %v6899
    %v7035 = vunpack.c.l.b16 %v6900
    %v7036 = vunpack.c.h.b16 %v6900
    %v7037 = vunpack.c.l.b16 %v6901
    %v7038 = vunpack.c.h.b16 %v6901
    %v7039 = vunpack.c.l.b16 %v6902
    %v7040 = vunpack.c.h.b16 %v6902
    %v7041 = vunpack.c.l.b16 %v6903
    %v7042 = vunpack.c.h.b16 %v6903
    %v7043 = vunpack.c.l.b16 %v6904
    %v7044 = vunpack.c.h.b16 %v6904
    %v7045 = vunpack.c.l.b16 %v6905
    %v7046 = vunpack.c.h.b16 %v6905
    %v7047 = vunpack.c.l.b16 %v6906
    %v7048 = vunpack.c.h.b16 %v6906
    %v7049 = vunpack.c.l.b16 %v6907
    %v7050 = vunpack.c.h.b16 %v6907
    %v7051 = vunpack.c.l.b16 %v6908
    %v7052 = vunpack.c.h.b16 %v6908
    %v7053 = vunpack.c.l.b16 %v6909
    %v7054 = vunpack.c.h.b16 %v6909
    %v7055 = vunpack.c.l.b16 %v6910
    %v7056 = vunpack.c.h.b16 %v6910
    %v7057 = vunpack.c.l.b16 %v6911
    %v7058 = vunpack.c.h.b16 %v6911
    %v7059 = vunpack.c.l.b16 %v6912
    %v7060 = vunpack.c.h.b16 %v6912
    %v7061 = vunpack.c.l.b16 %v6913
    %v7062 = vunpack.c.h.b16 %v6913
    %v7063 = vunpack.c.l.b16 %v6914
    %v7064 = vunpack.c.h.b16 %v6914
    %v7065 = vunpack.c.l.b16 %v6915
    %v7066 = vunpack.c.h.b16 %v6915
    %v7067 = vunpack.c.l.b16 %v6916
    %v7068 = vunpack.c.h.b16 %v6916
    %v7069 = vunpack.c.l.b16 %v6917
    %v7070 = vunpack.c.h.b16 %v6917
    %v7071 = vunpack.c.l.b16 %v6918
    %v7072 = vunpack.c.h.b16 %v6918
    %v7073 = vunpack.c.l.b16 %v6919
    %v7074 = vunpack.c.h.b16 %v6919
    %v7075 = vunpack.c.l.b16 %v6920
    %v7076 = vunpack.c.h.b16 %v6920
    %v7077 = vunpack.c.l.b16 %v6921
    %v7078 = vunpack.c.h.b16 %v6921
    %v7079 = vunpack.c.l.b16 %v6922
    %v7080 = vunpack.c.h.b16 %v6922
    %v7081 = vunpack.c.l.b16 %v6923
    %v7082 = vunpack.c.h.b16 %v6923
    %v7083 = vunpack.c.l.b16 %v6924
    %v7084 = vunpack.c.h.b16 %v6924
    %v7085 = vunpack.c.l.b16 %v6925
    %v7086 = vunpack.c.h.b16 %v6925
    %v7087 = vunpack.c.l.b16 %v6926
    %v7088 = vunpack.c.h.b16 %v6926
    %v7089 = vunpack.c.l.b16 %v6927
    %v7090 = vunpack.c.h.b16 %v6927
    %v7091 = vunpack.c.l.b16 %v6928
    %v7092 = vunpack.c.h.b16 %v6928
    %v7093 = vunpack.c.l.b16 %v6929
    %v7094 = vunpack.c.h.b16 %v6929
    %v7095 = vunpack.c.l.b16 %v6930
    %v7096 = vunpack.c.h.b16 %v6930
    %v7097 = vunpack.c.l.b16 %v6931
    %v7098 = vunpack.c.h.b16 %v6931
    %v7099 = vunpack.c.l.b16 %v6932
    %v7100 = vunpack.c.h.b16 %v6932
    %v7101 = vunpack.c.l.b16 %v6933
    %v7102 = vunpack.c.h.b16 %v6933
    %v7103 = vunpack.c.l.b16 %v6934
    %v7104 = vunpack.c.h.b16 %v6934
    %v7105 = vunpack.c.l.b16 %v6935
    %v7106 = vunpack.c.h.b16 %v6935
    %v7107 = vunpack.c.l.b16 %v6936
    %v7108 = vunpack.c.h.b16 %v6936
    %v7109 = vunpack.c.l.b16 %v6937
    %v7110 = vunpack.c.h.b16 %v6937
    %v7111 = vpack.c.b16 %v7013, %v7011
    %v7112 = vpack.c.b16 %v7014, %v7012
    %v7113 = vpack.c.b16 %v7017, %v7015
    %v7114 = vpack.c.b16 %v7018, %v7016
    %v7115 = vpack.c.b16 %v7021, %v7019
    %v7116 = vpack.c.b16 %v7022, %v7020
    %v7117 = vpack.c.b16 %v7025, %v7023
    %v7118 = vpack.c.b16 %v7026, %v7024
    %v7119 = vpack.c.b16 %v7029, %v7027
    %v7120 = vpack.c.b16 %v7030, %v7028
    %v7121 = vpack.c.b16 %v7033, %v7031
    %v7122 = vpack.c.b16 %v7034, %v7032
    %v7123 = vpack.c.b16 %v7037, %v7035
    %v7124 = vpack.c.b16 %v7038, %v7036
    %v7125 = vpack.c.b16 %v7041, %v7039
    %v7126 = vpack.c.b16 %v7042, %v7040
    %v7127 = vpack.c.b16 %v7045, %v7043
    %v7128 = vpack.c.b16 %v7046, %v7044
    %v7129 = vpack.c.b16 %v7049, %v7047
    %v7130 = vpack.c.b16 %v7050, %v7048
    %v7131 = vpack.c.b16 %v7053, %v7051
    %v7132 = vpack.c.b16 %v7054, %v7052
    %v7133 = vpack.c.b16 %v7057, %v7055
    %v7134 = vpack.c.b16 %v7058, %v7056
    %v7135 = vpack.c.b16 %v7061, %v7059
    %v7136 = vpack.c.b16 %v7062, %v7060
    %v7137 = vpack.c.b16 %v7065, %v7063
    %v7138 = vpack.c.b16 %v7066, %v7064
    %v7139 = vpack.c.b16 %v7069, %v7067
    %v7140 = vpack.c.b16 %v7070, %v7068
    %v7141 = vpack.c.b16 %v7073, %v7071
    %v7142 = vpack.c.b16 %v7074, %v7072
    %v7143 = vpack.c.b16 %v7077, %v7075
    %v7144 = vpack.c.b16 %v7078, %v7076
    %v7145 = vpack.c.b16 %v7081, %v7079
    %v7146 = vpack.c.b16 %v7082, %v7080
    %v7147 = vpack.c.b16 %v7085, %v7083
    %v7148 = vpack.c.b16 %v7086, %v7084
    %v7149 = vpack.c.b16 %v7089, %v7087
    %v7150 = vpack.c.b16 %v7090, %v7088
    %v7151 = vpack.c.b16 %v7093, %v7091
    %v7152 = vpack.c.b16 %v7094, %v7092
    %v7153 = vpack.c.b16 %v7097, %v7095
    %v7154 = vpack.c.b16 %v7098, %v7096
    %v7155 = vpack.c.b16 %v7101, %v7099
    %v7156 = vpack.c.b16 %v7102, %v7100
    %v7157 = vpack.c.b16 %v7105, %v7103
    %v7158 = vpack.c.b16 %v7106, %v7104
    %v7159 = vpack.c.b16 %v7109, %v7107
    %v7160 = vpack.c.b16 %v7110, %v7108
    %v7208 = vunpack.c.l.b16 %v6939
    %v7209 = vunpack.c.l.b16 %v6940
    %v7210 = vunpack.c.l.b16 %v6941
    %v7211 = vunpack.c.l.b16 %v6942
    %v7212 = vunpack.c.l.b16 %v6943
    %v7213 = vunpack.c.l.b16 %v6944
    %v7214 = vunpack.c.l.b16 %v6945
    %v7215 = vunpack.c.l.b16 %v6946
    %v7216 = vunpack.c.l.b16 %v6947
    %v7217 = vunpack.c.l.b16 %v6948
    %v7218 = vunpack.c.l.b16 %v6949
    %v7219 = vunpack.c.l.b16 %v6950
    %v7220 = vunpack.c.l.b16 %v6951
    %v7221 = vunpack.c.l.b16 %v6952
    %v7222 = vunpack.c.l.b16 %v6953
    %v7223 = vunpack.c.l.b16 %v6954
    %v7224 = vunpack.c.l.b16 %v6955
    %v7225 = vunpack.c.l.b16 %v6956
    %v7226 = vunpack.c.l.b16 %v6957
    %v7227 = vunpack.c.l.b16 %v6958
    %v7228 = vunpack.c.l.b16 %v6959
    %v7229 = vunpack.c.l.b16 %v6960
    %v7230 = vpack.c.b16 %v7209, %v7208
    %v7231 = vpack.c.b16 %v7211, %v7210
    %v7232 = vpack.c.b16 %v7213, %v7212
    %v7233 = vpack.c.b16 %v7215, %v7214
    %v7234 = vpack.c.b16 %v7217, %v7216
    %v7235 = vpack.c.b16 %v7219, %v7218
    %v7236 = vpack.c.b16 %v7221, %v7220
    %v7237 = vpack.c.b16 %v7223, %v7222
    %v7238 = vpack.c.b16 %v7225, %v7224
    %v7239 = vpack.c.b16 %v7227, %v7226
    %v7240 = vpack.c.b16 %v7229, %v7228
    %v7253 = vsel %vm5546, %v7112, 0
    %v7256 = vsel %vm5546, %v7114, 0
    %v7259 = vsel %vm5546, %v7116, 0
    %v7262 = vsel %vm5546, %v7118, 0
    %v7265 = vsel %vm5546, %v7120, 0
    %v7268 = vsel %vm5546, %v7122, 0
    %v7271 = vsel %vm5546, %v7124, 0
    %v7274 = vsel %vm5546, %v7126, 0
    %v7277 = vsel %vm5546, %v7128, 0
    %v7280 = vsel %vm5546, %v7130, 0
    %v7283 = vsel %vm5546, %v7132, 0
    %v7286 = vsel %vm5546, %v7134, 0
    %v7289 = vsel %vm5546, %v7136, 0
    %v7292 = vsel %vm5546, %v7138, 0
    %v7295 = vsel %vm5546, %v7140, 0
    %v7298 = vsel %vm5546, %v7142, 0
    %v7301 = vsel %vm5546, %v7144, 0
    %v7304 = vsel %vm5546, %v7146, 0
    %v7307 = vsel %vm5546, %v7148, 0
    %v7310 = vsel %vm5546, %v7150, 0
    %v7313 = vsel %vm5546, %v7152, 0
    %v7316 = vsel %vm5546, %v7154, 0
    %v7319 = vsel %vm5546, %v7156, 0
    %v7322 = vsel %vm5546, %v7158, 0
    %v7325 = vsel %vm5546, %v7160, 0
    %7327 = vmatprep.subr.bf16.mxu0 0
    %7328 = vmatpush1.bf16.msra.mxu0 %v7237
    %7329 = vmatprep.subr.bf16.mxu0 0
    %7330 = vmatpush1.bf16.msra.mxu0 %v7236
    %7331 = vmatprep.subr.bf16.mxu0 0
    %7332 = vmatpush1.bf16.msra.mxu0 %v7235
    %7333 = vmatprep.subr.bf16.mxu0 0
    %7334 = vmatpush1.bf16.msra.mxu0 %v7234
    %7335 = vmatprep.subr.bf16.mxu0 0
    %7336 = vmatpush1.bf16.msra.mxu0 %v7233
    %7337 = vmatprep.subr.bf16.mxu0 0
    %7338 = vmatpush1.bf16.msra.mxu0 %v7232
    %7339 = vmatprep.subr.bf16.mxu0 0
    %7340 = vmatpush1.bf16.msra.mxu0 %v7231
    %7341 = vmatprep.subr.bf16.mxu0 0
    %7342 = vmatpush1.bf16.msra.mxu0 %v7230
    %7343 = vmatprep.subr.bf16.mxu0 0
    %7344 = vmatpush2.bf16.msra.mxu0 0
    %7345 = vmatprep.subr.bf16.mxu0 0
    %7346 = vmatpush2.bf16.msra.mxu0 0
    %7347 = vmatprep.subr.bf16.mxu0 0
    %7348 = vmatpush2.bf16.msra.mxu0 0
    %7349 = vmatprep.subr.bf16.mxu0 0
    %7350 = vmatpush2.bf16.msra.mxu0 0
    %7351 = vmatprep.subr.bf16.mxu0 0
    %7352 = vmatpush2.bf16.msra.mxu0 0
    %7353 = vmatprep.subr.bf16.mxu0 0
    %7354 = vmatpush2.bf16.msra.mxu0 %v7240
    %7355 = vmatprep.subr.bf16.mxu0 0
    %7356 = vmatpush2.bf16.msra.mxu0 %v7239
    %7357 = vmatprep.subr.bf16.mxu0 0
    %7358 = vmatpush2.bf16.msra.mxu0 %v7238
    %7359 = vmatprep.mubr.bf16.mxu0 %v7253
    %7360 = vmatmul.mubr.bf16.gmra.mxu0 %v7111
    %v7361 = vpop.f32.mrf.mxu0
    %v7362 = vadd.f32 0.0, %v7361
    %v7363 = vpop.f32.mrf.mxu0
    %v7364 = vpop.f32.mrf.mxu0
    %v7365 = vadd.f32 0.0, %v7364
    %v7366 = vpop.f32.mrf.mxu0
    %7367 = vmatprep.mubr.bf16.mxu0 %v7256
    %7368 = vmatmul.mubr.bf16.gmra.mxu0 %v7113
    %v7369 = vpop.f32.mrf.mxu0
    %v7370 = vadd.f32 0.0, %v7369
    %v7371 = vpop.f32.mrf.mxu0
    %v7372 = vpop.f32.mrf.mxu0
    %v7373 = vadd.f32 0.0, %v7372
    %v7374 = vpop.f32.mrf.mxu0
    %7375 = vmatprep.mubr.bf16.mxu0 %v7259
    %7376 = vmatmul.mubr.bf16.gmra.mxu0 %v7115
    %v7377 = vpop.f32.mrf.mxu0
    %v7378 = vadd.f32 0.0, %v7377
    %v7379 = vpop.f32.mrf.mxu0
    %v7380 = vpop.f32.mrf.mxu0
    %v7381 = vadd.f32 0.0, %v7380
    %v7382 = vpop.f32.mrf.mxu0
    %7383 = vmatprep.mubr.bf16.mxu0 %v7262
    %7384 = vmatmul.mubr.bf16.gmra.mxu0 %v7117
    %v7385 = vpop.f32.mrf.mxu0
    %v7386 = vadd.f32 0.0, %v7385
    %v7387 = vpop.f32.mrf.mxu0
    %v7388 = vpop.f32.mrf.mxu0
    %v7389 = vadd.f32 0.0, %v7388
    %v7390 = vpop.f32.mrf.mxu0
    %7391 = vmatprep.mubr.bf16.mxu0 %v7265
    %7392 = vmatmul.mubr.bf16.gmra.mxu0 %v7119
    %v7393 = vpop.f32.mrf.mxu0
    %v7394 = vadd.f32 0.0, %v7393
    %v7395 = vpop.f32.mrf.mxu0
    %v7396 = vpop.f32.mrf.mxu0
    %v7397 = vadd.f32 0.0, %v7396
    %v7398 = vpop.f32.mrf.mxu0
    %7399 = vmatprep.mubr.bf16.mxu0 %v7268
    %7400 = vmatmul.mubr.bf16.gmra.mxu0 %v7121
    %v7401 = vpop.f32.mrf.mxu0
    %v7402 = vadd.f32 0.0, %v7401
    %v7403 = vpop.f32.mrf.mxu0
    %v7404 = vpop.f32.mrf.mxu0
    %v7405 = vadd.f32 0.0, %v7404
    %v7406 = vpop.f32.mrf.mxu0
    %7407 = vmatprep.mubr.bf16.mxu0 %v7271
    %7408 = vmatmul.mubr.bf16.gmra.mxu0 %v7123
    %v7409 = vpop.f32.mrf.mxu0
    %v7410 = vadd.f32 0.0, %v7409
    %v7411 = vpop.f32.mrf.mxu0
    %v7412 = vpop.f32.mrf.mxu0
    %v7413 = vadd.f32 0.0, %v7412
    %v7414 = vpop.f32.mrf.mxu0
    %7415 = vmatprep.mubr.bf16.mxu0 %v7274
    %7416 = vmatmul.mubr.bf16.gmra.mxu0 %v7125
    %v7417 = vpop.f32.mrf.mxu0
    %v7418 = vadd.f32 0.0, %v7417
    %v7419 = vpop.f32.mrf.mxu0
    %v7420 = vpop.f32.mrf.mxu0
    %v7421 = vadd.f32 0.0, %v7420
    %v7422 = vpop.f32.mrf.mxu0
    %7423 = vmatprep.mubr.bf16.mxu0 %v7277
    %7424 = vmatmul.mubr.bf16.gmra.mxu0 %v7127
    %v7425 = vpop.f32.mrf.mxu0
    %v7426 = vadd.f32 0.0, %v7425
    %v7427 = vpop.f32.mrf.mxu0
    %v7428 = vpop.f32.mrf.mxu0
    %v7429 = vadd.f32 0.0, %v7428
    %v7430 = vpop.f32.mrf.mxu0
    %7431 = vmatprep.mubr.bf16.mxu0 %v7280
    %7432 = vmatmul.mubr.bf16.gmra.mxu0 %v7129
    %v7433 = vpop.f32.mrf.mxu0
    %v7434 = vadd.f32 0.0, %v7433
    %v7435 = vpop.f32.mrf.mxu0
    %v7436 = vpop.f32.mrf.mxu0
    %v7437 = vadd.f32 0.0, %v7436
    %v7438 = vpop.f32.mrf.mxu0
    %7439 = vmatprep.mubr.bf16.mxu0 %v7283
    %7440 = vmatmul.mubr.bf16.gmra.mxu0 %v7131
    %v7441 = vpop.f32.mrf.mxu0
    %v7442 = vadd.f32 0.0, %v7441
    %v7443 = vpop.f32.mrf.mxu0
    %v7444 = vpop.f32.mrf.mxu0
    %v7445 = vadd.f32 0.0, %v7444
    %v7446 = vpop.f32.mrf.mxu0
    %7447 = vmatprep.mubr.bf16.mxu0 %v7286
    %7448 = vmatmul.mubr.bf16.gmra.mxu0 %v7133
    %v7449 = vpop.f32.mrf.mxu0
    %v7450 = vadd.f32 0.0, %v7449
    %v7451 = vpop.f32.mrf.mxu0
    %v7452 = vpop.f32.mrf.mxu0
    %v7453 = vadd.f32 0.0, %v7452
    %v7454 = vpop.f32.mrf.mxu0
    %7455 = vmatprep.mubr.bf16.mxu0 %v7289
    %7456 = vmatmul.mubr.bf16.gmra.mxu0 %v7135
    %v7457 = vpop.f32.mrf.mxu0
    %v7458 = vadd.f32 0.0, %v7457
    %v7459 = vpop.f32.mrf.mxu0
    %v7460 = vpop.f32.mrf.mxu0
    %v7461 = vadd.f32 0.0, %v7460
    %v7462 = vpop.f32.mrf.mxu0
    %7463 = vmatprep.mubr.bf16.mxu0 %v7292
    %7464 = vmatmul.mubr.bf16.gmra.mxu0 %v7137
    %v7465 = vpop.f32.mrf.mxu0
    %v7466 = vadd.f32 0.0, %v7465
    %v7467 = vpop.f32.mrf.mxu0
    %v7468 = vpop.f32.mrf.mxu0
    %v7469 = vadd.f32 0.0, %v7468
    %v7470 = vpop.f32.mrf.mxu0
    %7471 = vmatprep.mubr.bf16.mxu0 %v7295
    %7472 = vmatmul.mubr.bf16.gmra.mxu0 %v7139
    %v7473 = vpop.f32.mrf.mxu0
    %v7474 = vadd.f32 0.0, %v7473
    %v7475 = vpop.f32.mrf.mxu0
    %v7476 = vpop.f32.mrf.mxu0
    %v7477 = vadd.f32 0.0, %v7476
    %v7478 = vpop.f32.mrf.mxu0
    %7479 = vmatprep.mubr.bf16.mxu0 %v7298
    %7480 = vmatmul.mubr.bf16.gmra.mxu0 %v7141
    %v7481 = vpop.f32.mrf.mxu0
    %v7482 = vadd.f32 0.0, %v7481
    %v7483 = vpop.f32.mrf.mxu0
    %v7484 = vpop.f32.mrf.mxu0
    %v7485 = vadd.f32 0.0, %v7484
    %v7486 = vpop.f32.mrf.mxu0
    %7487 = vmatprep.mubr.bf16.mxu0 %v7301
    %7488 = vmatmul.mubr.bf16.gmra.mxu0 %v7143
    %v7489 = vpop.f32.mrf.mxu0
    %v7490 = vadd.f32 0.0, %v7489
    %v7491 = vpop.f32.mrf.mxu0
    %v7492 = vpop.f32.mrf.mxu0
    %v7493 = vadd.f32 0.0, %v7492
    %v7494 = vpop.f32.mrf.mxu0
    %7495 = vmatprep.mubr.bf16.mxu0 %v7304
    %7496 = vmatmul.mubr.bf16.gmra.mxu0 %v7145
    %v7497 = vpop.f32.mrf.mxu0
    %v7498 = vadd.f32 0.0, %v7497
    %v7499 = vpop.f32.mrf.mxu0
    %v7500 = vpop.f32.mrf.mxu0
    %v7501 = vadd.f32 0.0, %v7500
    %v7502 = vpop.f32.mrf.mxu0
    %7503 = vmatprep.mubr.bf16.mxu0 %v7307
    %7504 = vmatmul.mubr.bf16.gmra.mxu0 %v7147
    %v7505 = vpop.f32.mrf.mxu0
    %v7506 = vadd.f32 0.0, %v7505
    %v7507 = vpop.f32.mrf.mxu0
    %v7508 = vpop.f32.mrf.mxu0
    %v7509 = vadd.f32 0.0, %v7508
    %v7510 = vpop.f32.mrf.mxu0
    %7511 = vmatprep.mubr.bf16.mxu0 %v7310
    %7512 = vmatmul.mubr.bf16.gmra.mxu0 %v7149
    %v7513 = vpop.f32.mrf.mxu0
    %v7514 = vadd.f32 0.0, %v7513
    %v7515 = vpop.f32.mrf.mxu0
    %v7516 = vpop.f32.mrf.mxu0
    %v7517 = vadd.f32 0.0, %v7516
    %v7518 = vpop.f32.mrf.mxu0
    %7519 = vmatprep.mubr.bf16.mxu0 %v7313
    %7520 = vmatmul.mubr.bf16.gmra.mxu0 %v7151
    %v7521 = vpop.f32.mrf.mxu0
    %v7522 = vadd.f32 0.0, %v7521
    %v7523 = vpop.f32.mrf.mxu0
    %v7524 = vpop.f32.mrf.mxu0
    %v7525 = vadd.f32 0.0, %v7524
    %v7526 = vpop.f32.mrf.mxu0
    %7527 = vmatprep.mubr.bf16.mxu0 %v7316
    %7528 = vmatmul.mubr.bf16.gmra.mxu0 %v7153
    %v7529 = vpop.f32.mrf.mxu0
    %v7530 = vadd.f32 0.0, %v7529
    %v7531 = vpop.f32.mrf.mxu0
    %v7532 = vpop.f32.mrf.mxu0
    %v7533 = vadd.f32 0.0, %v7532
    %v7534 = vpop.f32.mrf.mxu0
    %7535 = vmatprep.mubr.bf16.mxu0 %v7319
    %7536 = vmatmul.mubr.bf16.gmra.mxu0 %v7155
    %v7537 = vpop.f32.mrf.mxu0
    %v7538 = vadd.f32 0.0, %v7537
    %v7539 = vpop.f32.mrf.mxu0
    %v7540 = vpop.f32.mrf.mxu0
    %v7541 = vadd.f32 0.0, %v7540
    %v7542 = vpop.f32.mrf.mxu0
    %7543 = vmatprep.mubr.bf16.mxu0 %v7322
    %7544 = vmatmul.mubr.bf16.gmra.mxu0 %v7157
    %v7545 = vpop.f32.mrf.mxu0
    %v7546 = vadd.f32 0.0, %v7545
    %v7547 = vpop.f32.mrf.mxu0
    %v7548 = vpop.f32.mrf.mxu0
    %v7549 = vadd.f32 0.0, %v7548
    %v7550 = vpop.f32.mrf.mxu0
    %7551 = vmatprep.mubr.bf16.mxu0 %v7325
    %7552 = vmatmul.mubr.bf16.gmra.mxu0 %v7159
    %v7553 = vpop.f32.mrf.mxu0
    %v7554 = vadd.f32 0.0, %v7553
    %v7555 = vpop.f32.mrf.mxu0
    %v7556 = vpop.f32.mrf.mxu0
    %v7557 = vadd.f32 0.0, %v7556
    %v7558 = vpop.f32.mrf.mxu0
    %7559 = vdwg.mxu0
    %v7560 = vadd.f32 %v6838, %v7362
    %v7561 = vadd.f32 %v6839, %v7365
    %v7562 = vadd.f32 %v6840, %v7370
    %v7563 = vadd.f32 %v6841, %v7373
    %v7564 = vadd.f32 %v6842, %v7378
    %v7565 = vadd.f32 %v6843, %v7381
    %v7566 = vadd.f32 %v6844, %v7386
    %v7567 = vadd.f32 %v6845, %v7389
    %v7568 = vadd.f32 %v6846, %v7394
    %v7569 = vadd.f32 %v6847, %v7397
    %v7570 = vadd.f32 %v6848, %v7402
    %v7571 = vadd.f32 %v6849, %v7405
    %v7572 = vadd.f32 %v6850, %v7410
    %v7573 = vadd.f32 %v6851, %v7413
    %v7574 = vadd.f32 %v6852, %v7418
    %v7575 = vadd.f32 %v6853, %v7421
    %v7576 = vadd.f32 %v6854, %v7426
    %v7577 = vadd.f32 %v6855, %v7429
    %v7578 = vadd.f32 %v6856, %v7434
    %v7579 = vadd.f32 %v6857, %v7437
    %v7580 = vadd.f32 %v6858, %v7442
    %v7581 = vadd.f32 %v6859, %v7445
    %v7582 = vadd.f32 %v6860, %v7450
    %v7583 = vadd.f32 %v6861, %v7453
    %v7584 = vadd.f32 %v6862, %v7458
    %v7585 = vadd.f32 %v6863, %v7461
    %v7586 = vadd.f32 %v6864, %v7466
    %v7587 = vadd.f32 %v6865, %v7469
    %v7588 = vadd.f32 %v6866, %v7474
    %v7589 = vadd.f32 %v6867, %v7477
    %v7590 = vadd.f32 %v6868, %v7482
    %v7591 = vadd.f32 %v6869, %v7485
    %v7592 = vadd.f32 %v6870, %v7490
    %v7593 = vadd.f32 %v6871, %v7493
    %v7594 = vadd.f32 %v6872, %v7498
    %v7595 = vadd.f32 %v6873, %v7501
    %v7596 = vadd.f32 %v6874, %v7506
    %v7597 = vadd.f32 %v6875, %v7509
    %v7598 = vadd.f32 %v6876, %v7514
    %v7599 = vadd.f32 %v6877, %v7517
    %v7600 = vadd.f32 %v6878, %v7522
    %v7601 = vadd.f32 %v6879, %v7525
    %v7602 = vadd.f32 %v6880, %v7530
    %v7603 = vadd.f32 %v6881, %v7533
    %v7604 = vadd.f32 %v6882, %v7538
    %v7605 = vadd.f32 %v6883, %v7541
    %v7606 = vadd.f32 %v6884, %v7546
    %v7607 = vadd.f32 %v6885, %v7549
    %v7608 = vadd.f32 %v6886, %v7554
    %v7609 = vadd.f32 %v6887, %v7557
    %v7610 = vld [vmem:[%s11] sm:$0x1]
    %v7612 = vlaneseq
    %v7613 = vshrl.u32 %v7612, 7
    %v7614 = vsub.s32 0, %v7613
    %v7615 = vrot.slane %v7610, %v7614
    %v7617 = vmul.f32 %v7560, %v7615
    %v7618 = vmul.f32 %v7561, %v7615
    %v7619 = vmul.f32 %v7562, %v7615
    %v7620 = vmul.f32 %v7563, %v7615
    %v7621 = vmul.f32 %v7564, %v7615
    %v7622 = vmul.f32 %v7565, %v7615
    %v7623 = vmul.f32 %v7566, %v7615
    %v7624 = vmul.f32 %v7567, %v7615
    %v7625 = vmul.f32 %v7568, %v7615
    %v7626 = vmul.f32 %v7569, %v7615
    %v7627 = vmul.f32 %v7570, %v7615
    %v7628 = vmul.f32 %v7571, %v7615
    %v7629 = vmul.f32 %v7572, %v7615
    %v7630 = vmul.f32 %v7573, %v7615
    %v7631 = vmul.f32 %v7574, %v7615
    %v7632 = vmul.f32 %v7575, %v7615
    %v7633 = vmul.f32 %v7576, %v7615
    %v7634 = vmul.f32 %v7577, %v7615
    %v7635 = vmul.f32 %v7578, %v7615
    %v7636 = vmul.f32 %v7579, %v7615
    %v7637 = vmul.f32 %v7580, %v7615
    %v7638 = vmul.f32 %v7581, %v7615
    %v7639 = vmul.f32 %v7582, %v7615
    %v7640 = vmul.f32 %v7583, %v7615
    %v7641 = vmul.f32 %v7584, %v7615
    %v7642 = vmul.f32 %v7585, %v7615
    %v7643 = vmul.f32 %v7586, %v7615
    %v7644 = vmul.f32 %v7587, %v7615
    %v7645 = vmul.f32 %v7588, %v7615
    %v7646 = vmul.f32 %v7589, %v7615
    %v7647 = vmul.f32 %v7590, %v7615
    %v7648 = vmul.f32 %v7591, %v7615
    %v7649 = vmul.f32 %v7592, %v7615
    %v7650 = vmul.f32 %v7593, %v7615
    %v7651 = vmul.f32 %v7594, %v7615
    %v7652 = vmul.f32 %v7595, %v7615
    %v7653 = vmul.f32 %v7596, %v7615
    %v7654 = vmul.f32 %v7597, %v7615
    %v7655 = vmul.f32 %v7598, %v7615
    %v7656 = vmul.f32 %v7599, %v7615
    %v7657 = vmul.f32 %v7600, %v7615
    %v7658 = vmul.f32 %v7601, %v7615
    %v7659 = vmul.f32 %v7602, %v7615
    %v7660 = vmul.f32 %v7603, %v7615
    %v7661 = vmul.f32 %v7604, %v7615
    %v7662 = vmul.f32 %v7605, %v7615
    %v7663 = vmul.f32 %v7606, %v7615
    %v7664 = vmul.f32 %v7607, %v7615
    %v7665 = vmul.f32 %v7608, %v7615
    %v7666 = vmul.f32 %v7609, %v7615
    %v7667 = vld [vmem:[%s12] sm:$0x1]
    %v7669 = vlaneseq
    %v7670 = vshrl.u32 %v7669, 7
    %v7671 = vsub.s32 0, %v7670
    %v7672 = vrot.slane %v7667, %v7671
    %v7674 = vadd.f32 %v7617, %v7672
    %v7675 = vadd.f32 %v7618, %v7672
    %v7676 = vadd.f32 %v7619, %v7672
    %v7677 = vadd.f32 %v7620, %v7672
    %v7678 = vadd.f32 %v7621, %v7672
    %v7679 = vadd.f32 %v7622, %v7672
    %v7680 = vadd.f32 %v7623, %v7672
    %v7681 = vadd.f32 %v7624, %v7672
    %v7682 = vadd.f32 %v7625, %v7672
    %v7683 = vadd.f32 %v7626, %v7672
    %v7684 = vadd.f32 %v7627, %v7672
    %v7685 = vadd.f32 %v7628, %v7672
    %v7686 = vadd.f32 %v7629, %v7672
    %v7687 = vadd.f32 %v7630, %v7672
    %v7688 = vadd.f32 %v7631, %v7672
    %v7689 = vadd.f32 %v7632, %v7672
    %v7690 = vadd.f32 %v7633, %v7672
    %v7691 = vadd.f32 %v7634, %v7672
    %v7692 = vadd.f32 %v7635, %v7672
    %v7693 = vadd.f32 %v7636, %v7672
    %v7694 = vadd.f32 %v7637, %v7672
    %v7695 = vadd.f32 %v7638, %v7672
    %v7696 = vadd.f32 %v7639, %v7672
    %v7697 = vadd.f32 %v7640, %v7672
    %v7698 = vadd.f32 %v7641, %v7672
    %v7699 = vadd.f32 %v7642, %v7672
    %v7700 = vadd.f32 %v7643, %v7672
    %v7701 = vadd.f32 %v7644, %v7672
    %v7702 = vadd.f32 %v7645, %v7672
    %v7703 = vadd.f32 %v7646, %v7672
    %v7704 = vadd.f32 %v7647, %v7672
    %v7705 = vadd.f32 %v7648, %v7672
    %v7706 = vadd.f32 %v7649, %v7672
    %v7707 = vadd.f32 %v7650, %v7672
    %v7708 = vadd.f32 %v7651, %v7672
    %v7709 = vadd.f32 %v7652, %v7672
    %v7710 = vadd.f32 %v7653, %v7672
    %v7711 = vadd.f32 %v7654, %v7672
    %v7712 = vadd.f32 %v7655, %v7672
    %v7713 = vadd.f32 %v7656, %v7672
    %v7714 = vadd.f32 %v7657, %v7672
    %v7715 = vadd.f32 %v7658, %v7672
    %v7716 = vadd.f32 %v7659, %v7672
    %v7717 = vadd.f32 %v7660, %v7672
    %v7718 = vadd.f32 %v7661, %v7672
    %v7719 = vadd.f32 %v7662, %v7672
    %v7720 = vadd.f32 %v7663, %v7672
    %v7721 = vadd.f32 %v7664, %v7672
    %v7722 = vadd.f32 %v7665, %v7672
    %v7723 = vadd.f32 %v7666, %v7672
    %v7724 = vmax.f32 %v7674, 0.0
    %v7725 = vmax.f32 %v7675, 0.0
    %v7726 = vmax.f32 %v7676, 0.0
    %v7727 = vmax.f32 %v7677, 0.0
    %v7728 = vmax.f32 %v7678, 0.0
    %v7729 = vmax.f32 %v7679, 0.0
    %v7730 = vmax.f32 %v7680, 0.0
    %v7731 = vmax.f32 %v7681, 0.0
    %v7732 = vmax.f32 %v7682, 0.0
    %v7733 = vmax.f32 %v7683, 0.0
    %v7734 = vmax.f32 %v7684, 0.0
    %v7735 = vmax.f32 %v7685, 0.0
    %v7736 = vmax.f32 %v7686, 0.0
    %v7737 = vmax.f32 %v7687, 0.0
    %v7738 = vmax.f32 %v7688, 0.0
    %v7739 = vmax.f32 %v7689, 0.0
    %v7740 = vmax.f32 %v7690, 0.0
    %v7741 = vmax.f32 %v7691, 0.0
    %v7742 = vmax.f32 %v7692, 0.0
    %v7743 = vmax.f32 %v7693, 0.0
    %v7744 = vmax.f32 %v7694, 0.0
    %v7745 = vmax.f32 %v7695, 0.0
    %v7746 = vmax.f32 %v7696, 0.0
    %v7747 = vmax.f32 %v7697, 0.0
    %v7748 = vmax.f32 %v7698, 0.0
    %v7749 = vmax.f32 %v7699, 0.0
    %v7750 = vmax.f32 %v7700, 0.0
    %v7751 = vmax.f32 %v7701, 0.0
    %v7752 = vmax.f32 %v7702, 0.0
    %v7753 = vmax.f32 %v7703, 0.0
    %v7754 = vmax.f32 %v7704, 0.0
    %v7755 = vmax.f32 %v7705, 0.0
    %v7756 = vmax.f32 %v7706, 0.0
    %v7757 = vmax.f32 %v7707, 0.0
    %v7758 = vmax.f32 %v7708, 0.0
    %v7759 = vmax.f32 %v7709, 0.0
    %v7760 = vmax.f32 %v7710, 0.0
    %v7761 = vmax.f32 %v7711, 0.0
    %v7762 = vmax.f32 %v7712, 0.0
    %v7763 = vmax.f32 %v7713, 0.0
    %v7764 = vmax.f32 %v7714, 0.0
    %v7765 = vmax.f32 %v7715, 0.0
    %v7766 = vmax.f32 %v7716, 0.0
    %v7767 = vmax.f32 %v7717, 0.0
    %v7768 = vmax.f32 %v7718, 0.0
    %v7769 = vmax.f32 %v7719, 0.0
    %v7770 = vmax.f32 %v7720, 0.0
    %v7771 = vmax.f32 %v7721, 0.0
    %v7772 = vmax.f32 %v7722, 0.0
    %v7773 = vmax.f32 %v7723, 0.0
    %vm7774 = vcmask 814080
    %7775 = vst.msk [vmem:[#allocation5] sm:$0xf] %vm7774, 0
    %7776 = vst.msk [vmem:[#allocation5 + $0x4] sm:$0xf] %vm7774, 0
    %7777 = vst.msk [vmem:[#allocation5 + $0x8] sm:$0xf] %vm7774, 0
    %7778 = vst.msk [vmem:[#allocation5 + $0xc] sm:$0xf] %vm7774, 0
    %7779 = vst.msk [vmem:[#allocation5 + $0x10] sm:$0xf] %vm7774, 0
    %7780 = vst.msk [vmem:[#allocation5 + $0x14] sm:$0xf] %vm7774, 0
    %7781 = vst.msk [vmem:[#allocation5 + $0xe0] sm:$0xf] %vm7774, 0
    %7782 = vst.msk [vmem:[#allocation5 + $0xe4] sm:$0xf] %vm7774, 0
    %7783 = vst.msk [vmem:[#allocation5 + $0xe8] sm:$0xf] %vm7774, 0
    %7784 = vst.msk [vmem:[#allocation5 + $0xec] sm:$0xf] %vm7774, 0
    %7785 = vst.msk [vmem:[#allocation5 + $0xf0] sm:$0xf] %vm7774, 0
    %7786 = vst.msk [vmem:[#allocation5 + $0xf4] sm:$0xf] %vm7774, 0
    %v7787 = vpack.c.bf16 %v7725, %v7724
    %v7788 = vpack.c.bf16 %v7727, %v7726
    %v7789 = vpack.c.bf16 %v7729, %v7728
    %v7790 = vpack.c.bf16 %v7731, %v7730
    %v7791 = vpack.c.bf16 %v7733, %v7732
    %v7792 = vpack.c.bf16 %v7735, %v7734
    %v7793 = vpack.c.bf16 %v7737, %v7736
    %v7794 = vpack.c.bf16 %v7739, %v7738
    %v7795 = vpack.c.bf16 %v7741, %v7740
    %v7796 = vpack.c.bf16 %v7743, %v7742
    %v7797 = vpack.c.bf16 %v7745, %v7744
    %v7798 = vpack.c.bf16 %v7747, %v7746
    %v7799 = vpack.c.bf16 %v7749, %v7748
    %v7800 = vpack.c.bf16 %v7751, %v7750
    %v7801 = vpack.c.bf16 %v7753, %v7752
    %v7802 = vpack.c.bf16 %v7755, %v7754
    %v7803 = vpack.c.bf16 %v7757, %v7756
    %v7804 = vpack.c.bf16 %v7759, %v7758
    %v7805 = vpack.c.bf16 %v7761, %v7760
    %v7806 = vpack.c.bf16 %v7763, %v7762
    %v7807 = vpack.c.bf16 %v7765, %v7764
    %v7808 = vpack.c.bf16 %v7767, %v7766
    %v7809 = vpack.c.bf16 %v7769, %v7768
    %v7810 = vpack.c.bf16 %v7771, %v7770
    %v7811 = vpack.c.bf16 %v7773, %v7772
    %v7837 = vunpack.c.l.b16 %v7787
    %v7838 = vunpack.c.h.b16 %v7787
    %v7839 = vunpack.c.l.b16 %v7788
    %v7840 = vunpack.c.h.b16 %v7788
    %v7841 = vunpack.c.l.b16 %v7789
    %v7842 = vunpack.c.h.b16 %v7789
    %v7843 = vunpack.c.l.b16 %v7790
    %v7844 = vunpack.c.h.b16 %v7790
    %v7845 = vunpack.c.l.b16 %v7791
    %v7846 = vunpack.c.h.b16 %v7791
    %v7847 = vunpack.c.l.b16 %v7792
    %v7848 = vunpack.c.h.b16 %v7792
    %v7849 = vunpack.c.l.b16 %v7793
    %v7850 = vunpack.c.h.b16 %v7793
    %v7851 = vunpack.c.l.b16 %v7794
    %v7852 = vunpack.c.h.b16 %v7794
    %v7853 = vunpack.c.l.b16 %v7795
    %v7854 = vunpack.c.h.b16 %v7795
    %v7855 = vunpack.c.l.b16 %v7796
    %v7856 = vunpack.c.h.b16 %v7796
    %v7857 = vunpack.c.l.b16 %v7797
    %v7858 = vunpack.c.h.b16 %v7797
    %v7859 = vunpack.c.l.b16 %v7798
    %v7860 = vunpack.c.h.b16 %v7798
    %v7861 = vunpack.c.l.b16 %v7799
    %v7862 = vunpack.c.h.b16 %v7799
    %v7863 = vunpack.c.l.b16 %v7800
    %v7864 = vunpack.c.h.b16 %v7800
    %v7865 = vunpack.c.l.b16 %v7801
    %v7866 = vunpack.c.h.b16 %v7801
    %v7867 = vunpack.c.l.b16 %v7802
    %v7868 = vunpack.c.h.b16 %v7802
    %v7869 = vunpack.c.l.b16 %v7803
    %v7870 = vunpack.c.h.b16 %v7803
    %v7871 = vunpack.c.l.b16 %v7804
    %v7872 = vunpack.c.h.b16 %v7804
    %v7873 = vunpack.c.l.b16 %v7805
    %v7874 = vunpack.c.h.b16 %v7805
    %v7875 = vunpack.c.l.b16 %v7806
    %v7876 = vunpack.c.h.b16 %v7806
    %v7877 = vunpack.c.l.b16 %v7807
    %v7878 = vunpack.c.h.b16 %v7807
    %v7879 = vunpack.c.l.b16 %v7808
    %v7880 = vunpack.c.h.b16 %v7808
    %v7881 = vunpack.c.l.b16 %v7809
    %v7882 = vunpack.c.h.b16 %v7809
    %v7883 = vunpack.c.l.b16 %v7810
    %v7884 = vunpack.c.h.b16 %v7810
    %v7885 = vunpack.c.l.b16 %v7811
    %v7886 = vunpack.c.h.b16 %v7811
    %v7887 = vpack.c.b16 %v7837, %v7837
    %v7888 = vpack.c.b16 %v7838, %v7838
    %v7889 = vpack.c.b16 %v7839, %v7839
    %v7890 = vpack.c.b16 %v7840, %v7840
    %v7891 = vpack.c.b16 %v7841, %v7841
    %v7892 = vpack.c.b16 %v7842, %v7842
    %v7893 = vpack.c.b16 %v7843, %v7843
    %v7894 = vpack.c.b16 %v7844, %v7844
    %v7895 = vpack.c.b16 %v7845, %v7845
    %v7896 = vpack.c.b16 %v7846, %v7846
    %v7897 = vpack.c.b16 %v7847, %v7847
    %v7898 = vpack.c.b16 %v7848, %v7848
    %v7899 = vpack.c.b16 %v7849, %v7849
    %v7900 = vpack.c.b16 %v7850, %v7850
    %v7901 = vpack.c.b16 %v7851, %v7851
    %v7902 = vpack.c.b16 %v7852, %v7852
    %v7903 = vpack.c.b16 %v7853, %v7853
    %v7904 = vpack.c.b16 %v7854, %v7854
    %v7905 = vpack.c.b16 %v7855, %v7855
    %v7906 = vpack.c.b16 %v7856, %v7856
    %v7907 = vpack.c.b16 %v7857, %v7857
    %v7908 = vpack.c.b16 %v7858, %v7858
    %v7909 = vpack.c.b16 %v7859, %v7859
    %v7910 = vpack.c.b16 %v7860, %v7860
    %v7911 = vpack.c.b16 %v7861, %v7861
    %v7912 = vpack.c.b16 %v7862, %v7862
    %v7913 = vpack.c.b16 %v7863, %v7863
    %v7914 = vpack.c.b16 %v7864, %v7864
    %v7915 = vpack.c.b16 %v7865, %v7865
    %v7916 = vpack.c.b16 %v7866, %v7866
    %v7917 = vpack.c.b16 %v7867, %v7867
    %v7918 = vpack.c.b16 %v7868, %v7868
    %v7919 = vpack.c.b16 %v7869, %v7869
    %v7920 = vpack.c.b16 %v7870, %v7870
    %v7921 = vpack.c.b16 %v7871, %v7871
    %v7922 = vpack.c.b16 %v7872, %v7872
    %v7923 = vpack.c.b16 %v7873, %v7873
    %v7924 = vpack.c.b16 %v7874, %v7874
    %v7925 = vpack.c.b16 %v7875, %v7875
    %v7926 = vpack.c.b16 %v7876, %v7876
    %v7927 = vpack.c.b16 %v7877, %v7877
    %v7928 = vpack.c.b16 %v7878, %v7878
    %v7929 = vpack.c.b16 %v7879, %v7879
    %v7930 = vpack.c.b16 %v7880, %v7880
    %v7931 = vpack.c.b16 %v7881, %v7881
    %v7932 = vpack.c.b16 %v7882, %v7882
    %v7933 = vpack.c.b16 %v7883, %v7883
    %v7934 = vpack.c.b16 %v7884, %v7884
    %v7935 = vpack.c.b16 %v7885, %v7885
    %v7936 = vpack.c.b16 %v7886, %v7886
    %7987 = vst.msk [vmem:[#allocation5 + $0x18] sm:$0xf] %vm7774, %v7887
    %7988 = vst.msk [vmem:[#allocation5 + $0x1c] sm:$0xf] %vm7774, %v7888
    %7989 = vst.msk [vmem:[#allocation5 + $0x20] sm:$0xf] %vm7774, %v7889
    %7990 = vst.msk [vmem:[#allocation5 + $0x24] sm:$0xf] %vm7774, %v7890
    %7991 = vst.msk [vmem:[#allocation5 + $0x28] sm:$0xf] %vm7774, %v7891
    %7992 = vst.msk [vmem:[#allocation5 + $0x2c] sm:$0xf] %vm7774, %v7892
    %7993 = vst.msk [vmem:[#allocation5 + $0x30] sm:$0xf] %vm7774, %v7893
    %7994 = vst.msk [vmem:[#allocation5 + $0x34] sm:$0xf] %vm7774, %v7894
    %7995 = vst.msk [vmem:[#allocation5 + $0x38] sm:$0xf] %vm7774, %v7895
    %7996 = vst.msk [vmem:[#allocation5 + $0x3c] sm:$0xf] %vm7774, %v7896
    %7997 = vst.msk [vmem:[#allocation5 + $0x40] sm:$0xf] %vm7774, %v7897
    %7998 = vst.msk [vmem:[#allocation5 + $0x44] sm:$0xf] %vm7774, %v7898
    %7999 = vst.msk [vmem:[#allocation5 + $0x48] sm:$0xf] %vm7774, %v7899
    %8000 = vst.msk [vmem:[#allocation5 + $0x4c] sm:$0xf] %vm7774, %v7900
    %8001 = vst.msk [vmem:[#allocation5 + $0x50] sm:$0xf] %vm7774, %v7901
    %8002 = vst.msk [vmem:[#allocation5 + $0x54] sm:$0xf] %vm7774, %v7902
    %8003 = vst.msk [vmem:[#allocation5 + $0x58] sm:$0xf] %vm7774, %v7903
    %8004 = vst.msk [vmem:[#allocation5 + $0x5c] sm:$0xf] %vm7774, %v7904
    %8005 = vst.msk [vmem:[#allocation5 + $0x60] sm:$0xf] %vm7774, %v7905
    %8006 = vst.msk [vmem:[#allocation5 + $0x64] sm:$0xf] %vm7774, %v7906
    %8007 = vst.msk [vmem:[#allocation5 + $0x68] sm:$0xf] %vm7774, %v7907
    %8008 = vst.msk [vmem:[#allocation5 + $0x6c] sm:$0xf] %vm7774, %v7908
    %8009 = vst.msk [vmem:[#allocation5 + $0x70] sm:$0xf] %vm7774, %v7909
    %8010 = vst.msk [vmem:[#allocation5 + $0x74] sm:$0xf] %vm7774, %v7910
    %8011 = vst.msk [vmem:[#allocation5 + $0x78] sm:$0xf] %vm7774, %v7911
    %8012 = vst.msk [vmem:[#allocation5 + $0x7c] sm:$0xf] %vm7774, %v7912
    %8013 = vst.msk [vmem:[#allocation5 + $0x80] sm:$0xf] %vm7774, %v7913
    %8014 = vst.msk [vmem:[#allocation5 + $0x84] sm:$0xf] %vm7774, %v7914
    %8015 = vst.msk [vmem:[#allocation5 + $0x88] sm:$0xf] %vm7774, %v7915
    %8016 = vst.msk [vmem:[#allocation5 + $0x8c] sm:$0xf] %vm7774, %v7916
    %8017 = vst.msk [vmem:[#allocation5 + $0x90] sm:$0xf] %vm7774, %v7917
    %8018 = vst.msk [vmem:[#allocation5 + $0x94] sm:$0xf] %vm7774, %v7918
    %8019 = vst.msk [vmem:[#allocation5 + $0x98] sm:$0xf] %vm7774, %v7919
    %8020 = vst.msk [vmem:[#allocation5 + $0x9c] sm:$0xf] %vm7774, %v7920
    %8021 = vst.msk [vmem:[#allocation5 + $0xa0] sm:$0xf] %vm7774, %v7921
    %8022 = vst.msk [vmem:[#allocation5 + $0xa4] sm:$0xf] %vm7774, %v7922
    %8023 = vst.msk [vmem:[#allocation5 + $0xa8] sm:$0xf] %vm7774, %v7923
    %8024 = vst.msk [vmem:[#allocation5 + $0xac] sm:$0xf] %vm7774, %v7924
    %8025 = vst.msk [vmem:[#allocation5 + $0xb0] sm:$0xf] %vm7774, %v7925
    %8026 = vst.msk [vmem:[#allocation5 + $0xb4] sm:$0xf] %vm7774, %v7926
    %8027 = vst.msk [vmem:[#allocation5 + $0xb8] sm:$0xf] %vm7774, %v7927
    %8028 = vst.msk [vmem:[#allocation5 + $0xbc] sm:$0xf] %vm7774, %v7928
    %8029 = vst.msk [vmem:[#allocation5 + $0xc0] sm:$0xf] %vm7774, %v7929
    %8030 = vst.msk [vmem:[#allocation5 + $0xc4] sm:$0xf] %vm7774, %v7930
    %8031 = vst.msk [vmem:[#allocation5 + $0xc8] sm:$0xf] %vm7774, %v7931
    %8032 = vst.msk [vmem:[#allocation5 + $0xcc] sm:$0xf] %vm7774, %v7932
    %8033 = vst.msk [vmem:[#allocation5 + $0xd0] sm:$0xf] %vm7774, %v7933
    %8034 = vst.msk [vmem:[#allocation5 + $0xd4] sm:$0xf] %vm7774, %v7934
    %8035 = vst.msk [vmem:[#allocation5 + $0xd8] sm:$0xf] %vm7774, %v7935
    %8036 = vst.msk [vmem:[#allocation5 + $0xdc] sm:$0xf] %vm7774, %v7936
    %v8037 = vld [vmem:[#allocation5] sm:$0xf]
    %v8038 = vld [vmem:[#allocation5 + $0x4] sm:$0xf]
    %v8039 = vld [vmem:[#allocation5 + $0x8] sm:$0xf]
    %v8040 = vld [vmem:[#allocation5 + $0xc] sm:$0xf]
    %v8041 = vld [vmem:[#allocation5 + $0x10] sm:$0xf]
    %v8042 = vld [vmem:[#allocation5 + $0x14] sm:$0xf]
    %v8043 = vld [vmem:[#allocation5 + $0x18] sm:$0xf]
    %v8044 = vld [vmem:[#allocation5 + $0x1c] sm:$0xf]
    %v8045 = vld [vmem:[#allocation5 + $0x20] sm:$0xf]
    %v8046 = vld [vmem:[#allocation5 + $0x24] sm:$0xf]
    %v8047 = vld [vmem:[#allocation5 + $0x28] sm:$0xf]
    %v8048 = vld [vmem:[#allocation5 + $0x2c] sm:$0xf]
    %v8049 = vld [vmem:[#allocation5 + $0x30] sm:$0xf]
    %v8050 = vld [vmem:[#allocation5 + $0x34] sm:$0xf]
    %v8051 = vld [vmem:[#allocation5 + $0x38] sm:$0xf]
    %v8052 = vld [vmem:[#allocation5 + $0x3c] sm:$0xf]
    %v8053 = vld [vmem:[#allocation5 + $0x40] sm:$0xf]
    %v8054 = vld [vmem:[#allocation5 + $0x44] sm:$0xf]
    %v8055 = vld [vmem:[#allocation5 + $0x48] sm:$0xf]
    %v8056 = vld [vmem:[#allocation5 + $0x4c] sm:$0xf]
    %v8057 = vld [vmem:[#allocation5 + $0x50] sm:$0xf]
    %v8058 = vld [vmem:[#allocation5 + $0x54] sm:$0xf]
    %v8059 = vld [vmem:[#allocation5 + $0x58] sm:$0xf]
    %v8060 = vld [vmem:[#allocation5 + $0x5c] sm:$0xf]
    %v8061 = vld [vmem:[#allocation5 + $0x60] sm:$0xf]
    %v8062 = vld [vmem:[#allocation5 + $0x64] sm:$0xf]
    %v8063 = vld [vmem:[#allocation5 + $0x68] sm:$0xf]
    %v8064 = vld [vmem:[#allocation5 + $0x6c] sm:$0xf]
    %v8065 = vld [vmem:[#allocation5 + $0x70] sm:$0xf]
    %v8066 = vld [vmem:[#allocation5 + $0x74] sm:$0xf]
    %v8067 = vld [vmem:[#allocation5 + $0x78] sm:$0xf]
    %v8068 = vld [vmem:[#allocation5 + $0x7c] sm:$0xf]
    %v8069 = vld [vmem:[#allocation5 + $0x80] sm:$0xf]
    %v8070 = vld [vmem:[#allocation5 + $0x84] sm:$0xf]
    %v8071 = vld [vmem:[#allocation5 + $0x88] sm:$0xf]
    %v8072 = vld [vmem:[#allocation5 + $0x8c] sm:$0xf]
    %v8073 = vld [vmem:[#allocation5 + $0x90] sm:$0xf]
    %v8074 = vld [vmem:[#allocation5 + $0x94] sm:$0xf]
    %v8075 = vld [vmem:[#allocation5 + $0x98] sm:$0xf]
    %v8076 = vld [vmem:[#allocation5 + $0x9c] sm:$0xf]
    %v8077 = vld [vmem:[#allocation5 + $0xa0] sm:$0xf]
    %v8078 = vld [vmem:[#allocation5 + $0xa4] sm:$0xf]
    %v8079 = vld [vmem:[#allocation5 + $0xa8] sm:$0xf]
    %v8080 = vld [vmem:[#allocation5 + $0xac] sm:$0xf]
    %v8081 = vld [vmem:[#allocation5 + $0xb0] sm:$0xf]
    %v8082 = vld [vmem:[#allocation5 + $0xb4] sm:$0xf]
    %v8083 = vld [vmem:[#allocation5 + $0xb8] sm:$0xf]
    %v8084 = vld [vmem:[#allocation5 + $0xbc] sm:$0xf]
    %v8085 = vld [vmem:[#allocation5 + $0xc0] sm:$0xf]
    %v8086 = vld [vmem:[#allocation5 + $0xc4] sm:$0xf]
    %v8087 = vld [vmem:[#allocation5 + $0xc8] sm:$0xf]
    %v8088 = vld [vmem:[#allocation5 + $0xcc] sm:$0xf]
    %v8089 = vld [vmem:[#allocation5 + $0xd0] sm:$0xf]
    %v8090 = vld [vmem:[#allocation5 + $0xd4] sm:$0xf]
    %v8091 = vld [vmem:[#allocation5 + $0xd8] sm:$0xf]
    %v8092 = vld [vmem:[#allocation5 + $0xdc] sm:$0xf]
    %v8093 = vld [vmem:[%s13] sm:$0xf]
    %v8094 = vld [vmem:[%s13 + $0x4] sm:$0xf]
    %v8095 = vld [vmem:[%s13 + $0x8] sm:$0xf]
    %v8096 = vld [vmem:[%s13 + $0xc] sm:$0xf]
    %v8097 = vld [vmem:[%s13 + $0x10] sm:$0xf]
    %v8098 = vld [vmem:[%s13 + $0x14] sm:$0xf]
    %v8099 = vld [vmem:[%s13 + $0x18] sm:$0xf]
    %v8100 = vld [vmem:[%s13 + $0x1c] sm:$0xf]
    %v8101 = vld [vmem:[%s13 + $0x20] sm:$0xf]
    %v8102 = vld [vmem:[%s13 + $0x24] sm:$0xf]
    %v8103 = vld [vmem:[%s13 + $0x28] sm:$0xf]
    %v8104 = vld [vmem:[%s13 + $0x2c] sm:$0xf]
    %v8105 = vld [vmem:[%s13 + $0x30] sm:$0x3]
    %v8106 = vld [vmem:[#allocation5 + $0xe0] sm:$0xf]
    %v8107 = vld [vmem:[#allocation5 + $0xe4] sm:$0xf]
    %s8108 = scalar_lea.vmem %s13, 52
    %v8109 = vld [vmem:[%s8108] sm:$0xf]
    %v8110 = vld [vmem:[%s8108 + $0x4] sm:$0xf]
    %v8111 = vld [vmem:[%s8108 + $0x8] sm:$0xf]
    %v8112 = vld [vmem:[%s8108 + $0xc] sm:$0xf]
    %v8113 = vld [vmem:[%s8108 + $0x10] sm:$0xf]
    %v8114 = vld [vmem:[%s8108 + $0x14] sm:$0xf]
    %v8115 = vld [vmem:[%s8108 + $0x18] sm:$0xf]
    %v8116 = vld [vmem:[%s8108 + $0x1c] sm:$0xf]
    %v8117 = vld [vmem:[%s8108 + $0x20] sm:$0xf]
    %v8118 = vld [vmem:[%s8108 + $0x24] sm:$0xf]
    %v8119 = vld [vmem:[%s8108 + $0x28] sm:$0xf]
    %v8120 = vld [vmem:[%s8108 + $0x2c] sm:$0xf]
    %v8121 = vld [vmem:[%s8108 + $0x30] sm:$0x3]
    %v8178 = vunpack.c.l.b16 %v8039
    %v8179 = vunpack.c.l.b16 %v8040
    %v8180 = vunpack.c.l.b16 %v8041
    %v8181 = vunpack.c.l.b16 %v8042
    %v8182 = vunpack.c.l.b16 %v8043
    %v8183 = vunpack.c.l.b16 %v8044
    %v8184 = vunpack.c.l.b16 %v8045
    %v8185 = vunpack.c.l.b16 %v8046
    %v8186 = vunpack.c.l.b16 %v8047
    %v8187 = vunpack.c.l.b16 %v8048
    %v8188 = vunpack.c.l.b16 %v8049
    %v8189 = vunpack.c.l.b16 %v8050
    %v8190 = vunpack.c.l.b16 %v8051
    %v8191 = vunpack.c.l.b16 %v8052
    %v8192 = vunpack.c.l.b16 %v8053
    %v8193 = vunpack.c.l.b16 %v8054
    %v8194 = vunpack.c.l.b16 %v8055
    %v8195 = vunpack.c.l.b16 %v8056
    %v8196 = vunpack.c.l.b16 %v8057
    %v8197 = vunpack.c.l.b16 %v8058
    %v8198 = vunpack.c.l.b16 %v8059
    %v8199 = vunpack.c.l.b16 %v8060
    %v8200 = vunpack.c.l.b16 %v8061
    %v8201 = vunpack.c.l.b16 %v8062
    %v8202 = vunpack.c.l.b16 %v8063
    %v8203 = vunpack.c.l.b16 %v8064
    %v8204 = vunpack.c.l.b16 %v8065
    %v8205 = vunpack.c.l.b16 %v8066
    %v8206 = vunpack.c.l.b16 %v8067
    %v8207 = vunpack.c.l.b16 %v8068
    %v8208 = vunpack.c.l.b16 %v8069
    %v8209 = vunpack.c.l.b16 %v8070
    %v8210 = vunpack.c.l.b16 %v8071
    %v8211 = vunpack.c.l.b16 %v8072
    %v8212 = vunpack.c.l.b16 %v8073
    %v8213 = vunpack.c.l.b16 %v8074
    %v8214 = vunpack.c.l.b16 %v8075
    %v8215 = vunpack.c.l.b16 %v8076
    %v8216 = vunpack.c.l.b16 %v8077
    %v8217 = vunpack.c.l.b16 %v8078
    %v8218 = vunpack.c.l.b16 %v8079
    %v8219 = vunpack.c.l.b16 %v8080
    %v8220 = vunpack.c.l.b16 %v8081
    %v8221 = vunpack.c.l.b16 %v8082
    %v8222 = vunpack.c.l.b16 %v8083
    %v8223 = vunpack.c.l.b16 %v8084
    %v8224 = vunpack.c.l.b16 %v8085
    %v8225 = vunpack.c.l.b16 %v8086
    %v8226 = vunpack.c.l.b16 %v8087
    %v8227 = vunpack.c.l.b16 %v8088
    %v8228 = vunpack.c.l.b16 %v8089
    %v8229 = vunpack.c.l.b16 %v8090
    %v8230 = vunpack.c.l.b16 %v8091
    %v8231 = vunpack.c.l.b16 %v8092
    %v8232 = vunpack.c.l.b16 %v8106
    %v8233 = vunpack.c.l.b16 %v8107
    %v8234 = vpack.c.b16 %v8179, %v8178
    %v8235 = vpack.c.b16 %v8181, %v8180
    %v8236 = vpack.c.b16 %v8183, %v8182
    %v8237 = vpack.c.b16 %v8185, %v8184
    %v8238 = vpack.c.b16 %v8187, %v8186
    %v8239 = vpack.c.b16 %v8189, %v8188
    %v8240 = vpack.c.b16 %v8191, %v8190
    %v8241 = vpack.c.b16 %v8193, %v8192
    %v8242 = vpack.c.b16 %v8195, %v8194
    %v8243 = vpack.c.b16 %v8197, %v8196
    %v8244 = vpack.c.b16 %v8199, %v8198
    %v8245 = vpack.c.b16 %v8201, %v8200
    %v8246 = vpack.c.b16 %v8203, %v8202
    %v8247 = vpack.c.b16 %v8205, %v8204
    %v8248 = vpack.c.b16 %v8207, %v8206
    %v8249 = vpack.c.b16 %v8209, %v8208
    %v8250 = vpack.c.b16 %v8211, %v8210
    %v8251 = vpack.c.b16 %v8213, %v8212
    %v8252 = vpack.c.b16 %v8215, %v8214
    %v8253 = vpack.c.b16 %v8217, %v8216
    %v8254 = vpack.c.b16 %v8219, %v8218
    %v8255 = vpack.c.b16 %v8221, %v8220
    %v8256 = vpack.c.b16 %v8223, %v8222
    %v8257 = vpack.c.b16 %v8225, %v8224
    %v8258 = vpack.c.b16 %v8227, %v8226
    %v8259 = vpack.c.b16 %v8229, %v8228
    %v8260 = vpack.c.b16 %v8231, %v8230
    %v8261 = vpack.c.b16 %v8233, %v8232
    %v8275 = vunpack.c.l.b16 %v8109
    %v8276 = vunpack.c.l.b16 %v8110
    %v8277 = vunpack.c.l.b16 %v8111
    %v8278 = vunpack.c.l.b16 %v8112
    %v8279 = vunpack.c.l.b16 %v8113
    %v8280 = vunpack.c.l.b16 %v8114
    %v8281 = vunpack.c.l.b16 %v8115
    %v8282 = vunpack.c.l.b16 %v8116
    %v8283 = vunpack.c.l.b16 %v8117
    %v8284 = vunpack.c.l.b16 %v8118
    %v8285 = vunpack.c.l.b16 %v8119
    %v8286 = vunpack.c.l.b16 %v8120
    %v8287 = vunpack.c.l.b16 %v8121
    %v8288 = vpack.c.b16 %v8276, %v8275
    %v8289 = vpack.c.b16 %v8278, %v8277
    %v8290 = vpack.c.b16 %v8280, %v8279
    %v8291 = vpack.c.b16 %v8282, %v8281
    %v8292 = vpack.c.b16 %v8284, %v8283
    %v8293 = vpack.c.b16 %v8286, %v8285
    %v8294 = vpack.c.b16 %v8287, %v8287
    %vm8301 = vcmask 818176
    %v8303 = vsel %vm8301, %v8234, 0
    %v8306 = vsel %vm8301, %v8235, 0
    %v8309 = vsel %vm8301, %v8236, 0
    %v8312 = vsel %vm8301, %v8237, 0
    %v8315 = vsel %vm8301, %v8238, 0
    %v8318 = vsel %vm8301, %v8239, 0
    %v8321 = vsel %vm8301, %v8240, 0
    %v8324 = vsel %vm8301, %v8241, 0
    %v8327 = vsel %vm8301, %v8242, 0
    %v8330 = vsel %vm8301, %v8243, 0
    %v8333 = vsel %vm8301, %v8244, 0
    %v8336 = vsel %vm8301, %v8245, 0
    %v8339 = vsel %vm8301, %v8246, 0
    %v8342 = vsel %vm8301, %v8247, 0
    %v8345 = vsel %vm8301, %v8248, 0
    %v8348 = vsel %vm8301, %v8249, 0
    %v8351 = vsel %vm8301, %v8250, 0
    %v8354 = vsel %vm8301, %v8251, 0
    %v8357 = vsel %vm8301, %v8252, 0
    %v8360 = vsel %vm8301, %v8253, 0
    %v8363 = vsel %vm8301, %v8254, 0
    %v8366 = vsel %vm8301, %v8255, 0
    %v8369 = vsel %vm8301, %v8256, 0
    %v8372 = vsel %vm8301, %v8257, 0
    %v8375 = vsel %vm8301, %v8258, 0
    %v8378 = vsel %vm8301, %v8259, 0
    %v8381 = vsel %vm8301, %v8260, 0
    %v8384 = vsel %vm8301, %v8261, 0
    %vm8386 = vcmask 1041408
    %v8388 = vsel %vm8386, %v8294, 0
    %8390 = vmatprep.subr.bf16.mxu0 0
    %8391 = vmatpush1.bf16.msra.mxu0 0
    %8392 = vmatprep.subr.bf16.mxu0 0
    %8393 = vmatpush1.bf16.msra.mxu0 %v8388
    %8394 = vmatprep.subr.bf16.mxu0 0
    %8395 = vmatpush1.bf16.msra.mxu0 %v8293
    %8396 = vmatprep.subr.bf16.mxu0 0
    %8397 = vmatpush1.bf16.msra.mxu0 %v8292
    %8398 = vmatprep.subr.bf16.mxu0 0
    %8399 = vmatpush1.bf16.msra.mxu0 %v8291
    %8400 = vmatprep.subr.bf16.mxu0 0
    %8401 = vmatpush1.bf16.msra.mxu0 %v8290
    %8402 = vmatprep.subr.bf16.mxu0 0
    %8403 = vmatpush1.bf16.msra.mxu0 %v8289
    %8404 = vmatprep.subr.bf16.mxu0 0
    %8405 = vmatpush1.bf16.msra.mxu0 %v8288
    %8406 = vmatprep.subr.bf16.mxu0 0
    %8407 = vmatpush2.bf16.msra.mxu0 0
    %8408 = vmatprep.subr.bf16.mxu0 0
    %8409 = vmatpush2.bf16.msra.mxu0 0
    %8410 = vmatprep.subr.bf16.mxu0 0
    %8411 = vmatpush2.bf16.msra.mxu0 0
    %8412 = vmatprep.subr.bf16.mxu0 0
    %8413 = vmatpush2.bf16.msra.mxu0 0
    %8414 = vmatprep.subr.bf16.mxu0 0
    %8415 = vmatpush2.bf16.msra.mxu0 0
    %8416 = vmatprep.subr.bf16.mxu0 0
    %8417 = vmatpush2.bf16.msra.mxu0 0
    %8418 = vmatprep.subr.bf16.mxu0 0
    %8419 = vmatpush2.bf16.msra.mxu0 0
    %8420 = vmatprep.subr.bf16.mxu0 0
    %8421 = vmatpush2.bf16.msra.mxu0 0
    %8422 = vmatprep.mubr.bf16.mxu0 0
    %8423 = vmatmul.mubr.bf16.gmra.mxu0 %v8303
    %v8424 = vpop.f32.mrf.mxu0
    %v8425 = vadd.f32 0.0, %v8424
    %v8426 = vpop.f32.mrf.mxu0
    %v8427 = vpop.f32.mrf.mxu0
    %v8428 = vadd.f32 0.0, %v8427
    %v8429 = vpop.f32.mrf.mxu0
    %8430 = vmatprep.mubr.bf16.mxu0 0
    %8431 = vmatmul.mubr.bf16.gmra.mxu0 %v8306
    %v8432 = vpop.f32.mrf.mxu0
    %v8433 = vadd.f32 0.0, %v8432
    %v8434 = vpop.f32.mrf.mxu0
    %v8435 = vpop.f32.mrf.mxu0
    %v8436 = vadd.f32 0.0, %v8435
    %v8437 = vpop.f32.mrf.mxu0
    %8438 = vmatprep.mubr.bf16.mxu0 0
    %8439 = vmatmul.mubr.bf16.gmra.mxu0 %v8309
    %v8440 = vpop.f32.mrf.mxu0
    %v8441 = vadd.f32 0.0, %v8440
    %v8442 = vpop.f32.mrf.mxu0
    %v8443 = vpop.f32.mrf.mxu0
    %v8444 = vadd.f32 0.0, %v8443
    %v8445 = vpop.f32.mrf.mxu0
    %8446 = vmatprep.mubr.bf16.mxu0 0
    %8447 = vmatmul.mubr.bf16.gmra.mxu0 %v8312
    %v8448 = vpop.f32.mrf.mxu0
    %v8449 = vadd.f32 0.0, %v8448
    %v8450 = vpop.f32.mrf.mxu0
    %v8451 = vpop.f32.mrf.mxu0
    %v8452 = vadd.f32 0.0, %v8451
    %v8453 = vpop.f32.mrf.mxu0
    %8454 = vmatprep.mubr.bf16.mxu0 0
    %8455 = vmatmul.mubr.bf16.gmra.mxu0 %v8315
    %v8456 = vpop.f32.mrf.mxu0
    %v8457 = vadd.f32 0.0, %v8456
    %v8458 = vpop.f32.mrf.mxu0
    %v8459 = vpop.f32.mrf.mxu0
    %v8460 = vadd.f32 0.0, %v8459
    %v8461 = vpop.f32.mrf.mxu0
    %8462 = vmatprep.mubr.bf16.mxu0 0
    %8463 = vmatmul.mubr.bf16.gmra.mxu0 %v8318
    %v8464 = vpop.f32.mrf.mxu0
    %v8465 = vadd.f32 0.0, %v8464
    %v8466 = vpop.f32.mrf.mxu0
    %v8467 = vpop.f32.mrf.mxu0
    %v8468 = vadd.f32 0.0, %v8467
    %v8469 = vpop.f32.mrf.mxu0
    %8470 = vmatprep.mubr.bf16.mxu0 0
    %8471 = vmatmul.mubr.bf16.gmra.mxu0 %v8321
    %v8472 = vpop.f32.mrf.mxu0
    %v8473 = vadd.f32 0.0, %v8472
    %v8474 = vpop.f32.mrf.mxu0
    %v8475 = vpop.f32.mrf.mxu0
    %v8476 = vadd.f32 0.0, %v8475
    %v8477 = vpop.f32.mrf.mxu0
    %8478 = vmatprep.mubr.bf16.mxu0 0
    %8479 = vmatmul.mubr.bf16.gmra.mxu0 %v8324
    %v8480 = vpop.f32.mrf.mxu0
    %v8481 = vadd.f32 0.0, %v8480
    %v8482 = vpop.f32.mrf.mxu0
    %v8483 = vpop.f32.mrf.mxu0
    %v8484 = vadd.f32 0.0, %v8483
    %v8485 = vpop.f32.mrf.mxu0
    %8486 = vmatprep.mubr.bf16.mxu0 0
    %8487 = vmatmul.mubr.bf16.gmra.mxu0 %v8327
    %v8488 = vpop.f32.mrf.mxu0
    %v8489 = vadd.f32 0.0, %v8488
    %v8490 = vpop.f32.mrf.mxu0
    %v8491 = vpop.f32.mrf.mxu0
    %v8492 = vadd.f32 0.0, %v8491
    %v8493 = vpop.f32.mrf.mxu0
    %8494 = vmatprep.mubr.bf16.mxu0 0
    %8495 = vmatmul.mubr.bf16.gmra.mxu0 %v8330
    %v8496 = vpop.f32.mrf.mxu0
    %v8497 = vadd.f32 0.0, %v8496
    %v8498 = vpop.f32.mrf.mxu0
    %v8499 = vpop.f32.mrf.mxu0
    %v8500 = vadd.f32 0.0, %v8499
    %v8501 = vpop.f32.mrf.mxu0
    %8502 = vmatprep.mubr.bf16.mxu0 0
    %8503 = vmatmul.mubr.bf16.gmra.mxu0 %v8333
    %v8504 = vpop.f32.mrf.mxu0
    %v8505 = vadd.f32 0.0, %v8504
    %v8506 = vpop.f32.mrf.mxu0
    %v8507 = vpop.f32.mrf.mxu0
    %v8508 = vadd.f32 0.0, %v8507
    %v8509 = vpop.f32.mrf.mxu0
    %8510 = vmatprep.mubr.bf16.mxu0 0
    %8511 = vmatmul.mubr.bf16.gmra.mxu0 %v8336
    %v8512 = vpop.f32.mrf.mxu0
    %v8513 = vadd.f32 0.0, %v8512
    %v8514 = vpop.f32.mrf.mxu0
    %v8515 = vpop.f32.mrf.mxu0
    %v8516 = vadd.f32 0.0, %v8515
    %v8517 = vpop.f32.mrf.mxu0
    %8518 = vmatprep.mubr.bf16.mxu0 0
    %8519 = vmatmul.mubr.bf16.gmra.mxu0 %v8339
    %v8520 = vpop.f32.mrf.mxu0
    %v8521 = vadd.f32 0.0, %v8520
    %v8522 = vpop.f32.mrf.mxu0
    %v8523 = vpop.f32.mrf.mxu0
    %v8524 = vadd.f32 0.0, %v8523
    %v8525 = vpop.f32.mrf.mxu0
    %8526 = vmatprep.mubr.bf16.mxu0 0
    %8527 = vmatmul.mubr.bf16.gmra.mxu0 %v8342
    %v8528 = vpop.f32.mrf.mxu0
    %v8529 = vadd.f32 0.0, %v8528
    %v8530 = vpop.f32.mrf.mxu0
    %v8531 = vpop.f32.mrf.mxu0
    %v8532 = vadd.f32 0.0, %v8531
    %v8533 = vpop.f32.mrf.mxu0
    %8534 = vmatprep.mubr.bf16.mxu0 0
    %8535 = vmatmul.mubr.bf16.gmra.mxu0 %v8345
    %v8536 = vpop.f32.mrf.mxu0
    %v8537 = vadd.f32 0.0, %v8536
    %v8538 = vpop.f32.mrf.mxu0
    %v8539 = vpop.f32.mrf.mxu0
    %v8540 = vadd.f32 0.0, %v8539
    %v8541 = vpop.f32.mrf.mxu0
    %8542 = vmatprep.mubr.bf16.mxu0 0
    %8543 = vmatmul.mubr.bf16.gmra.mxu0 %v8348
    %v8544 = vpop.f32.mrf.mxu0
    %v8545 = vadd.f32 0.0, %v8544
    %v8546 = vpop.f32.mrf.mxu0
    %v8547 = vpop.f32.mrf.mxu0
    %v8548 = vadd.f32 0.0, %v8547
    %v8549 = vpop.f32.mrf.mxu0
    %8550 = vmatprep.mubr.bf16.mxu0 0
    %8551 = vmatmul.mubr.bf16.gmra.mxu0 %v8351
    %v8552 = vpop.f32.mrf.mxu0
    %v8553 = vadd.f32 0.0, %v8552
    %v8554 = vpop.f32.mrf.mxu0
    %v8555 = vpop.f32.mrf.mxu0
    %v8556 = vadd.f32 0.0, %v8555
    %v8557 = vpop.f32.mrf.mxu0
    %8558 = vmatprep.mubr.bf16.mxu0 0
    %8559 = vmatmul.mubr.bf16.gmra.mxu0 %v8354
    %v8560 = vpop.f32.mrf.mxu0
    %v8561 = vadd.f32 0.0, %v8560
    %v8562 = vpop.f32.mrf.mxu0
    %v8563 = vpop.f32.mrf.mxu0
    %v8564 = vadd.f32 0.0, %v8563
    %v8565 = vpop.f32.mrf.mxu0
    %8566 = vmatprep.mubr.bf16.mxu0 0
    %8567 = vmatmul.mubr.bf16.gmra.mxu0 %v8357
    %v8568 = vpop.f32.mrf.mxu0
    %v8569 = vadd.f32 0.0, %v8568
    %v8570 = vpop.f32.mrf.mxu0
    %v8571 = vpop.f32.mrf.mxu0
    %v8572 = vadd.f32 0.0, %v8571
    %v8573 = vpop.f32.mrf.mxu0
    %8574 = vmatprep.mubr.bf16.mxu0 0
    %8575 = vmatmul.mubr.bf16.gmra.mxu0 %v8360
    %v8576 = vpop.f32.mrf.mxu0
    %v8577 = vadd.f32 0.0, %v8576
    %v8578 = vpop.f32.mrf.mxu0
    %v8579 = vpop.f32.mrf.mxu0
    %v8580 = vadd.f32 0.0, %v8579
    %v8581 = vpop.f32.mrf.mxu0
    %8582 = vmatprep.mubr.bf16.mxu0 0
    %8583 = vmatmul.mubr.bf16.gmra.mxu0 %v8363
    %v8584 = vpop.f32.mrf.mxu0
    %v8585 = vadd.f32 0.0, %v8584
    %v8586 = vpop.f32.mrf.mxu0
    %v8587 = vpop.f32.mrf.mxu0
    %v8588 = vadd.f32 0.0, %v8587
    %v8589 = vpop.f32.mrf.mxu0
    %8590 = vmatprep.mubr.bf16.mxu0 0
    %8591 = vmatmul.mubr.bf16.gmra.mxu0 %v8366
    %v8592 = vpop.f32.mrf.mxu0
    %v8593 = vadd.f32 0.0, %v8592
    %v8594 = vpop.f32.mrf.mxu0
    %v8595 = vpop.f32.mrf.mxu0
    %v8596 = vadd.f32 0.0, %v8595
    %v8597 = vpop.f32.mrf.mxu0
    %8598 = vmatprep.mubr.bf16.mxu0 0
    %8599 = vmatmul.mubr.bf16.gmra.mxu0 %v8369
    %v8600 = vpop.f32.mrf.mxu0
    %v8601 = vadd.f32 0.0, %v8600
    %v8602 = vpop.f32.mrf.mxu0
    %v8603 = vpop.f32.mrf.mxu0
    %v8604 = vadd.f32 0.0, %v8603
    %v8605 = vpop.f32.mrf.mxu0
    %8606 = vmatprep.mubr.bf16.mxu0 0
    %8607 = vmatmul.mubr.bf16.gmra.mxu0 %v8372
    %v8608 = vpop.f32.mrf.mxu0
    %v8609 = vadd.f32 0.0, %v8608
    %v8610 = vpop.f32.mrf.mxu0
    %v8611 = vpop.f32.mrf.mxu0
    %v8612 = vadd.f32 0.0, %v8611
    %v8613 = vpop.f32.mrf.mxu0
    %8614 = vmatprep.mubr.bf16.mxu0 0
    %8615 = vmatmul.mubr.bf16.gmra.mxu0 %v8375
    %v8616 = vpop.f32.mrf.mxu0
    %v8617 = vadd.f32 0.0, %v8616
    %v8618 = vpop.f32.mrf.mxu0
    %v8619 = vpop.f32.mrf.mxu0
    %v8620 = vadd.f32 0.0, %v8619
    %v8621 = vpop.f32.mrf.mxu0
    %8622 = vmatprep.mubr.bf16.mxu0 0
    %8623 = vmatmul.mubr.bf16.gmra.mxu0 %v8378
    %v8624 = vpop.f32.mrf.mxu0
    %v8625 = vadd.f32 0.0, %v8624
    %v8626 = vpop.f32.mrf.mxu0
    %v8627 = vpop.f32.mrf.mxu0
    %v8628 = vadd.f32 0.0, %v8627
    %v8629 = vpop.f32.mrf.mxu0
    %8630 = vmatprep.mubr.bf16.mxu0 0
    %8631 = vmatmul.mubr.bf16.gmra.mxu0 %v8381
    %v8632 = vpop.f32.mrf.mxu0
    %v8633 = vadd.f32 0.0, %v8632
    %v8634 = vpop.f32.mrf.mxu0
    %v8635 = vpop.f32.mrf.mxu0
    %v8636 = vadd.f32 0.0, %v8635
    %v8637 = vpop.f32.mrf.mxu0
    %8638 = vmatprep.mubr.bf16.mxu0 0
    %8639 = vmatmul.mubr.bf16.gmra.mxu0 %v8384
    %v8640 = vpop.f32.mrf.mxu0
    %v8641 = vadd.f32 0.0, %v8640
    %v8642 = vpop.f32.mrf.mxu0
    %v8643 = vpop.f32.mrf.mxu0
    %v8644 = vadd.f32 0.0, %v8643
    %v8645 = vpop.f32.mrf.mxu0
    %8646 = vdwg.mxu0
    %v8649 = vunpack.c.l.b16 %v8037
    %v8650 = vunpack.c.l.b16 %v8038
    %v8651 = vpack.c.b16 %v8650, %v8649
    %v8665 = vunpack.c.l.b16 %v8093
    %v8666 = vunpack.c.l.b16 %v8094
    %v8667 = vunpack.c.l.b16 %v8095
    %v8668 = vunpack.c.l.b16 %v8096
    %v8669 = vunpack.c.l.b16 %v8097
    %v8670 = vunpack.c.l.b16 %v8098
    %v8671 = vunpack.c.l.b16 %v8099
    %v8672 = vunpack.c.l.b16 %v8100
    %v8673 = vunpack.c.l.b16 %v8101
    %v8674 = vunpack.c.l.b16 %v8102
    %v8675 = vunpack.c.l.b16 %v8103
    %v8676 = vunpack.c.l.b16 %v8104
    %v8677 = vunpack.c.l.b16 %v8105
    %v8678 = vpack.c.b16 %v8666, %v8665
    %v8679 = vpack.c.b16 %v8668, %v8667
    %v8680 = vpack.c.b16 %v8670, %v8669
    %v8681 = vpack.c.b16 %v8672, %v8671
    %v8682 = vpack.c.b16 %v8674, %v8673
    %v8683 = vpack.c.b16 %v8676, %v8675
    %v8684 = vpack.c.b16 %v8677, %v8677
    %v8692 = vsel %vm8301, %v8651, 0
    %v8695 = vsel %vm8386, %v8684, 0
    %8697 = vmatprep.subr.bf16.mxu0 0
    %8698 = vmatpush1.bf16.msra.mxu0 0
    %8699 = vmatprep.subr.bf16.mxu0 0
    %8700 = vmatpush1.bf16.msra.mxu0 %v8695
    %8701 = vmatprep.subr.bf16.mxu0 0
    %8702 = vmatpush1.bf16.msra.mxu0 %v8683
    %8703 = vmatprep.subr.bf16.mxu0 0
    %8704 = vmatpush1.bf16.msra.mxu0 %v8682
    %8705 = vmatprep.subr.bf16.mxu0 0
    %8706 = vmatpush1.bf16.msra.mxu0 %v8681
    %8707 = vmatprep.subr.bf16.mxu0 0
    %8708 = vmatpush1.bf16.msra.mxu0 %v8680
    %8709 = vmatprep.subr.bf16.mxu0 0
    %8710 = vmatpush1.bf16.msra.mxu0 %v8679
    %8711 = vmatprep.subr.bf16.mxu0 0
    %8712 = vmatpush1.bf16.msra.mxu0 %v8678
    %8713 = vmatprep.subr.bf16.mxu0 0
    %8714 = vmatpush2.bf16.msra.mxu0 0
    %8715 = vmatprep.subr.bf16.mxu0 0
    %8716 = vmatpush2.bf16.msra.mxu0 0
    %8717 = vmatprep.subr.bf16.mxu0 0
    %8718 = vmatpush2.bf16.msra.mxu0 0
    %8719 = vmatprep.subr.bf16.mxu0 0
    %8720 = vmatpush2.bf16.msra.mxu0 0
    %8721 = vmatprep.subr.bf16.mxu0 0
    %8722 = vmatpush2.bf16.msra.mxu0 0
    %8723 = vmatprep.subr.bf16.mxu0 0
    %8724 = vmatpush2.bf16.msra.mxu0 0
    %8725 = vmatprep.subr.bf16.mxu0 0
    %8726 = vmatpush2.bf16.msra.mxu0 0
    %8727 = vmatprep.subr.bf16.mxu0 0
    %8728 = vmatpush2.bf16.msra.mxu0 0
    %8729 = vmatprep.mubr.bf16.mxu0 0
    %8730 = vmatmul.mubr.bf16.gmra.mxu0 %v8692
    %v8731 = vpop.f32.mrf.mxu0
    %v8732 = vadd.f32 %v8425, %v8731
    %v8733 = vpop.f32.mrf.mxu0
    %v8734 = vpop.f32.mrf.mxu0
    %v8735 = vadd.f32 %v8428, %v8734
    %v8736 = vpop.f32.mrf.mxu0
    %8737 = vmatprep.mubr.bf16.mxu0 0
    %8738 = vmatmul.mubr.bf16.gmra.mxu0 %v8303
    %v8739 = vpop.f32.mrf.mxu0
    %v8740 = vadd.f32 %v8433, %v8739
    %v8741 = vpop.f32.mrf.mxu0
    %v8742 = vpop.f32.mrf.mxu0
    %v8743 = vadd.f32 %v8436, %v8742
    %v8744 = vpop.f32.mrf.mxu0
    %8745 = vmatprep.mubr.bf16.mxu0 0
    %8746 = vmatmul.mubr.bf16.gmra.mxu0 %v8306
    %v8747 = vpop.f32.mrf.mxu0
    %v8748 = vadd.f32 %v8441, %v8747
    %v8749 = vpop.f32.mrf.mxu0
    %v8750 = vpop.f32.mrf.mxu0
    %v8751 = vadd.f32 %v8444, %v8750
    %v8752 = vpop.f32.mrf.mxu0
    %8753 = vmatprep.mubr.bf16.mxu0 0
    %8754 = vmatmul.mubr.bf16.gmra.mxu0 %v8309
    %v8755 = vpop.f32.mrf.mxu0
    %v8756 = vadd.f32 %v8449, %v8755
    %v8757 = vpop.f32.mrf.mxu0
    %v8758 = vpop.f32.mrf.mxu0
    %v8759 = vadd.f32 %v8452, %v8758
    %v8760 = vpop.f32.mrf.mxu0
    %8761 = vmatprep.mubr.bf16.mxu0 0
    %8762 = vmatmul.mubr.bf16.gmra.mxu0 %v8312
    %v8763 = vpop.f32.mrf.mxu0
    %v8764 = vadd.f32 %v8457, %v8763
    %v8765 = vpop.f32.mrf.mxu0
    %v8766 = vpop.f32.mrf.mxu0
    %v8767 = vadd.f32 %v8460, %v8766
    %v8768 = vpop.f32.mrf.mxu0
    %8769 = vmatprep.mubr.bf16.mxu0 0
    %8770 = vmatmul.mubr.bf16.gmra.mxu0 %v8315
    %v8771 = vpop.f32.mrf.mxu0
    %v8772 = vadd.f32 %v8465, %v8771
    %v8773 = vpop.f32.mrf.mxu0
    %v8774 = vpop.f32.mrf.mxu0
    %v8775 = vadd.f32 %v8468, %v8774
    %v8776 = vpop.f32.mrf.mxu0
    %8777 = vmatprep.mubr.bf16.mxu0 0
    %8778 = vmatmul.mubr.bf16.gmra.mxu0 %v8318
    %v8779 = vpop.f32.mrf.mxu0
    %v8780 = vadd.f32 %v8473, %v8779
    %v8781 = vpop.f32.mrf.mxu0
    %v8782 = vpop.f32.mrf.mxu0
    %v8783 = vadd.f32 %v8476, %v8782
    %v8784 = vpop.f32.mrf.mxu0
    %8785 = vmatprep.mubr.bf16.mxu0 0
    %8786 = vmatmul.mubr.bf16.gmra.mxu0 %v8321
    %v8787 = vpop.f32.mrf.mxu0
    %v8788 = vadd.f32 %v8481, %v8787
    %v8789 = vpop.f32.mrf.mxu0
    %v8790 = vpop.f32.mrf.mxu0
    %v8791 = vadd.f32 %v8484, %v8790
    %v8792 = vpop.f32.mrf.mxu0
    %8793 = vmatprep.mubr.bf16.mxu0 0
    %8794 = vmatmul.mubr.bf16.gmra.mxu0 %v8324
    %v8795 = vpop.f32.mrf.mxu0
    %v8796 = vadd.f32 %v8489, %v8795
    %v8797 = vpop.f32.mrf.mxu0
    %v8798 = vpop.f32.mrf.mxu0
    %v8799 = vadd.f32 %v8492, %v8798
    %v8800 = vpop.f32.mrf.mxu0
    %8801 = vmatprep.mubr.bf16.mxu0 0
    %8802 = vmatmul.mubr.bf16.gmra.mxu0 %v8327
    %v8803 = vpop.f32.mrf.mxu0
    %v8804 = vadd.f32 %v8497, %v8803
    %v8805 = vpop.f32.mrf.mxu0
    %v8806 = vpop.f32.mrf.mxu0
    %v8807 = vadd.f32 %v8500, %v8806
    %v8808 = vpop.f32.mrf.mxu0
    %8809 = vmatprep.mubr.bf16.mxu0 0
    %8810 = vmatmul.mubr.bf16.gmra.mxu0 %v8330
    %v8811 = vpop.f32.mrf.mxu0
    %v8812 = vadd.f32 %v8505, %v8811
    %v8813 = vpop.f32.mrf.mxu0
    %v8814 = vpop.f32.mrf.mxu0
    %v8815 = vadd.f32 %v8508, %v8814
    %v8816 = vpop.f32.mrf.mxu0
    %8817 = vmatprep.mubr.bf16.mxu0 0
    %8818 = vmatmul.mubr.bf16.gmra.mxu0 %v8333
    %v8819 = vpop.f32.mrf.mxu0
    %v8820 = vadd.f32 %v8513, %v8819
    %v8821 = vpop.f32.mrf.mxu0
    %v8822 = vpop.f32.mrf.mxu0
    %v8823 = vadd.f32 %v8516, %v8822
    %v8824 = vpop.f32.mrf.mxu0
    %8825 = vmatprep.mubr.bf16.mxu0 0
    %8826 = vmatmul.mubr.bf16.gmra.mxu0 %v8336
    %v8827 = vpop.f32.mrf.mxu0
    %v8828 = vadd.f32 %v8521, %v8827
    %v8829 = vpop.f32.mrf.mxu0
    %v8830 = vpop.f32.mrf.mxu0
    %v8831 = vadd.f32 %v8524, %v8830
    %v8832 = vpop.f32.mrf.mxu0
    %8833 = vmatprep.mubr.bf16.mxu0 0
    %8834 = vmatmul.mubr.bf16.gmra.mxu0 %v8339
    %v8835 = vpop.f32.mrf.mxu0
    %v8836 = vadd.f32 %v8529, %v8835
    %v8837 = vpop.f32.mrf.mxu0
    %v8838 = vpop.f32.mrf.mxu0
    %v8839 = vadd.f32 %v8532, %v8838
    %v8840 = vpop.f32.mrf.mxu0
    %8841 = vmatprep.mubr.bf16.mxu0 0
    %8842 = vmatmul.mubr.bf16.gmra.mxu0 %v8342
    %v8843 = vpop.f32.mrf.mxu0
    %v8844 = vadd.f32 %v8537, %v8843
    %v8845 = vpop.f32.mrf.mxu0
    %v8846 = vpop.f32.mrf.mxu0
    %v8847 = vadd.f32 %v8540, %v8846
    %v8848 = vpop.f32.mrf.mxu0
    %8849 = vmatprep.mubr.bf16.mxu0 0
    %8850 = vmatmul.mubr.bf16.gmra.mxu0 %v8345
    %v8851 = vpop.f32.mrf.mxu0
    %v8852 = vadd.f32 %v8545, %v8851
    %v8853 = vpop.f32.mrf.mxu0
    %v8854 = vpop.f32.mrf.mxu0
    %v8855 = vadd.f32 %v8548, %v8854
    %v8856 = vpop.f32.mrf.mxu0
    %8857 = vmatprep.mubr.bf16.mxu0 0
    %8858 = vmatmul.mubr.bf16.gmra.mxu0 %v8348
    %v8859 = vpop.f32.mrf.mxu0
    %v8860 = vadd.f32 %v8553, %v8859
    %v8861 = vpop.f32.mrf.mxu0
    %v8862 = vpop.f32.mrf.mxu0
    %v8863 = vadd.f32 %v8556, %v8862
    %v8864 = vpop.f32.mrf.mxu0
    %8865 = vmatprep.mubr.bf16.mxu0 0
    %8866 = vmatmul.mubr.bf16.gmra.mxu0 %v8351
    %v8867 = vpop.f32.mrf.mxu0
    %v8868 = vadd.f32 %v8561, %v8867
    %v8869 = vpop.f32.mrf.mxu0
    %v8870 = vpop.f32.mrf.mxu0
    %v8871 = vadd.f32 %v8564, %v8870
    %v8872 = vpop.f32.mrf.mxu0
    %8873 = vmatprep.mubr.bf16.mxu0 0
    %8874 = vmatmul.mubr.bf16.gmra.mxu0 %v8354
    %v8875 = vpop.f32.mrf.mxu0
    %v8876 = vadd.f32 %v8569, %v8875
    %v8877 = vpop.f32.mrf.mxu0
    %v8878 = vpop.f32.mrf.mxu0
    %v8879 = vadd.f32 %v8572, %v8878
    %v8880 = vpop.f32.mrf.mxu0
    %8881 = vmatprep.mubr.bf16.mxu0 0
    %8882 = vmatmul.mubr.bf16.gmra.mxu0 %v8357
    %v8883 = vpop.f32.mrf.mxu0
    %v8884 = vadd.f32 %v8577, %v8883
    %v8885 = vpop.f32.mrf.mxu0
    %v8886 = vpop.f32.mrf.mxu0
    %v8887 = vadd.f32 %v8580, %v8886
    %v8888 = vpop.f32.mrf.mxu0
    %8889 = vmatprep.mubr.bf16.mxu0 0
    %8890 = vmatmul.mubr.bf16.gmra.mxu0 %v8360
    %v8891 = vpop.f32.mrf.mxu0
    %v8892 = vadd.f32 %v8585, %v8891
    %v8893 = vpop.f32.mrf.mxu0
    %v8894 = vpop.f32.mrf.mxu0
    %v8895 = vadd.f32 %v8588, %v8894
    %v8896 = vpop.f32.mrf.mxu0
    %8897 = vmatprep.mubr.bf16.mxu0 0
    %8898 = vmatmul.mubr.bf16.gmra.mxu0 %v8363
    %v8899 = vpop.f32.mrf.mxu0
    %v8900 = vadd.f32 %v8593, %v8899
    %v8901 = vpop.f32.mrf.mxu0
    %v8902 = vpop.f32.mrf.mxu0
    %v8903 = vadd.f32 %v8596, %v8902
    %v8904 = vpop.f32.mrf.mxu0
    %8905 = vmatprep.mubr.bf16.mxu0 0
    %8906 = vmatmul.mubr.bf16.gmra.mxu0 %v8366
    %v8907 = vpop.f32.mrf.mxu0
    %v8908 = vadd.f32 %v8601, %v8907
    %v8909 = vpop.f32.mrf.mxu0
    %v8910 = vpop.f32.mrf.mxu0
    %v8911 = vadd.f32 %v8604, %v8910
    %v8912 = vpop.f32.mrf.mxu0
    %8913 = vmatprep.mubr.bf16.mxu0 0
    %8914 = vmatmul.mubr.bf16.gmra.mxu0 %v8369
    %v8915 = vpop.f32.mrf.mxu0
    %v8916 = vadd.f32 %v8609, %v8915
    %v8917 = vpop.f32.mrf.mxu0
    %v8918 = vpop.f32.mrf.mxu0
    %v8919 = vadd.f32 %v8612, %v8918
    %v8920 = vpop.f32.mrf.mxu0
    %8921 = vmatprep.mubr.bf16.mxu0 0
    %8922 = vmatmul.mubr.bf16.gmra.mxu0 %v8372
    %v8923 = vpop.f32.mrf.mxu0
    %v8924 = vadd.f32 %v8617, %v8923
    %v8925 = vpop.f32.mrf.mxu0
    %v8926 = vpop.f32.mrf.mxu0
    %v8927 = vadd.f32 %v8620, %v8926
    %v8928 = vpop.f32.mrf.mxu0
    %8929 = vmatprep.mubr.bf16.mxu0 0
    %8930 = vmatmul.mubr.bf16.gmra.mxu0 %v8375
    %v8931 = vpop.f32.mrf.mxu0
    %v8932 = vadd.f32 %v8625, %v8931
    %v8933 = vpop.f32.mrf.mxu0
    %v8934 = vpop.f32.mrf.mxu0
    %v8935 = vadd.f32 %v8628, %v8934
    %v8936 = vpop.f32.mrf.mxu0
    %8937 = vmatprep.mubr.bf16.mxu0 0
    %8938 = vmatmul.mubr.bf16.gmra.mxu0 %v8378
    %v8939 = vpop.f32.mrf.mxu0
    %v8940 = vadd.f32 %v8633, %v8939
    %v8941 = vpop.f32.mrf.mxu0
    %v8942 = vpop.f32.mrf.mxu0
    %v8943 = vadd.f32 %v8636, %v8942
    %v8944 = vpop.f32.mrf.mxu0
    %8945 = vmatprep.mubr.bf16.mxu0 0
    %8946 = vmatmul.mubr.bf16.gmra.mxu0 %v8381
    %v8947 = vpop.f32.mrf.mxu0
    %v8948 = vadd.f32 %v8641, %v8947
    %v8949 = vpop.f32.mrf.mxu0
    %v8950 = vpop.f32.mrf.mxu0
    %v8951 = vadd.f32 %v8644, %v8950
    %v8952 = vpop.f32.mrf.mxu0
    %8953 = vdwg.mxu0
    %v8954 = vld [vmem:[#allocation5 + $0x10] sm:$0xf]
    %v8955 = vld [vmem:[#allocation5 + $0x14] sm:$0xf]
    %v8956 = vld [vmem:[#allocation5 + $0x18] sm:$0xf]
    %v8957 = vld [vmem:[#allocation5 + $0x1c] sm:$0xf]
    %v8958 = vld [vmem:[#allocation5 + $0x20] sm:$0xf]
    %v8959 = vld [vmem:[#allocation5 + $0x24] sm:$0xf]
    %v8960 = vld [vmem:[#allocation5 + $0x28] sm:$0xf]
    %v8961 = vld [vmem:[#allocation5 + $0x2c] sm:$0xf]
    %v8962 = vld [vmem:[#allocation5 + $0x30] sm:$0xf]
    %v8963 = vld [vmem:[#allocation5 + $0x34] sm:$0xf]
    %v8964 = vld [vmem:[#allocation5 + $0x38] sm:$0xf]
    %v8965 = vld [vmem:[#allocation5 + $0x3c] sm:$0xf]
    %v8966 = vld [vmem:[#allocation5 + $0x40] sm:$0xf]
    %v8967 = vld [vmem:[#allocation5 + $0x44] sm:$0xf]
    %v8968 = vld [vmem:[#allocation5 + $0x48] sm:$0xf]
    %v8969 = vld [vmem:[#allocation5 + $0x4c] sm:$0xf]
    %v8970 = vld [vmem:[#allocation5 + $0x50] sm:$0xf]
    %v8971 = vld [vmem:[#allocation5 + $0x54] sm:$0xf]
    %v8972 = vld [vmem:[#allocation5 + $0x58] sm:$0xf]
    %v8973 = vld [vmem:[#allocation5 + $0x5c] sm:$0xf]
    %v8974 = vld [vmem:[#allocation5 + $0x60] sm:$0xf]
    %v8975 = vld [vmem:[#allocation5 + $0x64] sm:$0xf]
    %v8976 = vld [vmem:[#allocation5 + $0x68] sm:$0xf]
    %v8977 = vld [vmem:[#allocation5 + $0x6c] sm:$0xf]
    %v8978 = vld [vmem:[#allocation5 + $0x70] sm:$0xf]
    %v8979 = vld [vmem:[#allocation5 + $0x74] sm:$0xf]
    %v8980 = vld [vmem:[#allocation5 + $0x78] sm:$0xf]
    %v8981 = vld [vmem:[#allocation5 + $0x7c] sm:$0xf]
    %v8982 = vld [vmem:[#allocation5 + $0x80] sm:$0xf]
    %v8983 = vld [vmem:[#allocation5 + $0x84] sm:$0xf]
    %v8984 = vld [vmem:[#allocation5 + $0x88] sm:$0xf]
    %v8985 = vld [vmem:[#allocation5 + $0x8c] sm:$0xf]
    %v8986 = vld [vmem:[#allocation5 + $0x90] sm:$0xf]
    %v8987 = vld [vmem:[#allocation5 + $0x94] sm:$0xf]
    %v8988 = vld [vmem:[#allocation5 + $0x98] sm:$0xf]
    %v8989 = vld [vmem:[#allocation5 + $0x9c] sm:$0xf]
    %v8990 = vld [vmem:[#allocation5 + $0xa0] sm:$0xf]
    %v8991 = vld [vmem:[#allocation5 + $0xa4] sm:$0xf]
    %v8992 = vld [vmem:[#allocation5 + $0xa8] sm:$0xf]
    %v8993 = vld [vmem:[#allocation5 + $0xac] sm:$0xf]
    %v8994 = vld [vmem:[#allocation5 + $0xb0] sm:$0xf]
    %v8995 = vld [vmem:[#allocation5 + $0xb4] sm:$0xf]
    %v8996 = vld [vmem:[#allocation5 + $0xb8] sm:$0xf]
    %v8997 = vld [vmem:[#allocation5 + $0xbc] sm:$0xf]
    %v8998 = vld [vmem:[#allocation5 + $0xc0] sm:$0xf]
    %v8999 = vld [vmem:[#allocation5 + $0xc4] sm:$0xf]
    %v9000 = vld [vmem:[#allocation5 + $0xc8] sm:$0xf]
    %v9001 = vld [vmem:[#allocation5 + $0xcc] sm:$0xf]
    %v9002 = vld [vmem:[#allocation5 + $0xd0] sm:$0xf]
    %v9003 = vld [vmem:[#allocation5 + $0xd4] sm:$0xf]
    %v9004 = vld [vmem:[#allocation5 + $0xd8] sm:$0xf]
    %v9005 = vld [vmem:[#allocation5 + $0xdc] sm:$0xf]
    %v9006 = vld [vmem:[#allocation5 + $0xe0] sm:$0xf]
    %v9007 = vld [vmem:[#allocation5 + $0xe4] sm:$0xf]
    %v9008 = vld [vmem:[#allocation5 + $0xe8] sm:$0xf]
    %v9009 = vld [vmem:[#allocation5 + $0xec] sm:$0xf]
    %s9010 = scalar_lea.vmem %s13, 104
    %v9011 = vld [vmem:[%s9010] sm:$0xf]
    %v9012 = vld [vmem:[%s9010 + $0x4] sm:$0xf]
    %v9013 = vld [vmem:[%s9010 + $0x8] sm:$0xf]
    %v9014 = vld [vmem:[%s9010 + $0xc] sm:$0xf]
    %v9015 = vld [vmem:[%s9010 + $0x10] sm:$0xf]
    %v9016 = vld [vmem:[%s9010 + $0x14] sm:$0xf]
    %v9017 = vld [vmem:[%s9010 + $0x18] sm:$0xf]
    %v9018 = vld [vmem:[%s9010 + $0x1c] sm:$0xf]
    %v9019 = vld [vmem:[%s9010 + $0x20] sm:$0xf]
    %v9020 = vld [vmem:[%s9010 + $0x24] sm:$0xf]
    %v9021 = vld [vmem:[%s9010 + $0x28] sm:$0xf]
    %v9022 = vld [vmem:[%s9010 + $0x2c] sm:$0xf]
    %v9023 = vld [vmem:[%s9010 + $0x30] sm:$0x3]
    %v9080 = vunpack.c.l.b16 %v8954
    %v9081 = vunpack.c.l.b16 %v8955
    %v9082 = vunpack.c.l.b16 %v8956
    %v9083 = vunpack.c.l.b16 %v8957
    %v9084 = vunpack.c.l.b16 %v8958
    %v9085 = vunpack.c.l.b16 %v8959
    %v9086 = vunpack.c.l.b16 %v8960
    %v9087 = vunpack.c.l.b16 %v8961
    %v9088 = vunpack.c.l.b16 %v8962
    %v9089 = vunpack.c.l.b16 %v8963
    %v9090 = vunpack.c.l.b16 %v8964
    %v9091 = vunpack.c.l.b16 %v8965
    %v9092 = vunpack.c.l.b16 %v8966
    %v9093 = vunpack.c.l.b16 %v8967
    %v9094 = vunpack.c.l.b16 %v8968
    %v9095 = vunpack.c.l.b16 %v8969
    %v9096 = vunpack.c.l.b16 %v8970
    %v9097 = vunpack.c.l.b16 %v8971
    %v9098 = vunpack.c.l.b16 %v8972
    %v9099 = vunpack.c.l.b16 %v8973
    %v9100 = vunpack.c.l.b16 %v8974
    %v9101 = vunpack.c.l.b16 %v8975
    %v9102 = vunpack.c.l.b16 %v8976
    %v9103 = vunpack.c.l.b16 %v8977
    %v9104 = vunpack.c.l.b16 %v8978
    %v9105 = vunpack.c.l.b16 %v8979
    %v9106 = vunpack.c.l.b16 %v8980
    %v9107 = vunpack.c.l.b16 %v8981
    %v9108 = vunpack.c.l.b16 %v8982
    %v9109 = vunpack.c.l.b16 %v8983
    %v9110 = vunpack.c.l.b16 %v8984
    %v9111 = vunpack.c.l.b16 %v8985
    %v9112 = vunpack.c.l.b16 %v8986
    %v9113 = vunpack.c.l.b16 %v8987
    %v9114 = vunpack.c.l.b16 %v8988
    %v9115 = vunpack.c.l.b16 %v8989
    %v9116 = vunpack.c.l.b16 %v8990
    %v9117 = vunpack.c.l.b16 %v8991
    %v9118 = vunpack.c.l.b16 %v8992
    %v9119 = vunpack.c.l.b16 %v8993
    %v9120 = vunpack.c.l.b16 %v8994
    %v9121 = vunpack.c.l.b16 %v8995
    %v9122 = vunpack.c.l.b16 %v8996
    %v9123 = vunpack.c.l.b16 %v8997
    %v9124 = vunpack.c.l.b16 %v8998
    %v9125 = vunpack.c.l.b16 %v8999
    %v9126 = vunpack.c.l.b16 %v9000
    %v9127 = vunpack.c.l.b16 %v9001
    %v9128 = vunpack.c.l.b16 %v9002
    %v9129 = vunpack.c.l.b16 %v9003
    %v9130 = vunpack.c.l.b16 %v9004
    %v9131 = vunpack.c.l.b16 %v9005
    %v9132 = vunpack.c.l.b16 %v9006
    %v9133 = vunpack.c.l.b16 %v9007
    %v9134 = vunpack.c.l.b16 %v9008
    %v9135 = vunpack.c.l.b16 %v9009
    %v9136 = vpack.c.b16 %v9081, %v9080
    %v9137 = vpack.c.b16 %v9083, %v9082
    %v9138 = vpack.c.b16 %v9085, %v9084
    %v9139 = vpack.c.b16 %v9087, %v9086
    %v9140 = vpack.c.b16 %v9089, %v9088
    %v9141 = vpack.c.b16 %v9091, %v9090
    %v9142 = vpack.c.b16 %v9093, %v9092
    %v9143 = vpack.c.b16 %v9095, %v9094
    %v9144 = vpack.c.b16 %v9097, %v9096
    %v9145 = vpack.c.b16 %v9099, %v9098
    %v9146 = vpack.c.b16 %v9101, %v9100
    %v9147 = vpack.c.b16 %v9103, %v9102
    %v9148 = vpack.c.b16 %v9105, %v9104
    %v9149 = vpack.c.b16 %v9107, %v9106
    %v9150 = vpack.c.b16 %v9109, %v9108
    %v9151 = vpack.c.b16 %v9111, %v9110
    %v9152 = vpack.c.b16 %v9113, %v9112
    %v9153 = vpack.c.b16 %v9115, %v9114
    %v9154 = vpack.c.b16 %v9117, %v9116
    %v9155 = vpack.c.b16 %v9119, %v9118
    %v9156 = vpack.c.b16 %v9121, %v9120
    %v9157 = vpack.c.b16 %v9123, %v9122
    %v9158 = vpack.c.b16 %v9125, %v9124
    %v9159 = vpack.c.b16 %v9127, %v9126
    %v9160 = vpack.c.b16 %v9129, %v9128
    %v9161 = vpack.c.b16 %v9131, %v9130
    %v9162 = vpack.c.b16 %v9133, %v9132
    %v9163 = vpack.c.b16 %v9135, %v9134
    %v9177 = vunpack.c.l.b16 %v9011
    %v9178 = vunpack.c.l.b16 %v9012
    %v9179 = vunpack.c.l.b16 %v9013
    %v9180 = vunpack.c.l.b16 %v9014
    %v9181 = vunpack.c.l.b16 %v9015
    %v9182 = vunpack.c.l.b16 %v9016
    %v9183 = vunpack.c.l.b16 %v9017
    %v9184 = vunpack.c.l.b16 %v9018
    %v9185 = vunpack.c.l.b16 %v9019
    %v9186 = vunpack.c.l.b16 %v9020
    %v9187 = vunpack.c.l.b16 %v9021
    %v9188 = vunpack.c.l.b16 %v9022
    %v9189 = vunpack.c.l.b16 %v9023
    %v9190 = vpack.c.b16 %v9178, %v9177
    %v9191 = vpack.c.b16 %v9180, %v9179
    %v9192 = vpack.c.b16 %v9182, %v9181
    %v9193 = vpack.c.b16 %v9184, %v9183
    %v9194 = vpack.c.b16 %v9186, %v9185
    %v9195 = vpack.c.b16 %v9188, %v9187
    %v9196 = vpack.c.b16 %v9189, %v9189
    %v9204 = vsel %vm8301, %v9136, 0
    %v9207 = vsel %vm8301, %v9137, 0
    %v9210 = vsel %vm8301, %v9138, 0
    %v9213 = vsel %vm8301, %v9139, 0
    %v9216 = vsel %vm8301, %v9140, 0
    %v9219 = vsel %vm8301, %v9141, 0
    %v9222 = vsel %vm8301, %v9142, 0
    %v9225 = vsel %vm8301, %v9143, 0
    %v9228 = vsel %vm8301, %v9144, 0
    %v9231 = vsel %vm8301, %v9145, 0
    %v9234 = vsel %vm8301, %v9146, 0
    %v9237 = vsel %vm8301, %v9147, 0
    %v9240 = vsel %vm8301, %v9148, 0
    %v9243 = vsel %vm8301, %v9149, 0
    %v9246 = vsel %vm8301, %v9150, 0
    %v9249 = vsel %vm8301, %v9151, 0
    %v9252 = vsel %vm8301, %v9152, 0
    %v9255 = vsel %vm8301, %v9153, 0
    %v9258 = vsel %vm8301, %v9154, 0
    %v9261 = vsel %vm8301, %v9155, 0
    %v9264 = vsel %vm8301, %v9156, 0
    %v9267 = vsel %vm8301, %v9157, 0
    %v9270 = vsel %vm8301, %v9158, 0
    %v9273 = vsel %vm8301, %v9159, 0
    %v9276 = vsel %vm8301, %v9160, 0
    %v9279 = vsel %vm8301, %v9161, 0
    %v9282 = vsel %vm8301, %v9162, 0
    %v9285 = vsel %vm8301, %v9163, 0
    %v9288 = vsel %vm8386, %v9196, 0
    %9290 = vmatprep.subr.bf16.mxu0 0
    %9291 = vmatpush1.bf16.msra.mxu0 0
    %9292 = vmatprep.subr.bf16.mxu0 0
    %9293 = vmatpush1.bf16.msra.mxu0 %v9288
    %9294 = vmatprep.subr.bf16.mxu0 0
    %9295 = vmatpush1.bf16.msra.mxu0 %v9195
    %9296 = vmatprep.subr.bf16.mxu0 0
    %9297 = vmatpush1.bf16.msra.mxu0 %v9194
    %9298 = vmatprep.subr.bf16.mxu0 0
    %9299 = vmatpush1.bf16.msra.mxu0 %v9193
    %9300 = vmatprep.subr.bf16.mxu0 0
    %9301 = vmatpush1.bf16.msra.mxu0 %v9192
    %9302 = vmatprep.subr.bf16.mxu0 0
    %9303 = vmatpush1.bf16.msra.mxu0 %v9191
    %9304 = vmatprep.subr.bf16.mxu0 0
    %9305 = vmatpush1.bf16.msra.mxu0 %v9190
    %9306 = vmatprep.subr.bf16.mxu0 0
    %9307 = vmatpush2.bf16.msra.mxu0 0
    %9308 = vmatprep.subr.bf16.mxu0 0
    %9309 = vmatpush2.bf16.msra.mxu0 0
    %9310 = vmatprep.subr.bf16.mxu0 0
    %9311 = vmatpush2.bf16.msra.mxu0 0
    %9312 = vmatprep.subr.bf16.mxu0 0
    %9313 = vmatpush2.bf16.msra.mxu0 0
    %9314 = vmatprep.subr.bf16.mxu0 0
    %9315 = vmatpush2.bf16.msra.mxu0 0
    %9316 = vmatprep.subr.bf16.mxu0 0
    %9317 = vmatpush2.bf16.msra.mxu0 0
    %9318 = vmatprep.subr.bf16.mxu0 0
    %9319 = vmatpush2.bf16.msra.mxu0 0
    %9320 = vmatprep.subr.bf16.mxu0 0
    %9321 = vmatpush2.bf16.msra.mxu0 0
    %9322 = vmatprep.mubr.bf16.mxu0 0
    %9323 = vmatmul.mubr.bf16.gmra.mxu0 %v9204
    %v9324 = vpop.f32.mrf.mxu0
    %v9325 = vadd.f32 0.0, %v9324
    %v9326 = vpop.f32.mrf.mxu0
    %v9327 = vpop.f32.mrf.mxu0
    %v9328 = vadd.f32 0.0, %v9327
    %v9329 = vpop.f32.mrf.mxu0
    %9330 = vmatprep.mubr.bf16.mxu0 0
    %9331 = vmatmul.mubr.bf16.gmra.mxu0 %v9207
    %v9332 = vpop.f32.mrf.mxu0
    %v9333 = vadd.f32 0.0, %v9332
    %v9334 = vpop.f32.mrf.mxu0
    %v9335 = vpop.f32.mrf.mxu0
    %v9336 = vadd.f32 0.0, %v9335
    %v9337 = vpop.f32.mrf.mxu0
    %9338 = vmatprep.mubr.bf16.mxu0 0
    %9339 = vmatmul.mubr.bf16.gmra.mxu0 %v9210
    %v9340 = vpop.f32.mrf.mxu0
    %v9341 = vadd.f32 0.0, %v9340
    %v9342 = vpop.f32.mrf.mxu0
    %v9343 = vpop.f32.mrf.mxu0
    %v9344 = vadd.f32 0.0, %v9343
    %v9345 = vpop.f32.mrf.mxu0
    %9346 = vmatprep.mubr.bf16.mxu0 0
    %9347 = vmatmul.mubr.bf16.gmra.mxu0 %v9213
    %v9348 = vpop.f32.mrf.mxu0
    %v9349 = vadd.f32 0.0, %v9348
    %v9350 = vpop.f32.mrf.mxu0
    %v9351 = vpop.f32.mrf.mxu0
    %v9352 = vadd.f32 0.0, %v9351
    %v9353 = vpop.f32.mrf.mxu0
    %9354 = vmatprep.mubr.bf16.mxu0 0
    %9355 = vmatmul.mubr.bf16.gmra.mxu0 %v9216
    %v9356 = vpop.f32.mrf.mxu0
    %v9357 = vadd.f32 0.0, %v9356
    %v9358 = vpop.f32.mrf.mxu0
    %v9359 = vpop.f32.mrf.mxu0
    %v9360 = vadd.f32 0.0, %v9359
    %v9361 = vpop.f32.mrf.mxu0
    %9362 = vmatprep.mubr.bf16.mxu0 0
    %9363 = vmatmul.mubr.bf16.gmra.mxu0 %v9219
    %v9364 = vpop.f32.mrf.mxu0
    %v9365 = vadd.f32 0.0, %v9364
    %v9366 = vpop.f32.mrf.mxu0
    %v9367 = vpop.f32.mrf.mxu0
    %v9368 = vadd.f32 0.0, %v9367
    %v9369 = vpop.f32.mrf.mxu0
    %9370 = vmatprep.mubr.bf16.mxu0 0
    %9371 = vmatmul.mubr.bf16.gmra.mxu0 %v9222
    %v9372 = vpop.f32.mrf.mxu0
    %v9373 = vadd.f32 0.0, %v9372
    %v9374 = vpop.f32.mrf.mxu0
    %v9375 = vpop.f32.mrf.mxu0
    %v9376 = vadd.f32 0.0, %v9375
    %v9377 = vpop.f32.mrf.mxu0
    %9378 = vmatprep.mubr.bf16.mxu0 0
    %9379 = vmatmul.mubr.bf16.gmra.mxu0 %v9225
    %v9380 = vpop.f32.mrf.mxu0
    %v9381 = vadd.f32 0.0, %v9380
    %v9382 = vpop.f32.mrf.mxu0
    %v9383 = vpop.f32.mrf.mxu0
    %v9384 = vadd.f32 0.0, %v9383
    %v9385 = vpop.f32.mrf.mxu0
    %9386 = vmatprep.mubr.bf16.mxu0 0
    %9387 = vmatmul.mubr.bf16.gmra.mxu0 %v9228
    %v9388 = vpop.f32.mrf.mxu0
    %v9389 = vadd.f32 0.0, %v9388
    %v9390 = vpop.f32.mrf.mxu0
    %v9391 = vpop.f32.mrf.mxu0
    %v9392 = vadd.f32 0.0, %v9391
    %v9393 = vpop.f32.mrf.mxu0
    %9394 = vmatprep.mubr.bf16.mxu0 0
    %9395 = vmatmul.mubr.bf16.gmra.mxu0 %v9231
    %v9396 = vpop.f32.mrf.mxu0
    %v9397 = vadd.f32 0.0, %v9396
    %v9398 = vpop.f32.mrf.mxu0
    %v9399 = vpop.f32.mrf.mxu0
    %v9400 = vadd.f32 0.0, %v9399
    %v9401 = vpop.f32.mrf.mxu0
    %9402 = vmatprep.mubr.bf16.mxu0 0
    %9403 = vmatmul.mubr.bf16.gmra.mxu0 %v9234
    %v9404 = vpop.f32.mrf.mxu0
    %v9405 = vadd.f32 0.0, %v9404
    %v9406 = vpop.f32.mrf.mxu0
    %v9407 = vpop.f32.mrf.mxu0
    %v9408 = vadd.f32 0.0, %v9407
    %v9409 = vpop.f32.mrf.mxu0
    %9410 = vmatprep.mubr.bf16.mxu0 0
    %9411 = vmatmul.mubr.bf16.gmra.mxu0 %v9237
    %v9412 = vpop.f32.mrf.mxu0
    %v9413 = vadd.f32 0.0, %v9412
    %v9414 = vpop.f32.mrf.mxu0
    %v9415 = vpop.f32.mrf.mxu0
    %v9416 = vadd.f32 0.0, %v9415
    %v9417 = vpop.f32.mrf.mxu0
    %9418 = vmatprep.mubr.bf16.mxu0 0
    %9419 = vmatmul.mubr.bf16.gmra.mxu0 %v9240
    %v9420 = vpop.f32.mrf.mxu0
    %v9421 = vadd.f32 0.0, %v9420
    %v9422 = vpop.f32.mrf.mxu0
    %v9423 = vpop.f32.mrf.mxu0
    %v9424 = vadd.f32 0.0, %v9423
    %v9425 = vpop.f32.mrf.mxu0
    %9426 = vmatprep.mubr.bf16.mxu0 0
    %9427 = vmatmul.mubr.bf16.gmra.mxu0 %v9243
    %v9428 = vpop.f32.mrf.mxu0
    %v9429 = vadd.f32 0.0, %v9428
    %v9430 = vpop.f32.mrf.mxu0
    %v9431 = vpop.f32.mrf.mxu0
    %v9432 = vadd.f32 0.0, %v9431
    %v9433 = vpop.f32.mrf.mxu0
    %9434 = vmatprep.mubr.bf16.mxu0 0
    %9435 = vmatmul.mubr.bf16.gmra.mxu0 %v9246
    %v9436 = vpop.f32.mrf.mxu0
    %v9437 = vadd.f32 0.0, %v9436
    %v9438 = vpop.f32.mrf.mxu0
    %v9439 = vpop.f32.mrf.mxu0
    %v9440 = vadd.f32 0.0, %v9439
    %v9441 = vpop.f32.mrf.mxu0
    %9442 = vmatprep.mubr.bf16.mxu0 0
    %9443 = vmatmul.mubr.bf16.gmra.mxu0 %v9249
    %v9444 = vpop.f32.mrf.mxu0
    %v9445 = vadd.f32 0.0, %v9444
    %v9446 = vpop.f32.mrf.mxu0
    %v9447 = vpop.f32.mrf.mxu0
    %v9448 = vadd.f32 0.0, %v9447
    %v9449 = vpop.f32.mrf.mxu0
    %9450 = vmatprep.mubr.bf16.mxu0 0
    %9451 = vmatmul.mubr.bf16.gmra.mxu0 %v9252
    %v9452 = vpop.f32.mrf.mxu0
    %v9453 = vadd.f32 0.0, %v9452
    %v9454 = vpop.f32.mrf.mxu0
    %v9455 = vpop.f32.mrf.mxu0
    %v9456 = vadd.f32 0.0, %v9455
    %v9457 = vpop.f32.mrf.mxu0
    %9458 = vmatprep.mubr.bf16.mxu0 0
    %9459 = vmatmul.mubr.bf16.gmra.mxu0 %v9255
    %v9460 = vpop.f32.mrf.mxu0
    %v9461 = vadd.f32 0.0, %v9460
    %v9462 = vpop.f32.mrf.mxu0
    %v9463 = vpop.f32.mrf.mxu0
    %v9464 = vadd.f32 0.0, %v9463
    %v9465 = vpop.f32.mrf.mxu0
    %9466 = vmatprep.mubr.bf16.mxu0 0
    %9467 = vmatmul.mubr.bf16.gmra.mxu0 %v9258
    %v9468 = vpop.f32.mrf.mxu0
    %v9469 = vadd.f32 0.0, %v9468
    %v9470 = vpop.f32.mrf.mxu0
    %v9471 = vpop.f32.mrf.mxu0
    %v9472 = vadd.f32 0.0, %v9471
    %v9473 = vpop.f32.mrf.mxu0
    %9474 = vmatprep.mubr.bf16.mxu0 0
    %9475 = vmatmul.mubr.bf16.gmra.mxu0 %v9261
    %v9476 = vpop.f32.mrf.mxu0
    %v9477 = vadd.f32 0.0, %v9476
    %v9478 = vpop.f32.mrf.mxu0
    %v9479 = vpop.f32.mrf.mxu0
    %v9480 = vadd.f32 0.0, %v9479
    %v9481 = vpop.f32.mrf.mxu0
    %9482 = vmatprep.mubr.bf16.mxu0 0
    %9483 = vmatmul.mubr.bf16.gmra.mxu0 %v9264
    %v9484 = vpop.f32.mrf.mxu0
    %v9485 = vadd.f32 0.0, %v9484
    %v9486 = vpop.f32.mrf.mxu0
    %v9487 = vpop.f32.mrf.mxu0
    %v9488 = vadd.f32 0.0, %v9487
    %v9489 = vpop.f32.mrf.mxu0
    %9490 = vmatprep.mubr.bf16.mxu0 0
    %9491 = vmatmul.mubr.bf16.gmra.mxu0 %v9267
    %v9492 = vpop.f32.mrf.mxu0
    %v9493 = vadd.f32 0.0, %v9492
    %v9494 = vpop.f32.mrf.mxu0
    %v9495 = vpop.f32.mrf.mxu0
    %v9496 = vadd.f32 0.0, %v9495
    %v9497 = vpop.f32.mrf.mxu0
    %9498 = vmatprep.mubr.bf16.mxu0 0
    %9499 = vmatmul.mubr.bf16.gmra.mxu0 %v9270
    %v9500 = vpop.f32.mrf.mxu0
    %v9501 = vadd.f32 0.0, %v9500
    %v9502 = vpop.f32.mrf.mxu0
    %v9503 = vpop.f32.mrf.mxu0
    %v9504 = vadd.f32 0.0, %v9503
    %v9505 = vpop.f32.mrf.mxu0
    %9506 = vmatprep.mubr.bf16.mxu0 0
    %9507 = vmatmul.mubr.bf16.gmra.mxu0 %v9273
    %v9508 = vpop.f32.mrf.mxu0
    %v9509 = vadd.f32 0.0, %v9508
    %v9510 = vpop.f32.mrf.mxu0
    %v9511 = vpop.f32.mrf.mxu0
    %v9512 = vadd.f32 0.0, %v9511
    %v9513 = vpop.f32.mrf.mxu0
    %9514 = vmatprep.mubr.bf16.mxu0 0
    %9515 = vmatmul.mubr.bf16.gmra.mxu0 %v9276
    %v9516 = vpop.f32.mrf.mxu0
    %v9517 = vadd.f32 0.0, %v9516
    %v9518 = vpop.f32.mrf.mxu0
    %v9519 = vpop.f32.mrf.mxu0
    %v9520 = vadd.f32 0.0, %v9519
    %v9521 = vpop.f32.mrf.mxu0
    %9522 = vmatprep.mubr.bf16.mxu0 0
    %9523 = vmatmul.mubr.bf16.gmra.mxu0 %v9279
    %v9524 = vpop.f32.mrf.mxu0
    %v9525 = vadd.f32 0.0, %v9524
    %v9526 = vpop.f32.mrf.mxu0
    %v9527 = vpop.f32.mrf.mxu0
    %v9528 = vadd.f32 0.0, %v9527
    %v9529 = vpop.f32.mrf.mxu0
    %9530 = vmatprep.mubr.bf16.mxu0 0
    %9531 = vmatmul.mubr.bf16.gmra.mxu0 %v9282
    %v9532 = vpop.f32.mrf.mxu0
    %v9533 = vadd.f32 0.0, %v9532
    %v9534 = vpop.f32.mrf.mxu0
    %v9535 = vpop.f32.mrf.mxu0
    %v9536 = vadd.f32 0.0, %v9535
    %v9537 = vpop.f32.mrf.mxu0
    %9538 = vmatprep.mubr.bf16.mxu0 0
    %9539 = vmatmul.mubr.bf16.gmra.mxu0 %v9285
    %v9540 = vpop.f32.mrf.mxu0
    %v9541 = vadd.f32 0.0, %v9540
    %v9542 = vpop.f32.mrf.mxu0
    %v9543 = vpop.f32.mrf.mxu0
    %v9544 = vadd.f32 0.0, %v9543
    %v9545 = vpop.f32.mrf.mxu0
    %9546 = vdwg.mxu0
    %v9547 = vadd.f32 %v8732, %v9325
    %v9548 = vadd.f32 %v8735, %v9328
    %v9549 = vadd.f32 %v8740, %v9333
    %v9550 = vadd.f32 %v8743, %v9336
    %v9551 = vadd.f32 %v8748, %v9341
    %v9552 = vadd.f32 %v8751, %v9344
    %v9553 = vadd.f32 %v8756, %v9349
    %v9554 = vadd.f32 %v8759, %v9352
    %v9555 = vadd.f32 %v8764, %v9357
    %v9556 = vadd.f32 %v8767, %v9360
    %v9557 = vadd.f32 %v8772, %v9365
    %v9558 = vadd.f32 %v8775, %v9368
    %v9559 = vadd.f32 %v8780, %v9373
    %v9560 = vadd.f32 %v8783, %v9376
    %v9561 = vadd.f32 %v8788, %v9381
    %v9562 = vadd.f32 %v8791, %v9384
    %v9563 = vadd.f32 %v8796, %v9389
    %v9564 = vadd.f32 %v8799, %v9392
    %v9565 = vadd.f32 %v8804, %v9397
    %v9566 = vadd.f32 %v8807, %v9400
    %v9567 = vadd.f32 %v8812, %v9405
    %v9568 = vadd.f32 %v8815, %v9408
    %v9569 = vadd.f32 %v8820, %v9413
    %v9570 = vadd.f32 %v8823, %v9416
    %v9571 = vadd.f32 %v8828, %v9421
    %v9572 = vadd.f32 %v8831, %v9424
    %v9573 = vadd.f32 %v8836, %v9429
    %v9574 = vadd.f32 %v8839, %v9432
    %v9575 = vadd.f32 %v8844, %v9437
    %v9576 = vadd.f32 %v8847, %v9440
    %v9577 = vadd.f32 %v8852, %v9445
    %v9578 = vadd.f32 %v8855, %v9448
    %v9579 = vadd.f32 %v8860, %v9453
    %v9580 = vadd.f32 %v8863, %v9456
    %v9581 = vadd.f32 %v8868, %v9461
    %v9582 = vadd.f32 %v8871, %v9464
    %v9583 = vadd.f32 %v8876, %v9469
    %v9584 = vadd.f32 %v8879, %v9472
    %v9585 = vadd.f32 %v8884, %v9477
    %v9586 = vadd.f32 %v8887, %v9480
    %v9587 = vadd.f32 %v8892, %v9485
    %v9588 = vadd.f32 %v8895, %v9488
    %v9589 = vadd.f32 %v8900, %v9493
    %v9590 = vadd.f32 %v8903, %v9496
    %v9591 = vadd.f32 %v8908, %v9501
    %v9592 = vadd.f32 %v8911, %v9504
    %v9593 = vadd.f32 %v8916, %v9509
    %v9594 = vadd.f32 %v8919, %v9512
    %v9595 = vadd.f32 %v8924, %v9517
    %v9596 = vadd.f32 %v8927, %v9520
    %v9597 = vadd.f32 %v8932, %v9525
    %v9598 = vadd.f32 %v8935, %v9528
    %v9599 = vadd.f32 %v8940, %v9533
    %v9600 = vadd.f32 %v8943, %v9536
    %v9601 = vadd.f32 %v8948, %v9541
    %v9602 = vadd.f32 %v8951, %v9544
    %v9603 = vld [vmem:[#allocation5 + $0x18] sm:$0xf]
    %v9604 = vld [vmem:[#allocation5 + $0x1c] sm:$0xf]
    %v9605 = vld [vmem:[#allocation5 + $0x20] sm:$0xf]
    %v9606 = vld [vmem:[#allocation5 + $0x24] sm:$0xf]
    %v9607 = vld [vmem:[#allocation5 + $0x28] sm:$0xf]
    %v9608 = vld [vmem:[#allocation5 + $0x2c] sm:$0xf]
    %v9609 = vld [vmem:[#allocation5 + $0x30] sm:$0xf]
    %v9610 = vld [vmem:[#allocation5 + $0x34] sm:$0xf]
    %v9611 = vld [vmem:[#allocation5 + $0x38] sm:$0xf]
    %v9612 = vld [vmem:[#allocation5 + $0x3c] sm:$0xf]
    %v9613 = vld [vmem:[#allocation5 + $0x40] sm:$0xf]
    %v9614 = vld [vmem:[#allocation5 + $0x44] sm:$0xf]
    %v9615 = vld [vmem:[#allocation5 + $0x48] sm:$0xf]
    %v9616 = vld [vmem:[#allocation5 + $0x4c] sm:$0xf]
    %v9617 = vld [vmem:[#allocation5 + $0x50] sm:$0xf]
    %v9618 = vld [vmem:[#allocation5 + $0x54] sm:$0xf]
    %v9619 = vld [vmem:[#allocation5 + $0x58] sm:$0xf]
    %v9620 = vld [vmem:[#allocation5 + $0x5c] sm:$0xf]
    %v9621 = vld [vmem:[#allocation5 + $0x60] sm:$0xf]
    %v9622 = vld [vmem:[#allocation5 + $0x64] sm:$0xf]
    %v9623 = vld [vmem:[#allocation5 + $0x68] sm:$0xf]
    %v9624 = vld [vmem:[#allocation5 + $0x6c] sm:$0xf]
    %v9625 = vld [vmem:[#allocation5 + $0x70] sm:$0xf]
    %v9626 = vld [vmem:[#allocation5 + $0x74] sm:$0xf]
    %v9627 = vld [vmem:[#allocation5 + $0x78] sm:$0xf]
    %v9628 = vld [vmem:[#allocation5 + $0x7c] sm:$0xf]
    %v9629 = vld [vmem:[#allocation5 + $0x80] sm:$0xf]
    %v9630 = vld [vmem:[#allocation5 + $0x84] sm:$0xf]
    %v9631 = vld [vmem:[#allocation5 + $0x88] sm:$0xf]
    %v9632 = vld [vmem:[#allocation5 + $0x8c] sm:$0xf]
    %v9633 = vld [vmem:[#allocation5 + $0x90] sm:$0xf]
    %v9634 = vld [vmem:[#allocation5 + $0x94] sm:$0xf]
    %v9635 = vld [vmem:[#allocation5 + $0x98] sm:$0xf]
    %v9636 = vld [vmem:[#allocation5 + $0x9c] sm:$0xf]
    %v9637 = vld [vmem:[#allocation5 + $0xa0] sm:$0xf]
    %v9638 = vld [vmem:[#allocation5 + $0xa4] sm:$0xf]
    %v9639 = vld [vmem:[#allocation5 + $0xa8] sm:$0xf]
    %v9640 = vld [vmem:[#allocation5 + $0xac] sm:$0xf]
    %v9641 = vld [vmem:[#allocation5 + $0xb0] sm:$0xf]
    %v9642 = vld [vmem:[#allocation5 + $0xb4] sm:$0xf]
    %v9643 = vld [vmem:[#allocation5 + $0xb8] sm:$0xf]
    %v9644 = vld [vmem:[#allocation5 + $0xbc] sm:$0xf]
    %v9645 = vld [vmem:[#allocation5 + $0xc0] sm:$0xf]
    %v9646 = vld [vmem:[#allocation5 + $0xc4] sm:$0xf]
    %v9647 = vld [vmem:[#allocation5 + $0xc8] sm:$0xf]
    %v9648 = vld [vmem:[#allocation5 + $0xcc] sm:$0xf]
    %v9649 = vld [vmem:[#allocation5 + $0xd0] sm:$0xf]
    %v9650 = vld [vmem:[#allocation5 + $0xd4] sm:$0xf]
    %v9651 = vld [vmem:[#allocation5 + $0xd8] sm:$0xf]
    %v9652 = vld [vmem:[#allocation5 + $0xdc] sm:$0xf]
    %v9653 = vld [vmem:[#allocation5 + $0xe0] sm:$0xf]
    %v9654 = vld [vmem:[#allocation5 + $0xe4] sm:$0xf]
    %v9655 = vld [vmem:[#allocation5 + $0xe8] sm:$0xf]
    %v9656 = vld [vmem:[#allocation5 + $0xec] sm:$0xf]
    %v9657 = vld [vmem:[#allocation5 + $0xf0] sm:$0xf]
    %v9658 = vld [vmem:[#allocation5 + $0xf4] sm:$0xf]
    %s9659 = scalar_lea.vmem %s13, 156
    %v9660 = vld [vmem:[%s9659] sm:$0xf]
    %v9661 = vld [vmem:[%s9659 + $0x4] sm:$0xf]
    %v9662 = vld [vmem:[%s9659 + $0x8] sm:$0xf]
    %v9663 = vld [vmem:[%s9659 + $0xc] sm:$0xf]
    %v9664 = vld [vmem:[%s9659 + $0x10] sm:$0xf]
    %v9665 = vld [vmem:[%s9659 + $0x14] sm:$0xf]
    %v9666 = vld [vmem:[%s9659 + $0x18] sm:$0xf]
    %v9667 = vld [vmem:[%s9659 + $0x1c] sm:$0xf]
    %v9668 = vld [vmem:[%s9659 + $0x20] sm:$0xf]
    %v9669 = vld [vmem:[%s9659 + $0x24] sm:$0xf]
    %v9670 = vld [vmem:[%s9659 + $0x28] sm:$0xf]
    %v9671 = vld [vmem:[%s9659 + $0x2c] sm:$0xf]
    %v9672 = vld [vmem:[%s9659 + $0x30] sm:$0x3]
    %v9729 = vunpack.c.l.b16 %v9603
    %v9730 = vunpack.c.l.b16 %v9604
    %v9731 = vunpack.c.l.b16 %v9605
    %v9732 = vunpack.c.l.b16 %v9606
    %v9733 = vunpack.c.l.b16 %v9607
    %v9734 = vunpack.c.l.b16 %v9608
    %v9735 = vunpack.c.l.b16 %v9609
    %v9736 = vunpack.c.l.b16 %v9610
    %v9737 = vunpack.c.l.b16 %v9611
    %v9738 = vunpack.c.l.b16 %v9612
    %v9739 = vunpack.c.l.b16 %v9613
    %v9740 = vunpack.c.l.b16 %v9614
    %v9741 = vunpack.c.l.b16 %v9615
    %v9742 = vunpack.c.l.b16 %v9616
    %v9743 = vunpack.c.l.b16 %v9617
    %v9744 = vunpack.c.l.b16 %v9618
    %v9745 = vunpack.c.l.b16 %v9619
    %v9746 = vunpack.c.l.b16 %v9620
    %v9747 = vunpack.c.l.b16 %v9621
    %v9748 = vunpack.c.l.b16 %v9622
    %v9749 = vunpack.c.l.b16 %v9623
    %v9750 = vunpack.c.l.b16 %v9624
    %v9751 = vunpack.c.l.b16 %v9625
    %v9752 = vunpack.c.l.b16 %v9626
    %v9753 = vunpack.c.l.b16 %v9627
    %v9754 = vunpack.c.l.b16 %v9628
    %v9755 = vunpack.c.l.b16 %v9629
    %v9756 = vunpack.c.l.b16 %v9630
    %v9757 = vunpack.c.l.b16 %v9631
    %v9758 = vunpack.c.l.b16 %v9632
    %v9759 = vunpack.c.l.b16 %v9633
    %v9760 = vunpack.c.l.b16 %v9634
    %v9761 = vunpack.c.l.b16 %v9635
    %v9762 = vunpack.c.l.b16 %v9636
    %v9763 = vunpack.c.l.b16 %v9637
    %v9764 = vunpack.c.l.b16 %v9638
    %v9765 = vunpack.c.l.b16 %v9639
    %v9766 = vunpack.c.l.b16 %v9640
    %v9767 = vunpack.c.l.b16 %v9641
    %v9768 = vunpack.c.l.b16 %v9642
    %v9769 = vunpack.c.l.b16 %v9643
    %v9770 = vunpack.c.l.b16 %v9644
    %v9771 = vunpack.c.l.b16 %v9645
    %v9772 = vunpack.c.l.b16 %v9646
    %v9773 = vunpack.c.l.b16 %v9647
    %v9774 = vunpack.c.l.b16 %v9648
    %v9775 = vunpack.c.l.b16 %v9649
    %v9776 = vunpack.c.l.b16 %v9650
    %v9777 = vunpack.c.l.b16 %v9651
    %v9778 = vunpack.c.l.b16 %v9652
    %v9779 = vunpack.c.l.b16 %v9653
    %v9780 = vunpack.c.l.b16 %v9654
    %v9781 = vunpack.c.l.b16 %v9655
    %v9782 = vunpack.c.l.b16 %v9656
    %v9783 = vunpack.c.l.b16 %v9657
    %v9784 = vunpack.c.l.b16 %v9658
    %v9785 = vpack.c.b16 %v9730, %v9729
    %v9786 = vpack.c.b16 %v9732, %v9731
    %v9787 = vpack.c.b16 %v9734, %v9733
    %v9788 = vpack.c.b16 %v9736, %v9735
    %v9789 = vpack.c.b16 %v9738, %v9737
    %v9790 = vpack.c.b16 %v9740, %v9739
    %v9791 = vpack.c.b16 %v9742, %v9741
    %v9792 = vpack.c.b16 %v9744, %v9743
    %v9793 = vpack.c.b16 %v9746, %v9745
    %v9794 = vpack.c.b16 %v9748, %v9747
    %v9795 = vpack.c.b16 %v9750, %v9749
    %v9796 = vpack.c.b16 %v9752, %v9751
    %v9797 = vpack.c.b16 %v9754, %v9753
    %v9798 = vpack.c.b16 %v9756, %v9755
    %v9799 = vpack.c.b16 %v9758, %v9757
    %v9800 = vpack.c.b16 %v9760, %v9759
    %v9801 = vpack.c.b16 %v9762, %v9761
    %v9802 = vpack.c.b16 %v9764, %v9763
    %v9803 = vpack.c.b16 %v9766, %v9765
    %v9804 = vpack.c.b16 %v9768, %v9767
    %v9805 = vpack.c.b16 %v9770, %v9769
    %v9806 = vpack.c.b16 %v9772, %v9771
    %v9807 = vpack.c.b16 %v9774, %v9773
    %v9808 = vpack.c.b16 %v9776, %v9775
    %v9809 = vpack.c.b16 %v9778, %v9777
    %v9810 = vpack.c.b16 %v9780, %v9779
    %v9811 = vpack.c.b16 %v9782, %v9781
    %v9812 = vpack.c.b16 %v9784, %v9783
    %v9826 = vunpack.c.l.b16 %v9660
    %v9827 = vunpack.c.l.b16 %v9661
    %v9828 = vunpack.c.l.b16 %v9662
    %v9829 = vunpack.c.l.b16 %v9663
    %v9830 = vunpack.c.l.b16 %v9664
    %v9831 = vunpack.c.l.b16 %v9665
    %v9832 = vunpack.c.l.b16 %v9666
    %v9833 = vunpack.c.l.b16 %v9667
    %v9834 = vunpack.c.l.b16 %v9668
    %v9835 = vunpack.c.l.b16 %v9669
    %v9836 = vunpack.c.l.b16 %v9670
    %v9837 = vunpack.c.l.b16 %v9671
    %v9838 = vunpack.c.l.b16 %v9672
    %v9839 = vpack.c.b16 %v9827, %v9826
    %v9840 = vpack.c.b16 %v9829, %v9828
    %v9841 = vpack.c.b16 %v9831, %v9830
    %v9842 = vpack.c.b16 %v9833, %v9832
    %v9843 = vpack.c.b16 %v9835, %v9834
    %v9844 = vpack.c.b16 %v9837, %v9836
    %v9845 = vpack.c.b16 %v9838, %v9838
    %v9853 = vsel %vm8301, %v9785, 0
    %v9856 = vsel %vm8301, %v9786, 0
    %v9859 = vsel %vm8301, %v9787, 0
    %v9862 = vsel %vm8301, %v9788, 0
    %v9865 = vsel %vm8301, %v9789, 0
    %v9868 = vsel %vm8301, %v9790, 0
    %v9871 = vsel %vm8301, %v9791, 0
    %v9874 = vsel %vm8301, %v9792, 0
    %v9877 = vsel %vm8301, %v9793, 0
    %v9880 = vsel %vm8301, %v9794, 0
    %v9883 = vsel %vm8301, %v9795, 0
    %v9886 = vsel %vm8301, %v9796, 0
    %v9889 = vsel %vm8301, %v9797, 0
    %v9892 = vsel %vm8301, %v9798, 0
    %v9895 = vsel %vm8301, %v9799, 0
    %v9898 = vsel %vm8301, %v9800, 0
    %v9901 = vsel %vm8301, %v9801, 0
    %v9904 = vsel %vm8301, %v9802, 0
    %v9907 = vsel %vm8301, %v9803, 0
    %v9910 = vsel %vm8301, %v9804, 0
    %v9913 = vsel %vm8301, %v9805, 0
    %v9916 = vsel %vm8301, %v9806, 0
    %v9919 = vsel %vm8301, %v9807, 0
    %v9922 = vsel %vm8301, %v9808, 0
    %v9925 = vsel %vm8301, %v9809, 0
    %v9928 = vsel %vm8301, %v9810, 0
    %v9931 = vsel %vm8301, %v9811, 0
    %v9934 = vsel %vm8301, %v9812, 0
    %v9937 = vsel %vm8386, %v9845, 0
    %9939 = vmatprep.subr.bf16.mxu0 0
    %9940 = vmatpush1.bf16.msra.mxu0 0
    %9941 = vmatprep.subr.bf16.mxu0 0
    %9942 = vmatpush1.bf16.msra.mxu0 %v9937
    %9943 = vmatprep.subr.bf16.mxu0 0
    %9944 = vmatpush1.bf16.msra.mxu0 %v9844
    %9945 = vmatprep.subr.bf16.mxu0 0
    %9946 = vmatpush1.bf16.msra.mxu0 %v9843
    %9947 = vmatprep.subr.bf16.mxu0 0
    %9948 = vmatpush1.bf16.msra.mxu0 %v9842
    %9949 = vmatprep.subr.bf16.mxu0 0
    %9950 = vmatpush1.bf16.msra.mxu0 %v9841
    %9951 = vmatprep.subr.bf16.mxu0 0
    %9952 = vmatpush1.bf16.msra.mxu0 %v9840
    %9953 = vmatprep.subr.bf16.mxu0 0
    %9954 = vmatpush1.bf16.msra.mxu0 %v9839
    %9955 = vmatprep.subr.bf16.mxu0 0
    %9956 = vmatpush2.bf16.msra.mxu0 0
    %9957 = vmatprep.subr.bf16.mxu0 0
    %9958 = vmatpush2.bf16.msra.mxu0 0
    %9959 = vmatprep.subr.bf16.mxu0 0
    %9960 = vmatpush2.bf16.msra.mxu0 0
    %9961 = vmatprep.subr.bf16.mxu0 0
    %9962 = vmatpush2.bf16.msra.mxu0 0
    %9963 = vmatprep.subr.bf16.mxu0 0
    %9964 = vmatpush2.bf16.msra.mxu0 0
    %9965 = vmatprep.subr.bf16.mxu0 0
    %9966 = vmatpush2.bf16.msra.mxu0 0
    %9967 = vmatprep.subr.bf16.mxu0 0
    %9968 = vmatpush2.bf16.msra.mxu0 0
    %9969 = vmatprep.subr.bf16.mxu0 0
    %9970 = vmatpush2.bf16.msra.mxu0 0
    %9971 = vmatprep.mubr.bf16.mxu0 0
    %9972 = vmatmul.mubr.bf16.gmra.mxu0 %v9853
    %v9973 = vpop.f32.mrf.mxu0
    %v9974 = vadd.f32 0.0, %v9973
    %v9975 = vpop.f32.mrf.mxu0
    %v9976 = vpop.f32.mrf.mxu0
    %v9977 = vadd.f32 0.0, %v9976
    %v9978 = vpop.f32.mrf.mxu0
    %9979 = vmatprep.mubr.bf16.mxu0 0
    %9980 = vmatmul.mubr.bf16.gmra.mxu0 %v9856
    %v9981 = vpop.f32.mrf.mxu0
    %v9982 = vadd.f32 0.0, %v9981
    %v9983 = vpop.f32.mrf.mxu0
    %v9984 = vpop.f32.mrf.mxu0
    %v9985 = vadd.f32 0.0, %v9984
    %v9986 = vpop.f32.mrf.mxu0
    %9987 = vmatprep.mubr.bf16.mxu0 0
    %9988 = vmatmul.mubr.bf16.gmra.mxu0 %v9859
    %v9989 = vpop.f32.mrf.mxu0
    %v9990 = vadd.f32 0.0, %v9989
    %v9991 = vpop.f32.mrf.mxu0
    %v9992 = vpop.f32.mrf.mxu0
    %v9993 = vadd.f32 0.0, %v9992
    %v9994 = vpop.f32.mrf.mxu0
    %9995 = vmatprep.mubr.bf16.mxu0 0
    %9996 = vmatmul.mubr.bf16.gmra.mxu0 %v9862
    %v9997 = vpop.f32.mrf.mxu0
    %v9998 = vadd.f32 0.0, %v9997
    %v9999 = vpop.f32.mrf.mxu0
    %v10000 = vpop.f32.mrf.mxu0
    %v10001 = vadd.f32 0.0, %v10000
    %v10002 = vpop.f32.mrf.mxu0
    %10003 = vmatprep.mubr.bf16.mxu0 0
    %10004 = vmatmul.mubr.bf16.gmra.mxu0 %v9865
    %v10005 = vpop.f32.mrf.mxu0
    %v10006 = vadd.f32 0.0, %v10005
    %v10007 = vpop.f32.mrf.mxu0
    %v10008 = vpop.f32.mrf.mxu0
    %v10009 = vadd.f32 0.0, %v10008
    %v10010 = vpop.f32.mrf.mxu0
    %10011 = vmatprep.mubr.bf16.mxu0 0
    %10012 = vmatmul.mubr.bf16.gmra.mxu0 %v9868
    %v10013 = vpop.f32.mrf.mxu0
    %v10014 = vadd.f32 0.0, %v10013
    %v10015 = vpop.f32.mrf.mxu0
    %v10016 = vpop.f32.mrf.mxu0
    %v10017 = vadd.f32 0.0, %v10016
    %v10018 = vpop.f32.mrf.mxu0
    %10019 = vmatprep.mubr.bf16.mxu0 0
    %10020 = vmatmul.mubr.bf16.gmra.mxu0 %v9871
    %v10021 = vpop.f32.mrf.mxu0
    %v10022 = vadd.f32 0.0, %v10021
    %v10023 = vpop.f32.mrf.mxu0
    %v10024 = vpop.f32.mrf.mxu0
    %v10025 = vadd.f32 0.0, %v10024
    %v10026 = vpop.f32.mrf.mxu0
    %10027 = vmatprep.mubr.bf16.mxu0 0
    %10028 = vmatmul.mubr.bf16.gmra.mxu0 %v9874
    %v10029 = vpop.f32.mrf.mxu0
    %v10030 = vadd.f32 0.0, %v10029
    %v10031 = vpop.f32.mrf.mxu0
    %v10032 = vpop.f32.mrf.mxu0
    %v10033 = vadd.f32 0.0, %v10032
    %v10034 = vpop.f32.mrf.mxu0
    %10035 = vmatprep.mubr.bf16.mxu0 0
    %10036 = vmatmul.mubr.bf16.gmra.mxu0 %v9877
    %v10037 = vpop.f32.mrf.mxu0
    %v10038 = vadd.f32 0.0, %v10037
    %v10039 = vpop.f32.mrf.mxu0
    %v10040 = vpop.f32.mrf.mxu0
    %v10041 = vadd.f32 0.0, %v10040
    %v10042 = vpop.f32.mrf.mxu0
    %10043 = vmatprep.mubr.bf16.mxu0 0
    %10044 = vmatmul.mubr.bf16.gmra.mxu0 %v9880
    %v10045 = vpop.f32.mrf.mxu0
    %v10046 = vadd.f32 0.0, %v10045
    %v10047 = vpop.f32.mrf.mxu0
    %v10048 = vpop.f32.mrf.mxu0
    %v10049 = vadd.f32 0.0, %v10048
    %v10050 = vpop.f32.mrf.mxu0
    %10051 = vmatprep.mubr.bf16.mxu0 0
    %10052 = vmatmul.mubr.bf16.gmra.mxu0 %v9883
    %v10053 = vpop.f32.mrf.mxu0
    %v10054 = vadd.f32 0.0, %v10053
    %v10055 = vpop.f32.mrf.mxu0
    %v10056 = vpop.f32.mrf.mxu0
    %v10057 = vadd.f32 0.0, %v10056
    %v10058 = vpop.f32.mrf.mxu0
    %10059 = vmatprep.mubr.bf16.mxu0 0
    %10060 = vmatmul.mubr.bf16.gmra.mxu0 %v9886
    %v10061 = vpop.f32.mrf.mxu0
    %v10062 = vadd.f32 0.0, %v10061
    %v10063 = vpop.f32.mrf.mxu0
    %v10064 = vpop.f32.mrf.mxu0
    %v10065 = vadd.f32 0.0, %v10064
    %v10066 = vpop.f32.mrf.mxu0
    %10067 = vmatprep.mubr.bf16.mxu0 0
    %10068 = vmatmul.mubr.bf16.gmra.mxu0 %v9889
    %v10069 = vpop.f32.mrf.mxu0
    %v10070 = vadd.f32 0.0, %v10069
    %v10071 = vpop.f32.mrf.mxu0
    %v10072 = vpop.f32.mrf.mxu0
    %v10073 = vadd.f32 0.0, %v10072
    %v10074 = vpop.f32.mrf.mxu0
    %10075 = vmatprep.mubr.bf16.mxu0 0
    %10076 = vmatmul.mubr.bf16.gmra.mxu0 %v9892
    %v10077 = vpop.f32.mrf.mxu0
    %v10078 = vadd.f32 0.0, %v10077
    %v10079 = vpop.f32.mrf.mxu0
    %v10080 = vpop.f32.mrf.mxu0
    %v10081 = vadd.f32 0.0, %v10080
    %v10082 = vpop.f32.mrf.mxu0
    %10083 = vmatprep.mubr.bf16.mxu0 0
    %10084 = vmatmul.mubr.bf16.gmra.mxu0 %v9895
    %v10085 = vpop.f32.mrf.mxu0
    %v10086 = vadd.f32 0.0, %v10085
    %v10087 = vpop.f32.mrf.mxu0
    %v10088 = vpop.f32.mrf.mxu0
    %v10089 = vadd.f32 0.0, %v10088
    %v10090 = vpop.f32.mrf.mxu0
    %10091 = vmatprep.mubr.bf16.mxu0 0
    %10092 = vmatmul.mubr.bf16.gmra.mxu0 %v9898
    %v10093 = vpop.f32.mrf.mxu0
    %v10094 = vadd.f32 0.0, %v10093
    %v10095 = vpop.f32.mrf.mxu0
    %v10096 = vpop.f32.mrf.mxu0
    %v10097 = vadd.f32 0.0, %v10096
    %v10098 = vpop.f32.mrf.mxu0
    %10099 = vmatprep.mubr.bf16.mxu0 0
    %10100 = vmatmul.mubr.bf16.gmra.mxu0 %v9901
    %v10101 = vpop.f32.mrf.mxu0
    %v10102 = vadd.f32 0.0, %v10101
    %v10103 = vpop.f32.mrf.mxu0
    %v10104 = vpop.f32.mrf.mxu0
    %v10105 = vadd.f32 0.0, %v10104
    %v10106 = vpop.f32.mrf.mxu0
    %10107 = vmatprep.mubr.bf16.mxu0 0
    %10108 = vmatmul.mubr.bf16.gmra.mxu0 %v9904
    %v10109 = vpop.f32.mrf.mxu0
    %v10110 = vadd.f32 0.0, %v10109
    %v10111 = vpop.f32.mrf.mxu0
    %v10112 = vpop.f32.mrf.mxu0
    %v10113 = vadd.f32 0.0, %v10112
    %v10114 = vpop.f32.mrf.mxu0
    %10115 = vmatprep.mubr.bf16.mxu0 0
    %10116 = vmatmul.mubr.bf16.gmra.mxu0 %v9907
    %v10117 = vpop.f32.mrf.mxu0
    %v10118 = vadd.f32 0.0, %v10117
    %v10119 = vpop.f32.mrf.mxu0
    %v10120 = vpop.f32.mrf.mxu0
    %v10121 = vadd.f32 0.0, %v10120
    %v10122 = vpop.f32.mrf.mxu0
    %10123 = vmatprep.mubr.bf16.mxu0 0
    %10124 = vmatmul.mubr.bf16.gmra.mxu0 %v9910
    %v10125 = vpop.f32.mrf.mxu0
    %v10126 = vadd.f32 0.0, %v10125
    %v10127 = vpop.f32.mrf.mxu0
    %v10128 = vpop.f32.mrf.mxu0
    %v10129 = vadd.f32 0.0, %v10128
    %v10130 = vpop.f32.mrf.mxu0
    %10131 = vmatprep.mubr.bf16.mxu0 0
    %10132 = vmatmul.mubr.bf16.gmra.mxu0 %v9913
    %v10133 = vpop.f32.mrf.mxu0
    %v10134 = vadd.f32 0.0, %v10133
    %v10135 = vpop.f32.mrf.mxu0
    %v10136 = vpop.f32.mrf.mxu0
    %v10137 = vadd.f32 0.0, %v10136
    %v10138 = vpop.f32.mrf.mxu0
    %10139 = vmatprep.mubr.bf16.mxu0 0
    %10140 = vmatmul.mubr.bf16.gmra.mxu0 %v9916
    %v10141 = vpop.f32.mrf.mxu0
    %v10142 = vadd.f32 0.0, %v10141
    %v10143 = vpop.f32.mrf.mxu0
    %v10144 = vpop.f32.mrf.mxu0
    %v10145 = vadd.f32 0.0, %v10144
    %v10146 = vpop.f32.mrf.mxu0
    %10147 = vmatprep.mubr.bf16.mxu0 0
    %10148 = vmatmul.mubr.bf16.gmra.mxu0 %v9919
    %v10149 = vpop.f32.mrf.mxu0
    %v10150 = vadd.f32 0.0, %v10149
    %v10151 = vpop.f32.mrf.mxu0
    %v10152 = vpop.f32.mrf.mxu0
    %v10153 = vadd.f32 0.0, %v10152
    %v10154 = vpop.f32.mrf.mxu0
    %10155 = vmatprep.mubr.bf16.mxu0 0
    %10156 = vmatmul.mubr.bf16.gmra.mxu0 %v9922
    %v10157 = vpop.f32.mrf.mxu0
    %v10158 = vadd.f32 0.0, %v10157
    %v10159 = vpop.f32.mrf.mxu0
    %v10160 = vpop.f32.mrf.mxu0
    %v10161 = vadd.f32 0.0, %v10160
    %v10162 = vpop.f32.mrf.mxu0
    %10163 = vmatprep.mubr.bf16.mxu0 0
    %10164 = vmatmul.mubr.bf16.gmra.mxu0 %v9925
    %v10165 = vpop.f32.mrf.mxu0
    %v10166 = vadd.f32 0.0, %v10165
    %v10167 = vpop.f32.mrf.mxu0
    %v10168 = vpop.f32.mrf.mxu0
    %v10169 = vadd.f32 0.0, %v10168
    %v10170 = vpop.f32.mrf.mxu0
    %10171 = vmatprep.mubr.bf16.mxu0 0
    %10172 = vmatmul.mubr.bf16.gmra.mxu0 %v9928
    %v10173 = vpop.f32.mrf.mxu0
    %v10174 = vadd.f32 0.0, %v10173
    %v10175 = vpop.f32.mrf.mxu0
    %v10176 = vpop.f32.mrf.mxu0
    %v10177 = vadd.f32 0.0, %v10176
    %v10178 = vpop.f32.mrf.mxu0
    %10179 = vmatprep.mubr.bf16.mxu0 0
    %10180 = vmatmul.mubr.bf16.gmra.mxu0 %v9931
    %v10181 = vpop.f32.mrf.mxu0
    %v10182 = vadd.f32 0.0, %v10181
    %v10183 = vpop.f32.mrf.mxu0
    %v10184 = vpop.f32.mrf.mxu0
    %v10185 = vadd.f32 0.0, %v10184
    %v10186 = vpop.f32.mrf.mxu0
    %10187 = vmatprep.mubr.bf16.mxu0 0
    %10188 = vmatmul.mubr.bf16.gmra.mxu0 %v9934
    %v10189 = vpop.f32.mrf.mxu0
    %v10190 = vadd.f32 0.0, %v10189
    %v10191 = vpop.f32.mrf.mxu0
    %v10192 = vpop.f32.mrf.mxu0
    %v10193 = vadd.f32 0.0, %v10192
    %v10194 = vpop.f32.mrf.mxu0
    %10195 = vdwg.mxu0
    %v10196 = vadd.f32 %v9547, %v9974
    %v10197 = vadd.f32 %v9548, %v9977
    %v10198 = vadd.f32 %v9549, %v9982
    %v10199 = vadd.f32 %v9550, %v9985
    %v10200 = vadd.f32 %v9551, %v9990
    %v10201 = vadd.f32 %v9552, %v9993
    %v10202 = vadd.f32 %v9553, %v9998
    %v10203 = vadd.f32 %v9554, %v10001
    %v10204 = vadd.f32 %v9555, %v10006
    %v10205 = vadd.f32 %v9556, %v10009
    %v10206 = vadd.f32 %v9557, %v10014
    %v10207 = vadd.f32 %v9558, %v10017
    %v10208 = vadd.f32 %v9559, %v10022
    %v10209 = vadd.f32 %v9560, %v10025
    %v10210 = vadd.f32 %v9561, %v10030
    %v10211 = vadd.f32 %v9562, %v10033
    %v10212 = vadd.f32 %v9563, %v10038
    %v10213 = vadd.f32 %v9564, %v10041
    %v10214 = vadd.f32 %v9565, %v10046
    %v10215 = vadd.f32 %v9566, %v10049
    %v10216 = vadd.f32 %v9567, %v10054
    %v10217 = vadd.f32 %v9568, %v10057
    %v10218 = vadd.f32 %v9569, %v10062
    %v10219 = vadd.f32 %v9570, %v10065
    %v10220 = vadd.f32 %v9571, %v10070
    %v10221 = vadd.f32 %v9572, %v10073
    %v10222 = vadd.f32 %v9573, %v10078
    %v10223 = vadd.f32 %v9574, %v10081
    %v10224 = vadd.f32 %v9575, %v10086
    %v10225 = vadd.f32 %v9576, %v10089
    %v10226 = vadd.f32 %v9577, %v10094
    %v10227 = vadd.f32 %v9578, %v10097
    %v10228 = vadd.f32 %v9579, %v10102
    %v10229 = vadd.f32 %v9580, %v10105
    %v10230 = vadd.f32 %v9581, %v10110
    %v10231 = vadd.f32 %v9582, %v10113
    %v10232 = vadd.f32 %v9583, %v10118
    %v10233 = vadd.f32 %v9584, %v10121
    %v10234 = vadd.f32 %v9585, %v10126
    %v10235 = vadd.f32 %v9586, %v10129
    %v10236 = vadd.f32 %v9587, %v10134
    %v10237 = vadd.f32 %v9588, %v10137
    %v10238 = vadd.f32 %v9589, %v10142
    %v10239 = vadd.f32 %v9590, %v10145
    %v10240 = vadd.f32 %v9591, %v10150
    %v10241 = vadd.f32 %v9592, %v10153
    %v10242 = vadd.f32 %v9593, %v10158
    %v10243 = vadd.f32 %v9594, %v10161
    %v10244 = vadd.f32 %v9595, %v10166
    %v10245 = vadd.f32 %v9596, %v10169
    %v10246 = vadd.f32 %v9597, %v10174
    %v10247 = vadd.f32 %v9598, %v10177
    %v10248 = vadd.f32 %v9599, %v10182
    %v10249 = vadd.f32 %v9600, %v10185
    %v10250 = vadd.f32 %v9601, %v10190
    %v10251 = vadd.f32 %v9602, %v10193
    %10252 = vst [vmem:[#allocation6] sm:$0xff] %v10196
    %10253 = vst [vmem:[#allocation6 + $0x8] sm:$0xff] %v10197
    %10254 = vst [vmem:[#allocation6 + $0x10] sm:$0xff] %v10198
    %10255 = vst [vmem:[#allocation6 + $0x18] sm:$0xff] %v10199
    %10256 = vst [vmem:[#allocation6 + $0x20] sm:$0xff] %v10200
    %10257 = vst [vmem:[#allocation6 + $0x28] sm:$0xff] %v10201
    %10258 = vst [vmem:[#allocation6 + $0x30] sm:$0xff] %v10202
    %10259 = vst [vmem:[#allocation6 + $0x38] sm:$0xff] %v10203
    %10260 = vst [vmem:[#allocation6 + $0x40] sm:$0xff] %v10204
    %10261 = vst [vmem:[#allocation6 + $0x48] sm:$0xff] %v10205
    %10262 = vst [vmem:[#allocation6 + $0x50] sm:$0xff] %v10206
    %10263 = vst [vmem:[#allocation6 + $0x58] sm:$0xff] %v10207
    %10264 = vst [vmem:[#allocation6 + $0x60] sm:$0xff] %v10208
    %10265 = vst [vmem:[#allocation6 + $0x68] sm:$0xff] %v10209
    %10266 = vst [vmem:[#allocation6 + $0x70] sm:$0xff] %v10210
    %10267 = vst [vmem:[#allocation6 + $0x78] sm:$0xff] %v10211
    %10268 = vst [vmem:[#allocation6 + $0x80] sm:$0xff] %v10212
    %10269 = vst [vmem:[#allocation6 + $0x88] sm:$0xff] %v10213
    %10270 = vst [vmem:[#allocation6 + $0x90] sm:$0xff] %v10214
    %10271 = vst [vmem:[#allocation6 + $0x98] sm:$0xff] %v10215
    %10272 = vst [vmem:[#allocation6 + $0xa0] sm:$0xff] %v10216
    %10273 = vst [vmem:[#allocation6 + $0xa8] sm:$0xff] %v10217
    %10274 = vst [vmem:[#allocation6 + $0xb0] sm:$0xff] %v10218
    %10275 = vst [vmem:[#allocation6 + $0xb8] sm:$0xff] %v10219
    %10276 = vst [vmem:[#allocation6 + $0xc0] sm:$0xff] %v10220
    %10277 = vst [vmem:[#allocation6 + $0xc8] sm:$0xff] %v10221
    %10278 = vst [vmem:[#allocation6 + $0xd0] sm:$0xff] %v10222
    %10279 = vst [vmem:[#allocation6 + $0xd8] sm:$0xff] %v10223
    %10280 = vst [vmem:[#allocation6 + $0xe0] sm:$0xff] %v10224
    %10281 = vst [vmem:[#allocation6 + $0xe8] sm:$0xff] %v10225
    %10282 = vst [vmem:[#allocation6 + $0xf0] sm:$0xff] %v10226
    %10283 = vst [vmem:[#allocation6 + $0xf8] sm:$0xff] %v10227
    %10284 = vst [vmem:[#allocation6 + $0x100] sm:$0xff] %v10228
    %10285 = vst [vmem:[#allocation6 + $0x108] sm:$0xff] %v10229
    %10286 = vst [vmem:[#allocation6 + $0x110] sm:$0xff] %v10230
    %10287 = vst [vmem:[#allocation6 + $0x118] sm:$0xff] %v10231
    %10288 = vst [vmem:[#allocation6 + $0x120] sm:$0xff] %v10232
    %10289 = vst [vmem:[#allocation6 + $0x128] sm:$0xff] %v10233
    %10290 = vst [vmem:[#allocation6 + $0x130] sm:$0xff] %v10234
    %10291 = vst [vmem:[#allocation6 + $0x138] sm:$0xff] %v10235
    %10292 = vst [vmem:[#allocation6 + $0x140] sm:$0xff] %v10236
    %10293 = vst [vmem:[#allocation6 + $0x148] sm:$0xff] %v10237
    %10294 = vst [vmem:[#allocation6 + $0x150] sm:$0xff] %v10238
    %10295 = vst [vmem:[#allocation6 + $0x158] sm:$0xff] %v10239
    %10296 = vst [vmem:[#allocation6 + $0x160] sm:$0xff] %v10240
    %10297 = vst [vmem:[#allocation6 + $0x168] sm:$0xff] %v10241
    %10298 = vst [vmem:[#allocation6 + $0x170] sm:$0xff] %v10242
    %10299 = vst [vmem:[#allocation6 + $0x178] sm:$0xff] %v10243
    %10300 = vst [vmem:[#allocation6 + $0x180] sm:$0xff] %v10244
    %10301 = vst [vmem:[#allocation6 + $0x188] sm:$0xff] %v10245
    %10302 = vst [vmem:[#allocation6 + $0x190] sm:$0xff] %v10246
    %10303 = vst [vmem:[#allocation6 + $0x198] sm:$0xff] %v10247
    %10304 = vst [vmem:[#allocation6 + $0x1a0] sm:$0xff] %v10248
    %10305 = vst [vmem:[#allocation6 + $0x1a8] sm:$0xff] %v10249
    %10306 = vst [vmem:[#allocation6 + $0x1b0] sm:$0xff] %v10250
    %10307 = vst [vmem:[#allocation6 + $0x1b8] sm:$0xff] %v10251
    // Predicated region
    $region58: #{tpu_custom_call.1} parent=1 // pred_check
      _
    $region59: #{tpu_custom_call.1} parent=1 // pred_check_branch
      %10309 = sbr.rel (0) target = $region61
    $region60: #{tpu_custom_call.1} parent=1 // pred_region
      %s10311 = ssub.s32 7168, 7168
      %10312 = vsyncadd [#allocation7], %s10311
      %s10313 = sshll.u32 [#allocation6], 4
      %s10314 = int_to_ptr.vmem [resolvable:$true] %s10313
      %10319 = dma.vmem_to_hbm [thread:$0]  %s10314, 7168, %s14, [#allocation7], 128, 128, 8
    $region61: #{tpu_custom_call.1} parent=1 // pred_fallthru
      _
    // Predicated region
    $region62: #{tpu_custom_call.1} parent=1 // pred_check
      _
    $region63: #{tpu_custom_call.1} parent=1 // pred_check_branch
      %10321 = sbr.rel (0) target = $region65
    $region64: #{tpu_custom_call.1} parent=1 // pred_region
      %10322 = dma.done [#allocation7], 7168
    $region65: #{tpu_custom_call.1} parent=1 // pred_fallthru
      _
    %10323 = vsyncpa [#allocation7], 1

</llo_original>
